<compile_context>
chip_gen: v5e
topology: v5e:2x2
jax: 0.10.0
libtpu: 0.0.40
codegen_flags: <defaults>
</compile_context>

<pallas_src>
import math

import jax
import jax.numpy as jnp
from jax.experimental import pallas as pl
from jax.experimental.pallas import tpu as pltpu

# ---- small synthetic Phi-3 config (real model: H=3072, 32 heads, 40 layers) ----
BATCH = 2
SEQ = 128
HIDDEN = 128
NUM_HEADS = 4
HEAD_DIM = HIDDEN // NUM_HEADS           # 32
INTERMEDIATE = 256
VOCAB = 256
NUM_LAYERS = 40                          # the PyTorch module hard-codes 40 DecoderLayerBlocks
RMS_EPS = 1e-5
ROPE_THETA = 10000.0
NEG_INF = -1e30


def _rmsnorm(x, w):
    var = jnp.mean(x * x, axis=-1, keepdims=True)
    return x * jax.lax.rsqrt(var + RMS_EPS) * w


# ---------------------- fused 40-layer decoder stack kernel ----------------------
def decoder_stack_kernel(x0_ref, cos_ref, sin_ref, bias_ref,
                         ln1_ref, wqkv_ref, wo_ref, ln2_ref, wgu_ref, wd_ref,
                         out_ref, xacc_ref):
    layer = pl.program_id(1)

    @pl.when(layer == 0)
    def _():
        xacc_ref[...] = x0_ref[...]

    x = xacc_ref[...]                                      # (1, S, H) f32

    # ------------------------------- attention -------------------------------
    hb = _rmsnorm(x, ln1_ref[...]).astype(jnp.bfloat16)    # (1, S, H) bf16
    cos = cos_ref[...]                                     # (S, H) f32, head-tiled
    sin = sin_ref[...]

    # Fused qkv projection: columns are [q | q_rot | k | k_rot | v]
    qkv = jnp.einsum('bsh,hk->bsk', hb, wqkv_ref[0],
                     preferred_element_type=jnp.float32)   # (1, S, 5H) f32
    q_lin = qkv[:, :, 0 * HIDDEN:1 * HIDDEN]               # 128-lane-aligned slices
    qr_lin = qkv[:, :, 1 * HIDDEN:2 * HIDDEN]
    k_lin = qkv[:, :, 2 * HIDDEN:3 * HIDDEN]
    kr_lin = qkv[:, :, 3 * HIDDEN:4 * HIDDEN]
    v = qkv[:, :, 4 * HIDDEN:5 * HIDDEN]

    # RoPE: rotate_half folded into the column-rotated weight copies -> pure
    # elementwise f32 math (no lane relayouts). Fold softmax scale into q once.
    scale = 1.0 / math.sqrt(HEAD_DIM)
    q = (q_lin * cos + qr_lin * sin) * scale               # (1, S, H) f32
    k = k_lin * cos + kr_lin * sin

    qb = q.astype(jnp.bfloat16)
    kb = k.astype(jnp.bfloat16)
    vb = v.astype(jnp.bfloat16)

    bias = bias_ref[...]                                   # (S, S) additive causal bias

    xa = x                                                 # accumulate attn output onto residual
    for h in range(NUM_HEADS):                             # static 4-way unroll
        sl = slice(h * HEAD_DIM, (h + 1) * HEAD_DIM)       # 32-lane aligned slice
        s = jnp.einsum('bqd,bkd->bqk', qb[:, :, sl], kb[:, :, sl],
                       preferred_element_type=jnp.float32) + bias
        m = jnp.max(s, axis=-1, keepdims=True)
        p = jnp.exp(s - m)
        p = p * pl.reciprocal(jnp.sum(p, axis=-1, keepdims=True), approx=True)
        o = jnp.einsum('bqk,bkd->bqd', p.astype(jnp.bfloat16), vb[:, :, sl],
                       preferred_element_type=jnp.float32)
        # per-head o_proj slab, accumulated -> no lane-dim concatenate of heads
        xa = xa + jnp.einsum('bqd,dh->bqh', o.astype(jnp.bfloat16), wo_ref[0, h],
                             preferred_element_type=jnp.float32)

    # ---------------------------------- MLP ----------------------------------
    h2 = _rmsnorm(xa, ln2_ref[...]).astype(jnp.bfloat16)
    gu = jnp.einsum('bsh,hi->bsi', h2, wgu_ref[0],
                    preferred_element_type=jnp.float32)    # (1, S, 2I): [gate | up]
    g = gu[:, :, :INTERMEDIATE]
    u = gu[:, :, INTERMEDIATE:]
    act = (u * (g * jax.nn.sigmoid(g))).astype(jnp.bfloat16)    # SiLU(gate) * up
    mlp = jnp.einsum('bsi,ih->bsh', act, wd_ref[0],
                     preferred_element_type=jnp.float32)

    x_new = xa + mlp
    xacc_ref[...] = x_new

    @pl.when(layer == pl.num_programs(1) - 1)
    def _():
        out_ref[...] = x_new


def decoder_stack(x0, tables, layers):
    B, S, H = x0.shape

    def wspec(*shape):
        zeros = (0,) * len(shape)
        return pl.BlockSpec((1,) + shape, lambda b, l, _z=zeros: (l,) + _z)

    const3 = pl.BlockSpec((1, S, H), lambda b, l: (b, 0, 0))
    tab = pl.BlockSpec((S, H), lambda b, l: (0, 0))
    bias_spec = pl.BlockSpec((S, S), lambda b, l: (0, 0))

    return pl.pallas_call(
        decoder_stack_kernel,
        out_shape=jax.ShapeDtypeStruct((B, S, H), jnp.float32),
        grid=(B, NUM_LAYERS),
        in_specs=[
            const3,                                  # x0 (initial embeddings)
            tab, tab,                                # cos, sin (head-tiled)
            bias_spec,                               # causal additive bias
            wspec(1, HIDDEN),                        # ln1
            wspec(HIDDEN, 5 * HIDDEN),               # wqkv = [q, q_rot, k, k_rot, v]
            wspec(NUM_HEADS, HEAD_DIM, HIDDEN),      # wo (per-head slabs)
            wspec(1, HIDDEN),                        # ln2
            wspec(HIDDEN, 2 * INTERMEDIATE),         # gate_up = [gate | up]
            wspec(INTERMEDIATE, HIDDEN),             # w_down
        ],
        out_specs=pl.BlockSpec((1, S, H), lambda b, l: (b, 0, 0)),
        scratch_shapes=[pltpu.VMEM((1, S, H), jnp.float32)],
        compiler_params=pltpu.CompilerParams(
            dimension_semantics=("parallel", "arbitrary")),
    )(x0, tables['cos'], tables['sin'], tables['bias'],
      layers['ln1'], layers['wqkv'], layers['wo'], layers['ln2'],
      layers['wgu'], layers['wd'])


# -------------------- final RMSNorm + lm_head + argmax kernel --------------------
def norm_head_kernel(x_ref, norm_w_ref, lm_w_ref, out_ref):
    h = _rmsnorm(x_ref[...], norm_w_ref[...])                    # (B, S, H) f32
    logits = jnp.einsum('bsh,hv->bsv', h.astype(jnp.bfloat16), lm_w_ref[...],
                        preferred_element_type=jnp.float32)      # (B, S, V)
    # torch.argmax first-max-index semantics: max + masked-iota min
    m = jnp.max(logits, axis=-1, keepdims=True)
    iota = jax.lax.broadcasted_iota(jnp.int32, logits.shape, 2)
    out_ref[...] = jnp.min(jnp.where(logits >= m, iota, VOCAB), axis=-1).astype(jnp.int32)


def norm_and_head(x, norm_w, lm_w):
    # TODO(synk): at real vocab size (32064) tile the vocab axis (grid over V) with a
    # running (max, argmax) in scratch instead of materializing the (B, S, V) logits.
    b, s, _ = x.shape
    vmem = pl.BlockSpec(memory_space=pltpu.MemorySpace.VMEM)
    return pl.pallas_call(
        norm_head_kernel,
        out_shape=jax.ShapeDtypeStruct((b, s), jnp.int32),
        in_specs=[vmem, vmem, vmem],
        out_specs=vmem,
    )(x, norm_w, lm_w)


# --------------------------------- glue (plain JAX) ---------------------------------
def build_tables():
    inv_freq = 1.0 / (ROPE_THETA ** (jnp.arange(0, HEAD_DIM, 2, dtype=jnp.float32)
                                     / HEAD_DIM))
    pos = jnp.arange(SEQ, dtype=jnp.float32)
    freqs = pos[:, None] * inv_freq[None, :]                     # (S, HEAD_DIM//2)
    emb = jnp.concatenate([freqs, freqs], axis=-1)               # (S, HEAD_DIM)
    cos = jnp.tile(jnp.cos(emb), (1, NUM_HEADS))                 # (S, H), head-tiled
    sin = jnp.tile(jnp.sin(emb), (1, NUM_HEADS))
    row = jax.lax.broadcasted_iota(jnp.int32, (SEQ, SEQ), 0)
    col = jax.lax.broadcasted_iota(jnp.int32, (SEQ, SEQ), 1)
    bias = jnp.where(col <= row, 0.0, NEG_INF).astype(jnp.float32)
    return {'cos': cos, 'sin': sin, 'bias': bias}


def _rotate_half_cols(w):
    """Fold the RoPE rotate_half output permutation (per head) into weight columns."""
    shp = w.shape
    wr = w.reshape(shp[:-1] + (NUM_HEADS, HEAD_DIM))
    half = HEAD_DIM // 2
    wr = jnp.concatenate([-wr[..., half:], wr[..., :half]], axis=-1)
    return wr.reshape(shp)


def init_params(key):
    ks = jax.random.split(key, 10)

    def nrm(k, shape):
        return 0.02 * jax.random.normal(k, shape, dtype=jnp.float32)

    bf = jnp.bfloat16
    wq = nrm(ks[0], (NUM_LAYERS, HIDDEN, HIDDEN))
    wk = nrm(ks[1], (NUM_LAYERS, HIDDEN, HIDDEN))
    wv = nrm(ks[2], (NUM_LAYERS, HIDDEN, HIDDEN))
    wg = nrm(ks[4], (NUM_LAYERS, HIDDEN, INTERMEDIATE))
    wu = nrm(ks[5], (NUM_LAYERS, HIDDEN, INTERMEDIATE))

    # Fused projection slabs (stacked along the output/lane axis).
    wqkv = jnp.concatenate(
        [wq, _rotate_half_cols(wq), wk, _rotate_half_cols(wk), wv], axis=-1)
    wgu = jnp.concatenate([wg, wu], axis=-1)

    layers = {
        'ln1':  jnp.ones((NUM_LAYERS, 1, HIDDEN), jnp.float32),
        'ln2':  jnp.ones((NUM_LAYERS, 1, HIDDEN), jnp.float32),
        'wqkv': wqkv.astype(bf),                                  # (L, H, 5H)
        'wo':   nrm(ks[3], (NUM_LAYERS, NUM_HEADS, HEAD_DIM, HIDDEN)).astype(bf),
        'wgu':  wgu.astype(bf),                                   # (L, H, 2I)
        'wd':   nrm(ks[6], (NUM_LAYERS, INTERMEDIATE, HIDDEN)).astype(bf),
    }
    return {
        'embed':  nrm(ks[7], (VOCAB, HIDDEN)),
        'layers': layers,
        'norm_w': jnp.ones((1, HIDDEN), jnp.float32),
        'lm_w':   nrm(ks[8], (HIDDEN, VOCAB)).astype(bf),
        'tables': build_tables(),
    }


@jax.jit
def phi3_blockwise_forward(input_ids, params):
    # embed_tokens + embed_dropout (identity at inference); gather stays in plain JAX.
    x = jnp.take(params['embed'], input_ids, axis=0)             # (B, S, H) f32
    # 40 DecoderLayerBlocks fused into one grid-over-layers pallas_call
    x = decoder_stack(x, params['tables'], params['layers'])
    # NormalizationBlock + OutputBlock (lm_head + argmax)
    return norm_and_head(x, params['norm_w'], params['lm_w'])


if __name__ == "__main__":
    key = jax.random.PRNGKey(0)
    pkey, dkey = jax.random.split(key)
    params = init_params(pkey)
    input_ids = jax.random.randint(dkey, (BATCH, SEQ), 0, VOCAB, dtype=jnp.int32)

    token_ids = phi3_blockwise_forward(input_ids, params)
    jax.block_until_ready(token_ids)

    assert token_ids.shape == (BATCH, SEQ)
    assert token_ids.dtype == jnp.int32
    print("KERNEL_OK")
</pallas_src>

<mosaic_0001>
module attributes {stable_mosaic.version = 11 : i64} {
  func.func @norm_head_kernel(%arg0: memref<2x128x128xf32, #tpu.memory_space<vmem>>, %arg1: memref<1x128xf32, #tpu.memory_space<vmem>>, %arg2: memref<128x256xbf16, #tpu.memory_space<vmem>>, %arg3: memref<2x128xi32, #tpu.memory_space<vmem>>) attributes {dimension_semantics = [], scalar_prefetch = 0 : i64, scratch_operands = 0 : i64, tpu.core_type = #tpu.core_type<tc>} {
    %c0 = arith.constant 0 : index
    %c0_0 = arith.constant 0 : index
    %c0_1 = arith.constant 0 : index
    %0 = vector.load %arg0[%c0, %c0_0, %c0_1] : memref<2x128x128xf32, #tpu.memory_space<vmem>>, vector<2x128x128xf32>
    %c0_2 = arith.constant 0 : index
    %c0_3 = arith.constant 0 : index
    %1 = vector.load %arg1[%c0_2, %c0_3] : memref<1x128xf32, #tpu.memory_space<vmem>>, vector<1x128xf32>
    %2 = arith.mulf %0, %0 : vector<2x128x128xf32>
    %cst = arith.constant dense<0.000000e+00> : vector<2x128xf32>
    %3 = vector.multi_reduction <add>, %2, %cst [2] : vector<2x128x128xf32> to vector<2x128xf32>
    %4 = vector.shape_cast %3 : vector<2x128xf32> to vector<2x128x1xf32>
    %cst_4 = arith.constant 1.280000e+02 : f32
    %5 = vector.broadcast %cst_4 : f32 to vector<2x128x1xf32>
    %6 = arith.divf %4, %5 : vector<2x128x1xf32>
    %cst_5 = arith.constant 9.99999974E-6 : f32
    %7 = vector.broadcast %cst_5 : f32 to vector<2x128x1xf32>
    %8 = arith.addf %6, %7 : vector<2x128x1xf32>
    %9 = math.rsqrt %8 : vector<2x128x1xf32>
    %10 = vector.broadcast %9 : vector<2x128x1xf32> to vector<2x128x128xf32>
    %11 = arith.mulf %0, %10 : vector<2x128x128xf32>
    %12 = vector.shape_cast %1 : vector<1x128xf32> to vector<1x1x128xf32>
    %13 = vector.broadcast %12 : vector<1x1x128xf32> to vector<2x128x128xf32>
    %14 = arith.mulf %11, %13 : vector<2x128x128xf32>
    %15 = arith.truncf %14 : vector<2x128x128xf32> to vector<2x128x128xbf16>
    %c0_6 = arith.constant 0 : index
    %c0_7 = arith.constant 0 : index
    %16 = vector.load %arg2[%c0_6, %c0_7] : memref<128x256xbf16, #tpu.memory_space<vmem>>, vector<128x256xbf16>
    "tpu.trace_start"() <{level = 10 : i32, message = "bsh,hv->bsv"}> : () -> ()
    %cst_8 = arith.constant dense<0.000000e+00> : vector<2x128x256xf32>
    %17 = tpu.matmul %15, %16, %cst_8 {dimension_numbers = #tpu.dot_dimension_numbers<[2], [0], [0, 1], [1], [0, 0, 0, 1, 1, 1], [], []>} : vector<2x128x128xbf16>, vector<128x256xbf16>, vector<2x128x256xf32> -> vector<2x128x256xf32>
    "tpu.trace_stop"() : () -> ()
    %cst_9 = arith.constant dense<0xFF800000> : vector<2x128xf32>
    %18 = vector.multi_reduction <maximumf>, %17, %cst_9 [2] : vector<2x128x256xf32> to vector<2x128xf32>
    %19 = vector.shape_cast %18 : vector<2x128xf32> to vector<2x128x1xf32>
    %20 = tpu.iota {dimensions = array<i32: 2>} : vector<2x128x256xi32>
    %21 = vector.broadcast %19 : vector<2x128x1xf32> to vector<2x128x256xf32>
    %22 = arith.cmpf oge, %17, %21 : vector<2x128x256xf32>
    %c256_i32 = arith.constant 256 : i32
    %23 = vector.broadcast %c256_i32 : i32 to vector<2x128x256xi32>
    %24 = arith.select %22, %20, %23 : vector<2x128x256xi1>, vector<2x128x256xi32>
    %cst_10 = arith.constant dense<2147483647> : vector<2x128xi32>
    %25 = vector.multi_reduction <minsi>, %24, %cst_10 [2] : vector<2x128x256xi32> to vector<2x128xi32>
    %c0_11 = arith.constant 0 : index
    %c0_12 = arith.constant 0 : index
    %26 = vector.load %arg3[%c0_11, %c0_12] : memref<2x128xi32, #tpu.memory_space<vmem>>, vector<2x128xi32>
    tpu.vector_store %arg3[%c0_11, %c0_12], %25 {strides = array<i32>} : memref<2x128xi32, #tpu.memory_space<vmem>>, vector<2x128xi32>,
    return
  }
}

module attributes {stable_mosaic.version = 11 : i64} {
  func.func @decoder_stack_kernel(%arg0: i32, %arg1: i32, %arg2: memref<1x128x128xf32, #tpu.memory_space<vmem>>, %arg3: memref<128x128xf32, #tpu.memory_space<vmem>>, %arg4: memref<128x128xf32, #tpu.memory_space<vmem>>, %arg5: memref<128x128xf32, #tpu.memory_space<vmem>>, %arg6: memref<1x1x128xf32, #tpu.memory_space<vmem>>, %arg7: memref<1x128x640xbf16, #tpu.memory_space<vmem>>, %arg8: memref<1x4x32x128xbf16, #tpu.memory_space<vmem>>, %arg9: memref<1x1x128xf32, #tpu.memory_space<vmem>>, %arg10: memref<1x128x512xbf16, #tpu.memory_space<vmem>>, %arg11: memref<1x256x128xbf16, #tpu.memory_space<vmem>>, %arg12: memref<1x128x128xf32, #tpu.memory_space<vmem>>, %arg13: memref<1x128x128xf32, #tpu.memory_space<vmem>>) attributes {dimension_semantics = [#tpu.dimension_semantics<parallel>, #tpu.dimension_semantics<arbitrary>], iteration_bounds = array<i64: 2, 40>, scalar_prefetch = 0 : i64, scratch_operands = 1 : i64, tpu.core_type = #tpu.core_type<tc>, window_params = [{transform_indices = @transform_0, window_bounds = array<i64: 1, 128, 128>}, {pipeline_mode = #tpu.pipeline_mode<synchronous>, transform_indices = @transform_1, window_bounds = array<i64: 128, 128>}, {pipeline_mode = #tpu.pipeline_mode<synchronous>, transform_indices = @transform_2, window_bounds = array<i64: 128, 128>}, {pipeline_mode = #tpu.pipeline_mode<synchronous>, transform_indices = @transform_3, window_bounds = array<i64: 128, 128>}, {transform_indices = @transform_4, window_bounds = array<i64: 1, 1, 128>}, {transform_indices = @transform_5, window_bounds = array<i64: 1, 128, 640>}, {transform_indices = @transform_6, window_bounds = array<i64: 1, 4, 32, 128>}, {transform_indices = @transform_7, window_bounds = array<i64: 1, 1, 128>}, {transform_indices = @transform_8, window_bounds = array<i64: 1, 128, 512>}, {transform_indices = @transform_9, window_bounds = array<i64: 1, 256, 128>}, {transform_indices = @transform_10, window_bounds = array<i64: 1, 128, 128>}]} {
    %c0_i32 = arith.constant 0 : i32
    %0 = arith.cmpi eq, %arg1, %c0_i32 : i32
    %1 = arith.extui %0 : i1 to i32
    %c0_i32_0 = arith.constant 0 : i32
    %2 = arith.cmpi ne, %1, %c0_i32_0 : i32
    scf.if %2 {
      %c0_71 = arith.constant 0 : index
      %c0_72 = arith.constant 0 : index
      %c0_73 = arith.constant 0 : index
      %171 = vector.load %arg2[%c0_71, %c0_72, %c0_73] : memref<1x128x128xf32, #tpu.memory_space<vmem>>, vector<1x128x128xf32>
      %c0_74 = arith.constant 0 : index
      %c0_75 = arith.constant 0 : index
      %c0_76 = arith.constant 0 : index
      %172 = vector.load %arg13[%c0_74, %c0_75, %c0_76] : memref<1x128x128xf32, #tpu.memory_space<vmem>>, vector<1x128x128xf32>
      tpu.vector_store %arg13[%c0_74, %c0_75, %c0_76], %171 {strides = array<i32>} : memref<1x128x128xf32, #tpu.memory_space<vmem>>, vector<1x128x128xf32>,
    } else {
    }
    %c0 = arith.constant 0 : index
    %c0_1 = arith.constant 0 : index
    %c0_2 = arith.constant 0 : index
    %3 = vector.load %arg13[%c0, %c0_1, %c0_2] : memref<1x128x128xf32, #tpu.memory_space<vmem>>, vector<1x128x128xf32>
    %c0_3 = arith.constant 0 : index
    %c0_4 = arith.constant 0 : index
    %c0_5 = arith.constant 0 : index
    %4 = vector.load %arg6[%c0_3, %c0_4, %c0_5] : memref<1x1x128xf32, #tpu.memory_space<vmem>>, vector<1x1x128xf32>
    %5 = arith.mulf %3, %3 : vector<1x128x128xf32>
    %cst = arith.constant dense<0.000000e+00> : vector<1x128xf32>
    %6 = vector.multi_reduction <add>, %5, %cst [2] : vector<1x128x128xf32> to vector<1x128xf32>
    %7 = vector.shape_cast %6 : vector<1x128xf32> to vector<1x128x1xf32>
    %cst_6 = arith.constant 1.280000e+02 : f32
    %8 = vector.broadcast %cst_6 : f32 to vector<1x128x1xf32>
    %9 = arith.divf %7, %8 : vector<1x128x1xf32>
    %cst_7 = arith.constant 9.99999974E-6 : f32
    %10 = vector.broadcast %cst_7 : f32 to vector<1x128x1xf32>
    %11 = arith.addf %9, %10 : vector<1x128x1xf32>
    %12 = math.rsqrt %11 : vector<1x128x1xf32>
    %13 = vector.broadcast %12 : vector<1x128x1xf32> to vector<1x128x128xf32>
    %14 = arith.mulf %3, %13 : vector<1x128x128xf32>
    %15 = vector.broadcast %4 : vector<1x1x128xf32> to vector<1x128x128xf32>
    %16 = arith.mulf %14, %15 : vector<1x128x128xf32>
    %17 = arith.truncf %16 : vector<1x128x128xf32> to vector<1x128x128xbf16>
    %c0_8 = arith.constant 0 : index
    %c0_9 = arith.constant 0 : index
    %18 = vector.load %arg3[%c0_8, %c0_9] : memref<128x128xf32, #tpu.memory_space<vmem>>, vector<128x128xf32>
    %c0_10 = arith.constant 0 : index
    %c0_11 = arith.constant 0 : index
    %19 = vector.load %arg4[%c0_10, %c0_11] : memref<128x128xf32, #tpu.memory_space<vmem>>, vector<128x128xf32>
    %c0_12 = arith.constant 0 : index
    %c0_13 = arith.constant 0 : index
    %c0_14 = arith.constant 0 : index
    %20 = vector.load %arg7[%c0_12, %c0_13, %c0_14] : memref<1x128x640xbf16, #tpu.memory_space<vmem>>, vector<1x128x640xbf16>
    %21 = vector.shape_cast %20 : vector<1x128x640xbf16> to vector<128x640xbf16>
    "tpu.trace_start"() <{level = 10 : i32, message = "bsh,hk->bsk"}> : () -> ()
    %cst_15 = arith.constant dense<0.000000e+00> : vector<1x128x640xf32>
    %22 = tpu.matmul %17, %21, %cst_15 {dimension_numbers = #tpu.dot_dimension_numbers<[2], [0], [0, 1], [1], [0, 0, 0, 1, 1, 1], [], []>} : vector<1x128x128xbf16>, vector<128x640xbf16>, vector<1x128x640xf32> -> vector<1x128x640xf32>
    "tpu.trace_stop"() : () -> ()
    %23 = vector.extract_strided_slice %22 {offsets = [0, 0, 0], sizes = [1, 128, 128], strides = [1, 1, 1]} : vector<1x128x640xf32> to vector<1x128x128xf32>
    %24 = vector.extract_strided_slice %22 {offsets = [0, 0, 128], sizes = [1, 128, 128], strides = [1, 1, 1]} : vector<1x128x640xf32> to vector<1x128x128xf32>
    %25 = vector.extract_strided_slice %22 {offsets = [0, 0, 256], sizes = [1, 128, 128], strides = [1, 1, 1]} : vector<1x128x640xf32> to vector<1x128x128xf32>
    %26 = vector.extract_strided_slice %22 {offsets = [0, 0, 384], sizes = [1, 128, 128], strides = [1, 1, 1]} : vector<1x128x640xf32> to vector<1x128x128xf32>
    %27 = vector.extract_strided_slice %22 {offsets = [0, 0, 512], sizes = [1, 128, 128], strides = [1, 1, 1]} : vector<1x128x640xf32> to vector<1x128x128xf32>
    %28 = vector.shape_cast %18 : vector<128x128xf32> to vector<1x128x128xf32>
    %29 = arith.mulf %23, %28 : vector<1x128x128xf32>
    %30 = vector.shape_cast %19 : vector<128x128xf32> to vector<1x128x128xf32>
    %31 = arith.mulf %24, %30 : vector<1x128x128xf32>
    %32 = arith.addf %29, %31 : vector<1x128x128xf32>
    %cst_16 = arith.constant 0.176776692 : f32
    %33 = vector.broadcast %cst_16 : f32 to vector<1x128x128xf32>
    %34 = arith.mulf %32, %33 : vector<1x128x128xf32>
    %35 = vector.shape_cast %18 : vector<128x128xf32> to vector<1x128x128xf32>
    %36 = arith.mulf %25, %35 : vector<1x128x128xf32>
    %37 = vector.shape_cast %19 : vector<128x128xf32> to vector<1x128x128xf32>
    %38 = arith.mulf %26, %37 : vector<1x128x128xf32>
    %39 = arith.addf %36, %38 : vector<1x128x128xf32>
    %40 = arith.truncf %34 : vector<1x128x128xf32> to vector<1x128x128xbf16>
    %41 = arith.truncf %39 : vector<1x128x128xf32> to vector<1x128x128xbf16>
    %42 = arith.truncf %27 : vector<1x128x128xf32> to vector<1x128x128xbf16>
    %c0_17 = arith.constant 0 : index
    %c0_18 = arith.constant 0 : index
    %43 = vector.load %arg5[%c0_17, %c0_18] : memref<128x128xf32, #tpu.memory_space<vmem>>, vector<128x128xf32>
    %44 = vector.extract_strided_slice %40 {offsets = [0, 0, 0], sizes = [1, 128, 32], strides = [1, 1, 1]} : vector<1x128x128xbf16> to vector<1x128x32xbf16>
    %45 = vector.extract_strided_slice %41 {offsets = [0, 0, 0], sizes = [1, 128, 32], strides = [1, 1, 1]} : vector<1x128x128xbf16> to vector<1x128x32xbf16>
    "tpu.trace_start"() <{level = 10 : i32, message = "bqd,bkd->bqk"}> : () -> ()
    %cst_19 = arith.constant dense<0.000000e+00> : vector<1x128x128xf32>
    %46 = tpu.matmul %44, %45, %cst_19 {dimension_numbers = #tpu.dot_dimension_numbers<[2], [2], [1], [1], [0, 0, 0, 1, 1, 1], [0], [0]>} : vector<1x128x32xbf16>, vector<1x128x32xbf16>, vector<1x128x128xf32> -> vector<1x128x128xf32>
    "tpu.trace_stop"() : () -> ()
    %47 = vector.shape_cast %43 : vector<128x128xf32> to vector<1x128x128xf32>
    %48 = arith.addf %46, %47 : vector<1x128x128xf32>
    %cst_20 = arith.constant dense<0xFF800000> : vector<1x128xf32>
    %49 = vector.multi_reduction <maximumf>, %48, %cst_20 [2] : vector<1x128x128xf32> to vector<1x128xf32>
    %50 = vector.shape_cast %49 : vector<1x128xf32> to vector<1x128x1xf32>
    %51 = vector.broadcast %50 : vector<1x128x1xf32> to vector<1x128x128xf32>
    %52 = arith.subf %48, %51 : vector<1x128x128xf32>
    %53 = math.exp %52 : vector<1x128x128xf32>
    %cst_21 = arith.constant dense<0.000000e+00> : vector<1x128xf32>
    %54 = vector.multi_reduction <add>, %53, %cst_21 [2] : vector<1x128x128xf32> to vector<1x128xf32>
    %55 = vector.shape_cast %54 : vector<1x128xf32> to vector<1x128x1xf32>
    %56 = tpu.reciprocal %55 {approx = true} : vector<1x128x1xf32> -> vector<1x128x1xf32>
    %57 = vector.broadcast %56 : vector<1x128x1xf32> to vector<1x128x128xf32>
    %58 = arith.mulf %53, %57 : vector<1x128x128xf32>
    %59 = arith.truncf %58 : vector<1x128x128xf32> to vector<1x128x128xbf16>
    %60 = vector.extract_strided_slice %42 {offsets = [0, 0, 0], sizes = [1, 128, 32], strides = [1, 1, 1]} : vector<1x128x128xbf16> to vector<1x128x32xbf16>
    "tpu.trace_start"() <{level = 10 : i32, message = "bqk,bkd->bqd"}> : () -> ()
    %cst_22 = arith.constant dense<0.000000e+00> : vector<1x128x32xf32>
    %61 = tpu.matmul %59, %60, %cst_22 {dimension_numbers = #tpu.dot_dimension_numbers<[2], [1], [1], [2], [0, 0, 0, 1, 1, 2], [0], [0]>} : vector<1x128x128xbf16>, vector<1x128x32xbf16>, vector<1x128x32xf32> -> vector<1x128x32xf32>
    "tpu.trace_stop"() : () -> ()
    %62 = arith.truncf %61 : vector<1x128x32xf32> to vector<1x128x32xbf16>
    %c0_23 = arith.constant 0 : index
    %c0_24 = arith.constant 0 : index
    %c0_25 = arith.constant 0 : index
    %c0_26 = arith.constant 0 : index
    %63 = vector.load %arg8[%c0_23, %c0_24, %c0_25, %c0_26] : memref<1x4x32x128xbf16, #tpu.memory_space<vmem>>, vector<1x1x32x128xbf16>
    %64 = vector.shape_cast %63 : vector<1x1x32x128xbf16> to vector<32x128xbf16>
    "tpu.trace_start"() <{level = 10 : i32, message = "bqd,dh->bqh"}> : () -> ()
    %cst_27 = arith.constant dense<0.000000e+00> : vector<1x128x128xf32>
    %65 = tpu.matmul %62, %64, %cst_27 {dimension_numbers = #tpu.dot_dimension_numbers<[2], [0], [0, 1], [1], [0, 0, 0, 1, 1, 1], [], []>} : vector<1x128x32xbf16>, vector<32x128xbf16>, vector<1x128x128xf32> -> vector<1x128x128xf32>
    "tpu.trace_stop"() : () -> ()
    %66 = arith.addf %3, %65 : vector<1x128x128xf32>
    %67 = vector.extract_strided_slice %40 {offsets = [0, 0, 32], sizes = [1, 128, 32], strides = [1, 1, 1]} : vector<1x128x128xbf16> to vector<1x128x32xbf16>
    %68 = vector.extract_strided_slice %41 {offsets = [0, 0, 32], sizes = [1, 128, 32], strides = [1, 1, 1]} : vector<1x128x128xbf16> to vector<1x128x32xbf16>
    "tpu.trace_start"() <{level = 10 : i32, message = "bqd,bkd->bqk"}> : () -> ()
    %cst_28 = arith.constant dense<0.000000e+00> : vector<1x128x128xf32>
    %69 = tpu.matmul %67, %68, %cst_28 {dimension_numbers = #tpu.dot_dimension_numbers<[2], [2], [1], [1], [0, 0, 0, 1, 1, 1], [0], [0]>} : vector<1x128x32xbf16>, vector<1x128x32xbf16>, vector<1x128x128xf32> -> vector<1x128x128xf32>
    "tpu.trace_stop"() : () -> ()
    %70 = vector.shape_cast %43 : vector<128x128xf32> to vector<1x128x128xf32>
    %71 = arith.addf %69, %70 : vector<1x128x128xf32>
    %cst_29 = arith.constant dense<0xFF800000> : vector<1x128xf32>
    %72 = vector.multi_reduction <maximumf>, %71, %cst_29 [2] : vector<1x128x128xf32> to vector<1x128xf32>
    %73 = vector.shape_cast %72 : vector<1x128xf32> to vector<1x128x1xf32>
    %74 = vector.broadcast %73 : vector<1x128x1xf32> to vector<1x128x128xf32>
    %75 = arith.subf %71, %74 : vector<1x128x128xf32>
    %76 = math.exp %75 : vector<1x128x128xf32>
    %cst_30 = arith.constant dense<0.000000e+00> : vector<1x128xf32>
    %77 = vector.multi_reduction <add>, %76, %cst_30 [2] : vector<1x128x128xf32> to vector<1x128xf32>
    %78 = vector.shape_cast %77 : vector<1x128xf32> to vector<1x128x1xf32>
    %79 = tpu.reciprocal %78 {approx = true} : vector<1x128x1xf32> -> vector<1x128x1xf32>
    %80 = vector.broadcast %79 : vector<1x128x1xf32> to vector<1x128x128xf32>
    %81 = arith.mulf %76, %80 : vector<1x128x128xf32>
    %82 = arith.truncf %81 : vector<1x128x128xf32> to vector<1x128x128xbf16>
    %83 = vector.extract_strided_slice %42 {offsets = [0, 0, 32], sizes = [1, 128, 32], strides = [1, 1, 1]} : vector<1x128x128xbf16> to vector<1x128x32xbf16>
    "tpu.trace_start"() <{level = 10 : i32, message = "bqk,bkd->bqd"}> : () -> ()
    %cst_31 = arith.constant dense<0.000000e+00> : vector<1x128x32xf32>
    %84 = tpu.matmul %82, %83, %cst_31 {dimension_numbers = #tpu.dot_dimension_numbers<[2], [1], [1], [2], [0, 0, 0, 1, 1, 2], [0], [0]>} : vector<1x128x128xbf16>, vector<1x128x32xbf16>, vector<1x128x32xf32> -> vector<1x128x32xf32>
    "tpu.trace_stop"() : () -> ()
    %85 = arith.truncf %84 : vector<1x128x32xf32> to vector<1x128x32xbf16>
    %c0_32 = arith.constant 0 : index
    %c1 = arith.constant 1 : index
    %c0_33 = arith.constant 0 : index
    %c0_34 = arith.constant 0 : index
    %86 = vector.load %arg8[%c0_32, %c1, %c0_33, %c0_34] : memref<1x4x32x128xbf16, #tpu.memory_space<vmem>>, vector<1x1x32x128xbf16>
    %87 = vector.shape_cast %86 : vector<1x1x32x128xbf16> to vector<32x128xbf16>
    "tpu.trace_start"() <{level = 10 : i32, message = "bqd,dh->bqh"}> : () -> ()
    %cst_35 = arith.constant dense<0.000000e+00> : vector<1x128x128xf32>
    %88 = tpu.matmul %85, %87, %cst_35 {dimension_numbers = #tpu.dot_dimension_numbers<[2], [0], [0, 1], [1], [0, 0, 0, 1, 1, 1], [], []>} : vector<1x128x32xbf16>, vector<32x128xbf16>, vector<1x128x128xf32> -> vector<1x128x128xf32>
    "tpu.trace_stop"() : () -> ()
    %89 = arith.addf %66, %88 : vector<1x128x128xf32>
    %90 = vector.extract_strided_slice %40 {offsets = [0, 0, 64], sizes = [1, 128, 32], strides = [1, 1, 1]} : vector<1x128x128xbf16> to vector<1x128x32xbf16>
    %91 = vector.extract_strided_slice %41 {offsets = [0, 0, 64], sizes = [1, 128, 32], strides = [1, 1, 1]} : vector<1x128x128xbf16> to vector<1x128x32xbf16>
    "tpu.trace_start"() <{level = 10 : i32, message = "bqd,bkd->bqk"}> : () -> ()
    %cst_36 = arith.constant dense<0.000000e+00> : vector<1x128x128xf32>
    %92 = tpu.matmul %90, %91, %cst_36 {dimension_numbers = #tpu.dot_dimension_numbers<[2], [2], [1], [1], [0, 0, 0, 1, 1, 1], [0], [0]>} : vector<1x128x32xbf16>, vector<1x128x32xbf16>, vector<1x128x128xf32> -> vector<1x128x128xf32>
    "tpu.trace_stop"() : () -> ()
    %93 = vector.shape_cast %43 : vector<128x128xf32> to vector<1x128x128xf32>
    %94 = arith.addf %92, %93 : vector<1x128x128xf32>
    %cst_37 = arith.constant dense<0xFF800000> : vector<1x128xf32>
    %95 = vector.multi_reduction <maximumf>, %94, %cst_37 [2] : vector<1x128x128xf32> to vector<1x128xf32>
    %96 = vector.shape_cast %95 : vector<1x128xf32> to vector<1x128x1xf32>
    %97 = vector.broadcast %96 : vector<1x128x1xf32> to vector<1x128x128xf32>
    %98 = arith.subf %94, %97 : vector<1x128x128xf32>
    %99 = math.exp %98 : vector<1x128x128xf32>
    %cst_38 = arith.constant dense<0.000000e+00> : vector<1x128xf32>
    %100 = vector.multi_reduction <add>, %99, %cst_38 [2] : vector<1x128x128xf32> to vector<1x128xf32>
    %101 = vector.shape_cast %100 : vector<1x128xf32> to vector<1x128x1xf32>
    %102 = tpu.reciprocal %101 {approx = true} : vector<1x128x1xf32> -> vector<1x128x1xf32>
    %103 = vector.broadcast %102 : vector<1x128x1xf32> to vector<1x128x128xf32>
    %104 = arith.mulf %99, %103 : vector<1x128x128xf32>
    %105 = arith.truncf %104 : vector<1x128x128xf32> to vector<1x128x128xbf16>
    %106 = vector.extract_strided_slice %42 {offsets = [0, 0, 64], sizes = [1, 128, 32], strides = [1, 1, 1]} : vector<1x128x128xbf16> to vector<1x128x32xbf16>
    "tpu.trace_start"() <{level = 10 : i32, message = "bqk,bkd->bqd"}> : () -> ()
    %cst_39 = arith.constant dense<0.000000e+00> : vector<1x128x32xf32>
    %107 = tpu.matmul %105, %106, %cst_39 {dimension_numbers = #tpu.dot_dimension_numbers<[2], [1], [1], [2], [0, 0, 0, 1, 1, 2], [0], [0]>} : vector<1x128x128xbf16>, vector<1x128x32xbf16>, vector<1x128x32xf32> -> vector<1x128x32xf32>
    "tpu.trace_stop"() : () -> ()
    %108 = arith.truncf %107 : vector<1x128x32xf32> to vector<1x128x32xbf16>
    %c0_40 = arith.constant 0 : index
    %c2 = arith.constant 2 : index
    %c0_41 = arith.constant 0 : index
    %c0_42 = arith.constant 0 : index
    %109 = vector.load %arg8[%c0_40, %c2, %c0_41, %c0_42] : memref<1x4x32x128xbf16, #tpu.memory_space<vmem>>, vector<1x1x32x128xbf16>
    %110 = vector.shape_cast %109 : vector<1x1x32x128xbf16> to vector<32x128xbf16>
    "tpu.trace_start"() <{level = 10 : i32, message = "bqd,dh->bqh"}> : () -> ()
    %cst_43 = arith.constant dense<0.000000e+00> : vector<1x128x128xf32>
    %111 = tpu.matmul %108, %110, %cst_43 {dimension_numbers = #tpu.dot_dimension_numbers<[2], [0], [0, 1], [1], [0, 0, 0, 1, 1, 1], [], []>} : vector<1x128x32xbf16>, vector<32x128xbf16>, vector<1x128x128xf32> -> vector<1x128x128xf32>
    "tpu.trace_stop"() : () -> ()
    %112 = arith.addf %89, %111 : vector<1x128x128xf32>
    %113 = vector.extract_strided_slice %40 {offsets = [0, 0, 96], sizes = [1, 128, 32], strides = [1, 1, 1]} : vector<1x128x128xbf16> to vector<1x128x32xbf16>
    %114 = vector.extract_strided_slice %41 {offsets = [0, 0, 96], sizes = [1, 128, 32], strides = [1, 1, 1]} : vector<1x128x128xbf16> to vector<1x128x32xbf16>
    "tpu.trace_start"() <{level = 10 : i32, message = "bqd,bkd->bqk"}> : () -> ()
    %cst_44 = arith.constant dense<0.000000e+00> : vector<1x128x128xf32>
    %115 = tpu.matmul %113, %114, %cst_44 {dimension_numbers = #tpu.dot_dimension_numbers<[2], [2], [1], [1], [0, 0, 0, 1, 1, 1], [0], [0]>} : vector<1x128x32xbf16>, vector<1x128x32xbf16>, vector<1x128x128xf32> -> vector<1x128x128xf32>
    "tpu.trace_stop"() : () -> ()
    %116 = vector.shape_cast %43 : vector<128x128xf32> to vector<1x128x128xf32>
    %117 = arith.addf %115, %116 : vector<1x128x128xf32>
    %cst_45 = arith.constant dense<0xFF800000> : vector<1x128xf32>
    %118 = vector.multi_reduction <maximumf>, %117, %cst_45 [2] : vector<1x128x128xf32> to vector<1x128xf32>
    %119 = vector.shape_cast %118 : vector<1x128xf32> to vector<1x128x1xf32>
    %120 = vector.broadcast %119 : vector<1x128x1xf32> to vector<1x128x128xf32>
    %121 = arith.subf %117, %120 : vector<1x128x128xf32>
    %122 = math.exp %121 : vector<1x128x128xf32>
    %cst_46 = arith.constant dense<0.000000e+00> : vector<1x128xf32>
    %123 = vector.multi_reduction <add>, %122, %cst_46 [2] : vector<1x128x128xf32> to vector<1x128xf32>
    %124 = vector.shape_cast %123 : vector<1x128xf32> to vector<1x128x1xf32>
    %125 = tpu.reciprocal %124 {approx = true} : vector<1x128x1xf32> -> vector<1x128x1xf32>
    %126 = vector.broadcast %125 : vector<1x128x1xf32> to vector<1x128x128xf32>
    %127 = arith.mulf %122, %126 : vector<1x128x128xf32>
    %128 = arith.truncf %127 : vector<1x128x128xf32> to vector<1x128x128xbf16>
    %129 = vector.extract_strided_slice %42 {offsets = [0, 0, 96], sizes = [1, 128, 32], strides = [1, 1, 1]} : vector<1x128x128xbf16> to vector<1x128x32xbf16>
    "tpu.trace_start"() <{level = 10 : i32, message = "bqk,bkd->bqd"}> : () -> ()
    %cst_47 = arith.constant dense<0.000000e+00> : vector<1x128x32xf32>
    %130 = tpu.matmul %128, %129, %cst_47 {dimension_numbers = #tpu.dot_dimension_numbers<[2], [1], [1], [2], [0, 0, 0, 1, 1, 2], [0], [0]>} : vector<1x128x128xbf16>, vector<1x128x32xbf16>, vector<1x128x32xf32> -> vector<1x128x32xf32>
    "tpu.trace_stop"() : () -> ()
    %131 = arith.truncf %130 : vector<1x128x32xf32> to vector<1x128x32xbf16>
    %c0_48 = arith.constant 0 : index
    %c3 = arith.constant 3 : index
    %c0_49 = arith.constant 0 : index
    %c0_50 = arith.constant 0 : index
    %132 = vector.load %arg8[%c0_48, %c3, %c0_49, %c0_50] : memref<1x4x32x128xbf16, #tpu.memory_space<vmem>>, vector<1x1x32x128xbf16>
    %133 = vector.shape_cast %132 : vector<1x1x32x128xbf16> to vector<32x128xbf16>
    "tpu.trace_start"() <{level = 10 : i32, message = "bqd,dh->bqh"}> : () -> ()
    %cst_51 = arith.constant dense<0.000000e+00> : vector<1x128x128xf32>
    %134 = tpu.matmul %131, %133, %cst_51 {dimension_numbers = #tpu.dot_dimension_numbers<[2], [0], [0, 1], [1], [0, 0, 0, 1, 1, 1], [], []>} : vector<1x128x32xbf16>, vector<32x128xbf16>, vector<1x128x128xf32> -> vector<1x128x128xf32>
    "tpu.trace_stop"() : () -> ()
    %135 = arith.addf %112, %134 : vector<1x128x128xf32>
    %c0_52 = arith.constant 0 : index
    %c0_53 = arith.constant 0 : index
    %c0_54 = arith.constant 0 : index
    %136 = vector.load %arg9[%c0_52, %c0_53, %c0_54] : memref<1x1x128xf32, #tpu.memory_space<vmem>>, vector<1x1x128xf32>
    %137 = arith.mulf %135, %135 : vector<1x128x128xf32>
    %cst_55 = arith.constant dense<0.000000e+00> : vector<1x128xf32>
    %138 = vector.multi_reduction <add>, %137, %cst_55 [2] : vector<1x128x128xf32> to vector<1x128xf32>
    %139 = vector.shape_cast %138 : vector<1x128xf32> to vector<1x128x1xf32>
    %cst_56 = arith.constant 1.280000e+02 : f32
    %140 = vector.broadcast %cst_56 : f32 to vector<1x128x1xf32>
    %141 = arith.divf %139, %140 : vector<1x128x1xf32>
    %cst_57 = arith.constant 9.99999974E-6 : f32
    %142 = vector.broadcast %cst_57 : f32 to vector<1x128x1xf32>
    %143 = arith.addf %141, %142 : vector<1x128x1xf32>
    %144 = math.rsqrt %143 : vector<1x128x1xf32>
    %145 = vector.broadcast %144 : vector<1x128x1xf32> to vector<1x128x128xf32>
    %146 = arith.mulf %135, %145 : vector<1x128x128xf32>
    %147 = vector.broadcast %136 : vector<1x1x128xf32> to vector<1x128x128xf32>
    %148 = arith.mulf %146, %147 : vector<1x128x128xf32>
    %149 = arith.truncf %148 : vector<1x128x128xf32> to vector<1x128x128xbf16>
    %c0_58 = arith.constant 0 : index
    %c0_59 = arith.constant 0 : index
    %c0_60 = arith.constant 0 : index
    %150 = vector.load %arg10[%c0_58, %c0_59, %c0_60] : memref<1x128x512xbf16, #tpu.memory_space<vmem>>, vector<1x128x512xbf16>
    %151 = vector.shape_cast %150 : vector<1x128x512xbf16> to vector<128x512xbf16>
    "tpu.trace_start"() <{level = 10 : i32, message = "bsh,hi->bsi"}> : () -> ()
    %cst_61 = arith.constant dense<0.000000e+00> : vector<1x128x512xf32>
    %152 = tpu.matmul %149, %151, %cst_61 {dimension_numbers = #tpu.dot_dimension_numbers<[2], [0], [0, 1], [1], [0, 0, 0, 1, 1, 1], [], []>} : vector<1x128x128xbf16>, vector<128x512xbf16>, vector<1x128x512xf32> -> vector<1x128x512xf32>
    "tpu.trace_stop"() : () -> ()
    %153 = vector.extract_strided_slice %152 {offsets = [0, 0, 0], sizes = [1, 128, 256], strides = [1, 1, 1]} : vector<1x128x512xf32> to vector<1x128x256xf32>
    %154 = vector.extract_strided_slice %152 {offsets = [0, 0, 256], sizes = [1, 128, 256], strides = [1, 1, 1]} : vector<1x128x512xf32> to vector<1x128x256xf32>
    %155 = arith.negf %153 : vector<1x128x256xf32>
    %156 = math.exp %155 : vector<1x128x256xf32>
    %cst_62 = arith.constant 1.000000e+00 : f32
    %157 = vector.broadcast %cst_62 : f32 to vector<1x128x256xf32>
    %158 = arith.addf %157, %156 : vector<1x128x256xf32>
    %159 = arith.divf %157, %158 : vector<1x128x256xf32>
    %160 = arith.mulf %153, %159 : vector<1x128x256xf32>
    %161 = arith.mulf %154, %160 : vector<1x128x256xf32>
    %162 = arith.truncf %161 : vector<1x128x256xf32> to vector<1x128x256xbf16>
    %c0_63 = arith.constant 0 : index
    %c0_64 = arith.constant 0 : index
    %c0_65 = arith.constant 0 : index
    %163 = vector.load %arg11[%c0_63, %c0_64, %c0_65] : memref<1x256x128xbf16, #tpu.memory_space<vmem>>, vector<1x256x128xbf16>
    %164 = vector.shape_cast %163 : vector<1x256x128xbf16> to vector<256x128xbf16>
    "tpu.trace_start"() <{level = 10 : i32, message = "bsi,ih->bsh"}> : () -> ()
    %cst_66 = arith.constant dense<0.000000e+00> : vector<1x128x128xf32>
    %165 = tpu.matmul %162, %164, %cst_66 {dimension_numbers = #tpu.dot_dimension_numbers<[2], [0], [0, 1], [1], [0, 0, 0, 1, 1, 1], [], []>} : vector<1x128x256xbf16>, vector<256x128xbf16>, vector<1x128x128xf32> -> vector<1x128x128xf32>
    "tpu.trace_stop"() : () -> ()
    %166 = arith.addf %135, %165 : vector<1x128x128xf32>
    %c0_67 = arith.constant 0 : index
    %c0_68 = arith.constant 0 : index
    %c0_69 = arith.constant 0 : index
    %167 = vector.load %arg13[%c0_67, %c0_68, %c0_69] : memref<1x128x128xf32, #tpu.memory_space<vmem>>, vector<1x128x128xf32>
    tpu.vector_store %arg13[%c0_67, %c0_68, %c0_69], %166 {strides = array<i32>} : memref<1x128x128xf32, #tpu.memory_space<vmem>>, vector<1x128x128xf32>,
    %c39_i32 = arith.constant 39 : i32
    %168 = arith.cmpi eq, %arg1, %c39_i32 : i32
    %169 = arith.extui %168 : i1 to i32
    %c0_i32_70 = arith.constant 0 : i32
    %170 = arith.cmpi ne, %169, %c0_i32_70 : i32
    scf.if %170 {
      %c0_71 = arith.constant 0 : index
      %c0_72 = arith.constant 0 : index
      %c0_73 = arith.constant 0 : index
      %171 = vector.load %arg12[%c0_71, %c0_72, %c0_73] : memref<1x128x128xf32, #tpu.memory_space<vmem>>, vector<1x128x128xf32>
      tpu.vector_store %arg12[%c0_71, %c0_72, %c0_73], %166 {strides = array<i32>} : memref<1x128x128xf32, #tpu.memory_space<vmem>>, vector<1x128x128xf32>,
    } else {
    }
    return
  }
  func.func @transform_0(%arg0: i32, %arg1: i32) -> (i32, i32, i32) {
    %c0_i32 = arith.constant 0 : i32
    %c0_i32_0 = arith.constant 0 : i32
    %c0_i32_1 = arith.constant 0 : i32
    return %arg0, %c0_i32, %c0_i32_0 : i32, i32, i32
  }
  func.func @transform_1(%arg0: i32, %arg1: i32) -> (i32, i32) {
    %c0_i32 = arith.constant 0 : i32
    %c0_i32_0 = arith.constant 0 : i32
    %c0_i32_1 = arith.constant 0 : i32
    return %c0_i32, %c0_i32_0 : i32, i32
  }
  func.func @transform_2(%arg0: i32, %arg1: i32) -> (i32, i32) {
    %c0_i32 = arith.constant 0 : i32
    %c0_i32_0 = arith.constant 0 : i32
    %c0_i32_1 = arith.constant 0 : i32
    return %c0_i32, %c0_i32_0 : i32, i32
  }
  func.func @transform_3(%arg0: i32, %arg1: i32) -> (i32, i32) {
    %c0_i32 = arith.constant 0 : i32
    %c0_i32_0 = arith.constant 0 : i32
    %c0_i32_1 = arith.constant 0 : i32
    return %c0_i32, %c0_i32_0 : i32, i32
  }
  func.func @transform_4(%arg0: i32, %arg1: i32) -> (i32, i32, i32) {
    %c0_i32 = arith.constant 0 : i32
    %c0_i32_0 = arith.constant 0 : i32
    %c0_i32_1 = arith.constant 0 : i32
    return %arg1, %c0_i32, %c0_i32_0 : i32, i32, i32
  }
  func.func @transform_5(%arg0: i32, %arg1: i32) -> (i32, i32, i32) {
    %c0_i32 = arith.constant 0 : i32
    %c0_i32_0 = arith.constant 0 : i32
    %c0_i32_1 = arith.constant 0 : i32
    return %arg1, %c0_i32, %c0_i32_0 : i32, i32, i32
  }
  func.func @transform_6(%arg0: i32, %arg1: i32) -> (i32, i32, i32, i32) {
    %c0_i32 = arith.constant 0 : i32
    %c0_i32_0 = arith.constant 0 : i32
    %c0_i32_1 = arith.constant 0 : i32
    %c0_i32_2 = arith.constant 0 : i32
    return %arg1, %c0_i32, %c0_i32_0, %c0_i32_1 : i32, i32, i32, i32
  }
  func.func @transform_7(%arg0: i32, %arg1: i32) -> (i32, i32, i32) {
    %c0_i32 = arith.constant 0 : i32
    %c0_i32_0 = arith.constant 0 : i32
    %c0_i32_1 = arith.constant 0 : i32
    return %arg1, %c0_i32, %c0_i32_0 : i32, i32, i32
  }
  func.func @transform_8(%arg0: i32, %arg1: i32) -> (i32, i32, i32) {
    %c0_i32 = arith.constant 0 : i32
    %c0_i32_0 = arith.constant 0 : i32
    %c0_i32_1 = arith.constant 0 : i32
    return %arg1, %c0_i32, %c0_i32_0 : i32, i32, i32
  }
  func.func @transform_9(%arg0: i32, %arg1: i32) -> (i32, i32, i32) {
    %c0_i32 = arith.constant 0 : i32
    %c0_i32_0 = arith.constant 0 : i32
    %c0_i32_1 = arith.constant 0 : i32
    return %arg1, %c0_i32, %c0_i32_0 : i32, i32, i32
  }
  func.func @transform_10(%arg0: i32, %arg1: i32) -> (i32, i32, i32) {
    %c0_i32 = arith.constant 0 : i32
    %c0_i32_0 = arith.constant 0 : i32
    %c0_i32_1 = arith.constant 0 : i32
    return %arg0, %c0_i32, %c0_i32_0 : i32, i32, i32
  }
}

</mosaic_0001>

<llo_original>
// kernel: phi3_blockwise_forward.3
$region0: #{phi3_blockwise_forward.3}
  #allocation0 [shape = 'u32[]', space=smem, size = 0x4, offset = 0x4, fixed_abs, tag = 'smem constant byte address 0x4 - core index']
  #allocation1 [shape = 'u32[72,128]{1,0:T(1,128)}', space=vmem, size = 0x9000, scoped, tag = 'internal scratch']
  %s0 = inlined_call_operand.vmem [shape: f32[2,128,128], index: 0, kind: input, shape index: {}]
  %s1 = inlined_call_operand.hbm [shape: f32[1,128], index: 1, kind: input, shape index: {}]
  %s2 = inlined_call_operand.hbm [shape: bf16[128,256], index: 2, kind: input, shape index: {}]
  %s3 = inlined_call_operand.hbm [shape: s32[2,128], index: 3, kind: output, shape index: {}]
  %s4 = sld [smem:[#allocation0]]
  $region30: #{phi3_blockwise_forward.3} parent=0
    _
  %s6 = ssub.s32 1, %s4
  %s7 = scalar_select 0, %s6, %s4
  $region1: #{phi3_blockwise_forward.3} parent=0
    #allocation2 [shape = 'u8[512]{0}', space=vmem, size = 0x400, scoped, tag = 'input window, operand 1, single buffered']
    #allocation3 [shape = 's32[1]{0}', space=sflag, size = 0x4, scoped, tag = 'scoped memory for phi3_blockwise_forward.3']
    #allocation4 [shape = 's32[1]{0}', space=sflag, size = 0x4, scoped, tag = 'scoped memory for phi3_blockwise_forward.3']
    #allocation5 [shape = 'u8[65536]{0}', space=vmem, size = 0x10000, scoped, tag = 'input window, operand 2, single buffered']
    #allocation6 [shape = 's32[1]{0}', space=sflag, size = 0x4, scoped, tag = 'scoped memory for phi3_blockwise_forward.3']
    #allocation7 [shape = 'u8[1024]{0}', space=vmem, size = 0x400, scoped, tag = 'output window, operand 0, single buffered']
    %8 = vsyncpa [#allocation3], 0
    %9 = vsyncpa [#allocation6], 0
    %10 = vsyncpa [#allocation4], 0
    // Predicated region
    $region2: #{phi3_blockwise_forward.3} parent=1 // pred_check
      _
    $region3: #{phi3_blockwise_forward.3} parent=1 // pred_check_branch
      %12 = sbr.rel (0) target = $region5
    $region4: #{phi3_blockwise_forward.3} parent=1 // pred_region
      _
    $region5: #{phi3_blockwise_forward.3} parent=1 // pred_fallthru
      _
    // Predicated region
    $region6: #{phi3_blockwise_forward.3} parent=1 // pred_check
      _
    $region7: #{phi3_blockwise_forward.3} parent=1 // pred_check_branch
      %14 = sbr.rel (0) target = $region9
    $region8: #{phi3_blockwise_forward.3} parent=1 // pred_region
      %16 = vsyncadd [#allocation3], 0
      %s18 = sshll.u32 %s1, 4
      %s19 = int_to_ptr.hbm [resolvable:$true] %s18
      %s20 = sshll.u32 [#allocation2], 4
      %s21 = int_to_ptr.vmem [resolvable:$true] %s20
      %23 = dma.hbm_to_vmem [thread:$0]  %s19, 16, %s21, [#allocation3]
    $region9: #{phi3_blockwise_forward.3} parent=1 // pred_fallthru
      _
    // Predicated region
    $region10: #{phi3_blockwise_forward.3} parent=1 // pred_check
      _
    $region11: #{phi3_blockwise_forward.3} parent=1 // pred_check_branch
      %25 = sbr.rel (0) target = $region13
    $region12: #{phi3_blockwise_forward.3} parent=1 // pred_region
      %27 = vsyncadd [#allocation6], 0
      %s28 = sshll.u32 %s2, 4
      %s29 = int_to_ptr.hbm [resolvable:$true] %s28
      %s30 = sshll.u32 [#allocation5], 4
      %s31 = int_to_ptr.vmem [resolvable:$true] %s30
      %36 = dma.hbm_to_vmem [thread:$0]  %s29, 2048, %s31, [#allocation6], 128, 128, 8
    $region13: #{phi3_blockwise_forward.3} parent=1 // pred_fallthru
      _
    // Predicated region
    $region14: #{phi3_blockwise_forward.3} parent=1 // pred_check
      _
    $region15: #{phi3_blockwise_forward.3} parent=1 // pred_check_branch
      %38 = sbr.rel (0) target = $region17
    $region16: #{phi3_blockwise_forward.3} parent=1 // pred_region
      %40 = dma.done [#allocation3], 16
    $region17: #{phi3_blockwise_forward.3} parent=1 // pred_fallthru
      _
    // Predicated region
    $region18: #{phi3_blockwise_forward.3} parent=1 // pred_check
      _
    $region19: #{phi3_blockwise_forward.3} parent=1 // pred_check_branch
      %42 = sbr.rel (0) target = $region21
    $region20: #{phi3_blockwise_forward.3} parent=1 // pred_region
      %44 = dma.done [#allocation6], 2048
    $region21: #{phi3_blockwise_forward.3} parent=1 // pred_fallthru
      _
    %v45 = vld [vmem:[%s0] sm:$0xff]
    %v46 = vld [vmem:[%s0 + $0x8] sm:$0xff]
    %v47 = vld [vmem:[%s0 + $0x10] sm:$0xff]
    %v48 = vld [vmem:[%s0 + $0x18] sm:$0xff]
    %v49 = vld [vmem:[%s0 + $0x20] sm:$0xff]
    %v50 = vld [vmem:[%s0 + $0x28] sm:$0xff]
    %v51 = vld [vmem:[%s0 + $0x30] sm:$0xff]
    %v52 = vld [vmem:[%s0 + $0x38] sm:$0xff]
    %v53 = vld [vmem:[%s0 + $0x40] sm:$0xff]
    %v54 = vld [vmem:[%s0 + $0x48] sm:$0xff]
    %v55 = vld [vmem:[%s0 + $0x50] sm:$0xff]
    %v56 = vld [vmem:[%s0 + $0x58] sm:$0xff]
    %v57 = vld [vmem:[%s0 + $0x60] sm:$0xff]
    %v58 = vld [vmem:[%s0 + $0x68] sm:$0xff]
    %v59 = vld [vmem:[%s0 + $0x70] sm:$0xff]
    %v60 = vld [vmem:[%s0 + $0x78] sm:$0xff]
    %v61 = vld [vmem:[%s0 + $0x80] sm:$0xff]
    %v62 = vld [vmem:[%s0 + $0x88] sm:$0xff]
    %v63 = vld [vmem:[%s0 + $0x90] sm:$0xff]
    %v64 = vld [vmem:[%s0 + $0x98] sm:$0xff]
    %v65 = vld [vmem:[%s0 + $0xa0] sm:$0xff]
    %v66 = vld [vmem:[%s0 + $0xa8] sm:$0xff]
    %v67 = vld [vmem:[%s0 + $0xb0] sm:$0xff]
    %v68 = vld [vmem:[%s0 + $0xb8] sm:$0xff]
    %v69 = vld [vmem:[%s0 + $0xc0] sm:$0xff]
    %v70 = vld [vmem:[%s0 + $0xc8] sm:$0xff]
    %v71 = vld [vmem:[%s0 + $0xd0] sm:$0xff]
    %v72 = vld [vmem:[%s0 + $0xd8] sm:$0xff]
    %v73 = vld [vmem:[%s0 + $0xe0] sm:$0xff]
    %v74 = vld [vmem:[%s0 + $0xe8] sm:$0xff]
    %v75 = vld [vmem:[%s0 + $0xf0] sm:$0xff]
    %v76 = vld [vmem:[%s0 + $0xf8] sm:$0xff]
    %v77 = vld [vmem:[#allocation2] sm:$0x1]
    %v78 = vmul.f32 %v45, %v45
    %v79 = vmul.f32 %v46, %v46
    %v80 = vmul.f32 %v47, %v47
    %v81 = vmul.f32 %v48, %v48
    %v82 = vmul.f32 %v49, %v49
    %v83 = vmul.f32 %v50, %v50
    %v84 = vmul.f32 %v51, %v51
    %v85 = vmul.f32 %v52, %v52
    %v86 = vmul.f32 %v53, %v53
    %v87 = vmul.f32 %v54, %v54
    %v88 = vmul.f32 %v55, %v55
    %v89 = vmul.f32 %v56, %v56
    %v90 = vmul.f32 %v57, %v57
    %v91 = vmul.f32 %v58, %v58
    %v92 = vmul.f32 %v59, %v59
    %v93 = vmul.f32 %v60, %v60
    %v94 = vmul.f32 %v61, %v61
    %v95 = vmul.f32 %v62, %v62
    %v96 = vmul.f32 %v63, %v63
    %v97 = vmul.f32 %v64, %v64
    %v98 = vmul.f32 %v65, %v65
    %v99 = vmul.f32 %v66, %v66
    %v100 = vmul.f32 %v67, %v67
    %v101 = vmul.f32 %v68, %v68
    %v102 = vmul.f32 %v69, %v69
    %v103 = vmul.f32 %v70, %v70
    %v104 = vmul.f32 %v71, %v71
    %v105 = vmul.f32 %v72, %v72
    %v106 = vmul.f32 %v73, %v73
    %v107 = vmul.f32 %v74, %v74
    %v108 = vmul.f32 %v75, %v75
    %v109 = vmul.f32 %v76, %v76
    %110 = vadd.xlane.f32.xlu0 %v78
    %v111 = vpop.xlane.xlu0 %110
    %112 = vadd.xlane.f32.xlu0 %v79
    %v113 = vpop.xlane.xlu0 %112
    %114 = vadd.xlane.f32.xlu0 %v80
    %v115 = vpop.xlane.xlu0 %114
    %116 = vadd.xlane.f32.xlu0 %v81
    %v117 = vpop.xlane.xlu0 %116
    %118 = vadd.xlane.f32.xlu0 %v82
    %v119 = vpop.xlane.xlu0 %118
    %120 = vadd.xlane.f32.xlu0 %v83
    %v121 = vpop.xlane.xlu0 %120
    %122 = vadd.xlane.f32.xlu0 %v84
    %v123 = vpop.xlane.xlu0 %122
    %124 = vadd.xlane.f32.xlu0 %v85
    %v125 = vpop.xlane.xlu0 %124
    %126 = vadd.xlane.f32.xlu0 %v86
    %v127 = vpop.xlane.xlu0 %126
    %128 = vadd.xlane.f32.xlu0 %v87
    %v129 = vpop.xlane.xlu0 %128
    %130 = vadd.xlane.f32.xlu0 %v88
    %v131 = vpop.xlane.xlu0 %130
    %132 = vadd.xlane.f32.xlu0 %v89
    %v133 = vpop.xlane.xlu0 %132
    %134 = vadd.xlane.f32.xlu0 %v90
    %v135 = vpop.xlane.xlu0 %134
    %136 = vadd.xlane.f32.xlu0 %v91
    %v137 = vpop.xlane.xlu0 %136
    %138 = vadd.xlane.f32.xlu0 %v92
    %v139 = vpop.xlane.xlu0 %138
    %140 = vadd.xlane.f32.xlu0 %v93
    %v141 = vpop.xlane.xlu0 %140
    %142 = vadd.xlane.f32.xlu0 %v94
    %v143 = vpop.xlane.xlu0 %142
    %144 = vadd.xlane.f32.xlu0 %v95
    %v145 = vpop.xlane.xlu0 %144
    %146 = vadd.xlane.f32.xlu0 %v96
    %v147 = vpop.xlane.xlu0 %146
    %148 = vadd.xlane.f32.xlu0 %v97
    %v149 = vpop.xlane.xlu0 %148
    %150 = vadd.xlane.f32.xlu0 %v98
    %v151 = vpop.xlane.xlu0 %150
    %152 = vadd.xlane.f32.xlu0 %v99
    %v153 = vpop.xlane.xlu0 %152
    %154 = vadd.xlane.f32.xlu0 %v100
    %v155 = vpop.xlane.xlu0 %154
    %156 = vadd.xlane.f32.xlu0 %v101
    %v157 = vpop.xlane.xlu0 %156
    %158 = vadd.xlane.f32.xlu0 %v102
    %v159 = vpop.xlane.xlu0 %158
    %160 = vadd.xlane.f32.xlu0 %v103
    %v161 = vpop.xlane.xlu0 %160
    %162 = vadd.xlane.f32.xlu0 %v104
    %v163 = vpop.xlane.xlu0 %162
    %164 = vadd.xlane.f32.xlu0 %v105
    %v165 = vpop.xlane.xlu0 %164
    %166 = vadd.xlane.f32.xlu0 %v106
    %v167 = vpop.xlane.xlu0 %166
    %168 = vadd.xlane.f32.xlu0 %v107
    %v169 = vpop.xlane.xlu0 %168
    %170 = vadd.xlane.f32.xlu0 %v108
    %v171 = vpop.xlane.xlu0 %170
    %172 = vadd.xlane.f32.xlu0 %v109
    %v173 = vpop.xlane.xlu0 %172
    %v174 = vrcp.pop 128.0
    %v175 = vmul.f32 128.0, %v174
    %v176 = vsub.f32 1.0, %v175
    %v177 = vmul.f32 %v174, %v176
    %v178 = vadd.f32 %v174, %v177
    %vm179 = vweird.f32 %v174
    %v180 = vsel %vm179, %v174, %v178
    %v181 = vmul.f32 %v111, %v180
    %v182 = vmul.f32 %v113, %v180
    %v183 = vmul.f32 %v115, %v180
    %v184 = vmul.f32 %v117, %v180
    %v185 = vmul.f32 %v119, %v180
    %v186 = vmul.f32 %v121, %v180
    %v187 = vmul.f32 %v123, %v180
    %v188 = vmul.f32 %v125, %v180
    %v189 = vmul.f32 %v127, %v180
    %v190 = vmul.f32 %v129, %v180
    %v191 = vmul.f32 %v131, %v180
    %v192 = vmul.f32 %v133, %v180
    %v193 = vmul.f32 %v135, %v180
    %v194 = vmul.f32 %v137, %v180
    %v195 = vmul.f32 %v139, %v180
    %v196 = vmul.f32 %v141, %v180
    %v197 = vmul.f32 %v143, %v180
    %v198 = vmul.f32 %v145, %v180
    %v199 = vmul.f32 %v147, %v180
    %v200 = vmul.f32 %v149, %v180
    %v201 = vmul.f32 %v151, %v180
    %v202 = vmul.f32 %v153, %v180
    %v203 = vmul.f32 %v155, %v180
    %v204 = vmul.f32 %v157, %v180
    %v205 = vmul.f32 %v159, %v180
    %v206 = vmul.f32 %v161, %v180
    %v207 = vmul.f32 %v163, %v180
    %v208 = vmul.f32 %v165, %v180
    %v209 = vmul.f32 %v167, %v180
    %v210 = vmul.f32 %v169, %v180
    %v211 = vmul.f32 %v171, %v180
    %v212 = vmul.f32 %v173, %v180
    %v213 = vadd.f32 %v181, 1e-05
    %v214 = vadd.f32 %v182, 1e-05
    %v215 = vadd.f32 %v183, 1e-05
    %v216 = vadd.f32 %v184, 1e-05
    %v217 = vadd.f32 %v185, 1e-05
    %v218 = vadd.f32 %v186, 1e-05
    %v219 = vadd.f32 %v187, 1e-05
    %v220 = vadd.f32 %v188, 1e-05
    %v221 = vadd.f32 %v189, 1e-05
    %v222 = vadd.f32 %v190, 1e-05
    %v223 = vadd.f32 %v191, 1e-05
    %v224 = vadd.f32 %v192, 1e-05
    %v225 = vadd.f32 %v193, 1e-05
    %v226 = vadd.f32 %v194, 1e-05
    %v227 = vadd.f32 %v195, 1e-05
    %v228 = vadd.f32 %v196, 1e-05
    %v229 = vadd.f32 %v197, 1e-05
    %v230 = vadd.f32 %v198, 1e-05
    %v231 = vadd.f32 %v199, 1e-05
    %v232 = vadd.f32 %v200, 1e-05
    %v233 = vadd.f32 %v201, 1e-05
    %v234 = vadd.f32 %v202, 1e-05
    %v235 = vadd.f32 %v203, 1e-05
    %v236 = vadd.f32 %v204, 1e-05
    %v237 = vadd.f32 %v205, 1e-05
    %v238 = vadd.f32 %v206, 1e-05
    %v239 = vadd.f32 %v207, 1e-05
    %v240 = vadd.f32 %v208, 1e-05
    %v241 = vadd.f32 %v209, 1e-05
    %v242 = vadd.f32 %v210, 1e-05
    %v243 = vadd.f32 %v211, 1e-05
    %v244 = vadd.f32 %v212, 1e-05
    %v245 = vrsqrt.pop %v213
    %v246 = vmul.f32 %v245, %v213
    %v247 = vmul.f32 %v246, %v245
    %v248 = vmul.f32 0.5, %v247
    %v249 = vsub.f32 1.5, %v248
    %v250 = vmul.f32 %v245, %v249
    %vm251 = vweird.f32 %v213
    %vm252 = vweird.f32 %v245
    %vm253 = vmor %vm251, %vm252
    %v254 = vsel %vm253, %v245, %v250
    %v255 = vrsqrt.pop %v214
    %v256 = vmul.f32 %v255, %v214
    %v257 = vmul.f32 %v256, %v255
    %v258 = vmul.f32 0.5, %v257
    %v259 = vsub.f32 1.5, %v258
    %v260 = vmul.f32 %v255, %v259
    %vm261 = vweird.f32 %v214
    %vm262 = vweird.f32 %v255
    %vm263 = vmor %vm261, %vm262
    %v264 = vsel %vm263, %v255, %v260
    %v265 = vrsqrt.pop %v215
    %v266 = vmul.f32 %v265, %v215
    %v267 = vmul.f32 %v266, %v265
    %v268 = vmul.f32 0.5, %v267
    %v269 = vsub.f32 1.5, %v268
    %v270 = vmul.f32 %v265, %v269
    %vm271 = vweird.f32 %v215
    %vm272 = vweird.f32 %v265
    %vm273 = vmor %vm271, %vm272
    %v274 = vsel %vm273, %v265, %v270
    %v275 = vrsqrt.pop %v216
    %v276 = vmul.f32 %v275, %v216
    %v277 = vmul.f32 %v276, %v275
    %v278 = vmul.f32 0.5, %v277
    %v279 = vsub.f32 1.5, %v278
    %v280 = vmul.f32 %v275, %v279
    %vm281 = vweird.f32 %v216
    %vm282 = vweird.f32 %v275
    %vm283 = vmor %vm281, %vm282
    %v284 = vsel %vm283, %v275, %v280
    %v285 = vrsqrt.pop %v217
    %v286 = vmul.f32 %v285, %v217
    %v287 = vmul.f32 %v286, %v285
    %v288 = vmul.f32 0.5, %v287
    %v289 = vsub.f32 1.5, %v288
    %v290 = vmul.f32 %v285, %v289
    %vm291 = vweird.f32 %v217
    %vm292 = vweird.f32 %v285
    %vm293 = vmor %vm291, %vm292
    %v294 = vsel %vm293, %v285, %v290
    %v295 = vrsqrt.pop %v218
    %v296 = vmul.f32 %v295, %v218
    %v297 = vmul.f32 %v296, %v295
    %v298 = vmul.f32 0.5, %v297
    %v299 = vsub.f32 1.5, %v298
    %v300 = vmul.f32 %v295, %v299
    %vm301 = vweird.f32 %v218
    %vm302 = vweird.f32 %v295
    %vm303 = vmor %vm301, %vm302
    %v304 = vsel %vm303, %v295, %v300
    %v305 = vrsqrt.pop %v219
    %v306 = vmul.f32 %v305, %v219
    %v307 = vmul.f32 %v306, %v305
    %v308 = vmul.f32 0.5, %v307
    %v309 = vsub.f32 1.5, %v308
    %v310 = vmul.f32 %v305, %v309
    %vm311 = vweird.f32 %v219
    %vm312 = vweird.f32 %v305
    %vm313 = vmor %vm311, %vm312
    %v314 = vsel %vm313, %v305, %v310
    %v315 = vrsqrt.pop %v220
    %v316 = vmul.f32 %v315, %v220
    %v317 = vmul.f32 %v316, %v315
    %v318 = vmul.f32 0.5, %v317
    %v319 = vsub.f32 1.5, %v318
    %v320 = vmul.f32 %v315, %v319
    %vm321 = vweird.f32 %v220
    %vm322 = vweird.f32 %v315
    %vm323 = vmor %vm321, %vm322
    %v324 = vsel %vm323, %v315, %v320
    %v325 = vrsqrt.pop %v221
    %v326 = vmul.f32 %v325, %v221
    %v327 = vmul.f32 %v326, %v325
    %v328 = vmul.f32 0.5, %v327
    %v329 = vsub.f32 1.5, %v328
    %v330 = vmul.f32 %v325, %v329
    %vm331 = vweird.f32 %v221
    %vm332 = vweird.f32 %v325
    %vm333 = vmor %vm331, %vm332
    %v334 = vsel %vm333, %v325, %v330
    %v335 = vrsqrt.pop %v222
    %v336 = vmul.f32 %v335, %v222
    %v337 = vmul.f32 %v336, %v335
    %v338 = vmul.f32 0.5, %v337
    %v339 = vsub.f32 1.5, %v338
    %v340 = vmul.f32 %v335, %v339
    %vm341 = vweird.f32 %v222
    %vm342 = vweird.f32 %v335
    %vm343 = vmor %vm341, %vm342
    %v344 = vsel %vm343, %v335, %v340
    %v345 = vrsqrt.pop %v223
    %v346 = vmul.f32 %v345, %v223
    %v347 = vmul.f32 %v346, %v345
    %v348 = vmul.f32 0.5, %v347
    %v349 = vsub.f32 1.5, %v348
    %v350 = vmul.f32 %v345, %v349
    %vm351 = vweird.f32 %v223
    %vm352 = vweird.f32 %v345
    %vm353 = vmor %vm351, %vm352
    %v354 = vsel %vm353, %v345, %v350
    %v355 = vrsqrt.pop %v224
    %v356 = vmul.f32 %v355, %v224
    %v357 = vmul.f32 %v356, %v355
    %v358 = vmul.f32 0.5, %v357
    %v359 = vsub.f32 1.5, %v358
    %v360 = vmul.f32 %v355, %v359
    %vm361 = vweird.f32 %v224
    %vm362 = vweird.f32 %v355
    %vm363 = vmor %vm361, %vm362
    %v364 = vsel %vm363, %v355, %v360
    %v365 = vrsqrt.pop %v225
    %v366 = vmul.f32 %v365, %v225
    %v367 = vmul.f32 %v366, %v365
    %v368 = vmul.f32 0.5, %v367
    %v369 = vsub.f32 1.5, %v368
    %v370 = vmul.f32 %v365, %v369
    %vm371 = vweird.f32 %v225
    %vm372 = vweird.f32 %v365
    %vm373 = vmor %vm371, %vm372
    %v374 = vsel %vm373, %v365, %v370
    %v375 = vrsqrt.pop %v226
    %v376 = vmul.f32 %v375, %v226
    %v377 = vmul.f32 %v376, %v375
    %v378 = vmul.f32 0.5, %v377
    %v379 = vsub.f32 1.5, %v378
    %v380 = vmul.f32 %v375, %v379
    %vm381 = vweird.f32 %v226
    %vm382 = vweird.f32 %v375
    %vm383 = vmor %vm381, %vm382
    %v384 = vsel %vm383, %v375, %v380
    %v385 = vrsqrt.pop %v227
    %v386 = vmul.f32 %v385, %v227
    %v387 = vmul.f32 %v386, %v385
    %v388 = vmul.f32 0.5, %v387
    %v389 = vsub.f32 1.5, %v388
    %v390 = vmul.f32 %v385, %v389
    %vm391 = vweird.f32 %v227
    %vm392 = vweird.f32 %v385
    %vm393 = vmor %vm391, %vm392
    %v394 = vsel %vm393, %v385, %v390
    %v395 = vrsqrt.pop %v228
    %v396 = vmul.f32 %v395, %v228
    %v397 = vmul.f32 %v396, %v395
    %v398 = vmul.f32 0.5, %v397
    %v399 = vsub.f32 1.5, %v398
    %v400 = vmul.f32 %v395, %v399
    %vm401 = vweird.f32 %v228
    %vm402 = vweird.f32 %v395
    %vm403 = vmor %vm401, %vm402
    %v404 = vsel %vm403, %v395, %v400
    %v405 = vrsqrt.pop %v229
    %v406 = vmul.f32 %v405, %v229
    %v407 = vmul.f32 %v406, %v405
    %v408 = vmul.f32 0.5, %v407
    %v409 = vsub.f32 1.5, %v408
    %v410 = vmul.f32 %v405, %v409
    %vm411 = vweird.f32 %v229
    %vm412 = vweird.f32 %v405
    %vm413 = vmor %vm411, %vm412
    %v414 = vsel %vm413, %v405, %v410
    %v415 = vrsqrt.pop %v230
    %v416 = vmul.f32 %v415, %v230
    %v417 = vmul.f32 %v416, %v415
    %v418 = vmul.f32 0.5, %v417
    %v419 = vsub.f32 1.5, %v418
    %v420 = vmul.f32 %v415, %v419
    %vm421 = vweird.f32 %v230
    %vm422 = vweird.f32 %v415
    %vm423 = vmor %vm421, %vm422
    %v424 = vsel %vm423, %v415, %v420
    %v425 = vrsqrt.pop %v231
    %v426 = vmul.f32 %v425, %v231
    %v427 = vmul.f32 %v426, %v425
    %v428 = vmul.f32 0.5, %v427
    %v429 = vsub.f32 1.5, %v428
    %v430 = vmul.f32 %v425, %v429
    %vm431 = vweird.f32 %v231
    %vm432 = vweird.f32 %v425
    %vm433 = vmor %vm431, %vm432
    %v434 = vsel %vm433, %v425, %v430
    %v435 = vrsqrt.pop %v232
    %v436 = vmul.f32 %v435, %v232
    %v437 = vmul.f32 %v436, %v435
    %v438 = vmul.f32 0.5, %v437
    %v439 = vsub.f32 1.5, %v438
    %v440 = vmul.f32 %v435, %v439
    %vm441 = vweird.f32 %v232
    %vm442 = vweird.f32 %v435
    %vm443 = vmor %vm441, %vm442
    %v444 = vsel %vm443, %v435, %v440
    %v445 = vrsqrt.pop %v233
    %v446 = vmul.f32 %v445, %v233
    %v447 = vmul.f32 %v446, %v445
    %v448 = vmul.f32 0.5, %v447
    %v449 = vsub.f32 1.5, %v448
    %v450 = vmul.f32 %v445, %v449
    %vm451 = vweird.f32 %v233
    %vm452 = vweird.f32 %v445
    %vm453 = vmor %vm451, %vm452
    %v454 = vsel %vm453, %v445, %v450
    %v455 = vrsqrt.pop %v234
    %v456 = vmul.f32 %v455, %v234
    %v457 = vmul.f32 %v456, %v455
    %v458 = vmul.f32 0.5, %v457
    %v459 = vsub.f32 1.5, %v458
    %v460 = vmul.f32 %v455, %v459
    %vm461 = vweird.f32 %v234
    %vm462 = vweird.f32 %v455
    %vm463 = vmor %vm461, %vm462
    %v464 = vsel %vm463, %v455, %v460
    %v465 = vrsqrt.pop %v235
    %v466 = vmul.f32 %v465, %v235
    %v467 = vmul.f32 %v466, %v465
    %v468 = vmul.f32 0.5, %v467
    %v469 = vsub.f32 1.5, %v468
    %v470 = vmul.f32 %v465, %v469
    %vm471 = vweird.f32 %v235
    %vm472 = vweird.f32 %v465
    %vm473 = vmor %vm471, %vm472
    %v474 = vsel %vm473, %v465, %v470
    %v475 = vrsqrt.pop %v236
    %v476 = vmul.f32 %v475, %v236
    %v477 = vmul.f32 %v476, %v475
    %v478 = vmul.f32 0.5, %v477
    %v479 = vsub.f32 1.5, %v478
    %v480 = vmul.f32 %v475, %v479
    %vm481 = vweird.f32 %v236
    %vm482 = vweird.f32 %v475
    %vm483 = vmor %vm481, %vm482
    %v484 = vsel %vm483, %v475, %v480
    %v485 = vrsqrt.pop %v237
    %v486 = vmul.f32 %v485, %v237
    %v487 = vmul.f32 %v486, %v485
    %v488 = vmul.f32 0.5, %v487
    %v489 = vsub.f32 1.5, %v488
    %v490 = vmul.f32 %v485, %v489
    %vm491 = vweird.f32 %v237
    %vm492 = vweird.f32 %v485
    %vm493 = vmor %vm491, %vm492
    %v494 = vsel %vm493, %v485, %v490
    %v495 = vrsqrt.pop %v238
    %v496 = vmul.f32 %v495, %v238
    %v497 = vmul.f32 %v496, %v495
    %v498 = vmul.f32 0.5, %v497
    %v499 = vsub.f32 1.5, %v498
    %v500 = vmul.f32 %v495, %v499
    %vm501 = vweird.f32 %v238
    %vm502 = vweird.f32 %v495
    %vm503 = vmor %vm501, %vm502
    %v504 = vsel %vm503, %v495, %v500
    %v505 = vrsqrt.pop %v239
    %v506 = vmul.f32 %v505, %v239
    %v507 = vmul.f32 %v506, %v505
    %v508 = vmul.f32 0.5, %v507
    %v509 = vsub.f32 1.5, %v508
    %v510 = vmul.f32 %v505, %v509
    %vm511 = vweird.f32 %v239
    %vm512 = vweird.f32 %v505
    %vm513 = vmor %vm511, %vm512
    %v514 = vsel %vm513, %v505, %v510
    %v515 = vrsqrt.pop %v240
    %v516 = vmul.f32 %v515, %v240
    %v517 = vmul.f32 %v516, %v515
    %v518 = vmul.f32 0.5, %v517
    %v519 = vsub.f32 1.5, %v518
    %v520 = vmul.f32 %v515, %v519
    %vm521 = vweird.f32 %v240
    %vm522 = vweird.f32 %v515
    %vm523 = vmor %vm521, %vm522
    %v524 = vsel %vm523, %v515, %v520
    %v525 = vrsqrt.pop %v241
    %v526 = vmul.f32 %v525, %v241
    %v527 = vmul.f32 %v526, %v525
    %v528 = vmul.f32 0.5, %v527
    %v529 = vsub.f32 1.5, %v528
    %v530 = vmul.f32 %v525, %v529
    %vm531 = vweird.f32 %v241
    %vm532 = vweird.f32 %v525
    %vm533 = vmor %vm531, %vm532
    %v534 = vsel %vm533, %v525, %v530
    %v535 = vrsqrt.pop %v242
    %v536 = vmul.f32 %v535, %v242
    %v537 = vmul.f32 %v536, %v535
    %v538 = vmul.f32 0.5, %v537
    %v539 = vsub.f32 1.5, %v538
    %v540 = vmul.f32 %v535, %v539
    %vm541 = vweird.f32 %v242
    %vm542 = vweird.f32 %v535
    %vm543 = vmor %vm541, %vm542
    %v544 = vsel %vm543, %v535, %v540
    %v545 = vrsqrt.pop %v243
    %v546 = vmul.f32 %v545, %v243
    %v547 = vmul.f32 %v546, %v545
    %v548 = vmul.f32 0.5, %v547
    %v549 = vsub.f32 1.5, %v548
    %v550 = vmul.f32 %v545, %v549
    %vm551 = vweird.f32 %v243
    %vm552 = vweird.f32 %v545
    %vm553 = vmor %vm551, %vm552
    %v554 = vsel %vm553, %v545, %v550
    %v555 = vrsqrt.pop %v244
    %v556 = vmul.f32 %v555, %v244
    %v557 = vmul.f32 %v556, %v555
    %v558 = vmul.f32 0.5, %v557
    %v559 = vsub.f32 1.5, %v558
    %v560 = vmul.f32 %v555, %v559
    %vm561 = vweird.f32 %v244
    %vm562 = vweird.f32 %v555
    %vm563 = vmor %vm561, %vm562
    %v564 = vsel %vm563, %v555, %v560
    %v565 = vmul.f32 %v45, %v254
    %v566 = vmul.f32 %v46, %v264
    %v567 = vmul.f32 %v47, %v274
    %v568 = vmul.f32 %v48, %v284
    %v569 = vmul.f32 %v49, %v294
    %v570 = vmul.f32 %v50, %v304
    %v571 = vmul.f32 %v51, %v314
    %v572 = vmul.f32 %v52, %v324
    %v573 = vmul.f32 %v53, %v334
    %v574 = vmul.f32 %v54, %v344
    %v575 = vmul.f32 %v55, %v354
    %v576 = vmul.f32 %v56, %v364
    %v577 = vmul.f32 %v57, %v374
    %v578 = vmul.f32 %v58, %v384
    %v579 = vmul.f32 %v59, %v394
    %v580 = vmul.f32 %v60, %v404
    %v581 = vmul.f32 %v61, %v414
    %v582 = vmul.f32 %v62, %v424
    %v583 = vmul.f32 %v63, %v434
    %v584 = vmul.f32 %v64, %v444
    %v585 = vmul.f32 %v65, %v454
    %v586 = vmul.f32 %v66, %v464
    %v587 = vmul.f32 %v67, %v474
    %v588 = vmul.f32 %v68, %v484
    %v589 = vmul.f32 %v69, %v494
    %v590 = vmul.f32 %v70, %v504
    %v591 = vmul.f32 %v71, %v514
    %v592 = vmul.f32 %v72, %v524
    %v593 = vmul.f32 %v73, %v534
    %v594 = vmul.f32 %v74, %v544
    %v595 = vmul.f32 %v75, %v554
    %v596 = vmul.f32 %v76, %v564
    %v598 = vperm.slane %v77, 0
    %v600 = vmul.f32 %v565, %v598
    %v601 = vmul.f32 %v566, %v598
    %v602 = vmul.f32 %v567, %v598
    %v603 = vmul.f32 %v568, %v598
    %v604 = vmul.f32 %v569, %v598
    %v605 = vmul.f32 %v570, %v598
    %v606 = vmul.f32 %v571, %v598
    %v607 = vmul.f32 %v572, %v598
    %v608 = vmul.f32 %v573, %v598
    %v609 = vmul.f32 %v574, %v598
    %v610 = vmul.f32 %v575, %v598
    %v611 = vmul.f32 %v576, %v598
    %v612 = vmul.f32 %v577, %v598
    %v613 = vmul.f32 %v578, %v598
    %v614 = vmul.f32 %v579, %v598
    %v615 = vmul.f32 %v580, %v598
    %v616 = vmul.f32 %v581, %v598
    %v617 = vmul.f32 %v582, %v598
    %v618 = vmul.f32 %v583, %v598
    %v619 = vmul.f32 %v584, %v598
    %v620 = vmul.f32 %v585, %v598
    %v621 = vmul.f32 %v586, %v598
    %v622 = vmul.f32 %v587, %v598
    %v623 = vmul.f32 %v588, %v598
    %v624 = vmul.f32 %v589, %v598
    %v625 = vmul.f32 %v590, %v598
    %v626 = vmul.f32 %v591, %v598
    %v627 = vmul.f32 %v592, %v598
    %v628 = vmul.f32 %v593, %v598
    %v629 = vmul.f32 %v594, %v598
    %v630 = vmul.f32 %v595, %v598
    %v631 = vmul.f32 %v596, %v598
    %v632 = vpack.c.bf16 %v600, %v600
    %v633 = vpack.c.bf16 %v601, %v601
    %v634 = vpack.c.bf16 %v602, %v602
    %v635 = vpack.c.bf16 %v603, %v603
    %v636 = vpack.c.bf16 %v604, %v604
    %v637 = vpack.c.bf16 %v605, %v605
    %v638 = vpack.c.bf16 %v606, %v606
    %v639 = vpack.c.bf16 %v607, %v607
    %v640 = vpack.c.bf16 %v608, %v608
    %v641 = vpack.c.bf16 %v609, %v609
    %v642 = vpack.c.bf16 %v610, %v610
    %v643 = vpack.c.bf16 %v611, %v611
    %v644 = vpack.c.bf16 %v612, %v612
    %v645 = vpack.c.bf16 %v613, %v613
    %v646 = vpack.c.bf16 %v614, %v614
    %v647 = vpack.c.bf16 %v615, %v615
    %v648 = vpack.c.bf16 %v616, %v616
    %v649 = vpack.c.bf16 %v617, %v617
    %v650 = vpack.c.bf16 %v618, %v618
    %v651 = vpack.c.bf16 %v619, %v619
    %v652 = vpack.c.bf16 %v620, %v620
    %v653 = vpack.c.bf16 %v621, %v621
    %v654 = vpack.c.bf16 %v622, %v622
    %v655 = vpack.c.bf16 %v623, %v623
    %v656 = vpack.c.bf16 %v624, %v624
    %v657 = vpack.c.bf16 %v625, %v625
    %v658 = vpack.c.bf16 %v626, %v626
    %v659 = vpack.c.bf16 %v627, %v627
    %v660 = vpack.c.bf16 %v628, %v628
    %v661 = vpack.c.bf16 %v629, %v629
    %v662 = vpack.c.bf16 %v630, %v630
    %v663 = vpack.c.bf16 %v631, %v631
    %v664 = vld [vmem:[#allocation5] sm:$0xff]
    %v665 = vld [vmem:[#allocation5 + $0x8] sm:$0xff]
    %v666 = vld [vmem:[#allocation5 + $0x10] sm:$0xff]
    %v667 = vld [vmem:[#allocation5 + $0x18] sm:$0xff]
    %v668 = vld [vmem:[#allocation5 + $0x20] sm:$0xff]
    %v669 = vld [vmem:[#allocation5 + $0x28] sm:$0xff]
    %v670 = vld [vmem:[#allocation5 + $0x30] sm:$0xff]
    %v671 = vld [vmem:[#allocation5 + $0x38] sm:$0xff]
    %v672 = vld [vmem:[#allocation5 + $0x40] sm:$0xff]
    %v673 = vld [vmem:[#allocation5 + $0x48] sm:$0xff]
    %v674 = vld [vmem:[#allocation5 + $0x50] sm:$0xff]
    %v675 = vld [vmem:[#allocation5 + $0x58] sm:$0xff]
    %v676 = vld [vmem:[#allocation5 + $0x60] sm:$0xff]
    %v677 = vld [vmem:[#allocation5 + $0x68] sm:$0xff]
    %v678 = vld [vmem:[#allocation5 + $0x70] sm:$0xff]
    %v679 = vld [vmem:[#allocation5 + $0x78] sm:$0xff]
    %v712 = vunpack.c.l.b16 %v632
    %v713 = vunpack.c.l.b16 %v633
    %v714 = vunpack.c.l.b16 %v634
    %v715 = vunpack.c.l.b16 %v635
    %v716 = vunpack.c.l.b16 %v636
    %v717 = vunpack.c.l.b16 %v637
    %v718 = vunpack.c.l.b16 %v638
    %v719 = vunpack.c.l.b16 %v639
    %v720 = vunpack.c.l.b16 %v640
    %v721 = vunpack.c.l.b16 %v641
    %v722 = vunpack.c.l.b16 %v642
    %v723 = vunpack.c.l.b16 %v643
    %v724 = vunpack.c.l.b16 %v644
    %v725 = vunpack.c.l.b16 %v645
    %v726 = vunpack.c.l.b16 %v646
    %v727 = vunpack.c.l.b16 %v647
    %v728 = vunpack.c.l.b16 %v648
    %v729 = vunpack.c.l.b16 %v649
    %v730 = vunpack.c.l.b16 %v650
    %v731 = vunpack.c.l.b16 %v651
    %v732 = vunpack.c.l.b16 %v652
    %v733 = vunpack.c.l.b16 %v653
    %v734 = vunpack.c.l.b16 %v654
    %v735 = vunpack.c.l.b16 %v655
    %v736 = vunpack.c.l.b16 %v656
    %v737 = vunpack.c.l.b16 %v657
    %v738 = vunpack.c.l.b16 %v658
    %v739 = vunpack.c.l.b16 %v659
    %v740 = vunpack.c.l.b16 %v660
    %v741 = vunpack.c.l.b16 %v661
    %v742 = vunpack.c.l.b16 %v662
    %v743 = vunpack.c.l.b16 %v663
    %v744 = vpack.c.b16 %v713, %v712
    %v745 = vpack.c.b16 %v715, %v714
    %v746 = vpack.c.b16 %v717, %v716
    %v747 = vpack.c.b16 %v719, %v718
    %v748 = vpack.c.b16 %v721, %v720
    %v749 = vpack.c.b16 %v723, %v722
    %v750 = vpack.c.b16 %v725, %v724
    %v751 = vpack.c.b16 %v727, %v726
    %v752 = vpack.c.b16 %v729, %v728
    %v753 = vpack.c.b16 %v731, %v730
    %v754 = vpack.c.b16 %v733, %v732
    %v755 = vpack.c.b16 %v735, %v734
    %v756 = vpack.c.b16 %v737, %v736
    %v757 = vpack.c.b16 %v739, %v738
    %v758 = vpack.c.b16 %v741, %v740
    %v759 = vpack.c.b16 %v743, %v742
    %v792 = vunpack.c.l.b16 %v664
    %v793 = vunpack.c.h.b16 %v664
    %v794 = vunpack.c.l.b16 %v665
    %v795 = vunpack.c.h.b16 %v665
    %v796 = vunpack.c.l.b16 %v666
    %v797 = vunpack.c.h.b16 %v666
    %v798 = vunpack.c.l.b16 %v667
    %v799 = vunpack.c.h.b16 %v667
    %v800 = vunpack.c.l.b16 %v668
    %v801 = vunpack.c.h.b16 %v668
    %v802 = vunpack.c.l.b16 %v669
    %v803 = vunpack.c.h.b16 %v669
    %v804 = vunpack.c.l.b16 %v670
    %v805 = vunpack.c.h.b16 %v670
    %v806 = vunpack.c.l.b16 %v671
    %v807 = vunpack.c.h.b16 %v671
    %v808 = vunpack.c.l.b16 %v672
    %v809 = vunpack.c.h.b16 %v672
    %v810 = vunpack.c.l.b16 %v673
    %v811 = vunpack.c.h.b16 %v673
    %v812 = vunpack.c.l.b16 %v674
    %v813 = vunpack.c.h.b16 %v674
    %v814 = vunpack.c.l.b16 %v675
    %v815 = vunpack.c.h.b16 %v675
    %v816 = vunpack.c.l.b16 %v676
    %v817 = vunpack.c.h.b16 %v676
    %v818 = vunpack.c.l.b16 %v677
    %v819 = vunpack.c.h.b16 %v677
    %v820 = vunpack.c.l.b16 %v678
    %v821 = vunpack.c.h.b16 %v678
    %v822 = vunpack.c.l.b16 %v679
    %v823 = vunpack.c.h.b16 %v679
    %v824 = vpack.c.b16 %v794, %v792
    %v825 = vpack.c.b16 %v795, %v793
    %v826 = vpack.c.b16 %v798, %v796
    %v827 = vpack.c.b16 %v799, %v797
    %v828 = vpack.c.b16 %v802, %v800
    %v829 = vpack.c.b16 %v803, %v801
    %v830 = vpack.c.b16 %v806, %v804
    %v831 = vpack.c.b16 %v807, %v805
    %v832 = vpack.c.b16 %v810, %v808
    %v833 = vpack.c.b16 %v811, %v809
    %v834 = vpack.c.b16 %v814, %v812
    %v835 = vpack.c.b16 %v815, %v813
    %v836 = vpack.c.b16 %v818, %v816
    %v837 = vpack.c.b16 %v819, %v817
    %v838 = vpack.c.b16 %v822, %v820
    %v839 = vpack.c.b16 %v823, %v821
    %856 = vmatpush.bf16.msra.mxu0 %v838
    %857 = vmatpush.bf16.msra.mxu0 %v836
    %858 = vmatpush.bf16.msra.mxu0 %v834
    %859 = vmatpush.bf16.msra.mxu0 %v832
    %860 = vmatpush.bf16.msra.mxu0 %v830
    %861 = vmatpush.bf16.msra.mxu0 %v828
    %862 = vmatpush.bf16.msra.mxu0 %v826
    %863 = vmatpush.bf16.msra.mxu0 %v824
    %864 = vmatmul.bf16.gmra.mxu0 %v744
    %v865 = vpop.f32.mrf.mxu0
    %v866 = vadd.f32 0.0, %v865
    %v867 = vpop.f32.mrf.mxu0
    %v868 = vadd.f32 0.0, %v867
    %869 = vmatmul.bf16.gmra.mxu0 %v745
    %v870 = vpop.f32.mrf.mxu0
    %v871 = vadd.f32 0.0, %v870
    %v872 = vpop.f32.mrf.mxu0
    %v873 = vadd.f32 0.0, %v872
    %874 = vmatmul.bf16.gmra.mxu0 %v746
    %v875 = vpop.f32.mrf.mxu0
    %v876 = vadd.f32 0.0, %v875
    %v877 = vpop.f32.mrf.mxu0
    %v878 = vadd.f32 0.0, %v877
    %879 = vmatmul.bf16.gmra.mxu0 %v747
    %v880 = vpop.f32.mrf.mxu0
    %v881 = vadd.f32 0.0, %v880
    %v882 = vpop.f32.mrf.mxu0
    %v883 = vadd.f32 0.0, %v882
    %884 = vmatmul.bf16.gmra.mxu0 %v748
    %v885 = vpop.f32.mrf.mxu0
    %v886 = vadd.f32 0.0, %v885
    %v887 = vpop.f32.mrf.mxu0
    %v888 = vadd.f32 0.0, %v887
    %889 = vmatmul.bf16.gmra.mxu0 %v749
    %v890 = vpop.f32.mrf.mxu0
    %v891 = vadd.f32 0.0, %v890
    %v892 = vpop.f32.mrf.mxu0
    %v893 = vadd.f32 0.0, %v892
    %894 = vmatmul.bf16.gmra.mxu0 %v750
    %v895 = vpop.f32.mrf.mxu0
    %v896 = vadd.f32 0.0, %v895
    %v897 = vpop.f32.mrf.mxu0
    %v898 = vadd.f32 0.0, %v897
    %899 = vmatmul.bf16.gmra.mxu0 %v751
    %v900 = vpop.f32.mrf.mxu0
    %v901 = vadd.f32 0.0, %v900
    %v902 = vpop.f32.mrf.mxu0
    %v903 = vadd.f32 0.0, %v902
    %904 = vmatmul.bf16.gmra.mxu0 %v752
    %v905 = vpop.f32.mrf.mxu0
    %v906 = vadd.f32 0.0, %v905
    %v907 = vpop.f32.mrf.mxu0
    %v908 = vadd.f32 0.0, %v907
    %909 = vmatmul.bf16.gmra.mxu0 %v753
    %v910 = vpop.f32.mrf.mxu0
    %v911 = vadd.f32 0.0, %v910
    %v912 = vpop.f32.mrf.mxu0
    %v913 = vadd.f32 0.0, %v912
    %914 = vmatmul.bf16.gmra.mxu0 %v754
    %v915 = vpop.f32.mrf.mxu0
    %v916 = vadd.f32 0.0, %v915
    %v917 = vpop.f32.mrf.mxu0
    %v918 = vadd.f32 0.0, %v917
    %919 = vmatmul.bf16.gmra.mxu0 %v755
    %v920 = vpop.f32.mrf.mxu0
    %v921 = vadd.f32 0.0, %v920
    %v922 = vpop.f32.mrf.mxu0
    %v923 = vadd.f32 0.0, %v922
    %924 = vmatmul.bf16.gmra.mxu0 %v756
    %v925 = vpop.f32.mrf.mxu0
    %v926 = vadd.f32 0.0, %v925
    %v927 = vpop.f32.mrf.mxu0
    %v928 = vadd.f32 0.0, %v927
    %929 = vmatmul.bf16.gmra.mxu0 %v757
    %v930 = vpop.f32.mrf.mxu0
    %v931 = vadd.f32 0.0, %v930
    %v932 = vpop.f32.mrf.mxu0
    %v933 = vadd.f32 0.0, %v932
    %934 = vmatmul.bf16.gmra.mxu0 %v758
    %v935 = vpop.f32.mrf.mxu0
    %v936 = vadd.f32 0.0, %v935
    %v937 = vpop.f32.mrf.mxu0
    %v938 = vadd.f32 0.0, %v937
    %939 = vmatmul.bf16.gmra.mxu0 %v759
    %v940 = vpop.f32.mrf.mxu0
    %v941 = vadd.f32 0.0, %v940
    %v942 = vpop.f32.mrf.mxu0
    %v943 = vadd.f32 0.0, %v942
    %944 = vdwg.mxu0
    %945 = vmatpush.bf16.msra.mxu0 %v839
    %946 = vmatpush.bf16.msra.mxu0 %v837
    %947 = vmatpush.bf16.msra.mxu0 %v835
    %948 = vmatpush.bf16.msra.mxu0 %v833
    %949 = vmatpush.bf16.msra.mxu0 %v831
    %950 = vmatpush.bf16.msra.mxu0 %v829
    %951 = vmatpush.bf16.msra.mxu0 %v827
    %952 = vmatpush.bf16.msra.mxu0 %v825
    %953 = vmatmul.bf16.gmra.mxu0 %v744
    %v954 = vpop.f32.mrf.mxu0
    %v955 = vadd.f32 0.0, %v954
    %v956 = vpop.f32.mrf.mxu0
    %v957 = vadd.f32 0.0, %v956
    %958 = vmatmul.bf16.gmra.mxu0 %v745
    %v959 = vpop.f32.mrf.mxu0
    %v960 = vadd.f32 0.0, %v959
    %v961 = vpop.f32.mrf.mxu0
    %v962 = vadd.f32 0.0, %v961
    %963 = vmatmul.bf16.gmra.mxu0 %v746
    %v964 = vpop.f32.mrf.mxu0
    %v965 = vadd.f32 0.0, %v964
    %v966 = vpop.f32.mrf.mxu0
    %v967 = vadd.f32 0.0, %v966
    %968 = vmatmul.bf16.gmra.mxu0 %v747
    %v969 = vpop.f32.mrf.mxu0
    %v970 = vadd.f32 0.0, %v969
    %v971 = vpop.f32.mrf.mxu0
    %v972 = vadd.f32 0.0, %v971
    %973 = vmatmul.bf16.gmra.mxu0 %v748
    %v974 = vpop.f32.mrf.mxu0
    %v975 = vadd.f32 0.0, %v974
    %v976 = vpop.f32.mrf.mxu0
    %v977 = vadd.f32 0.0, %v976
    %978 = vmatmul.bf16.gmra.mxu0 %v749
    %v979 = vpop.f32.mrf.mxu0
    %v980 = vadd.f32 0.0, %v979
    %v981 = vpop.f32.mrf.mxu0
    %v982 = vadd.f32 0.0, %v981
    %983 = vmatmul.bf16.gmra.mxu0 %v750
    %v984 = vpop.f32.mrf.mxu0
    %v985 = vadd.f32 0.0, %v984
    %v986 = vpop.f32.mrf.mxu0
    %v987 = vadd.f32 0.0, %v986
    %988 = vmatmul.bf16.gmra.mxu0 %v751
    %v989 = vpop.f32.mrf.mxu0
    %v990 = vadd.f32 0.0, %v989
    %v991 = vpop.f32.mrf.mxu0
    %v992 = vadd.f32 0.0, %v991
    %993 = vmatmul.bf16.gmra.mxu0 %v752
    %v994 = vpop.f32.mrf.mxu0
    %v995 = vadd.f32 0.0, %v994
    %v996 = vpop.f32.mrf.mxu0
    %v997 = vadd.f32 0.0, %v996
    %998 = vmatmul.bf16.gmra.mxu0 %v753
    %v999 = vpop.f32.mrf.mxu0
    %v1000 = vadd.f32 0.0, %v999
    %v1001 = vpop.f32.mrf.mxu0
    %v1002 = vadd.f32 0.0, %v1001
    %1003 = vmatmul.bf16.gmra.mxu0 %v754
    %v1004 = vpop.f32.mrf.mxu0
    %v1005 = vadd.f32 0.0, %v1004
    %v1006 = vpop.f32.mrf.mxu0
    %v1007 = vadd.f32 0.0, %v1006
    %1008 = vmatmul.bf16.gmra.mxu0 %v755
    %v1009 = vpop.f32.mrf.mxu0
    %v1010 = vadd.f32 0.0, %v1009
    %v1011 = vpop.f32.mrf.mxu0
    %v1012 = vadd.f32 0.0, %v1011
    %1013 = vmatmul.bf16.gmra.mxu0 %v756
    %v1014 = vpop.f32.mrf.mxu0
    %v1015 = vadd.f32 0.0, %v1014
    %v1016 = vpop.f32.mrf.mxu0
    %v1017 = vadd.f32 0.0, %v1016
    %1018 = vmatmul.bf16.gmra.mxu0 %v757
    %v1019 = vpop.f32.mrf.mxu0
    %v1020 = vadd.f32 0.0, %v1019
    %v1021 = vpop.f32.mrf.mxu0
    %v1022 = vadd.f32 0.0, %v1021
    %1023 = vmatmul.bf16.gmra.mxu0 %v758
    %v1024 = vpop.f32.mrf.mxu0
    %v1025 = vadd.f32 0.0, %v1024
    %v1026 = vpop.f32.mrf.mxu0
    %v1027 = vadd.f32 0.0, %v1026
    %1028 = vmatmul.bf16.gmra.mxu0 %v759
    %v1029 = vpop.f32.mrf.mxu0
    %v1030 = vadd.f32 0.0, %v1029
    %v1031 = vpop.f32.mrf.mxu0
    %v1032 = vadd.f32 0.0, %v1031
    %1033 = vdwg.mxu0
    %v1034 = vmax.f32 %v866, %v955
    %1035 = vmax.xlane.f32.xlu0 %v1034
    %v1036 = vpop.xlane.xlu0 %1035
    %v1037 = vmax.f32 %v868, %v957
    %1038 = vmax.xlane.f32.xlu0 %v1037
    %v1039 = vpop.xlane.xlu0 %1038
    %v1040 = vmax.f32 %v871, %v960
    %1041 = vmax.xlane.f32.xlu0 %v1040
    %v1042 = vpop.xlane.xlu0 %1041
    %v1043 = vmax.f32 %v873, %v962
    %1044 = vmax.xlane.f32.xlu0 %v1043
    %v1045 = vpop.xlane.xlu0 %1044
    %v1046 = vmax.f32 %v876, %v965
    %1047 = vmax.xlane.f32.xlu0 %v1046
    %v1048 = vpop.xlane.xlu0 %1047
    %v1049 = vmax.f32 %v878, %v967
    %1050 = vmax.xlane.f32.xlu0 %v1049
    %v1051 = vpop.xlane.xlu0 %1050
    %v1052 = vmax.f32 %v881, %v970
    %1053 = vmax.xlane.f32.xlu0 %v1052
    %v1054 = vpop.xlane.xlu0 %1053
    %v1055 = vmax.f32 %v883, %v972
    %1056 = vmax.xlane.f32.xlu0 %v1055
    %v1057 = vpop.xlane.xlu0 %1056
    %v1058 = vmax.f32 %v886, %v975
    %1059 = vmax.xlane.f32.xlu0 %v1058
    %v1060 = vpop.xlane.xlu0 %1059
    %v1061 = vmax.f32 %v888, %v977
    %1062 = vmax.xlane.f32.xlu0 %v1061
    %v1063 = vpop.xlane.xlu0 %1062
    %v1064 = vmax.f32 %v891, %v980
    %1065 = vmax.xlane.f32.xlu0 %v1064
    %v1066 = vpop.xlane.xlu0 %1065
    %v1067 = vmax.f32 %v893, %v982
    %1068 = vmax.xlane.f32.xlu0 %v1067
    %v1069 = vpop.xlane.xlu0 %1068
    %v1070 = vmax.f32 %v896, %v985
    %1071 = vmax.xlane.f32.xlu0 %v1070
    %v1072 = vpop.xlane.xlu0 %1071
    %v1073 = vmax.f32 %v898, %v987
    %1074 = vmax.xlane.f32.xlu0 %v1073
    %v1075 = vpop.xlane.xlu0 %1074
    %v1076 = vmax.f32 %v901, %v990
    %1077 = vmax.xlane.f32.xlu0 %v1076
    %v1078 = vpop.xlane.xlu0 %1077
    %v1079 = vmax.f32 %v903, %v992
    %1080 = vmax.xlane.f32.xlu0 %v1079
    %v1081 = vpop.xlane.xlu0 %1080
    %v1082 = vmax.f32 %v906, %v995
    %1083 = vmax.xlane.f32.xlu0 %v1082
    %v1084 = vpop.xlane.xlu0 %1083
    %v1085 = vmax.f32 %v908, %v997
    %1086 = vmax.xlane.f32.xlu0 %v1085
    %v1087 = vpop.xlane.xlu0 %1086
    %v1088 = vmax.f32 %v911, %v1000
    %1089 = vmax.xlane.f32.xlu0 %v1088
    %v1090 = vpop.xlane.xlu0 %1089
    %v1091 = vmax.f32 %v913, %v1002
    %1092 = vmax.xlane.f32.xlu0 %v1091
    %v1093 = vpop.xlane.xlu0 %1092
    %v1094 = vmax.f32 %v916, %v1005
    %1095 = vmax.xlane.f32.xlu0 %v1094
    %v1096 = vpop.xlane.xlu0 %1095
    %v1097 = vmax.f32 %v918, %v1007
    %1098 = vmax.xlane.f32.xlu0 %v1097
    %v1099 = vpop.xlane.xlu0 %1098
    %v1100 = vmax.f32 %v921, %v1010
    %1101 = vmax.xlane.f32.xlu0 %v1100
    %v1102 = vpop.xlane.xlu0 %1101
    %v1103 = vmax.f32 %v923, %v1012
    %1104 = vmax.xlane.f32.xlu0 %v1103
    %v1105 = vpop.xlane.xlu0 %1104
    %v1106 = vmax.f32 %v926, %v1015
    %1107 = vmax.xlane.f32.xlu0 %v1106
    %v1108 = vpop.xlane.xlu0 %1107
    %v1109 = vmax.f32 %v928, %v1017
    %1110 = vmax.xlane.f32.xlu0 %v1109
    %v1111 = vpop.xlane.xlu0 %1110
    %v1112 = vmax.f32 %v931, %v1020
    %1113 = vmax.xlane.f32.xlu0 %v1112
    %v1114 = vpop.xlane.xlu0 %1113
    %v1115 = vmax.f32 %v933, %v1022
    %1116 = vmax.xlane.f32.xlu0 %v1115
    %v1117 = vpop.xlane.xlu0 %1116
    %v1118 = vmax.f32 %v936, %v1025
    %1119 = vmax.xlane.f32.xlu0 %v1118
    %v1120 = vpop.xlane.xlu0 %1119
    %v1121 = vmax.f32 %v938, %v1027
    %1122 = vmax.xlane.f32.xlu0 %v1121
    %v1123 = vpop.xlane.xlu0 %1122
    %v1124 = vmax.f32 %v941, %v1030
    %1125 = vmax.xlane.f32.xlu0 %v1124
    %v1126 = vpop.xlane.xlu0 %1125
    %v1127 = vmax.f32 %v943, %v1032
    %1128 = vmax.xlane.f32.xlu0 %v1127
    %v1129 = vpop.xlane.xlu0 %1128
    %v1130 = vlaneseq
    %v1131 = vand.u32 %v1130, 127
    %v1132 = vadd.s32 %v1131, 128
    %vm1133 = vcmp.ge.f32.partialorder %v866, %v1036
    %vm1134 = vcmp.ge.f32.partialorder %v955, %v1036
    %vm1135 = vcmp.ge.f32.partialorder %v868, %v1039
    %vm1136 = vcmp.ge.f32.partialorder %v957, %v1039
    %vm1137 = vcmp.ge.f32.partialorder %v871, %v1042
    %vm1138 = vcmp.ge.f32.partialorder %v960, %v1042
    %vm1139 = vcmp.ge.f32.partialorder %v873, %v1045
    %vm1140 = vcmp.ge.f32.partialorder %v962, %v1045
    %vm1141 = vcmp.ge.f32.partialorder %v876, %v1048
    %vm1142 = vcmp.ge.f32.partialorder %v965, %v1048
    %vm1143 = vcmp.ge.f32.partialorder %v878, %v1051
    %vm1144 = vcmp.ge.f32.partialorder %v967, %v1051
    %vm1145 = vcmp.ge.f32.partialorder %v881, %v1054
    %vm1146 = vcmp.ge.f32.partialorder %v970, %v1054
    %vm1147 = vcmp.ge.f32.partialorder %v883, %v1057
    %vm1148 = vcmp.ge.f32.partialorder %v972, %v1057
    %vm1149 = vcmp.ge.f32.partialorder %v886, %v1060
    %vm1150 = vcmp.ge.f32.partialorder %v975, %v1060
    %vm1151 = vcmp.ge.f32.partialorder %v888, %v1063
    %vm1152 = vcmp.ge.f32.partialorder %v977, %v1063
    %vm1153 = vcmp.ge.f32.partialorder %v891, %v1066
    %vm1154 = vcmp.ge.f32.partialorder %v980, %v1066
    %vm1155 = vcmp.ge.f32.partialorder %v893, %v1069
    %vm1156 = vcmp.ge.f32.partialorder %v982, %v1069
    %vm1157 = vcmp.ge.f32.partialorder %v896, %v1072
    %vm1158 = vcmp.ge.f32.partialorder %v985, %v1072
    %vm1159 = vcmp.ge.f32.partialorder %v898, %v1075
    %vm1160 = vcmp.ge.f32.partialorder %v987, %v1075
    %vm1161 = vcmp.ge.f32.partialorder %v901, %v1078
    %vm1162 = vcmp.ge.f32.partialorder %v990, %v1078
    %vm1163 = vcmp.ge.f32.partialorder %v903, %v1081
    %vm1164 = vcmp.ge.f32.partialorder %v992, %v1081
    %vm1165 = vcmp.ge.f32.partialorder %v906, %v1084
    %vm1166 = vcmp.ge.f32.partialorder %v995, %v1084
    %vm1167 = vcmp.ge.f32.partialorder %v908, %v1087
    %vm1168 = vcmp.ge.f32.partialorder %v997, %v1087
    %vm1169 = vcmp.ge.f32.partialorder %v911, %v1090
    %vm1170 = vcmp.ge.f32.partialorder %v1000, %v1090
    %vm1171 = vcmp.ge.f32.partialorder %v913, %v1093
    %vm1172 = vcmp.ge.f32.partialorder %v1002, %v1093
    %vm1173 = vcmp.ge.f32.partialorder %v916, %v1096
    %vm1174 = vcmp.ge.f32.partialorder %v1005, %v1096
    %vm1175 = vcmp.ge.f32.partialorder %v918, %v1099
    %vm1176 = vcmp.ge.f32.partialorder %v1007, %v1099
    %vm1177 = vcmp.ge.f32.partialorder %v921, %v1102
    %vm1178 = vcmp.ge.f32.partialorder %v1010, %v1102
    %vm1179 = vcmp.ge.f32.partialorder %v923, %v1105
    %vm1180 = vcmp.ge.f32.partialorder %v1012, %v1105
    %vm1181 = vcmp.ge.f32.partialorder %v926, %v1108
    %vm1182 = vcmp.ge.f32.partialorder %v1015, %v1108
    %vm1183 = vcmp.ge.f32.partialorder %v928, %v1111
    %vm1184 = vcmp.ge.f32.partialorder %v1017, %v1111
    %vm1185 = vcmp.ge.f32.partialorder %v931, %v1114
    %vm1186 = vcmp.ge.f32.partialorder %v1020, %v1114
    %vm1187 = vcmp.ge.f32.partialorder %v933, %v1117
    %vm1188 = vcmp.ge.f32.partialorder %v1022, %v1117
    %vm1189 = vcmp.ge.f32.partialorder %v936, %v1120
    %vm1190 = vcmp.ge.f32.partialorder %v1025, %v1120
    %vm1191 = vcmp.ge.f32.partialorder %v938, %v1123
    %vm1192 = vcmp.ge.f32.partialorder %v1027, %v1123
    %vm1193 = vcmp.ge.f32.partialorder %v941, %v1126
    %vm1194 = vcmp.ge.f32.partialorder %v1030, %v1126
    %vm1195 = vcmp.ge.f32.partialorder %v943, %v1129
    %vm1196 = vcmp.ge.f32.partialorder %v1032, %v1129
    %v1197 = vsel %vm1133, %v1131, 256
    %v1198 = vsel %vm1134, %v1132, 256
    %v1199 = vsel %vm1135, %v1131, 256
    %v1200 = vsel %vm1136, %v1132, 256
    %v1201 = vsel %vm1137, %v1131, 256
    %v1202 = vsel %vm1138, %v1132, 256
    %v1203 = vsel %vm1139, %v1131, 256
    %v1204 = vsel %vm1140, %v1132, 256
    %v1205 = vsel %vm1141, %v1131, 256
    %v1206 = vsel %vm1142, %v1132, 256
    %v1207 = vsel %vm1143, %v1131, 256
    %v1208 = vsel %vm1144, %v1132, 256
    %v1209 = vsel %vm1145, %v1131, 256
    %v1210 = vsel %vm1146, %v1132, 256
    %v1211 = vsel %vm1147, %v1131, 256
    %v1212 = vsel %vm1148, %v1132, 256
    %v1213 = vsel %vm1149, %v1131, 256
    %v1214 = vsel %vm1150, %v1132, 256
    %v1215 = vsel %vm1151, %v1131, 256
    %v1216 = vsel %vm1152, %v1132, 256
    %v1217 = vsel %vm1153, %v1131, 256
    %v1218 = vsel %vm1154, %v1132, 256
    %v1219 = vsel %vm1155, %v1131, 256
    %v1220 = vsel %vm1156, %v1132, 256
    %v1221 = vsel %vm1157, %v1131, 256
    %v1222 = vsel %vm1158, %v1132, 256
    %v1223 = vsel %vm1159, %v1131, 256
    %v1224 = vsel %vm1160, %v1132, 256
    %v1225 = vsel %vm1161, %v1131, 256
    %v1226 = vsel %vm1162, %v1132, 256
    %v1227 = vsel %vm1163, %v1131, 256
    %v1228 = vsel %vm1164, %v1132, 256
    %v1229 = vsel %vm1165, %v1131, 256
    %v1230 = vsel %vm1166, %v1132, 256
    %v1231 = vsel %vm1167, %v1131, 256
    %v1232 = vsel %vm1168, %v1132, 256
    %v1233 = vsel %vm1169, %v1131, 256
    %v1234 = vsel %vm1170, %v1132, 256
    %v1235 = vsel %vm1171, %v1131, 256
    %v1236 = vsel %vm1172, %v1132, 256
    %v1237 = vsel %vm1173, %v1131, 256
    %v1238 = vsel %vm1174, %v1132, 256
    %v1239 = vsel %vm1175, %v1131, 256
    %v1240 = vsel %vm1176, %v1132, 256
    %v1241 = vsel %vm1177, %v1131, 256
    %v1242 = vsel %vm1178, %v1132, 256
    %v1243 = vsel %vm1179, %v1131, 256
    %v1244 = vsel %vm1180, %v1132, 256
    %v1245 = vsel %vm1181, %v1131, 256
    %v1246 = vsel %vm1182, %v1132, 256
    %v1247 = vsel %vm1183, %v1131, 256
    %v1248 = vsel %vm1184, %v1132, 256
    %v1249 = vsel %vm1185, %v1131, 256
    %v1250 = vsel %vm1186, %v1132, 256
    %v1251 = vsel %vm1187, %v1131, 256
    %v1252 = vsel %vm1188, %v1132, 256
    %v1253 = vsel %vm1189, %v1131, 256
    %v1254 = vsel %vm1190, %v1132, 256
    %v1255 = vsel %vm1191, %v1131, 256
    %v1256 = vsel %vm1192, %v1132, 256
    %v1257 = vsel %vm1193, %v1131, 256
    %v1258 = vsel %vm1194, %v1132, 256
    %v1259 = vsel %vm1195, %v1131, 256
    %v1260 = vsel %vm1196, %v1132, 256
    %vm1261 = vcmp.lt.s32.totalorder %v1197, %v1198
    %v1262 = vsel %vm1261, %v1197, %v1198
    %v1263 = vand.u32 %v1262, 65535
    %v1264 = vshra.s32 %v1262, 16
    %v1265 = vcvt.s32.f32 %v1263
    %v1266 = vcvt.s32.f32 %v1264
    %1267 = vmin.xlane.f32.xlu0 %v1266
    %v1268 = vpop.xlane.xlu0 %1267
    %vm1269 = vcmp.eq.f32.partialorder %v1266, %v1268
    %v1270 = vsel %vm1269, %v1265, inf
    %1271 = vmin.xlane.f32.xlu0 %v1270
    %v1272 = vpop.xlane.xlu0 %1271
    %v1273 = vcvt.f32.s32 %v1272
    %v1274 = vcvt.f32.s32 %v1268
    %v1275 = vshll.u32 %v1274, 16
    %v1276 = vadd.s32 %v1275, %v1273
    %vm1277 = vcmp.lt.s32.totalorder %v1199, %v1200
    %v1278 = vsel %vm1277, %v1199, %v1200
    %v1279 = vand.u32 %v1278, 65535
    %v1280 = vshra.s32 %v1278, 16
    %v1281 = vcvt.s32.f32 %v1279
    %v1282 = vcvt.s32.f32 %v1280
    %1283 = vmin.xlane.f32.xlu0 %v1282
    %v1284 = vpop.xlane.xlu0 %1283
    %vm1285 = vcmp.eq.f32.partialorder %v1282, %v1284
    %v1286 = vsel %vm1285, %v1281, inf
    %1287 = vmin.xlane.f32.xlu0 %v1286
    %v1288 = vpop.xlane.xlu0 %1287
    %v1289 = vcvt.f32.s32 %v1288
    %v1290 = vcvt.f32.s32 %v1284
    %v1291 = vshll.u32 %v1290, 16
    %v1292 = vadd.s32 %v1291, %v1289
    %vm1293 = vcmp.lt.s32.totalorder %v1201, %v1202
    %v1294 = vsel %vm1293, %v1201, %v1202
    %v1295 = vand.u32 %v1294, 65535
    %v1296 = vshra.s32 %v1294, 16
    %v1297 = vcvt.s32.f32 %v1295
    %v1298 = vcvt.s32.f32 %v1296
    %1299 = vmin.xlane.f32.xlu0 %v1298
    %v1300 = vpop.xlane.xlu0 %1299
    %vm1301 = vcmp.eq.f32.partialorder %v1298, %v1300
    %v1302 = vsel %vm1301, %v1297, inf
    %1303 = vmin.xlane.f32.xlu0 %v1302
    %v1304 = vpop.xlane.xlu0 %1303
    %v1305 = vcvt.f32.s32 %v1304
    %v1306 = vcvt.f32.s32 %v1300
    %v1307 = vshll.u32 %v1306, 16
    %v1308 = vadd.s32 %v1307, %v1305
    %vm1309 = vcmp.lt.s32.totalorder %v1203, %v1204
    %v1310 = vsel %vm1309, %v1203, %v1204
    %v1311 = vand.u32 %v1310, 65535
    %v1312 = vshra.s32 %v1310, 16
    %v1313 = vcvt.s32.f32 %v1311
    %v1314 = vcvt.s32.f32 %v1312
    %1315 = vmin.xlane.f32.xlu0 %v1314
    %v1316 = vpop.xlane.xlu0 %1315
    %vm1317 = vcmp.eq.f32.partialorder %v1314, %v1316
    %v1318 = vsel %vm1317, %v1313, inf
    %1319 = vmin.xlane.f32.xlu0 %v1318
    %v1320 = vpop.xlane.xlu0 %1319
    %v1321 = vcvt.f32.s32 %v1320
    %v1322 = vcvt.f32.s32 %v1316
    %v1323 = vshll.u32 %v1322, 16
    %v1324 = vadd.s32 %v1323, %v1321
    %vm1325 = vcmp.lt.s32.totalorder %v1205, %v1206
    %v1326 = vsel %vm1325, %v1205, %v1206
    %v1327 = vand.u32 %v1326, 65535
    %v1328 = vshra.s32 %v1326, 16
    %v1329 = vcvt.s32.f32 %v1327
    %v1330 = vcvt.s32.f32 %v1328
    %1331 = vmin.xlane.f32.xlu0 %v1330
    %v1332 = vpop.xlane.xlu0 %1331
    %vm1333 = vcmp.eq.f32.partialorder %v1330, %v1332
    %v1334 = vsel %vm1333, %v1329, inf
    %1335 = vmin.xlane.f32.xlu0 %v1334
    %v1336 = vpop.xlane.xlu0 %1335
    %v1337 = vcvt.f32.s32 %v1336
    %v1338 = vcvt.f32.s32 %v1332
    %v1339 = vshll.u32 %v1338, 16
    %v1340 = vadd.s32 %v1339, %v1337
    %vm1341 = vcmp.lt.s32.totalorder %v1207, %v1208
    %v1342 = vsel %vm1341, %v1207, %v1208
    %v1343 = vand.u32 %v1342, 65535
    %v1344 = vshra.s32 %v1342, 16
    %v1345 = vcvt.s32.f32 %v1343
    %v1346 = vcvt.s32.f32 %v1344
    %1347 = vmin.xlane.f32.xlu0 %v1346
    %v1348 = vpop.xlane.xlu0 %1347
    %vm1349 = vcmp.eq.f32.partialorder %v1346, %v1348
    %v1350 = vsel %vm1349, %v1345, inf
    %1351 = vmin.xlane.f32.xlu0 %v1350
    %v1352 = vpop.xlane.xlu0 %1351
    %v1353 = vcvt.f32.s32 %v1352
    %v1354 = vcvt.f32.s32 %v1348
    %v1355 = vshll.u32 %v1354, 16
    %v1356 = vadd.s32 %v1355, %v1353
    %vm1357 = vcmp.lt.s32.totalorder %v1209, %v1210
    %v1358 = vsel %vm1357, %v1209, %v1210
    %v1359 = vand.u32 %v1358, 65535
    %v1360 = vshra.s32 %v1358, 16
    %v1361 = vcvt.s32.f32 %v1359
    %v1362 = vcvt.s32.f32 %v1360
    %1363 = vmin.xlane.f32.xlu0 %v1362
    %v1364 = vpop.xlane.xlu0 %1363
    %vm1365 = vcmp.eq.f32.partialorder %v1362, %v1364
    %v1366 = vsel %vm1365, %v1361, inf
    %1367 = vmin.xlane.f32.xlu0 %v1366
    %v1368 = vpop.xlane.xlu0 %1367
    %v1369 = vcvt.f32.s32 %v1368
    %v1370 = vcvt.f32.s32 %v1364
    %v1371 = vshll.u32 %v1370, 16
    %v1372 = vadd.s32 %v1371, %v1369
    %vm1373 = vcmp.lt.s32.totalorder %v1211, %v1212
    %v1374 = vsel %vm1373, %v1211, %v1212
    %v1375 = vand.u32 %v1374, 65535
    %v1376 = vshra.s32 %v1374, 16
    %v1377 = vcvt.s32.f32 %v1375
    %v1378 = vcvt.s32.f32 %v1376
    %1379 = vmin.xlane.f32.xlu0 %v1378
    %v1380 = vpop.xlane.xlu0 %1379
    %vm1381 = vcmp.eq.f32.partialorder %v1378, %v1380
    %v1382 = vsel %vm1381, %v1377, inf
    %1383 = vmin.xlane.f32.xlu0 %v1382
    %v1384 = vpop.xlane.xlu0 %1383
    %v1385 = vcvt.f32.s32 %v1384
    %v1386 = vcvt.f32.s32 %v1380
    %v1387 = vshll.u32 %v1386, 16
    %v1388 = vadd.s32 %v1387, %v1385
    %vm1389 = vcmp.lt.s32.totalorder %v1213, %v1214
    %v1390 = vsel %vm1389, %v1213, %v1214
    %v1391 = vand.u32 %v1390, 65535
    %v1392 = vshra.s32 %v1390, 16
    %v1393 = vcvt.s32.f32 %v1391
    %v1394 = vcvt.s32.f32 %v1392
    %1395 = vmin.xlane.f32.xlu0 %v1394
    %v1396 = vpop.xlane.xlu0 %1395
    %vm1397 = vcmp.eq.f32.partialorder %v1394, %v1396
    %v1398 = vsel %vm1397, %v1393, inf
    %1399 = vmin.xlane.f32.xlu0 %v1398
    %v1400 = vpop.xlane.xlu0 %1399
    %v1401 = vcvt.f32.s32 %v1400
    %v1402 = vcvt.f32.s32 %v1396
    %v1403 = vshll.u32 %v1402, 16
    %v1404 = vadd.s32 %v1403, %v1401
    %vm1405 = vcmp.lt.s32.totalorder %v1215, %v1216
    %v1406 = vsel %vm1405, %v1215, %v1216
    %v1407 = vand.u32 %v1406, 65535
    %v1408 = vshra.s32 %v1406, 16
    %v1409 = vcvt.s32.f32 %v1407
    %v1410 = vcvt.s32.f32 %v1408
    %1411 = vmin.xlane.f32.xlu0 %v1410
    %v1412 = vpop.xlane.xlu0 %1411
    %vm1413 = vcmp.eq.f32.partialorder %v1410, %v1412
    %v1414 = vsel %vm1413, %v1409, inf
    %1415 = vmin.xlane.f32.xlu0 %v1414
    %v1416 = vpop.xlane.xlu0 %1415
    %v1417 = vcvt.f32.s32 %v1416
    %v1418 = vcvt.f32.s32 %v1412
    %v1419 = vshll.u32 %v1418, 16
    %v1420 = vadd.s32 %v1419, %v1417
    %vm1421 = vcmp.lt.s32.totalorder %v1217, %v1218
    %v1422 = vsel %vm1421, %v1217, %v1218
    %v1423 = vand.u32 %v1422, 65535
    %v1424 = vshra.s32 %v1422, 16
    %v1425 = vcvt.s32.f32 %v1423
    %v1426 = vcvt.s32.f32 %v1424
    %1427 = vmin.xlane.f32.xlu0 %v1426
    %v1428 = vpop.xlane.xlu0 %1427
    %vm1429 = vcmp.eq.f32.partialorder %v1426, %v1428
    %v1430 = vsel %vm1429, %v1425, inf
    %1431 = vmin.xlane.f32.xlu0 %v1430
    %v1432 = vpop.xlane.xlu0 %1431
    %v1433 = vcvt.f32.s32 %v1432
    %v1434 = vcvt.f32.s32 %v1428
    %v1435 = vshll.u32 %v1434, 16
    %v1436 = vadd.s32 %v1435, %v1433
    %vm1437 = vcmp.lt.s32.totalorder %v1219, %v1220
    %v1438 = vsel %vm1437, %v1219, %v1220
    %v1439 = vand.u32 %v1438, 65535
    %v1440 = vshra.s32 %v1438, 16
    %v1441 = vcvt.s32.f32 %v1439
    %v1442 = vcvt.s32.f32 %v1440
    %1443 = vmin.xlane.f32.xlu0 %v1442
    %v1444 = vpop.xlane.xlu0 %1443
    %vm1445 = vcmp.eq.f32.partialorder %v1442, %v1444
    %v1446 = vsel %vm1445, %v1441, inf
    %1447 = vmin.xlane.f32.xlu0 %v1446
    %v1448 = vpop.xlane.xlu0 %1447
    %v1449 = vcvt.f32.s32 %v1448
    %v1450 = vcvt.f32.s32 %v1444
    %v1451 = vshll.u32 %v1450, 16
    %v1452 = vadd.s32 %v1451, %v1449
    %vm1453 = vcmp.lt.s32.totalorder %v1221, %v1222
    %v1454 = vsel %vm1453, %v1221, %v1222
    %v1455 = vand.u32 %v1454, 65535
    %v1456 = vshra.s32 %v1454, 16
    %v1457 = vcvt.s32.f32 %v1455
    %v1458 = vcvt.s32.f32 %v1456
    %1459 = vmin.xlane.f32.xlu0 %v1458
    %v1460 = vpop.xlane.xlu0 %1459
    %vm1461 = vcmp.eq.f32.partialorder %v1458, %v1460
    %v1462 = vsel %vm1461, %v1457, inf
    %1463 = vmin.xlane.f32.xlu0 %v1462
    %v1464 = vpop.xlane.xlu0 %1463
    %v1465 = vcvt.f32.s32 %v1464
    %v1466 = vcvt.f32.s32 %v1460
    %v1467 = vshll.u32 %v1466, 16
    %v1468 = vadd.s32 %v1467, %v1465
    %vm1469 = vcmp.lt.s32.totalorder %v1223, %v1224
    %v1470 = vsel %vm1469, %v1223, %v1224
    %v1471 = vand.u32 %v1470, 65535
    %v1472 = vshra.s32 %v1470, 16
    %v1473 = vcvt.s32.f32 %v1471
    %v1474 = vcvt.s32.f32 %v1472
    %1475 = vmin.xlane.f32.xlu0 %v1474
    %v1476 = vpop.xlane.xlu0 %1475
    %vm1477 = vcmp.eq.f32.partialorder %v1474, %v1476
    %v1478 = vsel %vm1477, %v1473, inf
    %1479 = vmin.xlane.f32.xlu0 %v1478
    %v1480 = vpop.xlane.xlu0 %1479
    %v1481 = vcvt.f32.s32 %v1480
    %v1482 = vcvt.f32.s32 %v1476
    %v1483 = vshll.u32 %v1482, 16
    %v1484 = vadd.s32 %v1483, %v1481
    %vm1485 = vcmp.lt.s32.totalorder %v1225, %v1226
    %v1486 = vsel %vm1485, %v1225, %v1226
    %v1487 = vand.u32 %v1486, 65535
    %v1488 = vshra.s32 %v1486, 16
    %v1489 = vcvt.s32.f32 %v1487
    %v1490 = vcvt.s32.f32 %v1488
    %1491 = vmin.xlane.f32.xlu0 %v1490
    %v1492 = vpop.xlane.xlu0 %1491
    %vm1493 = vcmp.eq.f32.partialorder %v1490, %v1492
    %v1494 = vsel %vm1493, %v1489, inf
    %1495 = vmin.xlane.f32.xlu0 %v1494
    %v1496 = vpop.xlane.xlu0 %1495
    %v1497 = vcvt.f32.s32 %v1496
    %v1498 = vcvt.f32.s32 %v1492
    %v1499 = vshll.u32 %v1498, 16
    %v1500 = vadd.s32 %v1499, %v1497
    %vm1501 = vcmp.lt.s32.totalorder %v1227, %v1228
    %v1502 = vsel %vm1501, %v1227, %v1228
    %v1503 = vand.u32 %v1502, 65535
    %v1504 = vshra.s32 %v1502, 16
    %v1505 = vcvt.s32.f32 %v1503
    %v1506 = vcvt.s32.f32 %v1504
    %1507 = vmin.xlane.f32.xlu0 %v1506
    %v1508 = vpop.xlane.xlu0 %1507
    %vm1509 = vcmp.eq.f32.partialorder %v1506, %v1508
    %v1510 = vsel %vm1509, %v1505, inf
    %1511 = vmin.xlane.f32.xlu0 %v1510
    %v1512 = vpop.xlane.xlu0 %1511
    %v1513 = vcvt.f32.s32 %v1512
    %v1514 = vcvt.f32.s32 %v1508
    %v1515 = vshll.u32 %v1514, 16
    %v1516 = vadd.s32 %v1515, %v1513
    %vm1517 = vcmp.lt.s32.totalorder %v1229, %v1230
    %v1518 = vsel %vm1517, %v1229, %v1230
    %v1519 = vand.u32 %v1518, 65535
    %v1520 = vshra.s32 %v1518, 16
    %v1521 = vcvt.s32.f32 %v1519
    %v1522 = vcvt.s32.f32 %v1520
    %1523 = vmin.xlane.f32.xlu0 %v1522
    %v1524 = vpop.xlane.xlu0 %1523
    %vm1525 = vcmp.eq.f32.partialorder %v1522, %v1524
    %v1526 = vsel %vm1525, %v1521, inf
    %1527 = vmin.xlane.f32.xlu0 %v1526
    %v1528 = vpop.xlane.xlu0 %1527
    %v1529 = vcvt.f32.s32 %v1528
    %v1530 = vcvt.f32.s32 %v1524
    %v1531 = vshll.u32 %v1530, 16
    %v1532 = vadd.s32 %v1531, %v1529
    %vm1533 = vcmp.lt.s32.totalorder %v1231, %v1232
    %v1534 = vsel %vm1533, %v1231, %v1232
    %v1535 = vand.u32 %v1534, 65535
    %v1536 = vshra.s32 %v1534, 16
    %v1537 = vcvt.s32.f32 %v1535
    %v1538 = vcvt.s32.f32 %v1536
    %1539 = vmin.xlane.f32.xlu0 %v1538
    %v1540 = vpop.xlane.xlu0 %1539
    %vm1541 = vcmp.eq.f32.partialorder %v1538, %v1540
    %v1542 = vsel %vm1541, %v1537, inf
    %1543 = vmin.xlane.f32.xlu0 %v1542
    %v1544 = vpop.xlane.xlu0 %1543
    %v1545 = vcvt.f32.s32 %v1544
    %v1546 = vcvt.f32.s32 %v1540
    %v1547 = vshll.u32 %v1546, 16
    %v1548 = vadd.s32 %v1547, %v1545
    %vm1549 = vcmp.lt.s32.totalorder %v1233, %v1234
    %v1550 = vsel %vm1549, %v1233, %v1234
    %v1551 = vand.u32 %v1550, 65535
    %v1552 = vshra.s32 %v1550, 16
    %v1553 = vcvt.s32.f32 %v1551
    %v1554 = vcvt.s32.f32 %v1552
    %1555 = vmin.xlane.f32.xlu0 %v1554
    %v1556 = vpop.xlane.xlu0 %1555
    %vm1557 = vcmp.eq.f32.partialorder %v1554, %v1556
    %v1558 = vsel %vm1557, %v1553, inf
    %1559 = vmin.xlane.f32.xlu0 %v1558
    %v1560 = vpop.xlane.xlu0 %1559
    %v1561 = vcvt.f32.s32 %v1560
    %v1562 = vcvt.f32.s32 %v1556
    %v1563 = vshll.u32 %v1562, 16
    %v1564 = vadd.s32 %v1563, %v1561
    %vm1565 = vcmp.lt.s32.totalorder %v1235, %v1236
    %v1566 = vsel %vm1565, %v1235, %v1236
    %v1567 = vand.u32 %v1566, 65535
    %v1568 = vshra.s32 %v1566, 16
    %v1569 = vcvt.s32.f32 %v1567
    %v1570 = vcvt.s32.f32 %v1568
    %1571 = vmin.xlane.f32.xlu0 %v1570
    %v1572 = vpop.xlane.xlu0 %1571
    %vm1573 = vcmp.eq.f32.partialorder %v1570, %v1572
    %v1574 = vsel %vm1573, %v1569, inf
    %1575 = vmin.xlane.f32.xlu0 %v1574
    %v1576 = vpop.xlane.xlu0 %1575
    %v1577 = vcvt.f32.s32 %v1576
    %v1578 = vcvt.f32.s32 %v1572
    %v1579 = vshll.u32 %v1578, 16
    %v1580 = vadd.s32 %v1579, %v1577
    %vm1581 = vcmp.lt.s32.totalorder %v1237, %v1238
    %v1582 = vsel %vm1581, %v1237, %v1238
    %v1583 = vand.u32 %v1582, 65535
    %v1584 = vshra.s32 %v1582, 16
    %v1585 = vcvt.s32.f32 %v1583
    %v1586 = vcvt.s32.f32 %v1584
    %1587 = vmin.xlane.f32.xlu0 %v1586
    %v1588 = vpop.xlane.xlu0 %1587
    %vm1589 = vcmp.eq.f32.partialorder %v1586, %v1588
    %v1590 = vsel %vm1589, %v1585, inf
    %1591 = vmin.xlane.f32.xlu0 %v1590
    %v1592 = vpop.xlane.xlu0 %1591
    %v1593 = vcvt.f32.s32 %v1592
    %v1594 = vcvt.f32.s32 %v1588
    %v1595 = vshll.u32 %v1594, 16
    %v1596 = vadd.s32 %v1595, %v1593
    %vm1597 = vcmp.lt.s32.totalorder %v1239, %v1240
    %v1598 = vsel %vm1597, %v1239, %v1240
    %v1599 = vand.u32 %v1598, 65535
    %v1600 = vshra.s32 %v1598, 16
    %v1601 = vcvt.s32.f32 %v1599
    %v1602 = vcvt.s32.f32 %v1600
    %1603 = vmin.xlane.f32.xlu0 %v1602
    %v1604 = vpop.xlane.xlu0 %1603
    %vm1605 = vcmp.eq.f32.partialorder %v1602, %v1604
    %v1606 = vsel %vm1605, %v1601, inf
    %1607 = vmin.xlane.f32.xlu0 %v1606
    %v1608 = vpop.xlane.xlu0 %1607
    %v1609 = vcvt.f32.s32 %v1608
    %v1610 = vcvt.f32.s32 %v1604
    %v1611 = vshll.u32 %v1610, 16
    %v1612 = vadd.s32 %v1611, %v1609
    %vm1613 = vcmp.lt.s32.totalorder %v1241, %v1242
    %v1614 = vsel %vm1613, %v1241, %v1242
    %v1615 = vand.u32 %v1614, 65535
    %v1616 = vshra.s32 %v1614, 16
    %v1617 = vcvt.s32.f32 %v1615
    %v1618 = vcvt.s32.f32 %v1616
    %1619 = vmin.xlane.f32.xlu0 %v1618
    %v1620 = vpop.xlane.xlu0 %1619
    %vm1621 = vcmp.eq.f32.partialorder %v1618, %v1620
    %v1622 = vsel %vm1621, %v1617, inf
    %1623 = vmin.xlane.f32.xlu0 %v1622
    %v1624 = vpop.xlane.xlu0 %1623
    %v1625 = vcvt.f32.s32 %v1624
    %v1626 = vcvt.f32.s32 %v1620
    %v1627 = vshll.u32 %v1626, 16
    %v1628 = vadd.s32 %v1627, %v1625
    %vm1629 = vcmp.lt.s32.totalorder %v1243, %v1244
    %v1630 = vsel %vm1629, %v1243, %v1244
    %v1631 = vand.u32 %v1630, 65535
    %v1632 = vshra.s32 %v1630, 16
    %v1633 = vcvt.s32.f32 %v1631
    %v1634 = vcvt.s32.f32 %v1632
    %1635 = vmin.xlane.f32.xlu0 %v1634
    %v1636 = vpop.xlane.xlu0 %1635
    %vm1637 = vcmp.eq.f32.partialorder %v1634, %v1636
    %v1638 = vsel %vm1637, %v1633, inf
    %1639 = vmin.xlane.f32.xlu0 %v1638
    %v1640 = vpop.xlane.xlu0 %1639
    %v1641 = vcvt.f32.s32 %v1640
    %v1642 = vcvt.f32.s32 %v1636
    %v1643 = vshll.u32 %v1642, 16
    %v1644 = vadd.s32 %v1643, %v1641
    %vm1645 = vcmp.lt.s32.totalorder %v1245, %v1246
    %v1646 = vsel %vm1645, %v1245, %v1246
    %v1647 = vand.u32 %v1646, 65535
    %v1648 = vshra.s32 %v1646, 16
    %v1649 = vcvt.s32.f32 %v1647
    %v1650 = vcvt.s32.f32 %v1648
    %1651 = vmin.xlane.f32.xlu0 %v1650
    %v1652 = vpop.xlane.xlu0 %1651
    %vm1653 = vcmp.eq.f32.partialorder %v1650, %v1652
    %v1654 = vsel %vm1653, %v1649, inf
    %1655 = vmin.xlane.f32.xlu0 %v1654
    %v1656 = vpop.xlane.xlu0 %1655
    %v1657 = vcvt.f32.s32 %v1656
    %v1658 = vcvt.f32.s32 %v1652
    %v1659 = vshll.u32 %v1658, 16
    %v1660 = vadd.s32 %v1659, %v1657
    %vm1661 = vcmp.lt.s32.totalorder %v1247, %v1248
    %v1662 = vsel %vm1661, %v1247, %v1248
    %v1663 = vand.u32 %v1662, 65535
    %v1664 = vshra.s32 %v1662, 16
    %v1665 = vcvt.s32.f32 %v1663
    %v1666 = vcvt.s32.f32 %v1664
    %1667 = vmin.xlane.f32.xlu0 %v1666
    %v1668 = vpop.xlane.xlu0 %1667
    %vm1669 = vcmp.eq.f32.partialorder %v1666, %v1668
    %v1670 = vsel %vm1669, %v1665, inf
    %1671 = vmin.xlane.f32.xlu0 %v1670
    %v1672 = vpop.xlane.xlu0 %1671
    %v1673 = vcvt.f32.s32 %v1672
    %v1674 = vcvt.f32.s32 %v1668
    %v1675 = vshll.u32 %v1674, 16
    %v1676 = vadd.s32 %v1675, %v1673
    %vm1677 = vcmp.lt.s32.totalorder %v1249, %v1250
    %v1678 = vsel %vm1677, %v1249, %v1250
    %v1679 = vand.u32 %v1678, 65535
    %v1680 = vshra.s32 %v1678, 16
    %v1681 = vcvt.s32.f32 %v1679
    %v1682 = vcvt.s32.f32 %v1680
    %1683 = vmin.xlane.f32.xlu0 %v1682
    %v1684 = vpop.xlane.xlu0 %1683
    %vm1685 = vcmp.eq.f32.partialorder %v1682, %v1684
    %v1686 = vsel %vm1685, %v1681, inf
    %1687 = vmin.xlane.f32.xlu0 %v1686
    %v1688 = vpop.xlane.xlu0 %1687
    %v1689 = vcvt.f32.s32 %v1688
    %v1690 = vcvt.f32.s32 %v1684
    %v1691 = vshll.u32 %v1690, 16
    %v1692 = vadd.s32 %v1691, %v1689
    %vm1693 = vcmp.lt.s32.totalorder %v1251, %v1252
    %v1694 = vsel %vm1693, %v1251, %v1252
    %v1695 = vand.u32 %v1694, 65535
    %v1696 = vshra.s32 %v1694, 16
    %v1697 = vcvt.s32.f32 %v1695
    %v1698 = vcvt.s32.f32 %v1696
    %1699 = vmin.xlane.f32.xlu0 %v1698
    %v1700 = vpop.xlane.xlu0 %1699
    %vm1701 = vcmp.eq.f32.partialorder %v1698, %v1700
    %v1702 = vsel %vm1701, %v1697, inf
    %1703 = vmin.xlane.f32.xlu0 %v1702
    %v1704 = vpop.xlane.xlu0 %1703
    %v1705 = vcvt.f32.s32 %v1704
    %v1706 = vcvt.f32.s32 %v1700
    %v1707 = vshll.u32 %v1706, 16
    %v1708 = vadd.s32 %v1707, %v1705
    %vm1709 = vcmp.lt.s32.totalorder %v1253, %v1254
    %v1710 = vsel %vm1709, %v1253, %v1254
    %v1711 = vand.u32 %v1710, 65535
    %v1712 = vshra.s32 %v1710, 16
    %v1713 = vcvt.s32.f32 %v1711
    %v1714 = vcvt.s32.f32 %v1712
    %1715 = vmin.xlane.f32.xlu0 %v1714
    %v1716 = vpop.xlane.xlu0 %1715
    %vm1717 = vcmp.eq.f32.partialorder %v1714, %v1716
    %v1718 = vsel %vm1717, %v1713, inf
    %1719 = vmin.xlane.f32.xlu0 %v1718
    %v1720 = vpop.xlane.xlu0 %1719
    %v1721 = vcvt.f32.s32 %v1720
    %v1722 = vcvt.f32.s32 %v1716
    %v1723 = vshll.u32 %v1722, 16
    %v1724 = vadd.s32 %v1723, %v1721
    %vm1725 = vcmp.lt.s32.totalorder %v1255, %v1256
    %v1726 = vsel %vm1725, %v1255, %v1256
    %v1727 = vand.u32 %v1726, 65535
    %v1728 = vshra.s32 %v1726, 16
    %v1729 = vcvt.s32.f32 %v1727
    %v1730 = vcvt.s32.f32 %v1728
    %1731 = vmin.xlane.f32.xlu0 %v1730
    %v1732 = vpop.xlane.xlu0 %1731
    %vm1733 = vcmp.eq.f32.partialorder %v1730, %v1732
    %v1734 = vsel %vm1733, %v1729, inf
    %1735 = vmin.xlane.f32.xlu0 %v1734
    %v1736 = vpop.xlane.xlu0 %1735
    %v1737 = vcvt.f32.s32 %v1736
    %v1738 = vcvt.f32.s32 %v1732
    %v1739 = vshll.u32 %v1738, 16
    %v1740 = vadd.s32 %v1739, %v1737
    %vm1741 = vcmp.lt.s32.totalorder %v1257, %v1258
    %v1742 = vsel %vm1741, %v1257, %v1258
    %v1743 = vand.u32 %v1742, 65535
    %v1744 = vshra.s32 %v1742, 16
    %v1745 = vcvt.s32.f32 %v1743
    %v1746 = vcvt.s32.f32 %v1744
    %1747 = vmin.xlane.f32.xlu0 %v1746
    %v1748 = vpop.xlane.xlu0 %1747
    %vm1749 = vcmp.eq.f32.partialorder %v1746, %v1748
    %v1750 = vsel %vm1749, %v1745, inf
    %1751 = vmin.xlane.f32.xlu0 %v1750
    %v1752 = vpop.xlane.xlu0 %1751
    %v1753 = vcvt.f32.s32 %v1752
    %v1754 = vcvt.f32.s32 %v1748
    %v1755 = vshll.u32 %v1754, 16
    %v1756 = vadd.s32 %v1755, %v1753
    %vm1757 = vcmp.lt.s32.totalorder %v1259, %v1260
    %v1758 = vsel %vm1757, %v1259, %v1260
    %v1759 = vand.u32 %v1758, 65535
    %v1760 = vshra.s32 %v1758, 16
    %v1761 = vcvt.s32.f32 %v1759
    %v1762 = vcvt.s32.f32 %v1760
    %1763 = vmin.xlane.f32.xlu0 %v1762
    %v1764 = vpop.xlane.xlu0 %1763
    %vm1765 = vcmp.eq.f32.partialorder %v1762, %v1764
    %v1766 = vsel %vm1765, %v1761, inf
    %1767 = vmin.xlane.f32.xlu0 %v1766
    %v1768 = vpop.xlane.xlu0 %1767
    %v1769 = vcvt.f32.s32 %v1768
    %v1770 = vcvt.f32.s32 %v1764
    %v1771 = vshll.u32 %v1770, 16
    %v1772 = vadd.s32 %v1771, %v1769
    %v1773 = vperm.slane %v1276, %v1131
    %v1774 = vadd.s32 %v1131, 4294967288
    %v1775 = vperm.slane %v1292, %v1774
    %vm1776 = vcmask 130112
    %v1777 = vsel %vm1776, %v1775, %v1773
    %v1778 = vadd.s32 %v1131, 4294967280
    %v1779 = vperm.slane %v1308, %v1778
    %vm1780 = vcmask 195712
    %v1781 = vsel %vm1780, %v1779, %v1777
    %v1782 = vadd.s32 %v1131, 4294967272
    %v1783 = vperm.slane %v1324, %v1782
    %vm1784 = vcmask 261312
    %v1785 = vsel %vm1784, %v1783, %v1781
    %v1786 = vadd.s32 %v1131, 4294967264
    %v1787 = vperm.slane %v1340, %v1786
    %vm1788 = vcmask 326912
    %v1789 = vsel %vm1788, %v1787, %v1785
    %v1790 = vadd.s32 %v1131, 4294967256
    %v1791 = vperm.slane %v1356, %v1790
    %vm1792 = vcmask 392512
    %v1793 = vsel %vm1792, %v1791, %v1789
    %v1794 = vadd.s32 %v1131, 4294967248
    %v1795 = vperm.slane %v1372, %v1794
    %vm1796 = vcmask 458112
    %v1797 = vsel %vm1796, %v1795, %v1793
    %v1798 = vadd.s32 %v1131, 4294967240
    %v1799 = vperm.slane %v1388, %v1798
    %vm1800 = vcmask 523712
    %v1801 = vsel %vm1800, %v1799, %v1797
    %v1802 = vadd.s32 %v1131, 4294967232
    %v1803 = vperm.slane %v1404, %v1802
    %vm1804 = vcmask 589312
    %v1805 = vsel %vm1804, %v1803, %v1801
    %v1806 = vadd.s32 %v1131, 4294967224
    %v1807 = vperm.slane %v1420, %v1806
    %vm1808 = vcmask 654912
    %v1809 = vsel %vm1808, %v1807, %v1805
    %v1810 = vadd.s32 %v1131, 4294967216
    %v1811 = vperm.slane %v1436, %v1810
    %vm1812 = vcmask 720512
    %v1813 = vsel %vm1812, %v1811, %v1809
    %v1814 = vadd.s32 %v1131, 4294967208
    %v1815 = vperm.slane %v1452, %v1814
    %vm1816 = vcmask 786112
    %v1817 = vsel %vm1816, %v1815, %v1813
    %v1818 = vadd.s32 %v1131, 4294967200
    %v1819 = vperm.slane %v1468, %v1818
    %vm1820 = vcmask 851712
    %v1821 = vsel %vm1820, %v1819, %v1817
    %v1822 = vadd.s32 %v1131, 4294967192
    %v1823 = vperm.slane %v1484, %v1822
    %vm1824 = vcmask 917312
    %v1825 = vsel %vm1824, %v1823, %v1821
    %v1826 = vadd.s32 %v1131, 4294967184
    %v1827 = vperm.slane %v1500, %v1826
    %vm1828 = vcmask 982912
    %v1829 = vsel %vm1828, %v1827, %v1825
    %v1830 = vadd.s32 %v1131, 4294967176
    %v1831 = vperm.slane %v1516, %v1830
    %vm1832 = vcmask 1048512
    %v1833 = vsel %vm1832, %v1831, %v1829
    %v1834 = vperm.slane %v1532, %v1131
    %v1835 = vperm.slane %v1548, %v1774
    %v1836 = vsel %vm1776, %v1835, %v1834
    %v1837 = vperm.slane %v1564, %v1778
    %v1838 = vsel %vm1780, %v1837, %v1836
    %v1839 = vperm.slane %v1580, %v1782
    %v1840 = vsel %vm1784, %v1839, %v1838
    %v1841 = vperm.slane %v1596, %v1786
    %v1842 = vsel %vm1788, %v1841, %v1840
    %v1843 = vperm.slane %v1612, %v1790
    %v1844 = vsel %vm1792, %v1843, %v1842
    %v1845 = vperm.slane %v1628, %v1794
    %v1846 = vsel %vm1796, %v1845, %v1844
    %v1847 = vperm.slane %v1644, %v1798
    %v1848 = vsel %vm1800, %v1847, %v1846
    %v1849 = vperm.slane %v1660, %v1802
    %v1850 = vsel %vm1804, %v1849, %v1848
    %v1851 = vperm.slane %v1676, %v1806
    %v1852 = vsel %vm1808, %v1851, %v1850
    %v1853 = vperm.slane %v1692, %v1810
    %v1854 = vsel %vm1812, %v1853, %v1852
    %v1855 = vperm.slane %v1708, %v1814
    %v1856 = vsel %vm1816, %v1855, %v1854
    %v1857 = vperm.slane %v1724, %v1818
    %v1858 = vsel %vm1820, %v1857, %v1856
    %v1859 = vperm.slane %v1740, %v1822
    %v1860 = vsel %vm1824, %v1859, %v1858
    %v1861 = vperm.slane %v1756, %v1826
    %v1862 = vsel %vm1828, %v1861, %v1860
    %v1863 = vperm.slane %v1772, %v1830
    %v1864 = vsel %vm1832, %v1863, %v1862
    %vm1865 = vcmask 1041409
    %v1866 = vsel %vm1865, %v1864, %v1833
    %1867 = vst [vmem:[#allocation7] sm:$0x3] %v1866
    // Predicated region
    $region22: #{phi3_blockwise_forward.3} parent=1 // pred_check
      _
    $region23: #{phi3_blockwise_forward.3} parent=1 // pred_check_branch
      %1869 = sbr.rel (0) target = $region25
    $region24: #{phi3_blockwise_forward.3} parent=1 // pred_region
      %1871 = vsyncadd [#allocation4], 0
      %s1873 = sshll.u32 [#allocation7], 4
      %s1874 = int_to_ptr.vmem [resolvable:$true] %s1873
      %s1875 = sshll.u32 %s3, 4
      %s1876 = int_to_ptr.hbm [resolvable:$true] %s1875
      %1878 = dma.vmem_to_hbm [thread:$0]  %s1874, 32, %s1876, [#allocation4]
    $region25: #{phi3_blockwise_forward.3} parent=1 // pred_fallthru
      _
    // Predicated region
    $region26: #{phi3_blockwise_forward.3} parent=1 // pred_check
      _
    $region27: #{phi3_blockwise_forward.3} parent=1 // pred_check_branch
      %1880 = sbr.rel (0) target = $region29
    $region28: #{phi3_blockwise_forward.3} parent=1 // pred_region
      %1882 = dma.done [#allocation4], 32
    $region29: #{phi3_blockwise_forward.3} parent=1 // pred_fallthru
      _
    %1883 = vsyncpa [#allocation3], 1
    %1884 = vsyncpa [#allocation6], 1
    %1885 = vsyncpa [#allocation4], 1

// kernel: phi3_blockwise_forward.2
$region0: #{phi3_blockwise_forward.2}
  #allocation0 [shape = 'u32[]', space=smem, size = 0x4, offset = 0x4, fixed_abs, tag = 'smem constant byte address 0x4 - core index']
  #allocation1 [shape = 'u32[72,128]{1,0:T(1,128)}', space=vmem, size = 0x9000, scoped, tag = 'internal scratch']
  #allocation2 [shape = 'f32[1,128,128]{2,1,0:T(8,128)}', space=vmem, size = 0x10000, scoped, tag = 'scratch operand']
  %s0 = inlined_call_operand.vmem [shape: f32[2,128,128], index: 0, kind: input, shape index: {}]
  %s1 = inlined_call_operand.hbm [shape: f32[128,128], index: 1, kind: input, shape index: {}]
  %s2 = inlined_call_operand.hbm [shape: f32[128,128], index: 2, kind: input, shape index: {}]
  %s3 = inlined_call_operand.hbm [shape: f32[128,128], index: 3, kind: input, shape index: {}]
  %s4 = inlined_call_operand.hbm [shape: f32[40,1,128], index: 4, kind: input, shape index: {}]
  %s5 = inlined_call_operand.hbm [shape: bf16[40,128,640], index: 5, kind: input, shape index: {}]
  %s6 = inlined_call_operand.hbm [shape: bf16[40,4,32,128], index: 6, kind: input, shape index: {}]
  %s7 = inlined_call_operand.hbm [shape: f32[40,1,128], index: 7, kind: input, shape index: {}]
  %s8 = inlined_call_operand.hbm [shape: bf16[40,128,512], index: 8, kind: input, shape index: {}]
  %s9 = inlined_call_operand.hbm [shape: bf16[40,256,128], index: 9, kind: input, shape index: {}]
  %s10 = inlined_call_operand.vmem [shape: f32[2,128,128], index: 10, kind: output, shape index: {}]
  %s11 = sld [smem:[#allocation0]]
  $region117: #{phi3_blockwise_forward.2} parent=0
    _
  %s13 = ssub.s32 1, %s11
  %s14 = scalar_select 0, %s13, %s11
  $region1: #{phi3_blockwise_forward.2} parent=0
    #allocation3 [shape = 'u8[65536]{0}', space=vmem, size = 0x10000, scoped, tag = 'input window, operand 1, single buffered']
    #allocation4 [shape = 's32[2]{0}', space=sflag, size = 0x8, scoped, tag = 'scoped memory for phi3_blockwise_forward.2']
    #allocation5 [shape = 'u8[65536]{0}', space=vmem, size = 0x10000, scoped, tag = 'input window, operand 2, single buffered']
    #allocation6 [shape = 's32[1]{0}', space=sflag, size = 0x4, scoped, tag = 'scoped memory for phi3_blockwise_forward.2']
    #allocation7 [shape = 'u8[65536]{0}', space=vmem, size = 0x10000, scoped, tag = 'input window, operand 3, single buffered']
    #allocation8 [shape = 'u8[1024]{0}', space=vmem, size = 0x400, scoped, tag = 'input window, operand 4']
    #allocation9 [shape = 's32[2]{0}', space=sflag, size = 0x8, scoped, tag = 'scoped memory for phi3_blockwise_forward.2']
    #allocation10 [shape = 'u8[327680]{0}', space=vmem, size = 0x50000, scoped, tag = 'input window, operand 5']
    #allocation11 [shape = 'u8[65536]{0}', space=vmem, size = 0x10000, scoped, tag = 'input window, operand 6']
    #allocation12 [shape = 's32[2]{0}', space=sflag, size = 0x8, scoped, tag = 'scoped memory for phi3_blockwise_forward.2']
    #allocation13 [shape = 'u8[1024]{0}', space=vmem, size = 0x400, scoped, tag = 'input window, operand 7']
    #allocation14 [shape = 'u8[262144]{0}', space=vmem, size = 0x40000, scoped, tag = 'input window, operand 8']
    #allocation15 [shape = 's32[2]{0}', space=sflag, size = 0x8, scoped, tag = 'scoped memory for phi3_blockwise_forward.2']
    #allocation16 [shape = 'u8[131072]{0}', space=vmem, size = 0x20000, scoped, tag = 'input window, operand 9']
    %15 = vsyncpa [#allocation4], 0
    %16 = vsyncpa [#allocation6], 0
    %17 = vsyncpa [#allocation9], 0
    %s18 = scalar_lea.sflag [#allocation9], 1
    %19 = vsyncpa %s18, 0
    %20 = vsyncpa [#allocation12], 0
    %s21 = scalar_lea.sflag [#allocation12], 1
    %22 = vsyncpa %s21, 0
    %23 = vsyncpa [#allocation15], 0
    %s24 = scalar_lea.sflag [#allocation15], 1
    %25 = vsyncpa %s24, 0
    loop: start=0, step=1, limit=82
    $region2: #{phi3_blockwise_forward.2} parent=1 // loop_pre_header
      _
    $region3: #{phi3_blockwise_forward.2} parent=1 // loop_header
      %s27 = sphi 0, %s31
      %p28 = scmp.ge.s32.totalorder %s27, 82
      %s34 = sphi 0, %s46
      %s35 = sphi 0, %s42
      %s36 = sphi 0, %s34
      %s37 = sphi 0, %s35
      %s38 = sphi 0, %s36
      %s39 = sphi 0, %s37
      %s49 = sphi 0, %s51
      %s52 = sphi 0, %s49
      %s53 = sphi 0, %s52
      %s69 = sphi 0, %s53
      %s73 = sphi 0, %s73
      %s75 = sphi 0, %s73
      %s76 = sphi 0, %s75
      %s90 = sphi 0, %s76
      %s94 = sphi 0, %s94
      %s96 = sphi 0, %s94
      %s97 = sphi 0, %s96
      %s111 = sphi 0, %s97
      %s115 = sphi 0, %s115
      %s117 = sphi 0, %s115
      %s118 = sphi 0, %s117
      %s132 = sphi 0, %s118
      %s138 = sphi 0, %s140
      %s141 = sphi 0, %s138
      %s142 = sphi 0, %s141
      %s158 = sphi 0, %s142
      %s164 = sphi 0, %s166
      %s167 = sphi 0, %s164
      %s168 = sphi 0, %s167
      %s184 = sphi 0, %s168
      %s190 = sphi 0, %s192
      %s193 = sphi 0, %s190
      %s194 = sphi 0, %s193
      %s210 = sphi 0, %s194
      %s216 = sphi 0, %s218
      %s219 = sphi 0, %s216
      %s220 = sphi 0, %s219
      %s236 = sphi 0, %s220
      %s242 = sphi 0, %s244
      %s245 = sphi 0, %s242
      %s246 = sphi 0, %s245
      %s262 = sphi 0, %s246
      %s268 = sphi 0, %s270
      %s271 = sphi 0, %s268
      %s272 = sphi 0, %s271
      %s288 = sphi 0, %s272
      %s294 = sphi 0, %s296
      %s297 = sphi 0, %s294
      %s298 = sphi 0, %s297
      %s314 = sphi 0, %s298
    $region4: #{phi3_blockwise_forward.2} parent=1 // loop_header_branch
      %30 = sbr.rel (%p28) target = $region8
    $region5: #{phi3_blockwise_forward.2} parent=1 // loop_body
      %s32 = ssub.s32 %s27, 1
      %s33 = ssub.s32 %s27, 2
      %s40 = sadd.s32 1, %s35
      %p41 = scmp.ge.s32.totalorder %s40, 40
      %s42 = scalar_select %p41, 0, %s40
      %s43 = sadd.s32 1, %s34
      %s44 = scalar_select %p41, %s43, %s34
      %p45 = scmp.ge.s32.totalorder %s44, 2
      %s46 = scalar_select %p45, 0, %s44
      %s47 = ssub.s32 %s34, %s46
      %p48 = scmp.eq.s32.totalorder %s47, 0
      %s50 = sadd.s32 %s49, 1
      %s51 = scalar_select %p48, %s49, %s50
      %p54 = pneg %p48
      %p55 = scmp.eq.s32.totalorder %s27, 79
      %p56 = por %p54, %p55
      %p57 = scmp.ne.s32.totalorder %s49, %s52
      %p58 = scmp.eq.s32.totalorder %s27, 0
      %p59 = por %p57, %p58
      %p60 = scmp.ne.s32.totalorder %s49, %s52
      %p61 = scmp.eq.s32.totalorder %s32, 79
      %p62 = por %p60, %p61
      %p63 = scmp.ne.s32.totalorder %s52, %s53
      %p64 = scmp.eq.s32.totalorder %s32, 0
      %p65 = por %p63, %p64
      %p66 = scmp.ne.s32.totalorder %s52, %s53
      %p67 = scmp.eq.s32.totalorder %s33, 79
      %p68 = por %p66, %p67
      %p70 = scmp.ne.s32.totalorder %s53, %s69
      %p71 = scmp.eq.s32.totalorder %s33, 0
      %p72 = por %p70, %p71
      %s74 = sadd.s32 %s73, 1
      %p77 = scmp.eq.s32.totalorder %s27, 79
      %p78 = scmp.ne.s32.totalorder %s73, %s75
      %p79 = scmp.eq.s32.totalorder %s27, 0
      %p80 = por %p78, %p79
      %p81 = scmp.ne.s32.totalorder %s73, %s75
      %p82 = scmp.eq.s32.totalorder %s32, 79
      %p83 = por %p81, %p82
      %p84 = scmp.ne.s32.totalorder %s75, %s76
      %p85 = scmp.eq.s32.totalorder %s32, 0
      %p86 = por %p84, %p85
      %p87 = scmp.ne.s32.totalorder %s75, %s76
      %p88 = scmp.eq.s32.totalorder %s33, 79
      %p89 = por %p87, %p88
      %p91 = scmp.ne.s32.totalorder %s76, %s90
      %p92 = scmp.eq.s32.totalorder %s33, 0
      %p93 = por %p91, %p92
      %s95 = sadd.s32 %s94, 1
      %p98 = scmp.eq.s32.totalorder %s27, 79
      %p99 = scmp.ne.s32.totalorder %s94, %s96
      %p100 = scmp.eq.s32.totalorder %s27, 0
      %p101 = por %p99, %p100
      %p102 = scmp.ne.s32.totalorder %s94, %s96
      %p103 = scmp.eq.s32.totalorder %s32, 79
      %p104 = por %p102, %p103
      %p105 = scmp.ne.s32.totalorder %s96, %s97
      %p106 = scmp.eq.s32.totalorder %s32, 0
      %p107 = por %p105, %p106
      %p108 = scmp.ne.s32.totalorder %s96, %s97
      %p109 = scmp.eq.s32.totalorder %s33, 79
      %p110 = por %p108, %p109
      %p112 = scmp.ne.s32.totalorder %s97, %s111
      %p113 = scmp.eq.s32.totalorder %s33, 0
      %p114 = por %p112, %p113
      %s116 = sadd.s32 %s115, 1
      %p119 = scmp.eq.s32.totalorder %s27, 79
      %p120 = scmp.ne.s32.totalorder %s115, %s117
      %p121 = scmp.eq.s32.totalorder %s27, 0
      %p122 = por %p120, %p121
      %p123 = scmp.ne.s32.totalorder %s115, %s117
      %p124 = scmp.eq.s32.totalorder %s32, 79
      %p125 = por %p123, %p124
      %p126 = scmp.ne.s32.totalorder %s117, %s118
      %p127 = scmp.eq.s32.totalorder %s32, 0
      %p128 = por %p126, %p127
      %p129 = scmp.ne.s32.totalorder %s117, %s118
      %p130 = scmp.eq.s32.totalorder %s33, 79
      %p131 = por %p129, %p130
      %p133 = scmp.ne.s32.totalorder %s118, %s132
      %p134 = scmp.eq.s32.totalorder %s33, 0
      %p135 = por %p133, %p134
      %s136 = ssub.s32 %s35, %s42
      %p137 = scmp.eq.s32.totalorder %s136, 0
      %s139 = sadd.s32 %s138, 1
      %s140 = scalar_select %p137, %s138, %s139
      %p143 = pneg %p137
      %p144 = scmp.eq.s32.totalorder %s27, 79
      %p145 = por %p143, %p144
      %p146 = scmp.ne.s32.totalorder %s138, %s141
      %p147 = scmp.eq.s32.totalorder %s27, 0
      %p148 = por %p146, %p147
      %p149 = scmp.ne.s32.totalorder %s138, %s141
      %p150 = scmp.eq.s32.totalorder %s32, 79
      %p151 = por %p149, %p150
      %p152 = scmp.ne.s32.totalorder %s141, %s142
      %p153 = scmp.eq.s32.totalorder %s32, 0
      %p154 = por %p152, %p153
      %p155 = scmp.ne.s32.totalorder %s141, %s142
      %p156 = scmp.eq.s32.totalorder %s33, 79
      %p157 = por %p155, %p156
      %p159 = scmp.ne.s32.totalorder %s142, %s158
      %p160 = scmp.eq.s32.totalorder %s33, 0
      %p161 = por %p159, %p160
      %s162 = ssub.s32 %s35, %s42
      %p163 = scmp.eq.s32.totalorder %s162, 0
      %s165 = sadd.s32 %s164, 1
      %s166 = scalar_select %p163, %s164, %s165
      %p169 = pneg %p163
      %p170 = scmp.eq.s32.totalorder %s27, 79
      %p171 = por %p169, %p170
      %p172 = scmp.ne.s32.totalorder %s164, %s167
      %p173 = scmp.eq.s32.totalorder %s27, 0
      %p174 = por %p172, %p173
      %p175 = scmp.ne.s32.totalorder %s164, %s167
      %p176 = scmp.eq.s32.totalorder %s32, 79
      %p177 = por %p175, %p176
      %p178 = scmp.ne.s32.totalorder %s167, %s168
      %p179 = scmp.eq.s32.totalorder %s32, 0
      %p180 = por %p178, %p179
      %p181 = scmp.ne.s32.totalorder %s167, %s168
      %p182 = scmp.eq.s32.totalorder %s33, 79
      %p183 = por %p181, %p182
      %p185 = scmp.ne.s32.totalorder %s168, %s184
      %p186 = scmp.eq.s32.totalorder %s33, 0
      %p187 = por %p185, %p186
      %s188 = ssub.s32 %s35, %s42
      %p189 = scmp.eq.s32.totalorder %s188, 0
      %s191 = sadd.s32 %s190, 1
      %s192 = scalar_select %p189, %s190, %s191
      %p195 = pneg %p189
      %p196 = scmp.eq.s32.totalorder %s27, 79
      %p197 = por %p195, %p196
      %p198 = scmp.ne.s32.totalorder %s190, %s193
      %p199 = scmp.eq.s32.totalorder %s27, 0
      %p200 = por %p198, %p199
      %p201 = scmp.ne.s32.totalorder %s190, %s193
      %p202 = scmp.eq.s32.totalorder %s32, 79
      %p203 = por %p201, %p202
      %p204 = scmp.ne.s32.totalorder %s193, %s194
      %p205 = scmp.eq.s32.totalorder %s32, 0
      %p206 = por %p204, %p205
      %p207 = scmp.ne.s32.totalorder %s193, %s194
      %p208 = scmp.eq.s32.totalorder %s33, 79
      %p209 = por %p207, %p208
      %p211 = scmp.ne.s32.totalorder %s194, %s210
      %p212 = scmp.eq.s32.totalorder %s33, 0
      %p213 = por %p211, %p212
      %s214 = ssub.s32 %s35, %s42
      %p215 = scmp.eq.s32.totalorder %s214, 0
      %s217 = sadd.s32 %s216, 1
      %s218 = scalar_select %p215, %s216, %s217
      %p221 = pneg %p215
      %p222 = scmp.eq.s32.totalorder %s27, 79
      %p223 = por %p221, %p222
      %p224 = scmp.ne.s32.totalorder %s216, %s219
      %p225 = scmp.eq.s32.totalorder %s27, 0
      %p226 = por %p224, %p225
      %p227 = scmp.ne.s32.totalorder %s216, %s219
      %p228 = scmp.eq.s32.totalorder %s32, 79
      %p229 = por %p227, %p228
      %p230 = scmp.ne.s32.totalorder %s219, %s220
      %p231 = scmp.eq.s32.totalorder %s32, 0
      %p232 = por %p230, %p231
      %p233 = scmp.ne.s32.totalorder %s219, %s220
      %p234 = scmp.eq.s32.totalorder %s33, 79
      %p235 = por %p233, %p234
      %p237 = scmp.ne.s32.totalorder %s220, %s236
      %p238 = scmp.eq.s32.totalorder %s33, 0
      %p239 = por %p237, %p238
      %s240 = ssub.s32 %s35, %s42
      %p241 = scmp.eq.s32.totalorder %s240, 0
      %s243 = sadd.s32 %s242, 1
      %s244 = scalar_select %p241, %s242, %s243
      %p247 = pneg %p241
      %p248 = scmp.eq.s32.totalorder %s27, 79
      %p249 = por %p247, %p248
      %p250 = scmp.ne.s32.totalorder %s242, %s245
      %p251 = scmp.eq.s32.totalorder %s27, 0
      %p252 = por %p250, %p251
      %p253 = scmp.ne.s32.totalorder %s242, %s245
      %p254 = scmp.eq.s32.totalorder %s32, 79
      %p255 = por %p253, %p254
      %p256 = scmp.ne.s32.totalorder %s245, %s246
      %p257 = scmp.eq.s32.totalorder %s32, 0
      %p258 = por %p256, %p257
      %p259 = scmp.ne.s32.totalorder %s245, %s246
      %p260 = scmp.eq.s32.totalorder %s33, 79
      %p261 = por %p259, %p260
      %p263 = scmp.ne.s32.totalorder %s246, %s262
      %p264 = scmp.eq.s32.totalorder %s33, 0
      %p265 = por %p263, %p264
      %s266 = ssub.s32 %s35, %s42
      %p267 = scmp.eq.s32.totalorder %s266, 0
      %s269 = sadd.s32 %s268, 1
      %s270 = scalar_select %p267, %s268, %s269
      %p273 = pneg %p267
      %p274 = scmp.eq.s32.totalorder %s27, 79
      %p275 = por %p273, %p274
      %p276 = scmp.ne.s32.totalorder %s268, %s271
      %p277 = scmp.eq.s32.totalorder %s27, 0
      %p278 = por %p276, %p277
      %p279 = scmp.ne.s32.totalorder %s268, %s271
      %p280 = scmp.eq.s32.totalorder %s32, 79
      %p281 = por %p279, %p280
      %p282 = scmp.ne.s32.totalorder %s271, %s272
      %p283 = scmp.eq.s32.totalorder %s32, 0
      %p284 = por %p282, %p283
      %p285 = scmp.ne.s32.totalorder %s271, %s272
      %p286 = scmp.eq.s32.totalorder %s33, 79
      %p287 = por %p285, %p286
      %p289 = scmp.ne.s32.totalorder %s272, %s288
      %p290 = scmp.eq.s32.totalorder %s33, 0
      %p291 = por %p289, %p290
      %s292 = ssub.s32 %s34, %s46
      %p293 = scmp.eq.s32.totalorder %s292, 0
      %s295 = sadd.s32 %s294, 1
      %s296 = scalar_select %p293, %s294, %s295
      %p299 = pneg %p293
      %p300 = scmp.eq.s32.totalorder %s27, 79
      %p301 = por %p299, %p300
      %p302 = scmp.ne.s32.totalorder %s294, %s297
      %p303 = scmp.eq.s32.totalorder %s27, 0
      %p304 = por %p302, %p303
      %p305 = scmp.ne.s32.totalorder %s294, %s297
      %p306 = scmp.eq.s32.totalorder %s32, 79
      %p307 = por %p305, %p306
      %p308 = scmp.ne.s32.totalorder %s297, %s298
      %p309 = scmp.eq.s32.totalorder %s32, 0
      %p310 = por %p308, %p309
      %p311 = scmp.ne.s32.totalorder %s297, %s298
      %p312 = scmp.eq.s32.totalorder %s33, 79
      %p313 = por %p311, %p312
      %p315 = scmp.ne.s32.totalorder %s298, %s314
      %p316 = scmp.eq.s32.totalorder %s33, 0
      %p317 = por %p315, %p316
      %p318 = scmp.le.s32.totalorder 1, %s27
      %p319 = scmp.lt.s32.totalorder %s27, 81
      %p320 = pnand %p318, %p319
      %p321 = pneg %p320
      // Predicated region
      $region9: #{phi3_blockwise_forward.2} parent=5 // pred_check
        _
      $region10: #{phi3_blockwise_forward.2} parent=5 // pred_check_branch
        %323 = sbr.rel (%p320) target = $region12
      $region11: #{phi3_blockwise_forward.2} parent=5 // pred_region
        %s324 = ssub.s32 %s27, 1
        // Predicated region
        $region13: #{phi3_blockwise_forward.2} parent=11 // pred_check
          %p325 = pneg %p86
        $region14: #{phi3_blockwise_forward.2} parent=11 // pred_check_branch
          %327 = sbr.rel (%p325) target = $region16
        $region15: #{phi3_blockwise_forward.2} parent=11 // pred_region
          %329 = vsyncadd [#allocation4], 0
          %s330 = sshll.u32 %s1, 4
          %s331 = int_to_ptr.hbm [resolvable:$true] %s330
          %s332 = sshll.u32 [#allocation3], 4
          %s333 = int_to_ptr.vmem [resolvable:$true] %s332
          %338 = dma.hbm_to_vmem [thread:$0]  %s331, 2048, %s333, [#allocation4], 128, 128, 8
        $region16: #{phi3_blockwise_forward.2} parent=11 // pred_fallthru
          _
        // Predicated region
        $region17: #{phi3_blockwise_forward.2} parent=11 // pred_check
          %p339 = pneg %p107
        $region18: #{phi3_blockwise_forward.2} parent=11 // pred_check_branch
          %341 = sbr.rel (%p339) target = $region20
        $region19: #{phi3_blockwise_forward.2} parent=11 // pred_region
          %343 = vsyncadd [#allocation6], 0
          %s344 = sshll.u32 %s2, 4
          %s345 = int_to_ptr.hbm [resolvable:$true] %s344
          %s346 = sshll.u32 [#allocation5], 4
          %s347 = int_to_ptr.vmem [resolvable:$true] %s346
          %352 = dma.hbm_to_vmem [thread:$0]  %s345, 2048, %s347, [#allocation6], 128, 128, 8
        $region20: #{phi3_blockwise_forward.2} parent=11 // pred_fallthru
          _
        // Predicated region
        $region21: #{phi3_blockwise_forward.2} parent=11 // pred_check
          %p353 = pneg %p128
        $region22: #{phi3_blockwise_forward.2} parent=11 // pred_check_branch
          %355 = sbr.rel (%p353) target = $region24
        $region23: #{phi3_blockwise_forward.2} parent=11 // pred_region
          %357 = vsyncadd [#allocation6], 0
          %s358 = sshll.u32 %s3, 4
          %s359 = int_to_ptr.hbm [resolvable:$true] %s358
          %s360 = sshll.u32 [#allocation7], 4
          %s361 = int_to_ptr.vmem [resolvable:$true] %s360
          %366 = dma.hbm_to_vmem [thread:$0]  %s359, 2048, %s361, [#allocation6], 128, 128, 8
        $region24: #{phi3_blockwise_forward.2} parent=11 // pred_fallthru
          _
      $region12: #{phi3_blockwise_forward.2} parent=5 // pred_fallthru
        _
      %p367 = scmp.lt.s32.totalorder %s27, 80
      // Predicated region
      $region25: #{phi3_blockwise_forward.2} parent=5 // pred_check
        %p368 = pneg %p367
      $region26: #{phi3_blockwise_forward.2} parent=5 // pred_check_branch
        %370 = sbr.rel (%p368) target = $region28
      $region27: #{phi3_blockwise_forward.2} parent=5 // pred_region
        // Predicated region
        $region29: #{phi3_blockwise_forward.2} parent=27 // pred_check
          %p371 = pneg %p59
        $region30: #{phi3_blockwise_forward.2} parent=27 // pred_check_branch
          %373 = sbr.rel (%p371) target = $region32
        $region31: #{phi3_blockwise_forward.2} parent=27 // pred_region
          %p374 = scmp.lt.s32.totalorder %s34, 1
          %s375 = scalar_select %p374, %s34, 1
          %s376 = smul.addr %s375, 16
          %s377 = smul.addr %s376, 8
          %s378 = scalar_lea.vmem %s0, %s377
        $region32: #{phi3_blockwise_forward.2} parent=27 // pred_fallthru
          _
        // Predicated region
        $region33: #{phi3_blockwise_forward.2} parent=27 // pred_check
          %p379 = pneg %p148
        $region34: #{phi3_blockwise_forward.2} parent=27 // pred_check_branch
          %381 = sbr.rel (%p379) target = $region36
        $region35: #{phi3_blockwise_forward.2} parent=27 // pred_region
          %s382 = sand.u32 %s27, 1
          %s383 = scalar_lea.sflag [#allocation9], %s382
          %s384 = sand.u32 %s138, 1
          %s385 = scalar_lea.vmem [#allocation8], %s384
          %387 = vsyncadd %s383, 0
          %s388 = scalar_lea.hbm %s4, %s35
          %s390 = sshll.u32 %s388, 4
          %s391 = int_to_ptr.hbm [resolvable:$true] %s390
          %s392 = sshll.u32 %s385, 4
          %s393 = int_to_ptr.vmem [resolvable:$true] %s392
          %395 = dma.hbm_to_vmem [thread:$0]  %s391, 16, %s393, %s383
        $region36: #{phi3_blockwise_forward.2} parent=27 // pred_fallthru
          _
        // Predicated region
        $region37: #{phi3_blockwise_forward.2} parent=27 // pred_check
          %p396 = pneg %p174
        $region38: #{phi3_blockwise_forward.2} parent=27 // pred_check_branch
          %398 = sbr.rel (%p396) target = $region40
        $region39: #{phi3_blockwise_forward.2} parent=27 // pred_region
          %s399 = sand.u32 %s27, 1
          %s400 = scalar_lea.sflag [#allocation9], %s399
          %s401 = sand.u32 %s164, 1
          %s402 = smul.addr %s401, 320
          %s403 = scalar_lea.vmem [#allocation10], %s402
          %405 = vsyncadd %s400, 0
          %s406 = smul.addr %s35, 80
          %s407 = smul.addr %s406, 4
          %s408 = scalar_lea.hbm %s5, %s407
          %s409 = sshll.u32 %s408, 4
          %s410 = int_to_ptr.hbm [resolvable:$true] %s409
          %s411 = sshll.u32 %s403, 4
          %s412 = int_to_ptr.vmem [resolvable:$true] %s411
          %417 = dma.hbm_to_vmem [thread:$0]  %s410, 5120, %s412, %s400, 320, 320, 20
        $region40: #{phi3_blockwise_forward.2} parent=27 // pred_fallthru
          _
        // Predicated region
        $region41: #{phi3_blockwise_forward.2} parent=27 // pred_check
          %p418 = pneg %p200
        $region42: #{phi3_blockwise_forward.2} parent=27 // pred_check_branch
          %420 = sbr.rel (%p418) target = $region44
        $region43: #{phi3_blockwise_forward.2} parent=27 // pred_region
          %s421 = sand.u32 %s27, 1
          %s422 = scalar_lea.sflag [#allocation12], %s421
          %s423 = sand.u32 %s190, 1
          %s424 = smul.addr %s423, 64
          %s425 = scalar_lea.vmem [#allocation11], %s424
          %427 = vsyncadd %s422, 0
          %s428 = smul.addr %s35, 16
          %s429 = smul.addr %s428, 4
          %s430 = scalar_lea.hbm %s6, %s429
          %s431 = sshll.u32 %s430, 4
          %s432 = int_to_ptr.hbm [resolvable:$true] %s431
          %s433 = sshll.u32 %s425, 4
          %s434 = int_to_ptr.vmem [resolvable:$true] %s433
          %439 = dma.hbm_to_vmem [thread:$0]  %s432, 1024, %s434, %s422, 64, 64, 4
        $region44: #{phi3_blockwise_forward.2} parent=27 // pred_fallthru
          _
        // Predicated region
        $region45: #{phi3_blockwise_forward.2} parent=27 // pred_check
          %p440 = pneg %p226
        $region46: #{phi3_blockwise_forward.2} parent=27 // pred_check_branch
          %442 = sbr.rel (%p440) target = $region48
        $region47: #{phi3_blockwise_forward.2} parent=27 // pred_region
          %s443 = sand.u32 %s27, 1
          %s444 = scalar_lea.sflag [#allocation12], %s443
          %s445 = sand.u32 %s216, 1
          %s446 = scalar_lea.vmem [#allocation13], %s445
          %448 = vsyncadd %s444, 0
          %s449 = scalar_lea.hbm %s7, %s35
          %s451 = sshll.u32 %s449, 4
          %s452 = int_to_ptr.hbm [resolvable:$true] %s451
          %s453 = sshll.u32 %s446, 4
          %s454 = int_to_ptr.vmem [resolvable:$true] %s453
          %456 = dma.hbm_to_vmem [thread:$0]  %s452, 16, %s454, %s444
        $region48: #{phi3_blockwise_forward.2} parent=27 // pred_fallthru
          _
        // Predicated region
        $region49: #{phi3_blockwise_forward.2} parent=27 // pred_check
          %p457 = pneg %p252
        $region50: #{phi3_blockwise_forward.2} parent=27 // pred_check_branch
          %459 = sbr.rel (%p457) target = $region52
        $region51: #{phi3_blockwise_forward.2} parent=27 // pred_region
          %s460 = sand.u32 %s27, 1
          %s461 = scalar_lea.sflag [#allocation15], %s460
          %s462 = sand.u32 %s242, 1
          %s463 = smul.addr %s462, 256
          %s464 = scalar_lea.vmem [#allocation14], %s463
          %466 = vsyncadd %s461, 0
          %s467 = smul.addr %s35, 64
          %s468 = smul.addr %s467, 4
          %s469 = scalar_lea.hbm %s8, %s468
          %s470 = sshll.u32 %s469, 4
          %s471 = int_to_ptr.hbm [resolvable:$true] %s470
          %s472 = sshll.u32 %s464, 4
          %s473 = int_to_ptr.vmem [resolvable:$true] %s472
          %478 = dma.hbm_to_vmem [thread:$0]  %s471, 4096, %s473, %s461, 256, 256, 16
        $region52: #{phi3_blockwise_forward.2} parent=27 // pred_fallthru
          _
        // Predicated region
        $region53: #{phi3_blockwise_forward.2} parent=27 // pred_check
          %p479 = pneg %p278
        $region54: #{phi3_blockwise_forward.2} parent=27 // pred_check_branch
          %481 = sbr.rel (%p479) target = $region56
        $region55: #{phi3_blockwise_forward.2} parent=27 // pred_region
          %s482 = sand.u32 %s27, 1
          %s483 = scalar_lea.sflag [#allocation15], %s482
          %s484 = sand.u32 %s268, 1
          %s485 = smul.addr %s484, 128
          %s486 = scalar_lea.vmem [#allocation16], %s485
          %488 = vsyncadd %s483, 0
          %s489 = smul.addr %s35, 32
          %s490 = smul.addr %s489, 4
          %s491 = scalar_lea.hbm %s9, %s490
          %s492 = sshll.u32 %s491, 4
          %s493 = int_to_ptr.hbm [resolvable:$true] %s492
          %s494 = sshll.u32 %s486, 4
          %s495 = int_to_ptr.vmem [resolvable:$true] %s494
          %500 = dma.hbm_to_vmem [thread:$0]  %s493, 2048, %s495, %s483, 64, 64, 4
        $region56: #{phi3_blockwise_forward.2} parent=27 // pred_fallthru
          _
      $region28: #{phi3_blockwise_forward.2} parent=5 // pred_fallthru
        _
      %p501 = scmp.le.s32.totalorder 1, %s27
      %p502 = scmp.lt.s32.totalorder %s27, 81
      %p503 = pnand %p501, %p502
      %p504 = pneg %p503
      // Predicated region
      $region57: #{phi3_blockwise_forward.2} parent=5 // pred_check
        _
      $region58: #{phi3_blockwise_forward.2} parent=5 // pred_check_branch
        %506 = sbr.rel (%p503) target = $region60
      $region59: #{phi3_blockwise_forward.2} parent=5 // pred_region
        %s507 = ssub.s32 %s27, 1
        // Predicated region
        $region61: #{phi3_blockwise_forward.2} parent=59 // pred_check
          %p508 = pneg %p86
        $region62: #{phi3_blockwise_forward.2} parent=59 // pred_check_branch
          %510 = sbr.rel (%p508) target = $region64
        $region63: #{phi3_blockwise_forward.2} parent=59 // pred_region
          %512 = dma.done [#allocation4], 2048
        $region64: #{phi3_blockwise_forward.2} parent=59 // pred_fallthru
          _
        // Predicated region
        $region65: #{phi3_blockwise_forward.2} parent=59 // pred_check
          %p513 = pneg %p107
        $region66: #{phi3_blockwise_forward.2} parent=59 // pred_check_branch
          %515 = sbr.rel (%p513) target = $region68
        $region67: #{phi3_blockwise_forward.2} parent=59 // pred_region
          %517 = dma.done [#allocation6], 2048
        $region68: #{phi3_blockwise_forward.2} parent=59 // pred_fallthru
          _
        // Predicated region
        $region69: #{phi3_blockwise_forward.2} parent=59 // pred_check
          %p518 = pneg %p128
        $region70: #{phi3_blockwise_forward.2} parent=59 // pred_check_branch
          %520 = sbr.rel (%p518) target = $region72
        $region71: #{phi3_blockwise_forward.2} parent=59 // pred_region
          %522 = dma.done [#allocation6], 2048
        $region72: #{phi3_blockwise_forward.2} parent=59 // pred_fallthru
          _
        %s523 = sand.u32 %s32, 1
        %s524 = scalar_lea.sflag [#allocation9], %s523
        %s525 = sand.u32 %s141, 1
        %s526 = scalar_lea.vmem [#allocation8], %s525
        // Predicated region
        $region73: #{phi3_blockwise_forward.2} parent=59 // pred_check
          %p527 = pneg %p154
        $region74: #{phi3_blockwise_forward.2} parent=59 // pred_check_branch
          %529 = sbr.rel (%p527) target = $region76
        $region75: #{phi3_blockwise_forward.2} parent=59 // pred_region
          %531 = dma.done %s524, 16
        $region76: #{phi3_blockwise_forward.2} parent=59 // pred_fallthru
          _
        %s532 = sand.u32 %s32, 1
        %s533 = scalar_lea.sflag [#allocation9], %s532
        %s534 = sand.u32 %s167, 1
        %s535 = smul.addr %s534, 320
        %s536 = scalar_lea.vmem [#allocation10], %s535
        // Predicated region
        $region77: #{phi3_blockwise_forward.2} parent=59 // pred_check
          %p537 = pneg %p180
        $region78: #{phi3_blockwise_forward.2} parent=59 // pred_check_branch
          %539 = sbr.rel (%p537) target = $region80
        $region79: #{phi3_blockwise_forward.2} parent=59 // pred_region
          %541 = dma.done %s533, 5120
        $region80: #{phi3_blockwise_forward.2} parent=59 // pred_fallthru
          _
        %s542 = sand.u32 %s32, 1
        %s543 = scalar_lea.sflag [#allocation12], %s542
        %s544 = sand.u32 %s193, 1
        %s545 = smul.addr %s544, 64
        %s546 = scalar_lea.vmem [#allocation11], %s545
        // Predicated region
        $region81: #{phi3_blockwise_forward.2} parent=59 // pred_check
          %p547 = pneg %p206
        $region82: #{phi3_blockwise_forward.2} parent=59 // pred_check_branch
          %549 = sbr.rel (%p547) target = $region84
        $region83: #{phi3_blockwise_forward.2} parent=59 // pred_region
          %551 = dma.done %s543, 1024
        $region84: #{phi3_blockwise_forward.2} parent=59 // pred_fallthru
          _
        %s552 = sand.u32 %s32, 1
        %s553 = scalar_lea.sflag [#allocation12], %s552
        %s554 = sand.u32 %s219, 1
        %s555 = scalar_lea.vmem [#allocation13], %s554
        // Predicated region
        $region85: #{phi3_blockwise_forward.2} parent=59 // pred_check
          %p556 = pneg %p232
        $region86: #{phi3_blockwise_forward.2} parent=59 // pred_check_branch
          %558 = sbr.rel (%p556) target = $region88
        $region87: #{phi3_blockwise_forward.2} parent=59 // pred_region
          %560 = dma.done %s553, 16
        $region88: #{phi3_blockwise_forward.2} parent=59 // pred_fallthru
          _
        %s561 = sand.u32 %s32, 1
        %s562 = scalar_lea.sflag [#allocation15], %s561
        %s563 = sand.u32 %s245, 1
        %s564 = smul.addr %s563, 256
        %s565 = scalar_lea.vmem [#allocation14], %s564
        // Predicated region
        $region89: #{phi3_blockwise_forward.2} parent=59 // pred_check
          %p566 = pneg %p258
        $region90: #{phi3_blockwise_forward.2} parent=59 // pred_check_branch
          %568 = sbr.rel (%p566) target = $region92
        $region91: #{phi3_blockwise_forward.2} parent=59 // pred_region
          %570 = dma.done %s562, 4096
        $region92: #{phi3_blockwise_forward.2} parent=59 // pred_fallthru
          _
        %s571 = sand.u32 %s32, 1
        %s572 = scalar_lea.sflag [#allocation15], %s571
        %s573 = sand.u32 %s271, 1
        %s574 = smul.addr %s573, 128
        %s575 = scalar_lea.vmem [#allocation16], %s574
        // Predicated region
        $region93: #{phi3_blockwise_forward.2} parent=59 // pred_check
          %p576 = pneg %p284
        $region94: #{phi3_blockwise_forward.2} parent=59 // pred_check_branch
          %578 = sbr.rel (%p576) target = $region96
        $region95: #{phi3_blockwise_forward.2} parent=59 // pred_region
          %580 = dma.done %s572, 2048
        $region96: #{phi3_blockwise_forward.2} parent=59 // pred_fallthru
          _
        %p581 = scmp.lt.s32.totalorder %s36, 1
        %s582 = scalar_select %p581, %s36, 1
        %s583 = smul.addr %s582, 16
        %s584 = smul.addr %s583, 8
        %s585 = scalar_lea.vmem %s0, %s584
        %p586 = pneg %p65
        %p587 = pneg %p62
        %p588 = pneg %p86
        %p589 = pneg %p83
        %p590 = pneg %p107
        %p591 = pneg %p104
        %p592 = pneg %p128
        %p593 = pneg %p125
        %s594 = sand.u32 %s32, 1
        %s595 = scalar_lea.sflag [#allocation9], %s594
        %s596 = sand.u32 %s141, 1
        %s597 = scalar_lea.vmem [#allocation8], %s596
        %p598 = pneg %p154
        %p599 = pneg %p151
        %s600 = sand.u32 %s32, 1
        %s601 = scalar_lea.sflag [#allocation9], %s600
        %s602 = sand.u32 %s167, 1
        %s603 = smul.addr %s602, 320
        %s604 = scalar_lea.vmem [#allocation10], %s603
        %p605 = pneg %p180
        %p606 = pneg %p177
        %s607 = sand.u32 %s32, 1
        %s608 = scalar_lea.sflag [#allocation12], %s607
        %s609 = sand.u32 %s193, 1
        %s610 = smul.addr %s609, 64
        %s611 = scalar_lea.vmem [#allocation11], %s610
        %p612 = pneg %p206
        %p613 = pneg %p203
        %s614 = sand.u32 %s32, 1
        %s615 = scalar_lea.sflag [#allocation12], %s614
        %s616 = sand.u32 %s219, 1
        %s617 = scalar_lea.vmem [#allocation13], %s616
        %p618 = pneg %p232
        %p619 = pneg %p229
        %s620 = sand.u32 %s32, 1
        %s621 = scalar_lea.sflag [#allocation15], %s620
        %s622 = sand.u32 %s245, 1
        %s623 = smul.addr %s622, 256
        %s624 = scalar_lea.vmem [#allocation14], %s623
        %p625 = pneg %p258
        %p626 = pneg %p255
        %s627 = sand.u32 %s32, 1
        %s628 = scalar_lea.sflag [#allocation15], %s627
        %s629 = sand.u32 %s271, 1
        %s630 = smul.addr %s629, 128
        %s631 = scalar_lea.vmem [#allocation16], %s630
        %p632 = pneg %p284
        %p633 = pneg %p281
        %p634 = pneg %p310
        %p635 = pneg %p307
        %p636 = scmp.lt.s32.totalorder %s36, 1
        %s637 = scalar_select %p636, %s36, 1
        %s638 = smul.addr %s637, 16
        %s639 = smul.addr %s638, 8
        %s640 = scalar_lea.vmem %s10, %s639
        %p641 = scmp.lt.s32.totalorder %s36, 1
        %s642 = scalar_select %p641, %s36, 1
        %s643 = smul.addr %s642, 16
        %s644 = smul.addr %s643, 8
        %s645 = scalar_lea.vmem %s0, %s644
        %p646 = scmp.lt.s32.totalorder %s36, 1
        %s647 = scalar_select %p646, %s36, 1
        %s648 = smul.addr %s647, 16
        %s649 = smul.addr %s648, 8
        %s650 = scalar_lea.vmem %s10, %s649
        %p652 = scmp.eq.s32.totalorder %s37, 0
        // Predicated region
        $region97: #{phi3_blockwise_forward.2} parent=59 // pred_check
          %p653 = pneg %p652
        $region98: #{phi3_blockwise_forward.2} parent=59 // pred_check_branch
          %655 = sbr.rel (%p653) target = $region100
        $region99: #{phi3_blockwise_forward.2} parent=59 // pred_region
          %v656 = vld [vmem:[%s645] sm:$0xff]
          %v657 = vld [vmem:[%s645 + $0x8] sm:$0xff]
          %v658 = vld [vmem:[%s645 + $0x10] sm:$0xff]
          %v659 = vld [vmem:[%s645 + $0x18] sm:$0xff]
          %v660 = vld [vmem:[%s645 + $0x20] sm:$0xff]
          %v661 = vld [vmem:[%s645 + $0x28] sm:$0xff]
          %v662 = vld [vmem:[%s645 + $0x30] sm:$0xff]
          %v663 = vld [vmem:[%s645 + $0x38] sm:$0xff]
          %v664 = vld [vmem:[%s645 + $0x40] sm:$0xff]
          %v665 = vld [vmem:[%s645 + $0x48] sm:$0xff]
          %v666 = vld [vmem:[%s645 + $0x50] sm:$0xff]
          %v667 = vld [vmem:[%s645 + $0x58] sm:$0xff]
          %v668 = vld [vmem:[%s645 + $0x60] sm:$0xff]
          %v669 = vld [vmem:[%s645 + $0x68] sm:$0xff]
          %v670 = vld [vmem:[%s645 + $0x70] sm:$0xff]
          %v671 = vld [vmem:[%s645 + $0x78] sm:$0xff]
          %672 = vst [vmem:[#allocation2] sm:$0xff] %v656
          %673 = vst [vmem:[#allocation2 + $0x8] sm:$0xff] %v657
          %674 = vst [vmem:[#allocation2 + $0x10] sm:$0xff] %v658
          %675 = vst [vmem:[#allocation2 + $0x18] sm:$0xff] %v659
          %676 = vst [vmem:[#allocation2 + $0x20] sm:$0xff] %v660
          %677 = vst [vmem:[#allocation2 + $0x28] sm:$0xff] %v661
          %678 = vst [vmem:[#allocation2 + $0x30] sm:$0xff] %v662
          %679 = vst [vmem:[#allocation2 + $0x38] sm:$0xff] %v663
          %680 = vst [vmem:[#allocation2 + $0x40] sm:$0xff] %v664
          %681 = vst [vmem:[#allocation2 + $0x48] sm:$0xff] %v665
          %682 = vst [vmem:[#allocation2 + $0x50] sm:$0xff] %v666
          %683 = vst [vmem:[#allocation2 + $0x58] sm:$0xff] %v667
          %684 = vst [vmem:[#allocation2 + $0x60] sm:$0xff] %v668
          %685 = vst [vmem:[#allocation2 + $0x68] sm:$0xff] %v669
          %686 = vst [vmem:[#allocation2 + $0x70] sm:$0xff] %v670
          %687 = vst [vmem:[#allocation2 + $0x78] sm:$0xff] %v671
        $region100: #{phi3_blockwise_forward.2} parent=59 // pred_fallthru
          _
        %v688 = vld [vmem:[#allocation2] sm:$0xff]
        %v689 = vld [vmem:[#allocation2 + $0x8] sm:$0xff]
        %v690 = vld [vmem:[#allocation2 + $0x10] sm:$0xff]
        %v691 = vld [vmem:[#allocation2 + $0x18] sm:$0xff]
        %v692 = vld [vmem:[#allocation2 + $0x20] sm:$0xff]
        %v693 = vld [vmem:[#allocation2 + $0x28] sm:$0xff]
        %v694 = vld [vmem:[#allocation2 + $0x30] sm:$0xff]
        %v695 = vld [vmem:[#allocation2 + $0x38] sm:$0xff]
        %v696 = vld [vmem:[#allocation2 + $0x40] sm:$0xff]
        %v697 = vld [vmem:[#allocation2 + $0x48] sm:$0xff]
        %v698 = vld [vmem:[#allocation2 + $0x50] sm:$0xff]
        %v699 = vld [vmem:[#allocation2 + $0x58] sm:$0xff]
        %v700 = vld [vmem:[#allocation2 + $0x60] sm:$0xff]
        %v701 = vld [vmem:[#allocation2 + $0x68] sm:$0xff]
        %v702 = vld [vmem:[#allocation2 + $0x70] sm:$0xff]
        %v703 = vld [vmem:[#allocation2 + $0x78] sm:$0xff]
        %v704 = vld [vmem:[%s526] sm:$0x1]
        %v705 = vmul.f32 %v688, %v688
        %v706 = vmul.f32 %v689, %v689
        %v707 = vmul.f32 %v690, %v690
        %v708 = vmul.f32 %v691, %v691
        %v709 = vmul.f32 %v692, %v692
        %v710 = vmul.f32 %v693, %v693
        %v711 = vmul.f32 %v694, %v694
        %v712 = vmul.f32 %v695, %v695
        %v713 = vmul.f32 %v696, %v696
        %v714 = vmul.f32 %v697, %v697
        %v715 = vmul.f32 %v698, %v698
        %v716 = vmul.f32 %v699, %v699
        %v717 = vmul.f32 %v700, %v700
        %v718 = vmul.f32 %v701, %v701
        %v719 = vmul.f32 %v702, %v702
        %v720 = vmul.f32 %v703, %v703
        %721 = vadd.xlane.f32.xlu0 %v705
        %v722 = vpop.xlane.xlu0 %721
        %723 = vadd.xlane.f32.xlu0 %v706
        %v724 = vpop.xlane.xlu0 %723
        %725 = vadd.xlane.f32.xlu0 %v707
        %v726 = vpop.xlane.xlu0 %725
        %727 = vadd.xlane.f32.xlu0 %v708
        %v728 = vpop.xlane.xlu0 %727
        %729 = vadd.xlane.f32.xlu0 %v709
        %v730 = vpop.xlane.xlu0 %729
        %731 = vadd.xlane.f32.xlu0 %v710
        %v732 = vpop.xlane.xlu0 %731
        %733 = vadd.xlane.f32.xlu0 %v711
        %v734 = vpop.xlane.xlu0 %733
        %735 = vadd.xlane.f32.xlu0 %v712
        %v736 = vpop.xlane.xlu0 %735
        %737 = vadd.xlane.f32.xlu0 %v713
        %v738 = vpop.xlane.xlu0 %737
        %739 = vadd.xlane.f32.xlu0 %v714
        %v740 = vpop.xlane.xlu0 %739
        %741 = vadd.xlane.f32.xlu0 %v715
        %v742 = vpop.xlane.xlu0 %741
        %743 = vadd.xlane.f32.xlu0 %v716
        %v744 = vpop.xlane.xlu0 %743
        %745 = vadd.xlane.f32.xlu0 %v717
        %v746 = vpop.xlane.xlu0 %745
        %747 = vadd.xlane.f32.xlu0 %v718
        %v748 = vpop.xlane.xlu0 %747
        %749 = vadd.xlane.f32.xlu0 %v719
        %v750 = vpop.xlane.xlu0 %749
        %751 = vadd.xlane.f32.xlu0 %v720
        %v752 = vpop.xlane.xlu0 %751
        %v753 = vrcp.pop 128.0
        %v754 = vmul.f32 128.0, %v753
        %v755 = vsub.f32 1.0, %v754
        %v756 = vmul.f32 %v753, %v755
        %v757 = vadd.f32 %v753, %v756
        %vm758 = vweird.f32 %v753
        %v759 = vsel %vm758, %v753, %v757
        %v760 = vmul.f32 %v722, %v759
        %v761 = vmul.f32 %v724, %v759
        %v762 = vmul.f32 %v726, %v759
        %v763 = vmul.f32 %v728, %v759
        %v764 = vmul.f32 %v730, %v759
        %v765 = vmul.f32 %v732, %v759
        %v766 = vmul.f32 %v734, %v759
        %v767 = vmul.f32 %v736, %v759
        %v768 = vmul.f32 %v738, %v759
        %v769 = vmul.f32 %v740, %v759
        %v770 = vmul.f32 %v742, %v759
        %v771 = vmul.f32 %v744, %v759
        %v772 = vmul.f32 %v746, %v759
        %v773 = vmul.f32 %v748, %v759
        %v774 = vmul.f32 %v750, %v759
        %v775 = vmul.f32 %v752, %v759
        %v776 = vadd.f32 %v760, 1e-05
        %v777 = vadd.f32 %v761, 1e-05
        %v778 = vadd.f32 %v762, 1e-05
        %v779 = vadd.f32 %v763, 1e-05
        %v780 = vadd.f32 %v764, 1e-05
        %v781 = vadd.f32 %v765, 1e-05
        %v782 = vadd.f32 %v766, 1e-05
        %v783 = vadd.f32 %v767, 1e-05
        %v784 = vadd.f32 %v768, 1e-05
        %v785 = vadd.f32 %v769, 1e-05
        %v786 = vadd.f32 %v770, 1e-05
        %v787 = vadd.f32 %v771, 1e-05
        %v788 = vadd.f32 %v772, 1e-05
        %v789 = vadd.f32 %v773, 1e-05
        %v790 = vadd.f32 %v774, 1e-05
        %v791 = vadd.f32 %v775, 1e-05
        %v792 = vrsqrt.pop %v776
        %v793 = vmul.f32 %v792, %v776
        %v794 = vmul.f32 %v793, %v792
        %v795 = vmul.f32 0.5, %v794
        %v796 = vsub.f32 1.5, %v795
        %v797 = vmul.f32 %v792, %v796
        %vm798 = vweird.f32 %v776
        %vm799 = vweird.f32 %v792
        %vm800 = vmor %vm798, %vm799
        %v801 = vsel %vm800, %v792, %v797
        %v802 = vrsqrt.pop %v777
        %v803 = vmul.f32 %v802, %v777
        %v804 = vmul.f32 %v803, %v802
        %v805 = vmul.f32 0.5, %v804
        %v806 = vsub.f32 1.5, %v805
        %v807 = vmul.f32 %v802, %v806
        %vm808 = vweird.f32 %v777
        %vm809 = vweird.f32 %v802
        %vm810 = vmor %vm808, %vm809
        %v811 = vsel %vm810, %v802, %v807
        %v812 = vrsqrt.pop %v778
        %v813 = vmul.f32 %v812, %v778
        %v814 = vmul.f32 %v813, %v812
        %v815 = vmul.f32 0.5, %v814
        %v816 = vsub.f32 1.5, %v815
        %v817 = vmul.f32 %v812, %v816
        %vm818 = vweird.f32 %v778
        %vm819 = vweird.f32 %v812
        %vm820 = vmor %vm818, %vm819
        %v821 = vsel %vm820, %v812, %v817
        %v822 = vrsqrt.pop %v779
        %v823 = vmul.f32 %v822, %v779
        %v824 = vmul.f32 %v823, %v822
        %v825 = vmul.f32 0.5, %v824
        %v826 = vsub.f32 1.5, %v825
        %v827 = vmul.f32 %v822, %v826
        %vm828 = vweird.f32 %v779
        %vm829 = vweird.f32 %v822
        %vm830 = vmor %vm828, %vm829
        %v831 = vsel %vm830, %v822, %v827
        %v832 = vrsqrt.pop %v780
        %v833 = vmul.f32 %v832, %v780
        %v834 = vmul.f32 %v833, %v832
        %v835 = vmul.f32 0.5, %v834
        %v836 = vsub.f32 1.5, %v835
        %v837 = vmul.f32 %v832, %v836
        %vm838 = vweird.f32 %v780
        %vm839 = vweird.f32 %v832
        %vm840 = vmor %vm838, %vm839
        %v841 = vsel %vm840, %v832, %v837
        %v842 = vrsqrt.pop %v781
        %v843 = vmul.f32 %v842, %v781
        %v844 = vmul.f32 %v843, %v842
        %v845 = vmul.f32 0.5, %v844
        %v846 = vsub.f32 1.5, %v845
        %v847 = vmul.f32 %v842, %v846
        %vm848 = vweird.f32 %v781
        %vm849 = vweird.f32 %v842
        %vm850 = vmor %vm848, %vm849
        %v851 = vsel %vm850, %v842, %v847
        %v852 = vrsqrt.pop %v782
        %v853 = vmul.f32 %v852, %v782
        %v854 = vmul.f32 %v853, %v852
        %v855 = vmul.f32 0.5, %v854
        %v856 = vsub.f32 1.5, %v855
        %v857 = vmul.f32 %v852, %v856
        %vm858 = vweird.f32 %v782
        %vm859 = vweird.f32 %v852
        %vm860 = vmor %vm858, %vm859
        %v861 = vsel %vm860, %v852, %v857
        %v862 = vrsqrt.pop %v783
        %v863 = vmul.f32 %v862, %v783
        %v864 = vmul.f32 %v863, %v862
        %v865 = vmul.f32 0.5, %v864
        %v866 = vsub.f32 1.5, %v865
        %v867 = vmul.f32 %v862, %v866
        %vm868 = vweird.f32 %v783
        %vm869 = vweird.f32 %v862
        %vm870 = vmor %vm868, %vm869
        %v871 = vsel %vm870, %v862, %v867
        %v872 = vrsqrt.pop %v784
        %v873 = vmul.f32 %v872, %v784
        %v874 = vmul.f32 %v873, %v872
        %v875 = vmul.f32 0.5, %v874
        %v876 = vsub.f32 1.5, %v875
        %v877 = vmul.f32 %v872, %v876
        %vm878 = vweird.f32 %v784
        %vm879 = vweird.f32 %v872
        %vm880 = vmor %vm878, %vm879
        %v881 = vsel %vm880, %v872, %v877
        %v882 = vrsqrt.pop %v785
        %v883 = vmul.f32 %v882, %v785
        %v884 = vmul.f32 %v883, %v882
        %v885 = vmul.f32 0.5, %v884
        %v886 = vsub.f32 1.5, %v885
        %v887 = vmul.f32 %v882, %v886
        %vm888 = vweird.f32 %v785
        %vm889 = vweird.f32 %v882
        %vm890 = vmor %vm888, %vm889
        %v891 = vsel %vm890, %v882, %v887
        %v892 = vrsqrt.pop %v786
        %v893 = vmul.f32 %v892, %v786
        %v894 = vmul.f32 %v893, %v892
        %v895 = vmul.f32 0.5, %v894
        %v896 = vsub.f32 1.5, %v895
        %v897 = vmul.f32 %v892, %v896
        %vm898 = vweird.f32 %v786
        %vm899 = vweird.f32 %v892
        %vm900 = vmor %vm898, %vm899
        %v901 = vsel %vm900, %v892, %v897
        %v902 = vrsqrt.pop %v787
        %v903 = vmul.f32 %v902, %v787
        %v904 = vmul.f32 %v903, %v902
        %v905 = vmul.f32 0.5, %v904
        %v906 = vsub.f32 1.5, %v905
        %v907 = vmul.f32 %v902, %v906
        %vm908 = vweird.f32 %v787
        %vm909 = vweird.f32 %v902
        %vm910 = vmor %vm908, %vm909
        %v911 = vsel %vm910, %v902, %v907
        %v912 = vrsqrt.pop %v788
        %v913 = vmul.f32 %v912, %v788
        %v914 = vmul.f32 %v913, %v912
        %v915 = vmul.f32 0.5, %v914
        %v916 = vsub.f32 1.5, %v915
        %v917 = vmul.f32 %v912, %v916
        %vm918 = vweird.f32 %v788
        %vm919 = vweird.f32 %v912
        %vm920 = vmor %vm918, %vm919
        %v921 = vsel %vm920, %v912, %v917
        %v922 = vrsqrt.pop %v789
        %v923 = vmul.f32 %v922, %v789
        %v924 = vmul.f32 %v923, %v922
        %v925 = vmul.f32 0.5, %v924
        %v926 = vsub.f32 1.5, %v925
        %v927 = vmul.f32 %v922, %v926
        %vm928 = vweird.f32 %v789
        %vm929 = vweird.f32 %v922
        %vm930 = vmor %vm928, %vm929
        %v931 = vsel %vm930, %v922, %v927
        %v932 = vrsqrt.pop %v790
        %v933 = vmul.f32 %v932, %v790
        %v934 = vmul.f32 %v933, %v932
        %v935 = vmul.f32 0.5, %v934
        %v936 = vsub.f32 1.5, %v935
        %v937 = vmul.f32 %v932, %v936
        %vm938 = vweird.f32 %v790
        %vm939 = vweird.f32 %v932
        %vm940 = vmor %vm938, %vm939
        %v941 = vsel %vm940, %v932, %v937
        %v942 = vrsqrt.pop %v791
        %v943 = vmul.f32 %v942, %v791
        %v944 = vmul.f32 %v943, %v942
        %v945 = vmul.f32 0.5, %v944
        %v946 = vsub.f32 1.5, %v945
        %v947 = vmul.f32 %v942, %v946
        %vm948 = vweird.f32 %v791
        %vm949 = vweird.f32 %v942
        %vm950 = vmor %vm948, %vm949
        %v951 = vsel %vm950, %v942, %v947
        %v952 = vmul.f32 %v688, %v801
        %v953 = vmul.f32 %v689, %v811
        %v954 = vmul.f32 %v690, %v821
        %v955 = vmul.f32 %v691, %v831
        %v956 = vmul.f32 %v692, %v841
        %v957 = vmul.f32 %v693, %v851
        %v958 = vmul.f32 %v694, %v861
        %v959 = vmul.f32 %v695, %v871
        %v960 = vmul.f32 %v696, %v881
        %v961 = vmul.f32 %v697, %v891
        %v962 = vmul.f32 %v698, %v901
        %v963 = vmul.f32 %v699, %v911
        %v964 = vmul.f32 %v700, %v921
        %v965 = vmul.f32 %v701, %v931
        %v966 = vmul.f32 %v702, %v941
        %v967 = vmul.f32 %v703, %v951
        %v969 = vperm.slane %v704, 0
        %v971 = vmul.f32 %v952, %v969
        %v972 = vmul.f32 %v953, %v969
        %v973 = vmul.f32 %v954, %v969
        %v974 = vmul.f32 %v955, %v969
        %v975 = vmul.f32 %v956, %v969
        %v976 = vmul.f32 %v957, %v969
        %v977 = vmul.f32 %v958, %v969
        %v978 = vmul.f32 %v959, %v969
        %v979 = vmul.f32 %v960, %v969
        %v980 = vmul.f32 %v961, %v969
        %v981 = vmul.f32 %v962, %v969
        %v982 = vmul.f32 %v963, %v969
        %v983 = vmul.f32 %v964, %v969
        %v984 = vmul.f32 %v965, %v969
        %v985 = vmul.f32 %v966, %v969
        %v986 = vmul.f32 %v967, %v969
        %v987 = vpack.c.bf16 %v971, %v971
        %v988 = vpack.c.bf16 %v972, %v972
        %v989 = vpack.c.bf16 %v973, %v973
        %v990 = vpack.c.bf16 %v974, %v974
        %v991 = vpack.c.bf16 %v975, %v975
        %v992 = vpack.c.bf16 %v976, %v976
        %v993 = vpack.c.bf16 %v977, %v977
        %v994 = vpack.c.bf16 %v978, %v978
        %v995 = vpack.c.bf16 %v979, %v979
        %v996 = vpack.c.bf16 %v980, %v980
        %v997 = vpack.c.bf16 %v981, %v981
        %v998 = vpack.c.bf16 %v982, %v982
        %v999 = vpack.c.bf16 %v983, %v983
        %v1000 = vpack.c.bf16 %v984, %v984
        %v1001 = vpack.c.bf16 %v985, %v985
        %v1002 = vpack.c.bf16 %v986, %v986
        %v1003 = vld [vmem:[#allocation3] sm:$0xff]
        %v1004 = vld [vmem:[#allocation3 + $0x8] sm:$0xff]
        %v1005 = vld [vmem:[#allocation3 + $0x10] sm:$0xff]
        %v1006 = vld [vmem:[#allocation3 + $0x18] sm:$0xff]
        %v1007 = vld [vmem:[#allocation3 + $0x20] sm:$0xff]
        %v1008 = vld [vmem:[#allocation3 + $0x28] sm:$0xff]
        %v1009 = vld [vmem:[#allocation3 + $0x30] sm:$0xff]
        %v1010 = vld [vmem:[#allocation3 + $0x38] sm:$0xff]
        %v1011 = vld [vmem:[#allocation3 + $0x40] sm:$0xff]
        %v1012 = vld [vmem:[#allocation3 + $0x48] sm:$0xff]
        %v1013 = vld [vmem:[#allocation3 + $0x50] sm:$0xff]
        %v1014 = vld [vmem:[#allocation3 + $0x58] sm:$0xff]
        %v1015 = vld [vmem:[#allocation3 + $0x60] sm:$0xff]
        %v1016 = vld [vmem:[#allocation3 + $0x68] sm:$0xff]
        %v1017 = vld [vmem:[#allocation3 + $0x70] sm:$0xff]
        %v1018 = vld [vmem:[#allocation3 + $0x78] sm:$0xff]
        %v1019 = vld [vmem:[#allocation5] sm:$0xff]
        %v1020 = vld [vmem:[#allocation5 + $0x8] sm:$0xff]
        %v1021 = vld [vmem:[#allocation5 + $0x10] sm:$0xff]
        %v1022 = vld [vmem:[#allocation5 + $0x18] sm:$0xff]
        %v1023 = vld [vmem:[#allocation5 + $0x20] sm:$0xff]
        %v1024 = vld [vmem:[#allocation5 + $0x28] sm:$0xff]
        %v1025 = vld [vmem:[#allocation5 + $0x30] sm:$0xff]
        %v1026 = vld [vmem:[#allocation5 + $0x38] sm:$0xff]
        %v1027 = vld [vmem:[#allocation5 + $0x40] sm:$0xff]
        %v1028 = vld [vmem:[#allocation5 + $0x48] sm:$0xff]
        %v1029 = vld [vmem:[#allocation5 + $0x50] sm:$0xff]
        %v1030 = vld [vmem:[#allocation5 + $0x58] sm:$0xff]
        %v1031 = vld [vmem:[#allocation5 + $0x60] sm:$0xff]
        %v1032 = vld [vmem:[#allocation5 + $0x68] sm:$0xff]
        %v1033 = vld [vmem:[#allocation5 + $0x70] sm:$0xff]
        %v1034 = vld [vmem:[#allocation5 + $0x78] sm:$0xff]
        %v1035 = vld [vmem:[%s536] sm:$0xff]
        %v1036 = vld [vmem:[%s536 + $0x8] sm:$0xff]
        %v1037 = vld [vmem:[%s536 + $0x10] sm:$0xf]
        %v1038 = vld [vmem:[%s536 + $0x14] sm:$0xff]
        %v1039 = vld [vmem:[%s536 + $0x1c] sm:$0xff]
        %v1040 = vld [vmem:[%s536 + $0x24] sm:$0xf]
        %v1041 = vld [vmem:[%s536 + $0x28] sm:$0xff]
        %v1042 = vld [vmem:[%s536 + $0x30] sm:$0xff]
        %v1043 = vld [vmem:[%s536 + $0x38] sm:$0xf]
        %v1044 = vld [vmem:[%s536 + $0x3c] sm:$0xff]
        %v1045 = vld [vmem:[%s536 + $0x44] sm:$0xff]
        %v1046 = vld [vmem:[%s536 + $0x4c] sm:$0xf]
        %v1047 = vld [vmem:[%s536 + $0x50] sm:$0xff]
        %v1048 = vld [vmem:[%s536 + $0x58] sm:$0xff]
        %v1049 = vld [vmem:[%s536 + $0x60] sm:$0xf]
        %v1050 = vld [vmem:[%s536 + $0x64] sm:$0xff]
        %v1051 = vld [vmem:[%s536 + $0x6c] sm:$0xff]
        %v1052 = vld [vmem:[%s536 + $0x74] sm:$0xf]
        %v1053 = vld [vmem:[%s536 + $0x78] sm:$0xff]
        %v1054 = vld [vmem:[%s536 + $0x80] sm:$0xff]
        %v1055 = vld [vmem:[%s536 + $0x88] sm:$0xf]
        %v1056 = vld [vmem:[%s536 + $0x8c] sm:$0xff]
        %v1057 = vld [vmem:[%s536 + $0x94] sm:$0xff]
        %v1058 = vld [vmem:[%s536 + $0x9c] sm:$0xf]
        %v1059 = vld [vmem:[%s536 + $0xa0] sm:$0xff]
        %v1060 = vld [vmem:[%s536 + $0xa8] sm:$0xff]
        %v1061 = vld [vmem:[%s536 + $0xb0] sm:$0xf]
        %v1062 = vld [vmem:[%s536 + $0xb4] sm:$0xff]
        %v1063 = vld [vmem:[%s536 + $0xbc] sm:$0xff]
        %v1064 = vld [vmem:[%s536 + $0xc4] sm:$0xf]
        %v1065 = vld [vmem:[%s536 + $0xc8] sm:$0xff]
        %v1066 = vld [vmem:[%s536 + $0xd0] sm:$0xff]
        %v1067 = vld [vmem:[%s536 + $0xd8] sm:$0xf]
        %v1068 = vld [vmem:[%s536 + $0xdc] sm:$0xff]
        %v1069 = vld [vmem:[%s536 + $0xe4] sm:$0xff]
        %v1070 = vld [vmem:[%s536 + $0xec] sm:$0xf]
        %v1071 = vld [vmem:[%s536 + $0xf0] sm:$0xff]
        %v1072 = vld [vmem:[%s536 + $0xf8] sm:$0xff]
        %v1073 = vld [vmem:[%s536 + $0x100] sm:$0xf]
        %v1074 = vld [vmem:[%s536 + $0x104] sm:$0xff]
        %v1075 = vld [vmem:[%s536 + $0x10c] sm:$0xff]
        %v1076 = vld [vmem:[%s536 + $0x114] sm:$0xf]
        %v1077 = vld [vmem:[%s536 + $0x118] sm:$0xff]
        %v1078 = vld [vmem:[%s536 + $0x120] sm:$0xff]
        %v1079 = vld [vmem:[%s536 + $0x128] sm:$0xf]
        %v1080 = vld [vmem:[%s536 + $0x12c] sm:$0xff]
        %v1081 = vld [vmem:[%s536 + $0x134] sm:$0xff]
        %v1082 = vld [vmem:[%s536 + $0x13c] sm:$0xf]
        %v1099 = vunpack.c.l.b16 %v987
        %v1100 = vunpack.c.l.b16 %v988
        %v1101 = vunpack.c.l.b16 %v989
        %v1102 = vunpack.c.l.b16 %v990
        %v1103 = vunpack.c.l.b16 %v991
        %v1104 = vunpack.c.l.b16 %v992
        %v1105 = vunpack.c.l.b16 %v993
        %v1106 = vunpack.c.l.b16 %v994
        %v1107 = vunpack.c.l.b16 %v995
        %v1108 = vunpack.c.l.b16 %v996
        %v1109 = vunpack.c.l.b16 %v997
        %v1110 = vunpack.c.l.b16 %v998
        %v1111 = vunpack.c.l.b16 %v999
        %v1112 = vunpack.c.l.b16 %v1000
        %v1113 = vunpack.c.l.b16 %v1001
        %v1114 = vunpack.c.l.b16 %v1002
        %v1115 = vpack.c.b16 %v1100, %v1099
        %v1116 = vpack.c.b16 %v1102, %v1101
        %v1117 = vpack.c.b16 %v1104, %v1103
        %v1118 = vpack.c.b16 %v1106, %v1105
        %v1119 = vpack.c.b16 %v1108, %v1107
        %v1120 = vpack.c.b16 %v1110, %v1109
        %v1121 = vpack.c.b16 %v1112, %v1111
        %v1122 = vpack.c.b16 %v1114, %v1113
        %v1179 = vunpack.c.l.b16 %v1035
        %v1180 = vunpack.c.h.b16 %v1035
        %v1181 = vunpack.c.l.b16 %v1036
        %v1182 = vunpack.c.h.b16 %v1036
        %v1183 = vunpack.c.l.b16 %v1037
        %v1184 = vunpack.c.l.b16 %v1038
        %v1185 = vunpack.c.h.b16 %v1038
        %v1186 = vunpack.c.l.b16 %v1039
        %v1187 = vunpack.c.h.b16 %v1039
        %v1188 = vunpack.c.l.b16 %v1040
        %v1189 = vunpack.c.l.b16 %v1041
        %v1190 = vunpack.c.h.b16 %v1041
        %v1191 = vunpack.c.l.b16 %v1042
        %v1192 = vunpack.c.h.b16 %v1042
        %v1193 = vunpack.c.l.b16 %v1043
        %v1194 = vunpack.c.l.b16 %v1044
        %v1195 = vunpack.c.h.b16 %v1044
        %v1196 = vunpack.c.l.b16 %v1045
        %v1197 = vunpack.c.h.b16 %v1045
        %v1198 = vunpack.c.l.b16 %v1046
        %v1199 = vunpack.c.l.b16 %v1047
        %v1200 = vunpack.c.h.b16 %v1047
        %v1201 = vunpack.c.l.b16 %v1048
        %v1202 = vunpack.c.h.b16 %v1048
        %v1203 = vunpack.c.l.b16 %v1049
        %v1204 = vunpack.c.l.b16 %v1050
        %v1205 = vunpack.c.h.b16 %v1050
        %v1206 = vunpack.c.l.b16 %v1051
        %v1207 = vunpack.c.h.b16 %v1051
        %v1208 = vunpack.c.l.b16 %v1052
        %v1209 = vunpack.c.l.b16 %v1053
        %v1210 = vunpack.c.h.b16 %v1053
        %v1211 = vunpack.c.l.b16 %v1054
        %v1212 = vunpack.c.h.b16 %v1054
        %v1213 = vunpack.c.l.b16 %v1055
        %v1214 = vunpack.c.l.b16 %v1056
        %v1215 = vunpack.c.h.b16 %v1056
        %v1216 = vunpack.c.l.b16 %v1057
        %v1217 = vunpack.c.h.b16 %v1057
        %v1218 = vunpack.c.l.b16 %v1058
        %v1219 = vunpack.c.l.b16 %v1059
        %v1220 = vunpack.c.h.b16 %v1059
        %v1221 = vunpack.c.l.b16 %v1060
        %v1222 = vunpack.c.h.b16 %v1060
        %v1223 = vunpack.c.l.b16 %v1061
        %v1224 = vunpack.c.l.b16 %v1062
        %v1225 = vunpack.c.h.b16 %v1062
        %v1226 = vunpack.c.l.b16 %v1063
        %v1227 = vunpack.c.h.b16 %v1063
        %v1228 = vunpack.c.l.b16 %v1064
        %v1229 = vunpack.c.l.b16 %v1065
        %v1230 = vunpack.c.h.b16 %v1065
        %v1231 = vunpack.c.l.b16 %v1066
        %v1232 = vunpack.c.h.b16 %v1066
        %v1233 = vunpack.c.l.b16 %v1067
        %v1234 = vunpack.c.l.b16 %v1068
        %v1235 = vunpack.c.h.b16 %v1068
        %v1236 = vunpack.c.l.b16 %v1069
        %v1237 = vunpack.c.h.b16 %v1069
        %v1238 = vunpack.c.l.b16 %v1070
        %v1239 = vunpack.c.l.b16 %v1071
        %v1240 = vunpack.c.h.b16 %v1071
        %v1241 = vunpack.c.l.b16 %v1072
        %v1242 = vunpack.c.h.b16 %v1072
        %v1243 = vunpack.c.l.b16 %v1073
        %v1244 = vunpack.c.l.b16 %v1074
        %v1245 = vunpack.c.h.b16 %v1074
        %v1246 = vunpack.c.l.b16 %v1075
        %v1247 = vunpack.c.h.b16 %v1075
        %v1248 = vunpack.c.l.b16 %v1076
        %v1249 = vunpack.c.l.b16 %v1077
        %v1250 = vunpack.c.h.b16 %v1077
        %v1251 = vunpack.c.l.b16 %v1078
        %v1252 = vunpack.c.h.b16 %v1078
        %v1253 = vunpack.c.l.b16 %v1079
        %v1254 = vunpack.c.l.b16 %v1080
        %v1255 = vunpack.c.h.b16 %v1080
        %v1256 = vunpack.c.l.b16 %v1081
        %v1257 = vunpack.c.h.b16 %v1081
        %v1258 = vunpack.c.l.b16 %v1082
        %v1259 = vpack.c.b16 %v1184, %v1179
        %v1260 = vpack.c.b16 %v1185, %v1180
        %v1261 = vpack.c.b16 %v1186, %v1181
        %v1262 = vpack.c.b16 %v1187, %v1182
        %v1263 = vpack.c.b16 %v1188, %v1183
        %v1264 = vpack.c.b16 %v1194, %v1189
        %v1265 = vpack.c.b16 %v1195, %v1190
        %v1266 = vpack.c.b16 %v1196, %v1191
        %v1267 = vpack.c.b16 %v1197, %v1192
        %v1268 = vpack.c.b16 %v1198, %v1193
        %v1269 = vpack.c.b16 %v1204, %v1199
        %v1270 = vpack.c.b16 %v1205, %v1200
        %v1271 = vpack.c.b16 %v1206, %v1201
        %v1272 = vpack.c.b16 %v1207, %v1202
        %v1273 = vpack.c.b16 %v1208, %v1203
        %v1274 = vpack.c.b16 %v1214, %v1209
        %v1275 = vpack.c.b16 %v1215, %v1210
        %v1276 = vpack.c.b16 %v1216, %v1211
        %v1277 = vpack.c.b16 %v1217, %v1212
        %v1278 = vpack.c.b16 %v1218, %v1213
        %v1279 = vpack.c.b16 %v1224, %v1219
        %v1280 = vpack.c.b16 %v1225, %v1220
        %v1281 = vpack.c.b16 %v1226, %v1221
        %v1282 = vpack.c.b16 %v1227, %v1222
        %v1283 = vpack.c.b16 %v1228, %v1223
        %v1284 = vpack.c.b16 %v1234, %v1229
        %v1285 = vpack.c.b16 %v1235, %v1230
        %v1286 = vpack.c.b16 %v1236, %v1231
        %v1287 = vpack.c.b16 %v1237, %v1232
        %v1288 = vpack.c.b16 %v1238, %v1233
        %v1289 = vpack.c.b16 %v1244, %v1239
        %v1290 = vpack.c.b16 %v1245, %v1240
        %v1291 = vpack.c.b16 %v1246, %v1241
        %v1292 = vpack.c.b16 %v1247, %v1242
        %v1293 = vpack.c.b16 %v1248, %v1243
        %v1294 = vpack.c.b16 %v1254, %v1249
        %v1295 = vpack.c.b16 %v1255, %v1250
        %v1296 = vpack.c.b16 %v1256, %v1251
        %v1297 = vpack.c.b16 %v1257, %v1252
        %v1298 = vpack.c.b16 %v1258, %v1253
        %1339 = vmatpush.bf16.msra.mxu0 %v1294
        %1340 = vmatpush.bf16.msra.mxu0 %v1289
        %1341 = vmatpush.bf16.msra.mxu0 %v1284
        %1342 = vmatpush.bf16.msra.mxu0 %v1279
        %1343 = vmatpush.bf16.msra.mxu0 %v1274
        %1344 = vmatpush.bf16.msra.mxu0 %v1269
        %1345 = vmatpush.bf16.msra.mxu0 %v1264
        %1346 = vmatpush.bf16.msra.mxu0 %v1259
        %1347 = vmatmul.bf16.gmra.mxu0 %v1115
        %v1348 = vpop.f32.mrf.mxu0
        %v1349 = vadd.f32 0.0, %v1348
        %v1350 = vpop.f32.mrf.mxu0
        %v1351 = vadd.f32 0.0, %v1350
        %1352 = vmatmul.bf16.gmra.mxu0 %v1116
        %v1353 = vpop.f32.mrf.mxu0
        %v1354 = vadd.f32 0.0, %v1353
        %v1355 = vpop.f32.mrf.mxu0
        %v1356 = vadd.f32 0.0, %v1355
        %1357 = vmatmul.bf16.gmra.mxu0 %v1117
        %v1358 = vpop.f32.mrf.mxu0
        %v1359 = vadd.f32 0.0, %v1358
        %v1360 = vpop.f32.mrf.mxu0
        %v1361 = vadd.f32 0.0, %v1360
        %1362 = vmatmul.bf16.gmra.mxu0 %v1118
        %v1363 = vpop.f32.mrf.mxu0
        %v1364 = vadd.f32 0.0, %v1363
        %v1365 = vpop.f32.mrf.mxu0
        %v1366 = vadd.f32 0.0, %v1365
        %1367 = vmatmul.bf16.gmra.mxu0 %v1119
        %v1368 = vpop.f32.mrf.mxu0
        %v1369 = vadd.f32 0.0, %v1368
        %v1370 = vpop.f32.mrf.mxu0
        %v1371 = vadd.f32 0.0, %v1370
        %1372 = vmatmul.bf16.gmra.mxu0 %v1120
        %v1373 = vpop.f32.mrf.mxu0
        %v1374 = vadd.f32 0.0, %v1373
        %v1375 = vpop.f32.mrf.mxu0
        %v1376 = vadd.f32 0.0, %v1375
        %1377 = vmatmul.bf16.gmra.mxu0 %v1121
        %v1378 = vpop.f32.mrf.mxu0
        %v1379 = vadd.f32 0.0, %v1378
        %v1380 = vpop.f32.mrf.mxu0
        %v1381 = vadd.f32 0.0, %v1380
        %1382 = vmatmul.bf16.gmra.mxu0 %v1122
        %v1383 = vpop.f32.mrf.mxu0
        %v1384 = vadd.f32 0.0, %v1383
        %v1385 = vpop.f32.mrf.mxu0
        %v1386 = vadd.f32 0.0, %v1385
        %1387 = vdwg.mxu0
        %1388 = vmatpush.bf16.msra.mxu0 %v1295
        %1389 = vmatpush.bf16.msra.mxu0 %v1290
        %1390 = vmatpush.bf16.msra.mxu0 %v1285
        %1391 = vmatpush.bf16.msra.mxu0 %v1280
        %1392 = vmatpush.bf16.msra.mxu0 %v1275
        %1393 = vmatpush.bf16.msra.mxu0 %v1270
        %1394 = vmatpush.bf16.msra.mxu0 %v1265
        %1395 = vmatpush.bf16.msra.mxu0 %v1260
        %1396 = vmatmul.bf16.gmra.mxu0 %v1115
        %v1397 = vpop.f32.mrf.mxu0
        %v1398 = vadd.f32 0.0, %v1397
        %v1399 = vpop.f32.mrf.mxu0
        %v1400 = vadd.f32 0.0, %v1399
        %1401 = vmatmul.bf16.gmra.mxu0 %v1116
        %v1402 = vpop.f32.mrf.mxu0
        %v1403 = vadd.f32 0.0, %v1402
        %v1404 = vpop.f32.mrf.mxu0
        %v1405 = vadd.f32 0.0, %v1404
        %1406 = vmatmul.bf16.gmra.mxu0 %v1117
        %v1407 = vpop.f32.mrf.mxu0
        %v1408 = vadd.f32 0.0, %v1407
        %v1409 = vpop.f32.mrf.mxu0
        %v1410 = vadd.f32 0.0, %v1409
        %1411 = vmatmul.bf16.gmra.mxu0 %v1118
        %v1412 = vpop.f32.mrf.mxu0
        %v1413 = vadd.f32 0.0, %v1412
        %v1414 = vpop.f32.mrf.mxu0
        %v1415 = vadd.f32 0.0, %v1414
        %1416 = vmatmul.bf16.gmra.mxu0 %v1119
        %v1417 = vpop.f32.mrf.mxu0
        %v1418 = vadd.f32 0.0, %v1417
        %v1419 = vpop.f32.mrf.mxu0
        %v1420 = vadd.f32 0.0, %v1419
        %1421 = vmatmul.bf16.gmra.mxu0 %v1120
        %v1422 = vpop.f32.mrf.mxu0
        %v1423 = vadd.f32 0.0, %v1422
        %v1424 = vpop.f32.mrf.mxu0
        %v1425 = vadd.f32 0.0, %v1424
        %1426 = vmatmul.bf16.gmra.mxu0 %v1121
        %v1427 = vpop.f32.mrf.mxu0
        %v1428 = vadd.f32 0.0, %v1427
        %v1429 = vpop.f32.mrf.mxu0
        %v1430 = vadd.f32 0.0, %v1429
        %1431 = vmatmul.bf16.gmra.mxu0 %v1122
        %v1432 = vpop.f32.mrf.mxu0
        %v1433 = vadd.f32 0.0, %v1432
        %v1434 = vpop.f32.mrf.mxu0
        %v1435 = vadd.f32 0.0, %v1434
        %1436 = vdwg.mxu0
        %1437 = vmatpush.bf16.msra.mxu0 %v1296
        %1438 = vmatpush.bf16.msra.mxu0 %v1291
        %1439 = vmatpush.bf16.msra.mxu0 %v1286
        %1440 = vmatpush.bf16.msra.mxu0 %v1281
        %1441 = vmatpush.bf16.msra.mxu0 %v1276
        %1442 = vmatpush.bf16.msra.mxu0 %v1271
        %1443 = vmatpush.bf16.msra.mxu0 %v1266
        %1444 = vmatpush.bf16.msra.mxu0 %v1261
        %1445 = vmatmul.bf16.gmra.mxu0 %v1115
        %v1446 = vpop.f32.mrf.mxu0
        %v1447 = vadd.f32 0.0, %v1446
        %v1448 = vpop.f32.mrf.mxu0
        %v1449 = vadd.f32 0.0, %v1448
        %1450 = vmatmul.bf16.gmra.mxu0 %v1116
        %v1451 = vpop.f32.mrf.mxu0
        %v1452 = vadd.f32 0.0, %v1451
        %v1453 = vpop.f32.mrf.mxu0
        %v1454 = vadd.f32 0.0, %v1453
        %1455 = vmatmul.bf16.gmra.mxu0 %v1117
        %v1456 = vpop.f32.mrf.mxu0
        %v1457 = vadd.f32 0.0, %v1456
        %v1458 = vpop.f32.mrf.mxu0
        %v1459 = vadd.f32 0.0, %v1458
        %1460 = vmatmul.bf16.gmra.mxu0 %v1118
        %v1461 = vpop.f32.mrf.mxu0
        %v1462 = vadd.f32 0.0, %v1461
        %v1463 = vpop.f32.mrf.mxu0
        %v1464 = vadd.f32 0.0, %v1463
        %1465 = vmatmul.bf16.gmra.mxu0 %v1119
        %v1466 = vpop.f32.mrf.mxu0
        %v1467 = vadd.f32 0.0, %v1466
        %v1468 = vpop.f32.mrf.mxu0
        %v1469 = vadd.f32 0.0, %v1468
        %1470 = vmatmul.bf16.gmra.mxu0 %v1120
        %v1471 = vpop.f32.mrf.mxu0
        %v1472 = vadd.f32 0.0, %v1471
        %v1473 = vpop.f32.mrf.mxu0
        %v1474 = vadd.f32 0.0, %v1473
        %1475 = vmatmul.bf16.gmra.mxu0 %v1121
        %v1476 = vpop.f32.mrf.mxu0
        %v1477 = vadd.f32 0.0, %v1476
        %v1478 = vpop.f32.mrf.mxu0
        %v1479 = vadd.f32 0.0, %v1478
        %1480 = vmatmul.bf16.gmra.mxu0 %v1122
        %v1481 = vpop.f32.mrf.mxu0
        %v1482 = vadd.f32 0.0, %v1481
        %v1483 = vpop.f32.mrf.mxu0
        %v1484 = vadd.f32 0.0, %v1483
        %1485 = vdwg.mxu0
        %1486 = vmatpush.bf16.msra.mxu0 %v1297
        %1487 = vmatpush.bf16.msra.mxu0 %v1292
        %1488 = vmatpush.bf16.msra.mxu0 %v1287
        %1489 = vmatpush.bf16.msra.mxu0 %v1282
        %1490 = vmatpush.bf16.msra.mxu0 %v1277
        %1491 = vmatpush.bf16.msra.mxu0 %v1272
        %1492 = vmatpush.bf16.msra.mxu0 %v1267
        %1493 = vmatpush.bf16.msra.mxu0 %v1262
        %1494 = vmatmul.bf16.gmra.mxu0 %v1115
        %v1495 = vpop.f32.mrf.mxu0
        %v1496 = vadd.f32 0.0, %v1495
        %v1497 = vpop.f32.mrf.mxu0
        %v1498 = vadd.f32 0.0, %v1497
        %1499 = vmatmul.bf16.gmra.mxu0 %v1116
        %v1500 = vpop.f32.mrf.mxu0
        %v1501 = vadd.f32 0.0, %v1500
        %v1502 = vpop.f32.mrf.mxu0
        %v1503 = vadd.f32 0.0, %v1502
        %1504 = vmatmul.bf16.gmra.mxu0 %v1117
        %v1505 = vpop.f32.mrf.mxu0
        %v1506 = vadd.f32 0.0, %v1505
        %v1507 = vpop.f32.mrf.mxu0
        %v1508 = vadd.f32 0.0, %v1507
        %1509 = vmatmul.bf16.gmra.mxu0 %v1118
        %v1510 = vpop.f32.mrf.mxu0
        %v1511 = vadd.f32 0.0, %v1510
        %v1512 = vpop.f32.mrf.mxu0
        %v1513 = vadd.f32 0.0, %v1512
        %1514 = vmatmul.bf16.gmra.mxu0 %v1119
        %v1515 = vpop.f32.mrf.mxu0
        %v1516 = vadd.f32 0.0, %v1515
        %v1517 = vpop.f32.mrf.mxu0
        %v1518 = vadd.f32 0.0, %v1517
        %1519 = vmatmul.bf16.gmra.mxu0 %v1120
        %v1520 = vpop.f32.mrf.mxu0
        %v1521 = vadd.f32 0.0, %v1520
        %v1522 = vpop.f32.mrf.mxu0
        %v1523 = vadd.f32 0.0, %v1522
        %1524 = vmatmul.bf16.gmra.mxu0 %v1121
        %v1525 = vpop.f32.mrf.mxu0
        %v1526 = vadd.f32 0.0, %v1525
        %v1527 = vpop.f32.mrf.mxu0
        %v1528 = vadd.f32 0.0, %v1527
        %1529 = vmatmul.bf16.gmra.mxu0 %v1122
        %v1530 = vpop.f32.mrf.mxu0
        %v1531 = vadd.f32 0.0, %v1530
        %v1532 = vpop.f32.mrf.mxu0
        %v1533 = vadd.f32 0.0, %v1532
        %1534 = vdwg.mxu0
        %1535 = vmatpush.bf16.msra.mxu0 %v1298
        %1536 = vmatpush.bf16.msra.mxu0 %v1293
        %1537 = vmatpush.bf16.msra.mxu0 %v1288
        %1538 = vmatpush.bf16.msra.mxu0 %v1283
        %1539 = vmatpush.bf16.msra.mxu0 %v1278
        %1540 = vmatpush.bf16.msra.mxu0 %v1273
        %1541 = vmatpush.bf16.msra.mxu0 %v1268
        %1542 = vmatpush.bf16.msra.mxu0 %v1263
        %1543 = vmatmul.bf16.gmra.mxu0 %v1115
        %v1544 = vpop.f32.mrf.mxu0
        %v1545 = vadd.f32 0.0, %v1544
        %v1546 = vpop.f32.mrf.mxu0
        %v1547 = vadd.f32 0.0, %v1546
        %1548 = vmatmul.bf16.gmra.mxu0 %v1116
        %v1549 = vpop.f32.mrf.mxu0
        %v1550 = vadd.f32 0.0, %v1549
        %v1551 = vpop.f32.mrf.mxu0
        %v1552 = vadd.f32 0.0, %v1551
        %1553 = vmatmul.bf16.gmra.mxu0 %v1117
        %v1554 = vpop.f32.mrf.mxu0
        %v1555 = vadd.f32 0.0, %v1554
        %v1556 = vpop.f32.mrf.mxu0
        %v1557 = vadd.f32 0.0, %v1556
        %1558 = vmatmul.bf16.gmra.mxu0 %v1118
        %v1559 = vpop.f32.mrf.mxu0
        %v1560 = vadd.f32 0.0, %v1559
        %v1561 = vpop.f32.mrf.mxu0
        %v1562 = vadd.f32 0.0, %v1561
        %1563 = vmatmul.bf16.gmra.mxu0 %v1119
        %v1564 = vpop.f32.mrf.mxu0
        %v1565 = vadd.f32 0.0, %v1564
        %v1566 = vpop.f32.mrf.mxu0
        %v1567 = vadd.f32 0.0, %v1566
        %1568 = vmatmul.bf16.gmra.mxu0 %v1120
        %v1569 = vpop.f32.mrf.mxu0
        %v1570 = vadd.f32 0.0, %v1569
        %v1571 = vpop.f32.mrf.mxu0
        %v1572 = vadd.f32 0.0, %v1571
        %1573 = vmatmul.bf16.gmra.mxu0 %v1121
        %v1574 = vpop.f32.mrf.mxu0
        %v1575 = vadd.f32 0.0, %v1574
        %v1576 = vpop.f32.mrf.mxu0
        %v1577 = vadd.f32 0.0, %v1576
        %1578 = vmatmul.bf16.gmra.mxu0 %v1122
        %v1579 = vpop.f32.mrf.mxu0
        %v1580 = vadd.f32 0.0, %v1579
        %v1581 = vpop.f32.mrf.mxu0
        %v1582 = vadd.f32 0.0, %v1581
        %1583 = vdwg.mxu0
        %v1584 = vmul.f32 %v1349, %v1003
        %v1585 = vmul.f32 %v1351, %v1004
        %v1586 = vmul.f32 %v1354, %v1005
        %v1587 = vmul.f32 %v1356, %v1006
        %v1588 = vmul.f32 %v1359, %v1007
        %v1589 = vmul.f32 %v1361, %v1008
        %v1590 = vmul.f32 %v1364, %v1009
        %v1591 = vmul.f32 %v1366, %v1010
        %v1592 = vmul.f32 %v1369, %v1011
        %v1593 = vmul.f32 %v1371, %v1012
        %v1594 = vmul.f32 %v1374, %v1013
        %v1595 = vmul.f32 %v1376, %v1014
        %v1596 = vmul.f32 %v1379, %v1015
        %v1597 = vmul.f32 %v1381, %v1016
        %v1598 = vmul.f32 %v1384, %v1017
        %v1599 = vmul.f32 %v1386, %v1018
        %v1600 = vmul.f32 %v1398, %v1019
        %v1601 = vmul.f32 %v1400, %v1020
        %v1602 = vmul.f32 %v1403, %v1021
        %v1603 = vmul.f32 %v1405, %v1022
        %v1604 = vmul.f32 %v1408, %v1023
        %v1605 = vmul.f32 %v1410, %v1024
        %v1606 = vmul.f32 %v1413, %v1025
        %v1607 = vmul.f32 %v1415, %v1026
        %v1608 = vmul.f32 %v1418, %v1027
        %v1609 = vmul.f32 %v1420, %v1028
        %v1610 = vmul.f32 %v1423, %v1029
        %v1611 = vmul.f32 %v1425, %v1030
        %v1612 = vmul.f32 %v1428, %v1031
        %v1613 = vmul.f32 %v1430, %v1032
        %v1614 = vmul.f32 %v1433, %v1033
        %v1615 = vmul.f32 %v1435, %v1034
        %v1616 = vadd.f32 %v1584, %v1600
        %v1617 = vadd.f32 %v1585, %v1601
        %v1618 = vadd.f32 %v1586, %v1602
        %v1619 = vadd.f32 %v1587, %v1603
        %v1620 = vadd.f32 %v1588, %v1604
        %v1621 = vadd.f32 %v1589, %v1605
        %v1622 = vadd.f32 %v1590, %v1606
        %v1623 = vadd.f32 %v1591, %v1607
        %v1624 = vadd.f32 %v1592, %v1608
        %v1625 = vadd.f32 %v1593, %v1609
        %v1626 = vadd.f32 %v1594, %v1610
        %v1627 = vadd.f32 %v1595, %v1611
        %v1628 = vadd.f32 %v1596, %v1612
        %v1629 = vadd.f32 %v1597, %v1613
        %v1630 = vadd.f32 %v1598, %v1614
        %v1631 = vadd.f32 %v1599, %v1615
        %v1632 = vmul.f32 %v1616, 0.17677669
        %v1633 = vmul.f32 %v1617, 0.17677669
        %v1634 = vmul.f32 %v1618, 0.17677669
        %v1635 = vmul.f32 %v1619, 0.17677669
        %v1636 = vmul.f32 %v1620, 0.17677669
        %v1637 = vmul.f32 %v1621, 0.17677669
        %v1638 = vmul.f32 %v1622, 0.17677669
        %v1639 = vmul.f32 %v1623, 0.17677669
        %v1640 = vmul.f32 %v1624, 0.17677669
        %v1641 = vmul.f32 %v1625, 0.17677669
        %v1642 = vmul.f32 %v1626, 0.17677669
        %v1643 = vmul.f32 %v1627, 0.17677669
        %v1644 = vmul.f32 %v1628, 0.17677669
        %v1645 = vmul.f32 %v1629, 0.17677669
        %v1646 = vmul.f32 %v1630, 0.17677669
        %v1647 = vmul.f32 %v1631, 0.17677669
        %v1648 = vmul.f32 %v1447, %v1003
        %v1649 = vmul.f32 %v1449, %v1004
        %v1650 = vmul.f32 %v1452, %v1005
        %v1651 = vmul.f32 %v1454, %v1006
        %v1652 = vmul.f32 %v1457, %v1007
        %v1653 = vmul.f32 %v1459, %v1008
        %v1654 = vmul.f32 %v1462, %v1009
        %v1655 = vmul.f32 %v1464, %v1010
        %v1656 = vmul.f32 %v1467, %v1011
        %v1657 = vmul.f32 %v1469, %v1012
        %v1658 = vmul.f32 %v1472, %v1013
        %v1659 = vmul.f32 %v1474, %v1014
        %v1660 = vmul.f32 %v1477, %v1015
        %v1661 = vmul.f32 %v1479, %v1016
        %v1662 = vmul.f32 %v1482, %v1017
        %v1663 = vmul.f32 %v1484, %v1018
        %v1664 = vmul.f32 %v1496, %v1019
        %v1665 = vmul.f32 %v1498, %v1020
        %v1666 = vmul.f32 %v1501, %v1021
        %v1667 = vmul.f32 %v1503, %v1022
        %v1668 = vmul.f32 %v1506, %v1023
        %v1669 = vmul.f32 %v1508, %v1024
        %v1670 = vmul.f32 %v1511, %v1025
        %v1671 = vmul.f32 %v1513, %v1026
        %v1672 = vmul.f32 %v1516, %v1027
        %v1673 = vmul.f32 %v1518, %v1028
        %v1674 = vmul.f32 %v1521, %v1029
        %v1675 = vmul.f32 %v1523, %v1030
        %v1676 = vmul.f32 %v1526, %v1031
        %v1677 = vmul.f32 %v1528, %v1032
        %v1678 = vmul.f32 %v1531, %v1033
        %v1679 = vmul.f32 %v1533, %v1034
        %v1680 = vadd.f32 %v1648, %v1664
        %v1681 = vadd.f32 %v1649, %v1665
        %v1682 = vadd.f32 %v1650, %v1666
        %v1683 = vadd.f32 %v1651, %v1667
        %v1684 = vadd.f32 %v1652, %v1668
        %v1685 = vadd.f32 %v1653, %v1669
        %v1686 = vadd.f32 %v1654, %v1670
        %v1687 = vadd.f32 %v1655, %v1671
        %v1688 = vadd.f32 %v1656, %v1672
        %v1689 = vadd.f32 %v1657, %v1673
        %v1690 = vadd.f32 %v1658, %v1674
        %v1691 = vadd.f32 %v1659, %v1675
        %v1692 = vadd.f32 %v1660, %v1676
        %v1693 = vadd.f32 %v1661, %v1677
        %v1694 = vadd.f32 %v1662, %v1678
        %v1695 = vadd.f32 %v1663, %v1679
        %v1696 = vpack.c.bf16 %v1632, %v1632
        %v1697 = vpack.c.bf16 %v1633, %v1633
        %v1698 = vpack.c.bf16 %v1634, %v1634
        %v1699 = vpack.c.bf16 %v1635, %v1635
        %v1700 = vpack.c.bf16 %v1636, %v1636
        %v1701 = vpack.c.bf16 %v1637, %v1637
        %v1702 = vpack.c.bf16 %v1638, %v1638
        %v1703 = vpack.c.bf16 %v1639, %v1639
        %v1704 = vpack.c.bf16 %v1640, %v1640
        %v1705 = vpack.c.bf16 %v1641, %v1641
        %v1706 = vpack.c.bf16 %v1642, %v1642
        %v1707 = vpack.c.bf16 %v1643, %v1643
        %v1708 = vpack.c.bf16 %v1644, %v1644
        %v1709 = vpack.c.bf16 %v1645, %v1645
        %v1710 = vpack.c.bf16 %v1646, %v1646
        %v1711 = vpack.c.bf16 %v1647, %v1647
        %v1712 = vpack.c.bf16 %v1680, %v1680
        %v1713 = vpack.c.bf16 %v1681, %v1681
        %v1714 = vpack.c.bf16 %v1682, %v1682
        %v1715 = vpack.c.bf16 %v1683, %v1683
        %v1716 = vpack.c.bf16 %v1684, %v1684
        %v1717 = vpack.c.bf16 %v1685, %v1685
        %v1718 = vpack.c.bf16 %v1686, %v1686
        %v1719 = vpack.c.bf16 %v1687, %v1687
        %v1720 = vpack.c.bf16 %v1688, %v1688
        %v1721 = vpack.c.bf16 %v1689, %v1689
        %v1722 = vpack.c.bf16 %v1690, %v1690
        %v1723 = vpack.c.bf16 %v1691, %v1691
        %v1724 = vpack.c.bf16 %v1692, %v1692
        %v1725 = vpack.c.bf16 %v1693, %v1693
        %v1726 = vpack.c.bf16 %v1694, %v1694
        %v1727 = vpack.c.bf16 %v1695, %v1695
        %v1728 = vpack.c.bf16 %v1545, %v1545
        %v1729 = vpack.c.bf16 %v1547, %v1547
        %v1730 = vpack.c.bf16 %v1550, %v1550
        %v1731 = vpack.c.bf16 %v1552, %v1552
        %v1732 = vpack.c.bf16 %v1555, %v1555
        %v1733 = vpack.c.bf16 %v1557, %v1557
        %v1734 = vpack.c.bf16 %v1560, %v1560
        %v1735 = vpack.c.bf16 %v1562, %v1562
        %v1736 = vpack.c.bf16 %v1565, %v1565
        %v1737 = vpack.c.bf16 %v1567, %v1567
        %v1738 = vpack.c.bf16 %v1570, %v1570
        %v1739 = vpack.c.bf16 %v1572, %v1572
        %v1740 = vpack.c.bf16 %v1575, %v1575
        %v1741 = vpack.c.bf16 %v1577, %v1577
        %v1742 = vpack.c.bf16 %v1580, %v1580
        %v1743 = vpack.c.bf16 %v1582, %v1582
        %v1744 = vld [vmem:[#allocation7] sm:$0xff]
        %v1745 = vld [vmem:[#allocation7 + $0x8] sm:$0xff]
        %v1746 = vld [vmem:[#allocation7 + $0x10] sm:$0xff]
        %v1747 = vld [vmem:[#allocation7 + $0x18] sm:$0xff]
        %v1748 = vld [vmem:[#allocation7 + $0x20] sm:$0xff]
        %v1749 = vld [vmem:[#allocation7 + $0x28] sm:$0xff]
        %v1750 = vld [vmem:[#allocation7 + $0x30] sm:$0xff]
        %v1751 = vld [vmem:[#allocation7 + $0x38] sm:$0xff]
        %v1752 = vld [vmem:[#allocation7 + $0x40] sm:$0xff]
        %v1753 = vld [vmem:[#allocation7 + $0x48] sm:$0xff]
        %v1754 = vld [vmem:[#allocation7 + $0x50] sm:$0xff]
        %v1755 = vld [vmem:[#allocation7 + $0x58] sm:$0xff]
        %v1756 = vld [vmem:[#allocation7 + $0x60] sm:$0xff]
        %v1757 = vld [vmem:[#allocation7 + $0x68] sm:$0xff]
        %v1758 = vld [vmem:[#allocation7 + $0x70] sm:$0xff]
        %v1759 = vld [vmem:[#allocation7 + $0x78] sm:$0xff]
        %v1776 = vunpack.c.l.b16 %v1696
        %v1777 = vunpack.c.l.b16 %v1697
        %v1778 = vunpack.c.l.b16 %v1698
        %v1779 = vunpack.c.l.b16 %v1699
        %v1780 = vunpack.c.l.b16 %v1700
        %v1781 = vunpack.c.l.b16 %v1701
        %v1782 = vunpack.c.l.b16 %v1702
        %v1783 = vunpack.c.l.b16 %v1703
        %v1784 = vunpack.c.l.b16 %v1704
        %v1785 = vunpack.c.l.b16 %v1705
        %v1786 = vunpack.c.l.b16 %v1706
        %v1787 = vunpack.c.l.b16 %v1707
        %v1788 = vunpack.c.l.b16 %v1708
        %v1789 = vunpack.c.l.b16 %v1709
        %v1790 = vunpack.c.l.b16 %v1710
        %v1791 = vunpack.c.l.b16 %v1711
        %v1792 = vpack.c.b16 %v1777, %v1776
        %v1793 = vpack.c.b16 %v1779, %v1778
        %v1794 = vpack.c.b16 %v1781, %v1780
        %v1795 = vpack.c.b16 %v1783, %v1782
        %v1796 = vpack.c.b16 %v1785, %v1784
        %v1797 = vpack.c.b16 %v1787, %v1786
        %v1798 = vpack.c.b16 %v1789, %v1788
        %v1799 = vpack.c.b16 %v1791, %v1790
        %v1816 = vunpack.c.l.b16 %v1712
        %v1817 = vunpack.c.l.b16 %v1713
        %v1818 = vunpack.c.l.b16 %v1714
        %v1819 = vunpack.c.l.b16 %v1715
        %v1820 = vunpack.c.l.b16 %v1716
        %v1821 = vunpack.c.l.b16 %v1717
        %v1822 = vunpack.c.l.b16 %v1718
        %v1823 = vunpack.c.l.b16 %v1719
        %v1824 = vunpack.c.l.b16 %v1720
        %v1825 = vunpack.c.l.b16 %v1721
        %v1826 = vunpack.c.l.b16 %v1722
        %v1827 = vunpack.c.l.b16 %v1723
        %v1828 = vunpack.c.l.b16 %v1724
        %v1829 = vunpack.c.l.b16 %v1725
        %v1830 = vunpack.c.l.b16 %v1726
        %v1831 = vunpack.c.l.b16 %v1727
        %v1832 = vpack.c.b16 %v1817, %v1816
        %v1833 = vpack.c.b16 %v1819, %v1818
        %v1834 = vpack.c.b16 %v1821, %v1820
        %v1835 = vpack.c.b16 %v1823, %v1822
        %v1836 = vpack.c.b16 %v1825, %v1824
        %v1837 = vpack.c.b16 %v1827, %v1826
        %v1838 = vpack.c.b16 %v1829, %v1828
        %v1839 = vpack.c.b16 %v1831, %v1830
        %vm1840 = vcmask 261120
        %v1842 = vsel %vm1840, %v1792, 0
        %v1845 = vsel %vm1840, %v1793, 0
        %v1848 = vsel %vm1840, %v1794, 0
        %v1851 = vsel %vm1840, %v1795, 0
        %v1854 = vsel %vm1840, %v1796, 0
        %v1857 = vsel %vm1840, %v1797, 0
        %v1860 = vsel %vm1840, %v1798, 0
        %v1863 = vsel %vm1840, %v1799, 0
        %v1866 = vsel %vm1840, %v1832, 0
        %v1869 = vsel %vm1840, %v1833, 0
        %v1872 = vsel %vm1840, %v1834, 0
        %v1875 = vsel %vm1840, %v1835, 0
        %v1878 = vsel %vm1840, %v1836, 0
        %v1881 = vsel %vm1840, %v1837, 0
        %v1884 = vsel %vm1840, %v1838, 0
        %v1887 = vsel %vm1840, %v1839, 0
        %1889 = vmatpush.bf16.xpose.msra.mxu0 %v1887
        %1890 = vmatpush.bf16.xpose.msra.mxu0 %v1884
        %1891 = vmatpush.bf16.xpose.msra.mxu0 %v1881
        %1892 = vmatpush.bf16.xpose.msra.mxu0 %v1878
        %1893 = vmatpush.bf16.xpose.msra.mxu0 %v1875
        %1894 = vmatpush.bf16.xpose.msra.mxu0 %v1872
        %1895 = vmatpush.bf16.xpose.msra.mxu0 %v1869
        %1896 = vmatpush.bf16.xpose.msra.mxu0 %v1866
        %1897 = vmatmul.bf16.gmra.mxu0 %v1842
        %v1898 = vpop.f32.mrf.mxu0
        %v1899 = vadd.f32 %v1744, %v1898
        %v1900 = vpop.f32.mrf.mxu0
        %v1901 = vadd.f32 %v1745, %v1900
        %1902 = vmatmul.bf16.gmra.mxu0 %v1845
        %v1903 = vpop.f32.mrf.mxu0
        %v1904 = vadd.f32 %v1746, %v1903
        %v1905 = vpop.f32.mrf.mxu0
        %v1906 = vadd.f32 %v1747, %v1905
        %1907 = vmatmul.bf16.gmra.mxu0 %v1848
        %v1908 = vpop.f32.mrf.mxu0
        %v1909 = vadd.f32 %v1748, %v1908
        %v1910 = vpop.f32.mrf.mxu0
        %v1911 = vadd.f32 %v1749, %v1910
        %1912 = vmatmul.bf16.gmra.mxu0 %v1851
        %v1913 = vpop.f32.mrf.mxu0
        %v1914 = vadd.f32 %v1750, %v1913
        %v1915 = vpop.f32.mrf.mxu0
        %v1916 = vadd.f32 %v1751, %v1915
        %1917 = vmatmul.bf16.gmra.mxu0 %v1854
        %v1918 = vpop.f32.mrf.mxu0
        %v1919 = vadd.f32 %v1752, %v1918
        %v1920 = vpop.f32.mrf.mxu0
        %v1921 = vadd.f32 %v1753, %v1920
        %1922 = vmatmul.bf16.gmra.mxu0 %v1857
        %v1923 = vpop.f32.mrf.mxu0
        %v1924 = vadd.f32 %v1754, %v1923
        %v1925 = vpop.f32.mrf.mxu0
        %v1926 = vadd.f32 %v1755, %v1925
        %1927 = vmatmul.bf16.gmra.mxu0 %v1860
        %v1928 = vpop.f32.mrf.mxu0
        %v1929 = vadd.f32 %v1756, %v1928
        %v1930 = vpop.f32.mrf.mxu0
        %v1931 = vadd.f32 %v1757, %v1930
        %1932 = vmatmul.bf16.gmra.mxu0 %v1863
        %v1933 = vpop.f32.mrf.mxu0
        %v1934 = vadd.f32 %v1758, %v1933
        %v1935 = vpop.f32.mrf.mxu0
        %v1936 = vadd.f32 %v1759, %v1935
        %1937 = vdwg.mxu0
        %1938 = vmax.xlane.f32.xlu0 %v1899
        %v1939 = vpop.xlane.xlu0 %1938
        %1940 = vmax.xlane.f32.xlu0 %v1901
        %v1941 = vpop.xlane.xlu0 %1940
        %1942 = vmax.xlane.f32.xlu0 %v1904
        %v1943 = vpop.xlane.xlu0 %1942
        %1944 = vmax.xlane.f32.xlu0 %v1906
        %v1945 = vpop.xlane.xlu0 %1944
        %1946 = vmax.xlane.f32.xlu0 %v1909
        %v1947 = vpop.xlane.xlu0 %1946
        %1948 = vmax.xlane.f32.xlu0 %v1911
        %v1949 = vpop.xlane.xlu0 %1948
        %1950 = vmax.xlane.f32.xlu0 %v1914
        %v1951 = vpop.xlane.xlu0 %1950
        %1952 = vmax.xlane.f32.xlu0 %v1916
        %v1953 = vpop.xlane.xlu0 %1952
        %1954 = vmax.xlane.f32.xlu0 %v1919
        %v1955 = vpop.xlane.xlu0 %1954
        %1956 = vmax.xlane.f32.xlu0 %v1921
        %v1957 = vpop.xlane.xlu0 %1956
        %1958 = vmax.xlane.f32.xlu0 %v1924
        %v1959 = vpop.xlane.xlu0 %1958
        %1960 = vmax.xlane.f32.xlu0 %v1926
        %v1961 = vpop.xlane.xlu0 %1960
        %1962 = vmax.xlane.f32.xlu0 %v1929
        %v1963 = vpop.xlane.xlu0 %1962
        %1964 = vmax.xlane.f32.xlu0 %v1931
        %v1965 = vpop.xlane.xlu0 %1964
        %1966 = vmax.xlane.f32.xlu0 %v1934
        %v1967 = vpop.xlane.xlu0 %1966
        %1968 = vmax.xlane.f32.xlu0 %v1936
        %v1969 = vpop.xlane.xlu0 %1968
        %v1970 = vsub.f32 %v1899, %v1939
        %v1971 = vsub.f32 %v1901, %v1941
        %v1972 = vsub.f32 %v1904, %v1943
        %v1973 = vsub.f32 %v1906, %v1945
        %v1974 = vsub.f32 %v1909, %v1947
        %v1975 = vsub.f32 %v1911, %v1949
        %v1976 = vsub.f32 %v1914, %v1951
        %v1977 = vsub.f32 %v1916, %v1953
        %v1978 = vsub.f32 %v1919, %v1955
        %v1979 = vsub.f32 %v1921, %v1957
        %v1980 = vsub.f32 %v1924, %v1959
        %v1981 = vsub.f32 %v1926, %v1961
        %v1982 = vsub.f32 %v1929, %v1963
        %v1983 = vsub.f32 %v1931, %v1965
        %v1984 = vsub.f32 %v1934, %v1967
        %v1985 = vsub.f32 %v1936, %v1969
        %v1986 = vmul.f32 %v1970, 1.442695
        %v1987 = vpow.pop %v1986
        %v1988 = vmul.f32 %v1971, 1.442695
        %v1989 = vpow.pop %v1988
        %v1990 = vmul.f32 %v1972, 1.442695
        %v1991 = vpow.pop %v1990
        %v1992 = vmul.f32 %v1973, 1.442695
        %v1993 = vpow.pop %v1992
        %v1994 = vmul.f32 %v1974, 1.442695
        %v1995 = vpow.pop %v1994
        %v1996 = vmul.f32 %v1975, 1.442695
        %v1997 = vpow.pop %v1996
        %v1998 = vmul.f32 %v1976, 1.442695
        %v1999 = vpow.pop %v1998
        %v2000 = vmul.f32 %v1977, 1.442695
        %v2001 = vpow.pop %v2000
        %v2002 = vmul.f32 %v1978, 1.442695
        %v2003 = vpow.pop %v2002
        %v2004 = vmul.f32 %v1979, 1.442695
        %v2005 = vpow.pop %v2004
        %v2006 = vmul.f32 %v1980, 1.442695
        %v2007 = vpow.pop %v2006
        %v2008 = vmul.f32 %v1981, 1.442695
        %v2009 = vpow.pop %v2008
        %v2010 = vmul.f32 %v1982, 1.442695
        %v2011 = vpow.pop %v2010
        %v2012 = vmul.f32 %v1983, 1.442695
        %v2013 = vpow.pop %v2012
        %v2014 = vmul.f32 %v1984, 1.442695
        %v2015 = vpow.pop %v2014
        %v2016 = vmul.f32 %v1985, 1.442695
        %v2017 = vpow.pop %v2016
        %2018 = vadd.xlane.f32.xlu0 %v1987
        %v2019 = vpop.xlane.xlu0 %2018
        %2020 = vadd.xlane.f32.xlu0 %v1989
        %v2021 = vpop.xlane.xlu0 %2020
        %2022 = vadd.xlane.f32.xlu0 %v1991
        %v2023 = vpop.xlane.xlu0 %2022
        %2024 = vadd.xlane.f32.xlu0 %v1993
        %v2025 = vpop.xlane.xlu0 %2024
        %2026 = vadd.xlane.f32.xlu0 %v1995
        %v2027 = vpop.xlane.xlu0 %2026
        %2028 = vadd.xlane.f32.xlu0 %v1997
        %v2029 = vpop.xlane.xlu0 %2028
        %2030 = vadd.xlane.f32.xlu0 %v1999
        %v2031 = vpop.xlane.xlu0 %2030
        %2032 = vadd.xlane.f32.xlu0 %v2001
        %v2033 = vpop.xlane.xlu0 %2032
        %2034 = vadd.xlane.f32.xlu0 %v2003
        %v2035 = vpop.xlane.xlu0 %2034
        %2036 = vadd.xlane.f32.xlu0 %v2005
        %v2037 = vpop.xlane.xlu0 %2036
        %2038 = vadd.xlane.f32.xlu0 %v2007
        %v2039 = vpop.xlane.xlu0 %2038
        %2040 = vadd.xlane.f32.xlu0 %v2009
        %v2041 = vpop.xlane.xlu0 %2040
        %2042 = vadd.xlane.f32.xlu0 %v2011
        %v2043 = vpop.xlane.xlu0 %2042
        %2044 = vadd.xlane.f32.xlu0 %v2013
        %v2045 = vpop.xlane.xlu0 %2044
        %2046 = vadd.xlane.f32.xlu0 %v2015
        %v2047 = vpop.xlane.xlu0 %2046
        %2048 = vadd.xlane.f32.xlu0 %v2017
        %v2049 = vpop.xlane.xlu0 %2048
        %v2050 = vrcp.pop %v2019
        %v2051 = vrcp.pop %v2021
        %v2052 = vrcp.pop %v2023
        %v2053 = vrcp.pop %v2025
        %v2054 = vrcp.pop %v2027
        %v2055 = vrcp.pop %v2029
        %v2056 = vrcp.pop %v2031
        %v2057 = vrcp.pop %v2033
        %v2058 = vrcp.pop %v2035
        %v2059 = vrcp.pop %v2037
        %v2060 = vrcp.pop %v2039
        %v2061 = vrcp.pop %v2041
        %v2062 = vrcp.pop %v2043
        %v2063 = vrcp.pop %v2045
        %v2064 = vrcp.pop %v2047
        %v2065 = vrcp.pop %v2049
        %v2066 = vmul.f32 %v1987, %v2050
        %v2067 = vmul.f32 %v1989, %v2051
        %v2068 = vmul.f32 %v1991, %v2052
        %v2069 = vmul.f32 %v1993, %v2053
        %v2070 = vmul.f32 %v1995, %v2054
        %v2071 = vmul.f32 %v1997, %v2055
        %v2072 = vmul.f32 %v1999, %v2056
        %v2073 = vmul.f32 %v2001, %v2057
        %v2074 = vmul.f32 %v2003, %v2058
        %v2075 = vmul.f32 %v2005, %v2059
        %v2076 = vmul.f32 %v2007, %v2060
        %v2077 = vmul.f32 %v2009, %v2061
        %v2078 = vmul.f32 %v2011, %v2062
        %v2079 = vmul.f32 %v2013, %v2063
        %v2080 = vmul.f32 %v2015, %v2064
        %v2081 = vmul.f32 %v2017, %v2065
        %v2082 = vpack.c.bf16 %v2066, %v2066
        %v2083 = vpack.c.bf16 %v2067, %v2067
        %v2084 = vpack.c.bf16 %v2068, %v2068
        %v2085 = vpack.c.bf16 %v2069, %v2069
        %v2086 = vpack.c.bf16 %v2070, %v2070
        %v2087 = vpack.c.bf16 %v2071, %v2071
        %v2088 = vpack.c.bf16 %v2072, %v2072
        %v2089 = vpack.c.bf16 %v2073, %v2073
        %v2090 = vpack.c.bf16 %v2074, %v2074
        %v2091 = vpack.c.bf16 %v2075, %v2075
        %v2092 = vpack.c.bf16 %v2076, %v2076
        %v2093 = vpack.c.bf16 %v2077, %v2077
        %v2094 = vpack.c.bf16 %v2078, %v2078
        %v2095 = vpack.c.bf16 %v2079, %v2079
        %v2096 = vpack.c.bf16 %v2080, %v2080
        %v2097 = vpack.c.bf16 %v2081, %v2081
        %v2114 = vunpack.c.l.b16 %v2082
        %v2115 = vunpack.c.l.b16 %v2083
        %v2116 = vunpack.c.l.b16 %v2084
        %v2117 = vunpack.c.l.b16 %v2085
        %v2118 = vunpack.c.l.b16 %v2086
        %v2119 = vunpack.c.l.b16 %v2087
        %v2120 = vunpack.c.l.b16 %v2088
        %v2121 = vunpack.c.l.b16 %v2089
        %v2122 = vunpack.c.l.b16 %v2090
        %v2123 = vunpack.c.l.b16 %v2091
        %v2124 = vunpack.c.l.b16 %v2092
        %v2125 = vunpack.c.l.b16 %v2093
        %v2126 = vunpack.c.l.b16 %v2094
        %v2127 = vunpack.c.l.b16 %v2095
        %v2128 = vunpack.c.l.b16 %v2096
        %v2129 = vunpack.c.l.b16 %v2097
        %v2130 = vpack.c.b16 %v2115, %v2114
        %v2131 = vpack.c.b16 %v2117, %v2116
        %v2132 = vpack.c.b16 %v2119, %v2118
        %v2133 = vpack.c.b16 %v2121, %v2120
        %v2134 = vpack.c.b16 %v2123, %v2122
        %v2135 = vpack.c.b16 %v2125, %v2124
        %v2136 = vpack.c.b16 %v2127, %v2126
        %v2137 = vpack.c.b16 %v2129, %v2128
        %v2162 = vunpack.c.l.b16 %v1728
        %v2163 = vunpack.c.l.b16 %v1729
        %v2164 = vunpack.c.l.b16 %v1730
        %v2165 = vunpack.c.l.b16 %v1731
        %v2166 = vunpack.c.l.b16 %v1732
        %v2167 = vunpack.c.l.b16 %v1733
        %v2168 = vunpack.c.l.b16 %v1734
        %v2169 = vunpack.c.l.b16 %v1735
        %v2170 = vunpack.c.l.b16 %v1736
        %v2171 = vunpack.c.l.b16 %v1737
        %v2172 = vunpack.c.l.b16 %v1738
        %v2173 = vunpack.c.l.b16 %v1739
        %v2174 = vunpack.c.l.b16 %v1740
        %v2175 = vunpack.c.l.b16 %v1741
        %v2176 = vunpack.c.l.b16 %v1742
        %v2177 = vunpack.c.l.b16 %v1743
        %v2178 = vpack.c.b16 %v2163, %v2162
        %v2179 = vpack.c.b16 %v2165, %v2164
        %v2180 = vpack.c.b16 %v2167, %v2166
        %v2181 = vpack.c.b16 %v2169, %v2168
        %v2182 = vpack.c.b16 %v2171, %v2170
        %v2183 = vpack.c.b16 %v2173, %v2172
        %v2184 = vpack.c.b16 %v2175, %v2174
        %v2185 = vpack.c.b16 %v2177, %v2176
        %2194 = vmatpush.bf16.msra.mxu0 %v2185
        %2195 = vmatpush.bf16.msra.mxu0 %v2184
        %2196 = vmatpush.bf16.msra.mxu0 %v2183
        %2197 = vmatpush.bf16.msra.mxu0 %v2182
        %2198 = vmatpush.bf16.msra.mxu0 %v2181
        %2199 = vmatpush.bf16.msra.mxu0 %v2180
        %2200 = vmatpush.bf16.msra.mxu0 %v2179
        %2201 = vmatpush.bf16.msra.mxu0 %v2178
        %2202 = vmatmul.bf16.gmra.mxu0 %v2130
        %v2203 = vpop.f32.mrf.mxu0
        %v2204 = vadd.f32 0.0, %v2203
        %v2205 = vpop.f32.mrf.mxu0
        %v2206 = vadd.f32 0.0, %v2205
        %2207 = vmatmul.bf16.gmra.mxu0 %v2131
        %v2208 = vpop.f32.mrf.mxu0
        %v2209 = vadd.f32 0.0, %v2208
        %v2210 = vpop.f32.mrf.mxu0
        %v2211 = vadd.f32 0.0, %v2210
        %2212 = vmatmul.bf16.gmra.mxu0 %v2132
        %v2213 = vpop.f32.mrf.mxu0
        %v2214 = vadd.f32 0.0, %v2213
        %v2215 = vpop.f32.mrf.mxu0
        %v2216 = vadd.f32 0.0, %v2215
        %2217 = vmatmul.bf16.gmra.mxu0 %v2133
        %v2218 = vpop.f32.mrf.mxu0
        %v2219 = vadd.f32 0.0, %v2218
        %v2220 = vpop.f32.mrf.mxu0
        %v2221 = vadd.f32 0.0, %v2220
        %2222 = vmatmul.bf16.gmra.mxu0 %v2134
        %v2223 = vpop.f32.mrf.mxu0
        %v2224 = vadd.f32 0.0, %v2223
        %v2225 = vpop.f32.mrf.mxu0
        %v2226 = vadd.f32 0.0, %v2225
        %2227 = vmatmul.bf16.gmra.mxu0 %v2135
        %v2228 = vpop.f32.mrf.mxu0
        %v2229 = vadd.f32 0.0, %v2228
        %v2230 = vpop.f32.mrf.mxu0
        %v2231 = vadd.f32 0.0, %v2230
        %2232 = vmatmul.bf16.gmra.mxu0 %v2136
        %v2233 = vpop.f32.mrf.mxu0
        %v2234 = vadd.f32 0.0, %v2233
        %v2235 = vpop.f32.mrf.mxu0
        %v2236 = vadd.f32 0.0, %v2235
        %2237 = vmatmul.bf16.gmra.mxu0 %v2137
        %v2238 = vpop.f32.mrf.mxu0
        %v2239 = vadd.f32 0.0, %v2238
        %v2240 = vpop.f32.mrf.mxu0
        %v2241 = vadd.f32 0.0, %v2240
        %2242 = vdwg.mxu0
        %v2243 = vpack.c.bf16 %v2204, %v2204
        %v2244 = vpack.c.bf16 %v2206, %v2206
        %v2245 = vpack.c.bf16 %v2209, %v2209
        %v2246 = vpack.c.bf16 %v2211, %v2211
        %v2247 = vpack.c.bf16 %v2214, %v2214
        %v2248 = vpack.c.bf16 %v2216, %v2216
        %v2249 = vpack.c.bf16 %v2219, %v2219
        %v2250 = vpack.c.bf16 %v2221, %v2221
        %v2251 = vpack.c.bf16 %v2224, %v2224
        %v2252 = vpack.c.bf16 %v2226, %v2226
        %v2253 = vpack.c.bf16 %v2229, %v2229
        %v2254 = vpack.c.bf16 %v2231, %v2231
        %v2255 = vpack.c.bf16 %v2234, %v2234
        %v2256 = vpack.c.bf16 %v2236, %v2236
        %v2257 = vpack.c.bf16 %v2239, %v2239
        %v2258 = vpack.c.bf16 %v2241, %v2241
        %v2259 = vld [vmem:[%s546] sm:$0xf]
        %v2260 = vld [vmem:[%s546 + $0x4] sm:$0xf]
        %v2261 = vld [vmem:[%s546 + $0x8] sm:$0xf]
        %v2262 = vld [vmem:[%s546 + $0xc] sm:$0xf]
        %v2279 = vunpack.c.l.b16 %v2243
        %v2280 = vunpack.c.l.b16 %v2244
        %v2281 = vunpack.c.l.b16 %v2245
        %v2282 = vunpack.c.l.b16 %v2246
        %v2283 = vunpack.c.l.b16 %v2247
        %v2284 = vunpack.c.l.b16 %v2248
        %v2285 = vunpack.c.l.b16 %v2249
        %v2286 = vunpack.c.l.b16 %v2250
        %v2287 = vunpack.c.l.b16 %v2251
        %v2288 = vunpack.c.l.b16 %v2252
        %v2289 = vunpack.c.l.b16 %v2253
        %v2290 = vunpack.c.l.b16 %v2254
        %v2291 = vunpack.c.l.b16 %v2255
        %v2292 = vunpack.c.l.b16 %v2256
        %v2293 = vunpack.c.l.b16 %v2257
        %v2294 = vunpack.c.l.b16 %v2258
        %v2295 = vpack.c.b16 %v2280, %v2279
        %v2296 = vpack.c.b16 %v2282, %v2281
        %v2297 = vpack.c.b16 %v2284, %v2283
        %v2298 = vpack.c.b16 %v2286, %v2285
        %v2299 = vpack.c.b16 %v2288, %v2287
        %v2300 = vpack.c.b16 %v2290, %v2289
        %v2301 = vpack.c.b16 %v2292, %v2291
        %v2302 = vpack.c.b16 %v2294, %v2293
        %v2307 = vunpack.c.l.b16 %v2259
        %v2308 = vunpack.c.l.b16 %v2260
        %v2309 = vunpack.c.l.b16 %v2261
        %v2310 = vunpack.c.l.b16 %v2262
        %v2311 = vpack.c.b16 %v2308, %v2307
        %v2312 = vpack.c.b16 %v2310, %v2309
        %v2316 = vsel %vm1840, %v2295, 0
        %v2319 = vsel %vm1840, %v2296, 0
        %v2322 = vsel %vm1840, %v2297, 0
        %v2325 = vsel %vm1840, %v2298, 0
        %v2328 = vsel %vm1840, %v2299, 0
        %v2331 = vsel %vm1840, %v2300, 0
        %v2334 = vsel %vm1840, %v2301, 0
        %v2337 = vsel %vm1840, %v2302, 0
        %2339 = vmatpush.bf16.msra.mxu0 0
        %2340 = vmatpush.bf16.msra.mxu0 0
        %2341 = vmatpush.bf16.msra.mxu0 0
        %2342 = vmatpush.bf16.msra.mxu0 0
        %2343 = vmatpush.bf16.msra.mxu0 0
        %2344 = vmatpush.bf16.msra.mxu0 0
        %2345 = vmatpush.bf16.msra.mxu0 %v2312
        %2346 = vmatpush.bf16.msra.mxu0 %v2311
        %2347 = vmatmul.bf16.gmra.mxu0 %v2316
        %v2348 = vpop.f32.mrf.mxu0
        %v2349 = vadd.f32 0.0, %v2348
        %v2350 = vpop.f32.mrf.mxu0
        %v2351 = vadd.f32 0.0, %v2350
        %2352 = vmatmul.bf16.gmra.mxu0 %v2319
        %v2353 = vpop.f32.mrf.mxu0
        %v2354 = vadd.f32 0.0, %v2353
        %v2355 = vpop.f32.mrf.mxu0
        %v2356 = vadd.f32 0.0, %v2355
        %2357 = vmatmul.bf16.gmra.mxu0 %v2322
        %v2358 = vpop.f32.mrf.mxu0
        %v2359 = vadd.f32 0.0, %v2358
        %v2360 = vpop.f32.mrf.mxu0
        %v2361 = vadd.f32 0.0, %v2360
        %2362 = vmatmul.bf16.gmra.mxu0 %v2325
        %v2363 = vpop.f32.mrf.mxu0
        %v2364 = vadd.f32 0.0, %v2363
        %v2365 = vpop.f32.mrf.mxu0
        %v2366 = vadd.f32 0.0, %v2365
        %2367 = vmatmul.bf16.gmra.mxu0 %v2328
        %v2368 = vpop.f32.mrf.mxu0
        %v2369 = vadd.f32 0.0, %v2368
        %v2370 = vpop.f32.mrf.mxu0
        %v2371 = vadd.f32 0.0, %v2370
        %2372 = vmatmul.bf16.gmra.mxu0 %v2331
        %v2373 = vpop.f32.mrf.mxu0
        %v2374 = vadd.f32 0.0, %v2373
        %v2375 = vpop.f32.mrf.mxu0
        %v2376 = vadd.f32 0.0, %v2375
        %2377 = vmatmul.bf16.gmra.mxu0 %v2334
        %v2378 = vpop.f32.mrf.mxu0
        %v2379 = vadd.f32 0.0, %v2378
        %v2380 = vpop.f32.mrf.mxu0
        %v2381 = vadd.f32 0.0, %v2380
        %2382 = vmatmul.bf16.gmra.mxu0 %v2337
        %v2383 = vpop.f32.mrf.mxu0
        %v2384 = vadd.f32 0.0, %v2383
        %v2385 = vpop.f32.mrf.mxu0
        %v2386 = vadd.f32 0.0, %v2385
        %2387 = vdwg.mxu0
        %v2388 = vadd.f32 %v688, %v2349
        %v2389 = vadd.f32 %v689, %v2351
        %v2390 = vadd.f32 %v690, %v2354
        %v2391 = vadd.f32 %v691, %v2356
        %v2392 = vadd.f32 %v692, %v2359
        %v2393 = vadd.f32 %v693, %v2361
        %v2394 = vadd.f32 %v694, %v2364
        %v2395 = vadd.f32 %v695, %v2366
        %v2396 = vadd.f32 %v696, %v2369
        %v2397 = vadd.f32 %v697, %v2371
        %v2398 = vadd.f32 %v698, %v2374
        %v2399 = vadd.f32 %v699, %v2376
        %v2400 = vadd.f32 %v700, %v2379
        %v2401 = vadd.f32 %v701, %v2381
        %v2402 = vadd.f32 %v702, %v2384
        %v2403 = vadd.f32 %v703, %v2386
        %2404 = vrot.lane.b32.xlu0 %v1792, 96
        %v2405 = vpop.permute.xlu0 %2404
        %2406 = vrot.lane.b32.xlu0 %v1793, 96
        %v2407 = vpop.permute.xlu0 %2406
        %2408 = vrot.lane.b32.xlu0 %v1794, 96
        %v2409 = vpop.permute.xlu0 %2408
        %2410 = vrot.lane.b32.xlu0 %v1795, 96
        %v2411 = vpop.permute.xlu0 %2410
        %2412 = vrot.lane.b32.xlu0 %v1796, 96
        %v2413 = vpop.permute.xlu0 %2412
        %2414 = vrot.lane.b32.xlu0 %v1797, 96
        %v2415 = vpop.permute.xlu0 %2414
        %2416 = vrot.lane.b32.xlu0 %v1798, 96
        %v2417 = vpop.permute.xlu0 %2416
        %2418 = vrot.lane.b32.xlu0 %v1799, 96
        %v2419 = vpop.permute.xlu0 %2418
        %2420 = vrot.lane.b32.xlu0 %v1832, 96
        %v2421 = vpop.permute.xlu0 %2420
        %2422 = vrot.lane.b32.xlu0 %v1833, 96
        %v2423 = vpop.permute.xlu0 %2422
        %2424 = vrot.lane.b32.xlu0 %v1834, 96
        %v2425 = vpop.permute.xlu0 %2424
        %2426 = vrot.lane.b32.xlu0 %v1835, 96
        %v2427 = vpop.permute.xlu0 %2426
        %2428 = vrot.lane.b32.xlu0 %v1836, 96
        %v2429 = vpop.permute.xlu0 %2428
        %2430 = vrot.lane.b32.xlu0 %v1837, 96
        %v2431 = vpop.permute.xlu0 %2430
        %2432 = vrot.lane.b32.xlu0 %v1838, 96
        %v2433 = vpop.permute.xlu0 %2432
        %2434 = vrot.lane.b32.xlu0 %v1839, 96
        %v2435 = vpop.permute.xlu0 %2434
        %v2437 = vsel %vm1840, %v2405, 0
        %v2440 = vsel %vm1840, %v2407, 0
        %v2443 = vsel %vm1840, %v2409, 0
        %v2446 = vsel %vm1840, %v2411, 0
        %v2449 = vsel %vm1840, %v2413, 0
        %v2452 = vsel %vm1840, %v2415, 0
        %v2455 = vsel %vm1840, %v2417, 0
        %v2458 = vsel %vm1840, %v2419, 0
        %v2461 = vsel %vm1840, %v2421, 0
        %v2464 = vsel %vm1840, %v2423, 0
        %v2467 = vsel %vm1840, %v2425, 0
        %v2470 = vsel %vm1840, %v2427, 0
        %v2473 = vsel %vm1840, %v2429, 0
        %v2476 = vsel %vm1840, %v2431, 0
        %v2479 = vsel %vm1840, %v2433, 0
        %v2482 = vsel %vm1840, %v2435, 0
        %2484 = vmatpush.bf16.xpose.msra.mxu0 %v2482
        %2485 = vmatpush.bf16.xpose.msra.mxu0 %v2479
        %2486 = vmatpush.bf16.xpose.msra.mxu0 %v2476
        %2487 = vmatpush.bf16.xpose.msra.mxu0 %v2473
        %2488 = vmatpush.bf16.xpose.msra.mxu0 %v2470
        %2489 = vmatpush.bf16.xpose.msra.mxu0 %v2467
        %2490 = vmatpush.bf16.xpose.msra.mxu0 %v2464
        %2491 = vmatpush.bf16.xpose.msra.mxu0 %v2461
        %2492 = vmatmul.bf16.gmra.mxu0 %v2437
        %v2493 = vpop.f32.mrf.mxu0
        %v2494 = vadd.f32 %v1744, %v2493
        %v2495 = vpop.f32.mrf.mxu0
        %v2496 = vadd.f32 %v1745, %v2495
        %2497 = vmatmul.bf16.gmra.mxu0 %v2440
        %v2498 = vpop.f32.mrf.mxu0
        %v2499 = vadd.f32 %v1746, %v2498
        %v2500 = vpop.f32.mrf.mxu0
        %v2501 = vadd.f32 %v1747, %v2500
        %2502 = vmatmul.bf16.gmra.mxu0 %v2443
        %v2503 = vpop.f32.mrf.mxu0
        %v2504 = vadd.f32 %v1748, %v2503
        %v2505 = vpop.f32.mrf.mxu0
        %v2506 = vadd.f32 %v1749, %v2505
        %2507 = vmatmul.bf16.gmra.mxu0 %v2446
        %v2508 = vpop.f32.mrf.mxu0
        %v2509 = vadd.f32 %v1750, %v2508
        %v2510 = vpop.f32.mrf.mxu0
        %v2511 = vadd.f32 %v1751, %v2510
        %2512 = vmatmul.bf16.gmra.mxu0 %v2449
        %v2513 = vpop.f32.mrf.mxu0
        %v2514 = vadd.f32 %v1752, %v2513
        %v2515 = vpop.f32.mrf.mxu0
        %v2516 = vadd.f32 %v1753, %v2515
        %2517 = vmatmul.bf16.gmra.mxu0 %v2452
        %v2518 = vpop.f32.mrf.mxu0
        %v2519 = vadd.f32 %v1754, %v2518
        %v2520 = vpop.f32.mrf.mxu0
        %v2521 = vadd.f32 %v1755, %v2520
        %2522 = vmatmul.bf16.gmra.mxu0 %v2455
        %v2523 = vpop.f32.mrf.mxu0
        %v2524 = vadd.f32 %v1756, %v2523
        %v2525 = vpop.f32.mrf.mxu0
        %v2526 = vadd.f32 %v1757, %v2525
        %2527 = vmatmul.bf16.gmra.mxu0 %v2458
        %v2528 = vpop.f32.mrf.mxu0
        %v2529 = vadd.f32 %v1758, %v2528
        %v2530 = vpop.f32.mrf.mxu0
        %v2531 = vadd.f32 %v1759, %v2530
        %2532 = vdwg.mxu0
        %2533 = vmax.xlane.f32.xlu0 %v2494
        %v2534 = vpop.xlane.xlu0 %2533
        %2535 = vmax.xlane.f32.xlu0 %v2496
        %v2536 = vpop.xlane.xlu0 %2535
        %2537 = vmax.xlane.f32.xlu0 %v2499
        %v2538 = vpop.xlane.xlu0 %2537
        %2539 = vmax.xlane.f32.xlu0 %v2501
        %v2540 = vpop.xlane.xlu0 %2539
        %2541 = vmax.xlane.f32.xlu0 %v2504
        %v2542 = vpop.xlane.xlu0 %2541
        %2543 = vmax.xlane.f32.xlu0 %v2506
        %v2544 = vpop.xlane.xlu0 %2543
        %2545 = vmax.xlane.f32.xlu0 %v2509
        %v2546 = vpop.xlane.xlu0 %2545
        %2547 = vmax.xlane.f32.xlu0 %v2511
        %v2548 = vpop.xlane.xlu0 %2547
        %2549 = vmax.xlane.f32.xlu0 %v2514
        %v2550 = vpop.xlane.xlu0 %2549
        %2551 = vmax.xlane.f32.xlu0 %v2516
        %v2552 = vpop.xlane.xlu0 %2551
        %2553 = vmax.xlane.f32.xlu0 %v2519
        %v2554 = vpop.xlane.xlu0 %2553
        %2555 = vmax.xlane.f32.xlu0 %v2521
        %v2556 = vpop.xlane.xlu0 %2555
        %2557 = vmax.xlane.f32.xlu0 %v2524
        %v2558 = vpop.xlane.xlu0 %2557
        %2559 = vmax.xlane.f32.xlu0 %v2526
        %v2560 = vpop.xlane.xlu0 %2559
        %2561 = vmax.xlane.f32.xlu0 %v2529
        %v2562 = vpop.xlane.xlu0 %2561
        %2563 = vmax.xlane.f32.xlu0 %v2531
        %v2564 = vpop.xlane.xlu0 %2563
        %v2565 = vsub.f32 %v2494, %v2534
        %v2566 = vsub.f32 %v2496, %v2536
        %v2567 = vsub.f32 %v2499, %v2538
        %v2568 = vsub.f32 %v2501, %v2540
        %v2569 = vsub.f32 %v2504, %v2542
        %v2570 = vsub.f32 %v2506, %v2544
        %v2571 = vsub.f32 %v2509, %v2546
        %v2572 = vsub.f32 %v2511, %v2548
        %v2573 = vsub.f32 %v2514, %v2550
        %v2574 = vsub.f32 %v2516, %v2552
        %v2575 = vsub.f32 %v2519, %v2554
        %v2576 = vsub.f32 %v2521, %v2556
        %v2577 = vsub.f32 %v2524, %v2558
        %v2578 = vsub.f32 %v2526, %v2560
        %v2579 = vsub.f32 %v2529, %v2562
        %v2580 = vsub.f32 %v2531, %v2564
        %v2581 = vmul.f32 %v2565, 1.442695
        %v2582 = vpow.pop %v2581
        %v2583 = vmul.f32 %v2566, 1.442695
        %v2584 = vpow.pop %v2583
        %v2585 = vmul.f32 %v2567, 1.442695
        %v2586 = vpow.pop %v2585
        %v2587 = vmul.f32 %v2568, 1.442695
        %v2588 = vpow.pop %v2587
        %v2589 = vmul.f32 %v2569, 1.442695
        %v2590 = vpow.pop %v2589
        %v2591 = vmul.f32 %v2570, 1.442695
        %v2592 = vpow.pop %v2591
        %v2593 = vmul.f32 %v2571, 1.442695
        %v2594 = vpow.pop %v2593
        %v2595 = vmul.f32 %v2572, 1.442695
        %v2596 = vpow.pop %v2595
        %v2597 = vmul.f32 %v2573, 1.442695
        %v2598 = vpow.pop %v2597
        %v2599 = vmul.f32 %v2574, 1.442695
        %v2600 = vpow.pop %v2599
        %v2601 = vmul.f32 %v2575, 1.442695
        %v2602 = vpow.pop %v2601
        %v2603 = vmul.f32 %v2576, 1.442695
        %v2604 = vpow.pop %v2603
        %v2605 = vmul.f32 %v2577, 1.442695
        %v2606 = vpow.pop %v2605
        %v2607 = vmul.f32 %v2578, 1.442695
        %v2608 = vpow.pop %v2607
        %v2609 = vmul.f32 %v2579, 1.442695
        %v2610 = vpow.pop %v2609
        %v2611 = vmul.f32 %v2580, 1.442695
        %v2612 = vpow.pop %v2611
        %2613 = vadd.xlane.f32.xlu0 %v2582
        %v2614 = vpop.xlane.xlu0 %2613
        %2615 = vadd.xlane.f32.xlu0 %v2584
        %v2616 = vpop.xlane.xlu0 %2615
        %2617 = vadd.xlane.f32.xlu0 %v2586
        %v2618 = vpop.xlane.xlu0 %2617
        %2619 = vadd.xlane.f32.xlu0 %v2588
        %v2620 = vpop.xlane.xlu0 %2619
        %2621 = vadd.xlane.f32.xlu0 %v2590
        %v2622 = vpop.xlane.xlu0 %2621
        %2623 = vadd.xlane.f32.xlu0 %v2592
        %v2624 = vpop.xlane.xlu0 %2623
        %2625 = vadd.xlane.f32.xlu0 %v2594
        %v2626 = vpop.xlane.xlu0 %2625
        %2627 = vadd.xlane.f32.xlu0 %v2596
        %v2628 = vpop.xlane.xlu0 %2627
        %2629 = vadd.xlane.f32.xlu0 %v2598
        %v2630 = vpop.xlane.xlu0 %2629
        %2631 = vadd.xlane.f32.xlu0 %v2600
        %v2632 = vpop.xlane.xlu0 %2631
        %2633 = vadd.xlane.f32.xlu0 %v2602
        %v2634 = vpop.xlane.xlu0 %2633
        %2635 = vadd.xlane.f32.xlu0 %v2604
        %v2636 = vpop.xlane.xlu0 %2635
        %2637 = vadd.xlane.f32.xlu0 %v2606
        %v2638 = vpop.xlane.xlu0 %2637
        %2639 = vadd.xlane.f32.xlu0 %v2608
        %v2640 = vpop.xlane.xlu0 %2639
        %2641 = vadd.xlane.f32.xlu0 %v2610
        %v2642 = vpop.xlane.xlu0 %2641
        %2643 = vadd.xlane.f32.xlu0 %v2612
        %v2644 = vpop.xlane.xlu0 %2643
        %v2645 = vrcp.pop %v2614
        %v2646 = vrcp.pop %v2616
        %v2647 = vrcp.pop %v2618
        %v2648 = vrcp.pop %v2620
        %v2649 = vrcp.pop %v2622
        %v2650 = vrcp.pop %v2624
        %v2651 = vrcp.pop %v2626
        %v2652 = vrcp.pop %v2628
        %v2653 = vrcp.pop %v2630
        %v2654 = vrcp.pop %v2632
        %v2655 = vrcp.pop %v2634
        %v2656 = vrcp.pop %v2636
        %v2657 = vrcp.pop %v2638
        %v2658 = vrcp.pop %v2640
        %v2659 = vrcp.pop %v2642
        %v2660 = vrcp.pop %v2644
        %v2661 = vmul.f32 %v2582, %v2645
        %v2662 = vmul.f32 %v2584, %v2646
        %v2663 = vmul.f32 %v2586, %v2647
        %v2664 = vmul.f32 %v2588, %v2648
        %v2665 = vmul.f32 %v2590, %v2649
        %v2666 = vmul.f32 %v2592, %v2650
        %v2667 = vmul.f32 %v2594, %v2651
        %v2668 = vmul.f32 %v2596, %v2652
        %v2669 = vmul.f32 %v2598, %v2653
        %v2670 = vmul.f32 %v2600, %v2654
        %v2671 = vmul.f32 %v2602, %v2655
        %v2672 = vmul.f32 %v2604, %v2656
        %v2673 = vmul.f32 %v2606, %v2657
        %v2674 = vmul.f32 %v2608, %v2658
        %v2675 = vmul.f32 %v2610, %v2659
        %v2676 = vmul.f32 %v2612, %v2660
        %v2677 = vpack.c.bf16 %v2661, %v2661
        %v2678 = vpack.c.bf16 %v2662, %v2662
        %v2679 = vpack.c.bf16 %v2663, %v2663
        %v2680 = vpack.c.bf16 %v2664, %v2664
        %v2681 = vpack.c.bf16 %v2665, %v2665
        %v2682 = vpack.c.bf16 %v2666, %v2666
        %v2683 = vpack.c.bf16 %v2667, %v2667
        %v2684 = vpack.c.bf16 %v2668, %v2668
        %v2685 = vpack.c.bf16 %v2669, %v2669
        %v2686 = vpack.c.bf16 %v2670, %v2670
        %v2687 = vpack.c.bf16 %v2671, %v2671
        %v2688 = vpack.c.bf16 %v2672, %v2672
        %v2689 = vpack.c.bf16 %v2673, %v2673
        %v2690 = vpack.c.bf16 %v2674, %v2674
        %v2691 = vpack.c.bf16 %v2675, %v2675
        %v2692 = vpack.c.bf16 %v2676, %v2676
        %v2709 = vunpack.c.l.b16 %v2677
        %v2710 = vunpack.c.l.b16 %v2678
        %v2711 = vunpack.c.l.b16 %v2679
        %v2712 = vunpack.c.l.b16 %v2680
        %v2713 = vunpack.c.l.b16 %v2681
        %v2714 = vunpack.c.l.b16 %v2682
        %v2715 = vunpack.c.l.b16 %v2683
        %v2716 = vunpack.c.l.b16 %v2684
        %v2717 = vunpack.c.l.b16 %v2685
        %v2718 = vunpack.c.l.b16 %v2686
        %v2719 = vunpack.c.l.b16 %v2687
        %v2720 = vunpack.c.l.b16 %v2688
        %v2721 = vunpack.c.l.b16 %v2689
        %v2722 = vunpack.c.l.b16 %v2690
        %v2723 = vunpack.c.l.b16 %v2691
        %v2724 = vunpack.c.l.b16 %v2692
        %v2725 = vpack.c.b16 %v2710, %v2709
        %v2726 = vpack.c.b16 %v2712, %v2711
        %v2727 = vpack.c.b16 %v2714, %v2713
        %v2728 = vpack.c.b16 %v2716, %v2715
        %v2729 = vpack.c.b16 %v2718, %v2717
        %v2730 = vpack.c.b16 %v2720, %v2719
        %v2731 = vpack.c.b16 %v2722, %v2721
        %v2732 = vpack.c.b16 %v2724, %v2723
        %2741 = vrot.lane.b32.xlu0 %v2178, 96
        %v2742 = vpop.permute.xlu0 %2741
        %2743 = vrot.lane.b32.xlu0 %v2179, 96
        %v2744 = vpop.permute.xlu0 %2743
        %2745 = vrot.lane.b32.xlu0 %v2180, 96
        %v2746 = vpop.permute.xlu0 %2745
        %2747 = vrot.lane.b32.xlu0 %v2181, 96
        %v2748 = vpop.permute.xlu0 %2747
        %2749 = vrot.lane.b32.xlu0 %v2182, 96
        %v2750 = vpop.permute.xlu0 %2749
        %2751 = vrot.lane.b32.xlu0 %v2183, 96
        %v2752 = vpop.permute.xlu0 %2751
        %2753 = vrot.lane.b32.xlu0 %v2184, 96
        %v2754 = vpop.permute.xlu0 %2753
        %2755 = vrot.lane.b32.xlu0 %v2185, 96
        %v2756 = vpop.permute.xlu0 %2755
        %2765 = vmatpush.bf16.msra.mxu0 %v2756
        %2766 = vmatpush.bf16.msra.mxu0 %v2754
        %2767 = vmatpush.bf16.msra.mxu0 %v2752
        %2768 = vmatpush.bf16.msra.mxu0 %v2750
        %2769 = vmatpush.bf16.msra.mxu0 %v2748
        %2770 = vmatpush.bf16.msra.mxu0 %v2746
        %2771 = vmatpush.bf16.msra.mxu0 %v2744
        %2772 = vmatpush.bf16.msra.mxu0 %v2742
        %2773 = vmatmul.bf16.gmra.mxu0 %v2725
        %v2774 = vpop.f32.mrf.mxu0
        %v2775 = vadd.f32 0.0, %v2774
        %v2776 = vpop.f32.mrf.mxu0
        %v2777 = vadd.f32 0.0, %v2776
        %2778 = vmatmul.bf16.gmra.mxu0 %v2726
        %v2779 = vpop.f32.mrf.mxu0
        %v2780 = vadd.f32 0.0, %v2779
        %v2781 = vpop.f32.mrf.mxu0
        %v2782 = vadd.f32 0.0, %v2781
        %2783 = vmatmul.bf16.gmra.mxu0 %v2727
        %v2784 = vpop.f32.mrf.mxu0
        %v2785 = vadd.f32 0.0, %v2784
        %v2786 = vpop.f32.mrf.mxu0
        %v2787 = vadd.f32 0.0, %v2786
        %2788 = vmatmul.bf16.gmra.mxu0 %v2728
        %v2789 = vpop.f32.mrf.mxu0
        %v2790 = vadd.f32 0.0, %v2789
        %v2791 = vpop.f32.mrf.mxu0
        %v2792 = vadd.f32 0.0, %v2791
        %2793 = vmatmul.bf16.gmra.mxu0 %v2729
        %v2794 = vpop.f32.mrf.mxu0
        %v2795 = vadd.f32 0.0, %v2794
        %v2796 = vpop.f32.mrf.mxu0
        %v2797 = vadd.f32 0.0, %v2796
        %2798 = vmatmul.bf16.gmra.mxu0 %v2730
        %v2799 = vpop.f32.mrf.mxu0
        %v2800 = vadd.f32 0.0, %v2799
        %v2801 = vpop.f32.mrf.mxu0
        %v2802 = vadd.f32 0.0, %v2801
        %2803 = vmatmul.bf16.gmra.mxu0 %v2731
        %v2804 = vpop.f32.mrf.mxu0
        %v2805 = vadd.f32 0.0, %v2804
        %v2806 = vpop.f32.mrf.mxu0
        %v2807 = vadd.f32 0.0, %v2806
        %2808 = vmatmul.bf16.gmra.mxu0 %v2732
        %v2809 = vpop.f32.mrf.mxu0
        %v2810 = vadd.f32 0.0, %v2809
        %v2811 = vpop.f32.mrf.mxu0
        %v2812 = vadd.f32 0.0, %v2811
        %2813 = vdwg.mxu0
        %v2814 = vpack.c.bf16 %v2775, %v2775
        %v2815 = vpack.c.bf16 %v2777, %v2777
        %v2816 = vpack.c.bf16 %v2780, %v2780
        %v2817 = vpack.c.bf16 %v2782, %v2782
        %v2818 = vpack.c.bf16 %v2785, %v2785
        %v2819 = vpack.c.bf16 %v2787, %v2787
        %v2820 = vpack.c.bf16 %v2790, %v2790
        %v2821 = vpack.c.bf16 %v2792, %v2792
        %v2822 = vpack.c.bf16 %v2795, %v2795
        %v2823 = vpack.c.bf16 %v2797, %v2797
        %v2824 = vpack.c.bf16 %v2800, %v2800
        %v2825 = vpack.c.bf16 %v2802, %v2802
        %v2826 = vpack.c.bf16 %v2805, %v2805
        %v2827 = vpack.c.bf16 %v2807, %v2807
        %v2828 = vpack.c.bf16 %v2810, %v2810
        %v2829 = vpack.c.bf16 %v2812, %v2812
        %s2830 = scalar_lea.vmem %s546, 16 [#allocation11]
        %v2831 = vld [vmem:[%s2830] sm:$0xf]
        %v2832 = vld [vmem:[%s2830 + $0x4] sm:$0xf]
        %v2833 = vld [vmem:[%s2830 + $0x8] sm:$0xf]
        %v2834 = vld [vmem:[%s2830 + $0xc] sm:$0xf]
        %v2851 = vunpack.c.l.b16 %v2814
        %v2852 = vunpack.c.l.b16 %v2815
        %v2853 = vunpack.c.l.b16 %v2816
        %v2854 = vunpack.c.l.b16 %v2817
        %v2855 = vunpack.c.l.b16 %v2818
        %v2856 = vunpack.c.l.b16 %v2819
        %v2857 = vunpack.c.l.b16 %v2820
        %v2858 = vunpack.c.l.b16 %v2821
        %v2859 = vunpack.c.l.b16 %v2822
        %v2860 = vunpack.c.l.b16 %v2823
        %v2861 = vunpack.c.l.b16 %v2824
        %v2862 = vunpack.c.l.b16 %v2825
        %v2863 = vunpack.c.l.b16 %v2826
        %v2864 = vunpack.c.l.b16 %v2827
        %v2865 = vunpack.c.l.b16 %v2828
        %v2866 = vunpack.c.l.b16 %v2829
        %v2867 = vpack.c.b16 %v2852, %v2851
        %v2868 = vpack.c.b16 %v2854, %v2853
        %v2869 = vpack.c.b16 %v2856, %v2855
        %v2870 = vpack.c.b16 %v2858, %v2857
        %v2871 = vpack.c.b16 %v2860, %v2859
        %v2872 = vpack.c.b16 %v2862, %v2861
        %v2873 = vpack.c.b16 %v2864, %v2863
        %v2874 = vpack.c.b16 %v2866, %v2865
        %v2879 = vunpack.c.l.b16 %v2831
        %v2880 = vunpack.c.l.b16 %v2832
        %v2881 = vunpack.c.l.b16 %v2833
        %v2882 = vunpack.c.l.b16 %v2834
        %v2883 = vpack.c.b16 %v2880, %v2879
        %v2884 = vpack.c.b16 %v2882, %v2881
        %v2888 = vsel %vm1840, %v2867, 0
        %v2891 = vsel %vm1840, %v2868, 0
        %v2894 = vsel %vm1840, %v2869, 0
        %v2897 = vsel %vm1840, %v2870, 0
        %v2900 = vsel %vm1840, %v2871, 0
        %v2903 = vsel %vm1840, %v2872, 0
        %v2906 = vsel %vm1840, %v2873, 0
        %v2909 = vsel %vm1840, %v2874, 0
        %2911 = vmatpush.bf16.msra.mxu0 0
        %2912 = vmatpush.bf16.msra.mxu0 0
        %2913 = vmatpush.bf16.msra.mxu0 0
        %2914 = vmatpush.bf16.msra.mxu0 0
        %2915 = vmatpush.bf16.msra.mxu0 0
        %2916 = vmatpush.bf16.msra.mxu0 0
        %2917 = vmatpush.bf16.msra.mxu0 %v2884
        %2918 = vmatpush.bf16.msra.mxu0 %v2883
        %2919 = vmatmul.bf16.gmra.mxu0 %v2888
        %v2920 = vpop.f32.mrf.mxu0
        %v2921 = vadd.f32 0.0, %v2920
        %v2922 = vpop.f32.mrf.mxu0
        %v2923 = vadd.f32 0.0, %v2922
        %2924 = vmatmul.bf16.gmra.mxu0 %v2891
        %v2925 = vpop.f32.mrf.mxu0
        %v2926 = vadd.f32 0.0, %v2925
        %v2927 = vpop.f32.mrf.mxu0
        %v2928 = vadd.f32 0.0, %v2927
        %2929 = vmatmul.bf16.gmra.mxu0 %v2894
        %v2930 = vpop.f32.mrf.mxu0
        %v2931 = vadd.f32 0.0, %v2930
        %v2932 = vpop.f32.mrf.mxu0
        %v2933 = vadd.f32 0.0, %v2932
        %2934 = vmatmul.bf16.gmra.mxu0 %v2897
        %v2935 = vpop.f32.mrf.mxu0
        %v2936 = vadd.f32 0.0, %v2935
        %v2937 = vpop.f32.mrf.mxu0
        %v2938 = vadd.f32 0.0, %v2937
        %2939 = vmatmul.bf16.gmra.mxu0 %v2900
        %v2940 = vpop.f32.mrf.mxu0
        %v2941 = vadd.f32 0.0, %v2940
        %v2942 = vpop.f32.mrf.mxu0
        %v2943 = vadd.f32 0.0, %v2942
        %2944 = vmatmul.bf16.gmra.mxu0 %v2903
        %v2945 = vpop.f32.mrf.mxu0
        %v2946 = vadd.f32 0.0, %v2945
        %v2947 = vpop.f32.mrf.mxu0
        %v2948 = vadd.f32 0.0, %v2947
        %2949 = vmatmul.bf16.gmra.mxu0 %v2906
        %v2950 = vpop.f32.mrf.mxu0
        %v2951 = vadd.f32 0.0, %v2950
        %v2952 = vpop.f32.mrf.mxu0
        %v2953 = vadd.f32 0.0, %v2952
        %2954 = vmatmul.bf16.gmra.mxu0 %v2909
        %v2955 = vpop.f32.mrf.mxu0
        %v2956 = vadd.f32 0.0, %v2955
        %v2957 = vpop.f32.mrf.mxu0
        %v2958 = vadd.f32 0.0, %v2957
        %2959 = vdwg.mxu0
        %v2960 = vadd.f32 %v2388, %v2921
        %v2961 = vadd.f32 %v2389, %v2923
        %v2962 = vadd.f32 %v2390, %v2926
        %v2963 = vadd.f32 %v2391, %v2928
        %v2964 = vadd.f32 %v2392, %v2931
        %v2965 = vadd.f32 %v2393, %v2933
        %v2966 = vadd.f32 %v2394, %v2936
        %v2967 = vadd.f32 %v2395, %v2938
        %v2968 = vadd.f32 %v2396, %v2941
        %v2969 = vadd.f32 %v2397, %v2943
        %v2970 = vadd.f32 %v2398, %v2946
        %v2971 = vadd.f32 %v2399, %v2948
        %v2972 = vadd.f32 %v2400, %v2951
        %v2973 = vadd.f32 %v2401, %v2953
        %v2974 = vadd.f32 %v2402, %v2956
        %v2975 = vadd.f32 %v2403, %v2958
        %2976 = vrot.lane.b32.xlu0 %v1792, 64
        %v2977 = vpop.permute.xlu0 %2976
        %2978 = vrot.lane.b32.xlu0 %v1793, 64
        %v2979 = vpop.permute.xlu0 %2978
        %2980 = vrot.lane.b32.xlu0 %v1794, 64
        %v2981 = vpop.permute.xlu0 %2980
        %2982 = vrot.lane.b32.xlu0 %v1795, 64
        %v2983 = vpop.permute.xlu0 %2982
        %2984 = vrot.lane.b32.xlu0 %v1796, 64
        %v2985 = vpop.permute.xlu0 %2984
        %2986 = vrot.lane.b32.xlu0 %v1797, 64
        %v2987 = vpop.permute.xlu0 %2986
        %2988 = vrot.lane.b32.xlu0 %v1798, 64
        %v2989 = vpop.permute.xlu0 %2988
        %2990 = vrot.lane.b32.xlu0 %v1799, 64
        %v2991 = vpop.permute.xlu0 %2990
        %2992 = vrot.lane.b32.xlu0 %v1832, 64
        %v2993 = vpop.permute.xlu0 %2992
        %2994 = vrot.lane.b32.xlu0 %v1833, 64
        %v2995 = vpop.permute.xlu0 %2994
        %2996 = vrot.lane.b32.xlu0 %v1834, 64
        %v2997 = vpop.permute.xlu0 %2996
        %2998 = vrot.lane.b32.xlu0 %v1835, 64
        %v2999 = vpop.permute.xlu0 %2998
        %3000 = vrot.lane.b32.xlu0 %v1836, 64
        %v3001 = vpop.permute.xlu0 %3000
        %3002 = vrot.lane.b32.xlu0 %v1837, 64
        %v3003 = vpop.permute.xlu0 %3002
        %3004 = vrot.lane.b32.xlu0 %v1838, 64
        %v3005 = vpop.permute.xlu0 %3004
        %3006 = vrot.lane.b32.xlu0 %v1839, 64
        %v3007 = vpop.permute.xlu0 %3006
        %v3009 = vsel %vm1840, %v2977, 0
        %v3012 = vsel %vm1840, %v2979, 0
        %v3015 = vsel %vm1840, %v2981, 0
        %v3018 = vsel %vm1840, %v2983, 0
        %v3021 = vsel %vm1840, %v2985, 0
        %v3024 = vsel %vm1840, %v2987, 0
        %v3027 = vsel %vm1840, %v2989, 0
        %v3030 = vsel %vm1840, %v2991, 0
        %v3033 = vsel %vm1840, %v2993, 0
        %v3036 = vsel %vm1840, %v2995, 0
        %v3039 = vsel %vm1840, %v2997, 0
        %v3042 = vsel %vm1840, %v2999, 0
        %v3045 = vsel %vm1840, %v3001, 0
        %v3048 = vsel %vm1840, %v3003, 0
        %v3051 = vsel %vm1840, %v3005, 0
        %v3054 = vsel %vm1840, %v3007, 0
        %3056 = vmatpush.bf16.xpose.msra.mxu0 %v3054
        %3057 = vmatpush.bf16.xpose.msra.mxu0 %v3051
        %3058 = vmatpush.bf16.xpose.msra.mxu0 %v3048
        %3059 = vmatpush.bf16.xpose.msra.mxu0 %v3045
        %3060 = vmatpush.bf16.xpose.msra.mxu0 %v3042
        %3061 = vmatpush.bf16.xpose.msra.mxu0 %v3039
        %3062 = vmatpush.bf16.xpose.msra.mxu0 %v3036
        %3063 = vmatpush.bf16.xpose.msra.mxu0 %v3033
        %3064 = vmatmul.bf16.gmra.mxu0 %v3009
        %v3065 = vpop.f32.mrf.mxu0
        %v3066 = vadd.f32 %v1744, %v3065
        %v3067 = vpop.f32.mrf.mxu0
        %v3068 = vadd.f32 %v1745, %v3067
        %3069 = vmatmul.bf16.gmra.mxu0 %v3012
        %v3070 = vpop.f32.mrf.mxu0
        %v3071 = vadd.f32 %v1746, %v3070
        %v3072 = vpop.f32.mrf.mxu0
        %v3073 = vadd.f32 %v1747, %v3072
        %3074 = vmatmul.bf16.gmra.mxu0 %v3015
        %v3075 = vpop.f32.mrf.mxu0
        %v3076 = vadd.f32 %v1748, %v3075
        %v3077 = vpop.f32.mrf.mxu0
        %v3078 = vadd.f32 %v1749, %v3077
        %3079 = vmatmul.bf16.gmra.mxu0 %v3018
        %v3080 = vpop.f32.mrf.mxu0
        %v3081 = vadd.f32 %v1750, %v3080
        %v3082 = vpop.f32.mrf.mxu0
        %v3083 = vadd.f32 %v1751, %v3082
        %3084 = vmatmul.bf16.gmra.mxu0 %v3021
        %v3085 = vpop.f32.mrf.mxu0
        %v3086 = vadd.f32 %v1752, %v3085
        %v3087 = vpop.f32.mrf.mxu0
        %v3088 = vadd.f32 %v1753, %v3087
        %3089 = vmatmul.bf16.gmra.mxu0 %v3024
        %v3090 = vpop.f32.mrf.mxu0
        %v3091 = vadd.f32 %v1754, %v3090
        %v3092 = vpop.f32.mrf.mxu0
        %v3093 = vadd.f32 %v1755, %v3092
        %3094 = vmatmul.bf16.gmra.mxu0 %v3027
        %v3095 = vpop.f32.mrf.mxu0
        %v3096 = vadd.f32 %v1756, %v3095
        %v3097 = vpop.f32.mrf.mxu0
        %v3098 = vadd.f32 %v1757, %v3097
        %3099 = vmatmul.bf16.gmra.mxu0 %v3030
        %v3100 = vpop.f32.mrf.mxu0
        %v3101 = vadd.f32 %v1758, %v3100
        %v3102 = vpop.f32.mrf.mxu0
        %v3103 = vadd.f32 %v1759, %v3102
        %3104 = vdwg.mxu0
        %3105 = vmax.xlane.f32.xlu0 %v3066
        %v3106 = vpop.xlane.xlu0 %3105
        %3107 = vmax.xlane.f32.xlu0 %v3068
        %v3108 = vpop.xlane.xlu0 %3107
        %3109 = vmax.xlane.f32.xlu0 %v3071
        %v3110 = vpop.xlane.xlu0 %3109
        %3111 = vmax.xlane.f32.xlu0 %v3073
        %v3112 = vpop.xlane.xlu0 %3111
        %3113 = vmax.xlane.f32.xlu0 %v3076
        %v3114 = vpop.xlane.xlu0 %3113
        %3115 = vmax.xlane.f32.xlu0 %v3078
        %v3116 = vpop.xlane.xlu0 %3115
        %3117 = vmax.xlane.f32.xlu0 %v3081
        %v3118 = vpop.xlane.xlu0 %3117
        %3119 = vmax.xlane.f32.xlu0 %v3083
        %v3120 = vpop.xlane.xlu0 %3119
        %3121 = vmax.xlane.f32.xlu0 %v3086
        %v3122 = vpop.xlane.xlu0 %3121
        %3123 = vmax.xlane.f32.xlu0 %v3088
        %v3124 = vpop.xlane.xlu0 %3123
        %3125 = vmax.xlane.f32.xlu0 %v3091
        %v3126 = vpop.xlane.xlu0 %3125
        %3127 = vmax.xlane.f32.xlu0 %v3093
        %v3128 = vpop.xlane.xlu0 %3127
        %3129 = vmax.xlane.f32.xlu0 %v3096
        %v3130 = vpop.xlane.xlu0 %3129
        %3131 = vmax.xlane.f32.xlu0 %v3098
        %v3132 = vpop.xlane.xlu0 %3131
        %3133 = vmax.xlane.f32.xlu0 %v3101
        %v3134 = vpop.xlane.xlu0 %3133
        %3135 = vmax.xlane.f32.xlu0 %v3103
        %v3136 = vpop.xlane.xlu0 %3135
        %v3137 = vsub.f32 %v3066, %v3106
        %v3138 = vsub.f32 %v3068, %v3108
        %v3139 = vsub.f32 %v3071, %v3110
        %v3140 = vsub.f32 %v3073, %v3112
        %v3141 = vsub.f32 %v3076, %v3114
        %v3142 = vsub.f32 %v3078, %v3116
        %v3143 = vsub.f32 %v3081, %v3118
        %v3144 = vsub.f32 %v3083, %v3120
        %v3145 = vsub.f32 %v3086, %v3122
        %v3146 = vsub.f32 %v3088, %v3124
        %v3147 = vsub.f32 %v3091, %v3126
        %v3148 = vsub.f32 %v3093, %v3128
        %v3149 = vsub.f32 %v3096, %v3130
        %v3150 = vsub.f32 %v3098, %v3132
        %v3151 = vsub.f32 %v3101, %v3134
        %v3152 = vsub.f32 %v3103, %v3136
        %v3153 = vmul.f32 %v3137, 1.442695
        %v3154 = vpow.pop %v3153
        %v3155 = vmul.f32 %v3138, 1.442695
        %v3156 = vpow.pop %v3155
        %v3157 = vmul.f32 %v3139, 1.442695
        %v3158 = vpow.pop %v3157
        %v3159 = vmul.f32 %v3140, 1.442695
        %v3160 = vpow.pop %v3159
        %v3161 = vmul.f32 %v3141, 1.442695
        %v3162 = vpow.pop %v3161
        %v3163 = vmul.f32 %v3142, 1.442695
        %v3164 = vpow.pop %v3163
        %v3165 = vmul.f32 %v3143, 1.442695
        %v3166 = vpow.pop %v3165
        %v3167 = vmul.f32 %v3144, 1.442695
        %v3168 = vpow.pop %v3167
        %v3169 = vmul.f32 %v3145, 1.442695
        %v3170 = vpow.pop %v3169
        %v3171 = vmul.f32 %v3146, 1.442695
        %v3172 = vpow.pop %v3171
        %v3173 = vmul.f32 %v3147, 1.442695
        %v3174 = vpow.pop %v3173
        %v3175 = vmul.f32 %v3148, 1.442695
        %v3176 = vpow.pop %v3175
        %v3177 = vmul.f32 %v3149, 1.442695
        %v3178 = vpow.pop %v3177
        %v3179 = vmul.f32 %v3150, 1.442695
        %v3180 = vpow.pop %v3179
        %v3181 = vmul.f32 %v3151, 1.442695
        %v3182 = vpow.pop %v3181
        %v3183 = vmul.f32 %v3152, 1.442695
        %v3184 = vpow.pop %v3183
        %3185 = vadd.xlane.f32.xlu0 %v3154
        %v3186 = vpop.xlane.xlu0 %3185
        %3187 = vadd.xlane.f32.xlu0 %v3156
        %v3188 = vpop.xlane.xlu0 %3187
        %3189 = vadd.xlane.f32.xlu0 %v3158
        %v3190 = vpop.xlane.xlu0 %3189
        %3191 = vadd.xlane.f32.xlu0 %v3160
        %v3192 = vpop.xlane.xlu0 %3191
        %3193 = vadd.xlane.f32.xlu0 %v3162
        %v3194 = vpop.xlane.xlu0 %3193
        %3195 = vadd.xlane.f32.xlu0 %v3164
        %v3196 = vpop.xlane.xlu0 %3195
        %3197 = vadd.xlane.f32.xlu0 %v3166
        %v3198 = vpop.xlane.xlu0 %3197
        %3199 = vadd.xlane.f32.xlu0 %v3168
        %v3200 = vpop.xlane.xlu0 %3199
        %3201 = vadd.xlane.f32.xlu0 %v3170
        %v3202 = vpop.xlane.xlu0 %3201
        %3203 = vadd.xlane.f32.xlu0 %v3172
        %v3204 = vpop.xlane.xlu0 %3203
        %3205 = vadd.xlane.f32.xlu0 %v3174
        %v3206 = vpop.xlane.xlu0 %3205
        %3207 = vadd.xlane.f32.xlu0 %v3176
        %v3208 = vpop.xlane.xlu0 %3207
        %3209 = vadd.xlane.f32.xlu0 %v3178
        %v3210 = vpop.xlane.xlu0 %3209
        %3211 = vadd.xlane.f32.xlu0 %v3180
        %v3212 = vpop.xlane.xlu0 %3211
        %3213 = vadd.xlane.f32.xlu0 %v3182
        %v3214 = vpop.xlane.xlu0 %3213
        %3215 = vadd.xlane.f32.xlu0 %v3184
        %v3216 = vpop.xlane.xlu0 %3215
        %v3217 = vrcp.pop %v3186
        %v3218 = vrcp.pop %v3188
        %v3219 = vrcp.pop %v3190
        %v3220 = vrcp.pop %v3192
        %v3221 = vrcp.pop %v3194
        %v3222 = vrcp.pop %v3196
        %v3223 = vrcp.pop %v3198
        %v3224 = vrcp.pop %v3200
        %v3225 = vrcp.pop %v3202
        %v3226 = vrcp.pop %v3204
        %v3227 = vrcp.pop %v3206
        %v3228 = vrcp.pop %v3208
        %v3229 = vrcp.pop %v3210
        %v3230 = vrcp.pop %v3212
        %v3231 = vrcp.pop %v3214
        %v3232 = vrcp.pop %v3216
        %v3233 = vmul.f32 %v3154, %v3217
        %v3234 = vmul.f32 %v3156, %v3218
        %v3235 = vmul.f32 %v3158, %v3219
        %v3236 = vmul.f32 %v3160, %v3220
        %v3237 = vmul.f32 %v3162, %v3221
        %v3238 = vmul.f32 %v3164, %v3222
        %v3239 = vmul.f32 %v3166, %v3223
        %v3240 = vmul.f32 %v3168, %v3224
        %v3241 = vmul.f32 %v3170, %v3225
        %v3242 = vmul.f32 %v3172, %v3226
        %v3243 = vmul.f32 %v3174, %v3227
        %v3244 = vmul.f32 %v3176, %v3228
        %v3245 = vmul.f32 %v3178, %v3229
        %v3246 = vmul.f32 %v3180, %v3230
        %v3247 = vmul.f32 %v3182, %v3231
        %v3248 = vmul.f32 %v3184, %v3232
        %v3249 = vpack.c.bf16 %v3233, %v3233
        %v3250 = vpack.c.bf16 %v3234, %v3234
        %v3251 = vpack.c.bf16 %v3235, %v3235
        %v3252 = vpack.c.bf16 %v3236, %v3236
        %v3253 = vpack.c.bf16 %v3237, %v3237
        %v3254 = vpack.c.bf16 %v3238, %v3238
        %v3255 = vpack.c.bf16 %v3239, %v3239
        %v3256 = vpack.c.bf16 %v3240, %v3240
        %v3257 = vpack.c.bf16 %v3241, %v3241
        %v3258 = vpack.c.bf16 %v3242, %v3242
        %v3259 = vpack.c.bf16 %v3243, %v3243
        %v3260 = vpack.c.bf16 %v3244, %v3244
        %v3261 = vpack.c.bf16 %v3245, %v3245
        %v3262 = vpack.c.bf16 %v3246, %v3246
        %v3263 = vpack.c.bf16 %v3247, %v3247
        %v3264 = vpack.c.bf16 %v3248, %v3248
        %v3281 = vunpack.c.l.b16 %v3249
        %v3282 = vunpack.c.l.b16 %v3250
        %v3283 = vunpack.c.l.b16 %v3251
        %v3284 = vunpack.c.l.b16 %v3252
        %v3285 = vunpack.c.l.b16 %v3253
        %v3286 = vunpack.c.l.b16 %v3254
        %v3287 = vunpack.c.l.b16 %v3255
        %v3288 = vunpack.c.l.b16 %v3256
        %v3289 = vunpack.c.l.b16 %v3257
        %v3290 = vunpack.c.l.b16 %v3258
        %v3291 = vunpack.c.l.b16 %v3259
        %v3292 = vunpack.c.l.b16 %v3260
        %v3293 = vunpack.c.l.b16 %v3261
        %v3294 = vunpack.c.l.b16 %v3262
        %v3295 = vunpack.c.l.b16 %v3263
        %v3296 = vunpack.c.l.b16 %v3264
        %v3297 = vpack.c.b16 %v3282, %v3281
        %v3298 = vpack.c.b16 %v3284, %v3283
        %v3299 = vpack.c.b16 %v3286, %v3285
        %v3300 = vpack.c.b16 %v3288, %v3287
        %v3301 = vpack.c.b16 %v3290, %v3289
        %v3302 = vpack.c.b16 %v3292, %v3291
        %v3303 = vpack.c.b16 %v3294, %v3293
        %v3304 = vpack.c.b16 %v3296, %v3295
        %3313 = vrot.lane.b32.xlu0 %v2178, 64
        %v3314 = vpop.permute.xlu0 %3313
        %3315 = vrot.lane.b32.xlu0 %v2179, 64
        %v3316 = vpop.permute.xlu0 %3315
        %3317 = vrot.lane.b32.xlu0 %v2180, 64
        %v3318 = vpop.permute.xlu0 %3317
        %3319 = vrot.lane.b32.xlu0 %v2181, 64
        %v3320 = vpop.permute.xlu0 %3319
        %3321 = vrot.lane.b32.xlu0 %v2182, 64
        %v3322 = vpop.permute.xlu0 %3321
        %3323 = vrot.lane.b32.xlu0 %v2183, 64
        %v3324 = vpop.permute.xlu0 %3323
        %3325 = vrot.lane.b32.xlu0 %v2184, 64
        %v3326 = vpop.permute.xlu0 %3325
        %3327 = vrot.lane.b32.xlu0 %v2185, 64
        %v3328 = vpop.permute.xlu0 %3327
        %3337 = vmatpush.bf16.msra.mxu0 %v3328
        %3338 = vmatpush.bf16.msra.mxu0 %v3326
        %3339 = vmatpush.bf16.msra.mxu0 %v3324
        %3340 = vmatpush.bf16.msra.mxu0 %v3322
        %3341 = vmatpush.bf16.msra.mxu0 %v3320
        %3342 = vmatpush.bf16.msra.mxu0 %v3318
        %3343 = vmatpush.bf16.msra.mxu0 %v3316
        %3344 = vmatpush.bf16.msra.mxu0 %v3314
        %3345 = vmatmul.bf16.gmra.mxu0 %v3297
        %v3346 = vpop.f32.mrf.mxu0
        %v3347 = vadd.f32 0.0, %v3346
        %v3348 = vpop.f32.mrf.mxu0
        %v3349 = vadd.f32 0.0, %v3348
        %3350 = vmatmul.bf16.gmra.mxu0 %v3298
        %v3351 = vpop.f32.mrf.mxu0
        %v3352 = vadd.f32 0.0, %v3351
        %v3353 = vpop.f32.mrf.mxu0
        %v3354 = vadd.f32 0.0, %v3353
        %3355 = vmatmul.bf16.gmra.mxu0 %v3299
        %v3356 = vpop.f32.mrf.mxu0
        %v3357 = vadd.f32 0.0, %v3356
        %v3358 = vpop.f32.mrf.mxu0
        %v3359 = vadd.f32 0.0, %v3358
        %3360 = vmatmul.bf16.gmra.mxu0 %v3300
        %v3361 = vpop.f32.mrf.mxu0
        %v3362 = vadd.f32 0.0, %v3361
        %v3363 = vpop.f32.mrf.mxu0
        %v3364 = vadd.f32 0.0, %v3363
        %3365 = vmatmul.bf16.gmra.mxu0 %v3301
        %v3366 = vpop.f32.mrf.mxu0
        %v3367 = vadd.f32 0.0, %v3366
        %v3368 = vpop.f32.mrf.mxu0
        %v3369 = vadd.f32 0.0, %v3368
        %3370 = vmatmul.bf16.gmra.mxu0 %v3302
        %v3371 = vpop.f32.mrf.mxu0
        %v3372 = vadd.f32 0.0, %v3371
        %v3373 = vpop.f32.mrf.mxu0
        %v3374 = vadd.f32 0.0, %v3373
        %3375 = vmatmul.bf16.gmra.mxu0 %v3303
        %v3376 = vpop.f32.mrf.mxu0
        %v3377 = vadd.f32 0.0, %v3376
        %v3378 = vpop.f32.mrf.mxu0
        %v3379 = vadd.f32 0.0, %v3378
        %3380 = vmatmul.bf16.gmra.mxu0 %v3304
        %v3381 = vpop.f32.mrf.mxu0
        %v3382 = vadd.f32 0.0, %v3381
        %v3383 = vpop.f32.mrf.mxu0
        %v3384 = vadd.f32 0.0, %v3383
        %3385 = vdwg.mxu0
        %v3386 = vpack.c.bf16 %v3347, %v3347
        %v3387 = vpack.c.bf16 %v3349, %v3349
        %v3388 = vpack.c.bf16 %v3352, %v3352
        %v3389 = vpack.c.bf16 %v3354, %v3354
        %v3390 = vpack.c.bf16 %v3357, %v3357
        %v3391 = vpack.c.bf16 %v3359, %v3359
        %v3392 = vpack.c.bf16 %v3362, %v3362
        %v3393 = vpack.c.bf16 %v3364, %v3364
        %v3394 = vpack.c.bf16 %v3367, %v3367
        %v3395 = vpack.c.bf16 %v3369, %v3369
        %v3396 = vpack.c.bf16 %v3372, %v3372
        %v3397 = vpack.c.bf16 %v3374, %v3374
        %v3398 = vpack.c.bf16 %v3377, %v3377
        %v3399 = vpack.c.bf16 %v3379, %v3379
        %v3400 = vpack.c.bf16 %v3382, %v3382
        %v3401 = vpack.c.bf16 %v3384, %v3384
        %s3402 = scalar_lea.vmem %s546, 32 [#allocation11]
        %v3403 = vld [vmem:[%s3402] sm:$0xf]
        %v3404 = vld [vmem:[%s3402 + $0x4] sm:$0xf]
        %v3405 = vld [vmem:[%s3402 + $0x8] sm:$0xf]
        %v3406 = vld [vmem:[%s3402 + $0xc] sm:$0xf]
        %v3423 = vunpack.c.l.b16 %v3386
        %v3424 = vunpack.c.l.b16 %v3387
        %v3425 = vunpack.c.l.b16 %v3388
        %v3426 = vunpack.c.l.b16 %v3389
        %v3427 = vunpack.c.l.b16 %v3390
        %v3428 = vunpack.c.l.b16 %v3391
        %v3429 = vunpack.c.l.b16 %v3392
        %v3430 = vunpack.c.l.b16 %v3393
        %v3431 = vunpack.c.l.b16 %v3394
        %v3432 = vunpack.c.l.b16 %v3395
        %v3433 = vunpack.c.l.b16 %v3396
        %v3434 = vunpack.c.l.b16 %v3397
        %v3435 = vunpack.c.l.b16 %v3398
        %v3436 = vunpack.c.l.b16 %v3399
        %v3437 = vunpack.c.l.b16 %v3400
        %v3438 = vunpack.c.l.b16 %v3401
        %v3439 = vpack.c.b16 %v3424, %v3423
        %v3440 = vpack.c.b16 %v3426, %v3425
        %v3441 = vpack.c.b16 %v3428, %v3427
        %v3442 = vpack.c.b16 %v3430, %v3429
        %v3443 = vpack.c.b16 %v3432, %v3431
        %v3444 = vpack.c.b16 %v3434, %v3433
        %v3445 = vpack.c.b16 %v3436, %v3435
        %v3446 = vpack.c.b16 %v3438, %v3437
        %v3451 = vunpack.c.l.b16 %v3403
        %v3452 = vunpack.c.l.b16 %v3404
        %v3453 = vunpack.c.l.b16 %v3405
        %v3454 = vunpack.c.l.b16 %v3406
        %v3455 = vpack.c.b16 %v3452, %v3451
        %v3456 = vpack.c.b16 %v3454, %v3453
        %v3460 = vsel %vm1840, %v3439, 0
        %v3463 = vsel %vm1840, %v3440, 0
        %v3466 = vsel %vm1840, %v3441, 0
        %v3469 = vsel %vm1840, %v3442, 0
        %v3472 = vsel %vm1840, %v3443, 0
        %v3475 = vsel %vm1840, %v3444, 0
        %v3478 = vsel %vm1840, %v3445, 0
        %v3481 = vsel %vm1840, %v3446, 0
        %3483 = vmatpush.bf16.msra.mxu0 0
        %3484 = vmatpush.bf16.msra.mxu0 0
        %3485 = vmatpush.bf16.msra.mxu0 0
        %3486 = vmatpush.bf16.msra.mxu0 0
        %3487 = vmatpush.bf16.msra.mxu0 0
        %3488 = vmatpush.bf16.msra.mxu0 0
        %3489 = vmatpush.bf16.msra.mxu0 %v3456
        %3490 = vmatpush.bf16.msra.mxu0 %v3455
        %3491 = vmatmul.bf16.gmra.mxu0 %v3460
        %v3492 = vpop.f32.mrf.mxu0
        %v3493 = vadd.f32 0.0, %v3492
        %v3494 = vpop.f32.mrf.mxu0
        %v3495 = vadd.f32 0.0, %v3494
        %3496 = vmatmul.bf16.gmra.mxu0 %v3463
        %v3497 = vpop.f32.mrf.mxu0
        %v3498 = vadd.f32 0.0, %v3497
        %v3499 = vpop.f32.mrf.mxu0
        %v3500 = vadd.f32 0.0, %v3499
        %3501 = vmatmul.bf16.gmra.mxu0 %v3466
        %v3502 = vpop.f32.mrf.mxu0
        %v3503 = vadd.f32 0.0, %v3502
        %v3504 = vpop.f32.mrf.mxu0
        %v3505 = vadd.f32 0.0, %v3504
        %3506 = vmatmul.bf16.gmra.mxu0 %v3469
        %v3507 = vpop.f32.mrf.mxu0
        %v3508 = vadd.f32 0.0, %v3507
        %v3509 = vpop.f32.mrf.mxu0
        %v3510 = vadd.f32 0.0, %v3509
        %3511 = vmatmul.bf16.gmra.mxu0 %v3472
        %v3512 = vpop.f32.mrf.mxu0
        %v3513 = vadd.f32 0.0, %v3512
        %v3514 = vpop.f32.mrf.mxu0
        %v3515 = vadd.f32 0.0, %v3514
        %3516 = vmatmul.bf16.gmra.mxu0 %v3475
        %v3517 = vpop.f32.mrf.mxu0
        %v3518 = vadd.f32 0.0, %v3517
        %v3519 = vpop.f32.mrf.mxu0
        %v3520 = vadd.f32 0.0, %v3519
        %3521 = vmatmul.bf16.gmra.mxu0 %v3478
        %v3522 = vpop.f32.mrf.mxu0
        %v3523 = vadd.f32 0.0, %v3522
        %v3524 = vpop.f32.mrf.mxu0
        %v3525 = vadd.f32 0.0, %v3524
        %3526 = vmatmul.bf16.gmra.mxu0 %v3481
        %v3527 = vpop.f32.mrf.mxu0
        %v3528 = vadd.f32 0.0, %v3527
        %v3529 = vpop.f32.mrf.mxu0
        %v3530 = vadd.f32 0.0, %v3529
        %3531 = vdwg.mxu0
        %v3532 = vadd.f32 %v2960, %v3493
        %v3533 = vadd.f32 %v2961, %v3495
        %v3534 = vadd.f32 %v2962, %v3498
        %v3535 = vadd.f32 %v2963, %v3500
        %v3536 = vadd.f32 %v2964, %v3503
        %v3537 = vadd.f32 %v2965, %v3505
        %v3538 = vadd.f32 %v2966, %v3508
        %v3539 = vadd.f32 %v2967, %v3510
        %v3540 = vadd.f32 %v2968, %v3513
        %v3541 = vadd.f32 %v2969, %v3515
        %v3542 = vadd.f32 %v2970, %v3518
        %v3543 = vadd.f32 %v2971, %v3520
        %v3544 = vadd.f32 %v2972, %v3523
        %v3545 = vadd.f32 %v2973, %v3525
        %v3546 = vadd.f32 %v2974, %v3528
        %v3547 = vadd.f32 %v2975, %v3530
        %3548 = vrot.lane.b32.xlu0 %v1792, 32
        %v3549 = vpop.permute.xlu0 %3548
        %3550 = vrot.lane.b32.xlu0 %v1793, 32
        %v3551 = vpop.permute.xlu0 %3550
        %3552 = vrot.lane.b32.xlu0 %v1794, 32
        %v3553 = vpop.permute.xlu0 %3552
        %3554 = vrot.lane.b32.xlu0 %v1795, 32
        %v3555 = vpop.permute.xlu0 %3554
        %3556 = vrot.lane.b32.xlu0 %v1796, 32
        %v3557 = vpop.permute.xlu0 %3556
        %3558 = vrot.lane.b32.xlu0 %v1797, 32
        %v3559 = vpop.permute.xlu0 %3558
        %3560 = vrot.lane.b32.xlu0 %v1798, 32
        %v3561 = vpop.permute.xlu0 %3560
        %3562 = vrot.lane.b32.xlu0 %v1799, 32
        %v3563 = vpop.permute.xlu0 %3562
        %3564 = vrot.lane.b32.xlu0 %v1832, 32
        %v3565 = vpop.permute.xlu0 %3564
        %3566 = vrot.lane.b32.xlu0 %v1833, 32
        %v3567 = vpop.permute.xlu0 %3566
        %3568 = vrot.lane.b32.xlu0 %v1834, 32
        %v3569 = vpop.permute.xlu0 %3568
        %3570 = vrot.lane.b32.xlu0 %v1835, 32
        %v3571 = vpop.permute.xlu0 %3570
        %3572 = vrot.lane.b32.xlu0 %v1836, 32
        %v3573 = vpop.permute.xlu0 %3572
        %3574 = vrot.lane.b32.xlu0 %v1837, 32
        %v3575 = vpop.permute.xlu0 %3574
        %3576 = vrot.lane.b32.xlu0 %v1838, 32
        %v3577 = vpop.permute.xlu0 %3576
        %3578 = vrot.lane.b32.xlu0 %v1839, 32
        %v3579 = vpop.permute.xlu0 %3578
        %v3581 = vsel %vm1840, %v3549, 0
        %v3584 = vsel %vm1840, %v3551, 0
        %v3587 = vsel %vm1840, %v3553, 0
        %v3590 = vsel %vm1840, %v3555, 0
        %v3593 = vsel %vm1840, %v3557, 0
        %v3596 = vsel %vm1840, %v3559, 0
        %v3599 = vsel %vm1840, %v3561, 0
        %v3602 = vsel %vm1840, %v3563, 0
        %v3605 = vsel %vm1840, %v3565, 0
        %v3608 = vsel %vm1840, %v3567, 0
        %v3611 = vsel %vm1840, %v3569, 0
        %v3614 = vsel %vm1840, %v3571, 0
        %v3617 = vsel %vm1840, %v3573, 0
        %v3620 = vsel %vm1840, %v3575, 0
        %v3623 = vsel %vm1840, %v3577, 0
        %v3626 = vsel %vm1840, %v3579, 0
        %3628 = vmatpush.bf16.xpose.msra.mxu0 %v3626
        %3629 = vmatpush.bf16.xpose.msra.mxu0 %v3623
        %3630 = vmatpush.bf16.xpose.msra.mxu0 %v3620
        %3631 = vmatpush.bf16.xpose.msra.mxu0 %v3617
        %3632 = vmatpush.bf16.xpose.msra.mxu0 %v3614
        %3633 = vmatpush.bf16.xpose.msra.mxu0 %v3611
        %3634 = vmatpush.bf16.xpose.msra.mxu0 %v3608
        %3635 = vmatpush.bf16.xpose.msra.mxu0 %v3605
        %3636 = vmatmul.bf16.gmra.mxu0 %v3581
        %v3637 = vpop.f32.mrf.mxu0
        %v3638 = vadd.f32 %v1744, %v3637
        %v3639 = vpop.f32.mrf.mxu0
        %v3640 = vadd.f32 %v1745, %v3639
        %3641 = vmatmul.bf16.gmra.mxu0 %v3584
        %v3642 = vpop.f32.mrf.mxu0
        %v3643 = vadd.f32 %v1746, %v3642
        %v3644 = vpop.f32.mrf.mxu0
        %v3645 = vadd.f32 %v1747, %v3644
        %3646 = vmatmul.bf16.gmra.mxu0 %v3587
        %v3647 = vpop.f32.mrf.mxu0
        %v3648 = vadd.f32 %v1748, %v3647
        %v3649 = vpop.f32.mrf.mxu0
        %v3650 = vadd.f32 %v1749, %v3649
        %3651 = vmatmul.bf16.gmra.mxu0 %v3590
        %v3652 = vpop.f32.mrf.mxu0
        %v3653 = vadd.f32 %v1750, %v3652
        %v3654 = vpop.f32.mrf.mxu0
        %v3655 = vadd.f32 %v1751, %v3654
        %3656 = vmatmul.bf16.gmra.mxu0 %v3593
        %v3657 = vpop.f32.mrf.mxu0
        %v3658 = vadd.f32 %v1752, %v3657
        %v3659 = vpop.f32.mrf.mxu0
        %v3660 = vadd.f32 %v1753, %v3659
        %3661 = vmatmul.bf16.gmra.mxu0 %v3596
        %v3662 = vpop.f32.mrf.mxu0
        %v3663 = vadd.f32 %v1754, %v3662
        %v3664 = vpop.f32.mrf.mxu0
        %v3665 = vadd.f32 %v1755, %v3664
        %3666 = vmatmul.bf16.gmra.mxu0 %v3599
        %v3667 = vpop.f32.mrf.mxu0
        %v3668 = vadd.f32 %v1756, %v3667
        %v3669 = vpop.f32.mrf.mxu0
        %v3670 = vadd.f32 %v1757, %v3669
        %3671 = vmatmul.bf16.gmra.mxu0 %v3602
        %v3672 = vpop.f32.mrf.mxu0
        %v3673 = vadd.f32 %v1758, %v3672
        %v3674 = vpop.f32.mrf.mxu0
        %v3675 = vadd.f32 %v1759, %v3674
        %3676 = vdwg.mxu0
        %3677 = vmax.xlane.f32.xlu0 %v3638
        %v3678 = vpop.xlane.xlu0 %3677
        %3679 = vmax.xlane.f32.xlu0 %v3640
        %v3680 = vpop.xlane.xlu0 %3679
        %3681 = vmax.xlane.f32.xlu0 %v3643
        %v3682 = vpop.xlane.xlu0 %3681
        %3683 = vmax.xlane.f32.xlu0 %v3645
        %v3684 = vpop.xlane.xlu0 %3683
        %3685 = vmax.xlane.f32.xlu0 %v3648
        %v3686 = vpop.xlane.xlu0 %3685
        %3687 = vmax.xlane.f32.xlu0 %v3650
        %v3688 = vpop.xlane.xlu0 %3687
        %3689 = vmax.xlane.f32.xlu0 %v3653
        %v3690 = vpop.xlane.xlu0 %3689
        %3691 = vmax.xlane.f32.xlu0 %v3655
        %v3692 = vpop.xlane.xlu0 %3691
        %3693 = vmax.xlane.f32.xlu0 %v3658
        %v3694 = vpop.xlane.xlu0 %3693
        %3695 = vmax.xlane.f32.xlu0 %v3660
        %v3696 = vpop.xlane.xlu0 %3695
        %3697 = vmax.xlane.f32.xlu0 %v3663
        %v3698 = vpop.xlane.xlu0 %3697
        %3699 = vmax.xlane.f32.xlu0 %v3665
        %v3700 = vpop.xlane.xlu0 %3699
        %3701 = vmax.xlane.f32.xlu0 %v3668
        %v3702 = vpop.xlane.xlu0 %3701
        %3703 = vmax.xlane.f32.xlu0 %v3670
        %v3704 = vpop.xlane.xlu0 %3703
        %3705 = vmax.xlane.f32.xlu0 %v3673
        %v3706 = vpop.xlane.xlu0 %3705
        %3707 = vmax.xlane.f32.xlu0 %v3675
        %v3708 = vpop.xlane.xlu0 %3707
        %v3709 = vsub.f32 %v3638, %v3678
        %v3710 = vsub.f32 %v3640, %v3680
        %v3711 = vsub.f32 %v3643, %v3682
        %v3712 = vsub.f32 %v3645, %v3684
        %v3713 = vsub.f32 %v3648, %v3686
        %v3714 = vsub.f32 %v3650, %v3688
        %v3715 = vsub.f32 %v3653, %v3690
        %v3716 = vsub.f32 %v3655, %v3692
        %v3717 = vsub.f32 %v3658, %v3694
        %v3718 = vsub.f32 %v3660, %v3696
        %v3719 = vsub.f32 %v3663, %v3698
        %v3720 = vsub.f32 %v3665, %v3700
        %v3721 = vsub.f32 %v3668, %v3702
        %v3722 = vsub.f32 %v3670, %v3704
        %v3723 = vsub.f32 %v3673, %v3706
        %v3724 = vsub.f32 %v3675, %v3708
        %v3725 = vmul.f32 %v3709, 1.442695
        %v3726 = vpow.pop %v3725
        %v3727 = vmul.f32 %v3710, 1.442695
        %v3728 = vpow.pop %v3727
        %v3729 = vmul.f32 %v3711, 1.442695
        %v3730 = vpow.pop %v3729
        %v3731 = vmul.f32 %v3712, 1.442695
        %v3732 = vpow.pop %v3731
        %v3733 = vmul.f32 %v3713, 1.442695
        %v3734 = vpow.pop %v3733
        %v3735 = vmul.f32 %v3714, 1.442695
        %v3736 = vpow.pop %v3735
        %v3737 = vmul.f32 %v3715, 1.442695
        %v3738 = vpow.pop %v3737
        %v3739 = vmul.f32 %v3716, 1.442695
        %v3740 = vpow.pop %v3739
        %v3741 = vmul.f32 %v3717, 1.442695
        %v3742 = vpow.pop %v3741
        %v3743 = vmul.f32 %v3718, 1.442695
        %v3744 = vpow.pop %v3743
        %v3745 = vmul.f32 %v3719, 1.442695
        %v3746 = vpow.pop %v3745
        %v3747 = vmul.f32 %v3720, 1.442695
        %v3748 = vpow.pop %v3747
        %v3749 = vmul.f32 %v3721, 1.442695
        %v3750 = vpow.pop %v3749
        %v3751 = vmul.f32 %v3722, 1.442695
        %v3752 = vpow.pop %v3751
        %v3753 = vmul.f32 %v3723, 1.442695
        %v3754 = vpow.pop %v3753
        %v3755 = vmul.f32 %v3724, 1.442695
        %v3756 = vpow.pop %v3755
        %3757 = vadd.xlane.f32.xlu0 %v3726
        %v3758 = vpop.xlane.xlu0 %3757
        %3759 = vadd.xlane.f32.xlu0 %v3728
        %v3760 = vpop.xlane.xlu0 %3759
        %3761 = vadd.xlane.f32.xlu0 %v3730
        %v3762 = vpop.xlane.xlu0 %3761
        %3763 = vadd.xlane.f32.xlu0 %v3732
        %v3764 = vpop.xlane.xlu0 %3763
        %3765 = vadd.xlane.f32.xlu0 %v3734
        %v3766 = vpop.xlane.xlu0 %3765
        %3767 = vadd.xlane.f32.xlu0 %v3736
        %v3768 = vpop.xlane.xlu0 %3767
        %3769 = vadd.xlane.f32.xlu0 %v3738
        %v3770 = vpop.xlane.xlu0 %3769
        %3771 = vadd.xlane.f32.xlu0 %v3740
        %v3772 = vpop.xlane.xlu0 %3771
        %3773 = vadd.xlane.f32.xlu0 %v3742
        %v3774 = vpop.xlane.xlu0 %3773
        %3775 = vadd.xlane.f32.xlu0 %v3744
        %v3776 = vpop.xlane.xlu0 %3775
        %3777 = vadd.xlane.f32.xlu0 %v3746
        %v3778 = vpop.xlane.xlu0 %3777
        %3779 = vadd.xlane.f32.xlu0 %v3748
        %v3780 = vpop.xlane.xlu0 %3779
        %3781 = vadd.xlane.f32.xlu0 %v3750
        %v3782 = vpop.xlane.xlu0 %3781
        %3783 = vadd.xlane.f32.xlu0 %v3752
        %v3784 = vpop.xlane.xlu0 %3783
        %3785 = vadd.xlane.f32.xlu0 %v3754
        %v3786 = vpop.xlane.xlu0 %3785
        %3787 = vadd.xlane.f32.xlu0 %v3756
        %v3788 = vpop.xlane.xlu0 %3787
        %v3789 = vrcp.pop %v3758
        %v3790 = vrcp.pop %v3760
        %v3791 = vrcp.pop %v3762
        %v3792 = vrcp.pop %v3764
        %v3793 = vrcp.pop %v3766
        %v3794 = vrcp.pop %v3768
        %v3795 = vrcp.pop %v3770
        %v3796 = vrcp.pop %v3772
        %v3797 = vrcp.pop %v3774
        %v3798 = vrcp.pop %v3776
        %v3799 = vrcp.pop %v3778
        %v3800 = vrcp.pop %v3780
        %v3801 = vrcp.pop %v3782
        %v3802 = vrcp.pop %v3784
        %v3803 = vrcp.pop %v3786
        %v3804 = vrcp.pop %v3788
        %v3805 = vmul.f32 %v3726, %v3789
        %v3806 = vmul.f32 %v3728, %v3790
        %v3807 = vmul.f32 %v3730, %v3791
        %v3808 = vmul.f32 %v3732, %v3792
        %v3809 = vmul.f32 %v3734, %v3793
        %v3810 = vmul.f32 %v3736, %v3794
        %v3811 = vmul.f32 %v3738, %v3795
        %v3812 = vmul.f32 %v3740, %v3796
        %v3813 = vmul.f32 %v3742, %v3797
        %v3814 = vmul.f32 %v3744, %v3798
        %v3815 = vmul.f32 %v3746, %v3799
        %v3816 = vmul.f32 %v3748, %v3800
        %v3817 = vmul.f32 %v3750, %v3801
        %v3818 = vmul.f32 %v3752, %v3802
        %v3819 = vmul.f32 %v3754, %v3803
        %v3820 = vmul.f32 %v3756, %v3804
        %v3821 = vpack.c.bf16 %v3805, %v3805
        %v3822 = vpack.c.bf16 %v3806, %v3806
        %v3823 = vpack.c.bf16 %v3807, %v3807
        %v3824 = vpack.c.bf16 %v3808, %v3808
        %v3825 = vpack.c.bf16 %v3809, %v3809
        %v3826 = vpack.c.bf16 %v3810, %v3810
        %v3827 = vpack.c.bf16 %v3811, %v3811
        %v3828 = vpack.c.bf16 %v3812, %v3812
        %v3829 = vpack.c.bf16 %v3813, %v3813
        %v3830 = vpack.c.bf16 %v3814, %v3814
        %v3831 = vpack.c.bf16 %v3815, %v3815
        %v3832 = vpack.c.bf16 %v3816, %v3816
        %v3833 = vpack.c.bf16 %v3817, %v3817
        %v3834 = vpack.c.bf16 %v3818, %v3818
        %v3835 = vpack.c.bf16 %v3819, %v3819
        %v3836 = vpack.c.bf16 %v3820, %v3820
        %v3853 = vunpack.c.l.b16 %v3821
        %v3854 = vunpack.c.l.b16 %v3822
        %v3855 = vunpack.c.l.b16 %v3823
        %v3856 = vunpack.c.l.b16 %v3824
        %v3857 = vunpack.c.l.b16 %v3825
        %v3858 = vunpack.c.l.b16 %v3826
        %v3859 = vunpack.c.l.b16 %v3827
        %v3860 = vunpack.c.l.b16 %v3828
        %v3861 = vunpack.c.l.b16 %v3829
        %v3862 = vunpack.c.l.b16 %v3830
        %v3863 = vunpack.c.l.b16 %v3831
        %v3864 = vunpack.c.l.b16 %v3832
        %v3865 = vunpack.c.l.b16 %v3833
        %v3866 = vunpack.c.l.b16 %v3834
        %v3867 = vunpack.c.l.b16 %v3835
        %v3868 = vunpack.c.l.b16 %v3836
        %v3869 = vpack.c.b16 %v3854, %v3853
        %v3870 = vpack.c.b16 %v3856, %v3855
        %v3871 = vpack.c.b16 %v3858, %v3857
        %v3872 = vpack.c.b16 %v3860, %v3859
        %v3873 = vpack.c.b16 %v3862, %v3861
        %v3874 = vpack.c.b16 %v3864, %v3863
        %v3875 = vpack.c.b16 %v3866, %v3865
        %v3876 = vpack.c.b16 %v3868, %v3867
        %3885 = vrot.lane.b32.xlu0 %v2178, 32
        %v3886 = vpop.permute.xlu0 %3885
        %3887 = vrot.lane.b32.xlu0 %v2179, 32
        %v3888 = vpop.permute.xlu0 %3887
        %3889 = vrot.lane.b32.xlu0 %v2180, 32
        %v3890 = vpop.permute.xlu0 %3889
        %3891 = vrot.lane.b32.xlu0 %v2181, 32
        %v3892 = vpop.permute.xlu0 %3891
        %3893 = vrot.lane.b32.xlu0 %v2182, 32
        %v3894 = vpop.permute.xlu0 %3893
        %3895 = vrot.lane.b32.xlu0 %v2183, 32
        %v3896 = vpop.permute.xlu0 %3895
        %3897 = vrot.lane.b32.xlu0 %v2184, 32
        %v3898 = vpop.permute.xlu0 %3897
        %3899 = vrot.lane.b32.xlu0 %v2185, 32
        %v3900 = vpop.permute.xlu0 %3899
        %3909 = vmatpush.bf16.msra.mxu0 %v3900
        %3910 = vmatpush.bf16.msra.mxu0 %v3898
        %3911 = vmatpush.bf16.msra.mxu0 %v3896
        %3912 = vmatpush.bf16.msra.mxu0 %v3894
        %3913 = vmatpush.bf16.msra.mxu0 %v3892
        %3914 = vmatpush.bf16.msra.mxu0 %v3890
        %3915 = vmatpush.bf16.msra.mxu0 %v3888
        %3916 = vmatpush.bf16.msra.mxu0 %v3886
        %3917 = vmatmul.bf16.gmra.mxu0 %v3869
        %v3918 = vpop.f32.mrf.mxu0
        %v3919 = vadd.f32 0.0, %v3918
        %v3920 = vpop.f32.mrf.mxu0
        %v3921 = vadd.f32 0.0, %v3920
        %3922 = vmatmul.bf16.gmra.mxu0 %v3870
        %v3923 = vpop.f32.mrf.mxu0
        %v3924 = vadd.f32 0.0, %v3923
        %v3925 = vpop.f32.mrf.mxu0
        %v3926 = vadd.f32 0.0, %v3925
        %3927 = vmatmul.bf16.gmra.mxu0 %v3871
        %v3928 = vpop.f32.mrf.mxu0
        %v3929 = vadd.f32 0.0, %v3928
        %v3930 = vpop.f32.mrf.mxu0
        %v3931 = vadd.f32 0.0, %v3930
        %3932 = vmatmul.bf16.gmra.mxu0 %v3872
        %v3933 = vpop.f32.mrf.mxu0
        %v3934 = vadd.f32 0.0, %v3933
        %v3935 = vpop.f32.mrf.mxu0
        %v3936 = vadd.f32 0.0, %v3935
        %3937 = vmatmul.bf16.gmra.mxu0 %v3873
        %v3938 = vpop.f32.mrf.mxu0
        %v3939 = vadd.f32 0.0, %v3938
        %v3940 = vpop.f32.mrf.mxu0
        %v3941 = vadd.f32 0.0, %v3940
        %3942 = vmatmul.bf16.gmra.mxu0 %v3874
        %v3943 = vpop.f32.mrf.mxu0
        %v3944 = vadd.f32 0.0, %v3943
        %v3945 = vpop.f32.mrf.mxu0
        %v3946 = vadd.f32 0.0, %v3945
        %3947 = vmatmul.bf16.gmra.mxu0 %v3875
        %v3948 = vpop.f32.mrf.mxu0
        %v3949 = vadd.f32 0.0, %v3948
        %v3950 = vpop.f32.mrf.mxu0
        %v3951 = vadd.f32 0.0, %v3950
        %3952 = vmatmul.bf16.gmra.mxu0 %v3876
        %v3953 = vpop.f32.mrf.mxu0
        %v3954 = vadd.f32 0.0, %v3953
        %v3955 = vpop.f32.mrf.mxu0
        %v3956 = vadd.f32 0.0, %v3955
        %3957 = vdwg.mxu0
        %v3958 = vpack.c.bf16 %v3919, %v3919
        %v3959 = vpack.c.bf16 %v3921, %v3921
        %v3960 = vpack.c.bf16 %v3924, %v3924
        %v3961 = vpack.c.bf16 %v3926, %v3926
        %v3962 = vpack.c.bf16 %v3929, %v3929
        %v3963 = vpack.c.bf16 %v3931, %v3931
        %v3964 = vpack.c.bf16 %v3934, %v3934
        %v3965 = vpack.c.bf16 %v3936, %v3936
        %v3966 = vpack.c.bf16 %v3939, %v3939
        %v3967 = vpack.c.bf16 %v3941, %v3941
        %v3968 = vpack.c.bf16 %v3944, %v3944
        %v3969 = vpack.c.bf16 %v3946, %v3946
        %v3970 = vpack.c.bf16 %v3949, %v3949
        %v3971 = vpack.c.bf16 %v3951, %v3951
        %v3972 = vpack.c.bf16 %v3954, %v3954
        %v3973 = vpack.c.bf16 %v3956, %v3956
        %s3974 = scalar_lea.vmem %s546, 48 [#allocation11]
        %v3975 = vld [vmem:[%s3974] sm:$0xf]
        %v3976 = vld [vmem:[%s3974 + $0x4] sm:$0xf]
        %v3977 = vld [vmem:[%s3974 + $0x8] sm:$0xf]
        %v3978 = vld [vmem:[%s3974 + $0xc] sm:$0xf]
        %v3995 = vunpack.c.l.b16 %v3958
        %v3996 = vunpack.c.l.b16 %v3959
        %v3997 = vunpack.c.l.b16 %v3960
        %v3998 = vunpack.c.l.b16 %v3961
        %v3999 = vunpack.c.l.b16 %v3962
        %v4000 = vunpack.c.l.b16 %v3963
        %v4001 = vunpack.c.l.b16 %v3964
        %v4002 = vunpack.c.l.b16 %v3965
        %v4003 = vunpack.c.l.b16 %v3966
        %v4004 = vunpack.c.l.b16 %v3967
        %v4005 = vunpack.c.l.b16 %v3968
        %v4006 = vunpack.c.l.b16 %v3969
        %v4007 = vunpack.c.l.b16 %v3970
        %v4008 = vunpack.c.l.b16 %v3971
        %v4009 = vunpack.c.l.b16 %v3972
        %v4010 = vunpack.c.l.b16 %v3973
        %v4011 = vpack.c.b16 %v3996, %v3995
        %v4012 = vpack.c.b16 %v3998, %v3997
        %v4013 = vpack.c.b16 %v4000, %v3999
        %v4014 = vpack.c.b16 %v4002, %v4001
        %v4015 = vpack.c.b16 %v4004, %v4003
        %v4016 = vpack.c.b16 %v4006, %v4005
        %v4017 = vpack.c.b16 %v4008, %v4007
        %v4018 = vpack.c.b16 %v4010, %v4009
        %v4023 = vunpack.c.l.b16 %v3975
        %v4024 = vunpack.c.l.b16 %v3976
        %v4025 = vunpack.c.l.b16 %v3977
        %v4026 = vunpack.c.l.b16 %v3978
        %v4027 = vpack.c.b16 %v4024, %v4023
        %v4028 = vpack.c.b16 %v4026, %v4025
        %v4032 = vsel %vm1840, %v4011, 0
        %v4035 = vsel %vm1840, %v4012, 0
        %v4038 = vsel %vm1840, %v4013, 0
        %v4041 = vsel %vm1840, %v4014, 0
        %v4044 = vsel %vm1840, %v4015, 0
        %v4047 = vsel %vm1840, %v4016, 0
        %v4050 = vsel %vm1840, %v4017, 0
        %v4053 = vsel %vm1840, %v4018, 0
        %4055 = vmatpush.bf16.msra.mxu0 0
        %4056 = vmatpush.bf16.msra.mxu0 0
        %4057 = vmatpush.bf16.msra.mxu0 0
        %4058 = vmatpush.bf16.msra.mxu0 0
        %4059 = vmatpush.bf16.msra.mxu0 0
        %4060 = vmatpush.bf16.msra.mxu0 0
        %4061 = vmatpush.bf16.msra.mxu0 %v4028
        %4062 = vmatpush.bf16.msra.mxu0 %v4027
        %4063 = vmatmul.bf16.gmra.mxu0 %v4032
        %v4064 = vpop.f32.mrf.mxu0
        %v4065 = vadd.f32 0.0, %v4064
        %v4066 = vpop.f32.mrf.mxu0
        %v4067 = vadd.f32 0.0, %v4066
        %4068 = vmatmul.bf16.gmra.mxu0 %v4035
        %v4069 = vpop.f32.mrf.mxu0
        %v4070 = vadd.f32 0.0, %v4069
        %v4071 = vpop.f32.mrf.mxu0
        %v4072 = vadd.f32 0.0, %v4071
        %4073 = vmatmul.bf16.gmra.mxu0 %v4038
        %v4074 = vpop.f32.mrf.mxu0
        %v4075 = vadd.f32 0.0, %v4074
        %v4076 = vpop.f32.mrf.mxu0
        %v4077 = vadd.f32 0.0, %v4076
        %4078 = vmatmul.bf16.gmra.mxu0 %v4041
        %v4079 = vpop.f32.mrf.mxu0
        %v4080 = vadd.f32 0.0, %v4079
        %v4081 = vpop.f32.mrf.mxu0
        %v4082 = vadd.f32 0.0, %v4081
        %4083 = vmatmul.bf16.gmra.mxu0 %v4044
        %v4084 = vpop.f32.mrf.mxu0
        %v4085 = vadd.f32 0.0, %v4084
        %v4086 = vpop.f32.mrf.mxu0
        %v4087 = vadd.f32 0.0, %v4086
        %4088 = vmatmul.bf16.gmra.mxu0 %v4047
        %v4089 = vpop.f32.mrf.mxu0
        %v4090 = vadd.f32 0.0, %v4089
        %v4091 = vpop.f32.mrf.mxu0
        %v4092 = vadd.f32 0.0, %v4091
        %4093 = vmatmul.bf16.gmra.mxu0 %v4050
        %v4094 = vpop.f32.mrf.mxu0
        %v4095 = vadd.f32 0.0, %v4094
        %v4096 = vpop.f32.mrf.mxu0
        %v4097 = vadd.f32 0.0, %v4096
        %4098 = vmatmul.bf16.gmra.mxu0 %v4053
        %v4099 = vpop.f32.mrf.mxu0
        %v4100 = vadd.f32 0.0, %v4099
        %v4101 = vpop.f32.mrf.mxu0
        %v4102 = vadd.f32 0.0, %v4101
        %4103 = vdwg.mxu0
        %v4104 = vadd.f32 %v3532, %v4065
        %v4105 = vadd.f32 %v3533, %v4067
        %v4106 = vadd.f32 %v3534, %v4070
        %v4107 = vadd.f32 %v3535, %v4072
        %v4108 = vadd.f32 %v3536, %v4075
        %v4109 = vadd.f32 %v3537, %v4077
        %v4110 = vadd.f32 %v3538, %v4080
        %v4111 = vadd.f32 %v3539, %v4082
        %v4112 = vadd.f32 %v3540, %v4085
        %v4113 = vadd.f32 %v3541, %v4087
        %v4114 = vadd.f32 %v3542, %v4090
        %v4115 = vadd.f32 %v3543, %v4092
        %v4116 = vadd.f32 %v3544, %v4095
        %v4117 = vadd.f32 %v3545, %v4097
        %v4118 = vadd.f32 %v3546, %v4100
        %v4119 = vadd.f32 %v3547, %v4102
        %v4120 = vld [vmem:[%s555] sm:$0x1]
        %v4121 = vmul.f32 %v4104, %v4104
        %v4122 = vmul.f32 %v4105, %v4105
        %v4123 = vmul.f32 %v4106, %v4106
        %v4124 = vmul.f32 %v4107, %v4107
        %v4125 = vmul.f32 %v4108, %v4108
        %v4126 = vmul.f32 %v4109, %v4109
        %v4127 = vmul.f32 %v4110, %v4110
        %v4128 = vmul.f32 %v4111, %v4111
        %v4129 = vmul.f32 %v4112, %v4112
        %v4130 = vmul.f32 %v4113, %v4113
        %v4131 = vmul.f32 %v4114, %v4114
        %v4132 = vmul.f32 %v4115, %v4115
        %v4133 = vmul.f32 %v4116, %v4116
        %v4134 = vmul.f32 %v4117, %v4117
        %v4135 = vmul.f32 %v4118, %v4118
        %v4136 = vmul.f32 %v4119, %v4119
        %4137 = vadd.xlane.f32.xlu0 %v4121
        %v4138 = vpop.xlane.xlu0 %4137
        %4139 = vadd.xlane.f32.xlu0 %v4122
        %v4140 = vpop.xlane.xlu0 %4139
        %4141 = vadd.xlane.f32.xlu0 %v4123
        %v4142 = vpop.xlane.xlu0 %4141
        %4143 = vadd.xlane.f32.xlu0 %v4124
        %v4144 = vpop.xlane.xlu0 %4143
        %4145 = vadd.xlane.f32.xlu0 %v4125
        %v4146 = vpop.xlane.xlu0 %4145
        %4147 = vadd.xlane.f32.xlu0 %v4126
        %v4148 = vpop.xlane.xlu0 %4147
        %4149 = vadd.xlane.f32.xlu0 %v4127
        %v4150 = vpop.xlane.xlu0 %4149
        %4151 = vadd.xlane.f32.xlu0 %v4128
        %v4152 = vpop.xlane.xlu0 %4151
        %4153 = vadd.xlane.f32.xlu0 %v4129
        %v4154 = vpop.xlane.xlu0 %4153
        %4155 = vadd.xlane.f32.xlu0 %v4130
        %v4156 = vpop.xlane.xlu0 %4155
        %4157 = vadd.xlane.f32.xlu0 %v4131
        %v4158 = vpop.xlane.xlu0 %4157
        %4159 = vadd.xlane.f32.xlu0 %v4132
        %v4160 = vpop.xlane.xlu0 %4159
        %4161 = vadd.xlane.f32.xlu0 %v4133
        %v4162 = vpop.xlane.xlu0 %4161
        %4163 = vadd.xlane.f32.xlu0 %v4134
        %v4164 = vpop.xlane.xlu0 %4163
        %4165 = vadd.xlane.f32.xlu0 %v4135
        %v4166 = vpop.xlane.xlu0 %4165
        %4167 = vadd.xlane.f32.xlu0 %v4136
        %v4168 = vpop.xlane.xlu0 %4167
        %v4169 = vmul.f32 %v4138, %v759
        %v4170 = vmul.f32 %v4140, %v759
        %v4171 = vmul.f32 %v4142, %v759
        %v4172 = vmul.f32 %v4144, %v759
        %v4173 = vmul.f32 %v4146, %v759
        %v4174 = vmul.f32 %v4148, %v759
        %v4175 = vmul.f32 %v4150, %v759
        %v4176 = vmul.f32 %v4152, %v759
        %v4177 = vmul.f32 %v4154, %v759
        %v4178 = vmul.f32 %v4156, %v759
        %v4179 = vmul.f32 %v4158, %v759
        %v4180 = vmul.f32 %v4160, %v759
        %v4181 = vmul.f32 %v4162, %v759
        %v4182 = vmul.f32 %v4164, %v759
        %v4183 = vmul.f32 %v4166, %v759
        %v4184 = vmul.f32 %v4168, %v759
        %v4185 = vadd.f32 %v4169, 1e-05
        %v4186 = vadd.f32 %v4170, 1e-05
        %v4187 = vadd.f32 %v4171, 1e-05
        %v4188 = vadd.f32 %v4172, 1e-05
        %v4189 = vadd.f32 %v4173, 1e-05
        %v4190 = vadd.f32 %v4174, 1e-05
        %v4191 = vadd.f32 %v4175, 1e-05
        %v4192 = vadd.f32 %v4176, 1e-05
        %v4193 = vadd.f32 %v4177, 1e-05
        %v4194 = vadd.f32 %v4178, 1e-05
        %v4195 = vadd.f32 %v4179, 1e-05
        %v4196 = vadd.f32 %v4180, 1e-05
        %v4197 = vadd.f32 %v4181, 1e-05
        %v4198 = vadd.f32 %v4182, 1e-05
        %v4199 = vadd.f32 %v4183, 1e-05
        %v4200 = vadd.f32 %v4184, 1e-05
        %v4201 = vrsqrt.pop %v4185
        %v4202 = vmul.f32 %v4201, %v4185
        %v4203 = vmul.f32 %v4202, %v4201
        %v4204 = vmul.f32 0.5, %v4203
        %v4205 = vsub.f32 1.5, %v4204
        %v4206 = vmul.f32 %v4201, %v4205
        %vm4207 = vweird.f32 %v4185
        %vm4208 = vweird.f32 %v4201
        %vm4209 = vmor %vm4207, %vm4208
        %v4210 = vsel %vm4209, %v4201, %v4206
        %v4211 = vrsqrt.pop %v4186
        %v4212 = vmul.f32 %v4211, %v4186
        %v4213 = vmul.f32 %v4212, %v4211
        %v4214 = vmul.f32 0.5, %v4213
        %v4215 = vsub.f32 1.5, %v4214
        %v4216 = vmul.f32 %v4211, %v4215
        %vm4217 = vweird.f32 %v4186
        %vm4218 = vweird.f32 %v4211
        %vm4219 = vmor %vm4217, %vm4218
        %v4220 = vsel %vm4219, %v4211, %v4216
        %v4221 = vrsqrt.pop %v4187
        %v4222 = vmul.f32 %v4221, %v4187
        %v4223 = vmul.f32 %v4222, %v4221
        %v4224 = vmul.f32 0.5, %v4223
        %v4225 = vsub.f32 1.5, %v4224
        %v4226 = vmul.f32 %v4221, %v4225
        %vm4227 = vweird.f32 %v4187
        %vm4228 = vweird.f32 %v4221
        %vm4229 = vmor %vm4227, %vm4228
        %v4230 = vsel %vm4229, %v4221, %v4226
        %v4231 = vrsqrt.pop %v4188
        %v4232 = vmul.f32 %v4231, %v4188
        %v4233 = vmul.f32 %v4232, %v4231
        %v4234 = vmul.f32 0.5, %v4233
        %v4235 = vsub.f32 1.5, %v4234
        %v4236 = vmul.f32 %v4231, %v4235
        %vm4237 = vweird.f32 %v4188
        %vm4238 = vweird.f32 %v4231
        %vm4239 = vmor %vm4237, %vm4238
        %v4240 = vsel %vm4239, %v4231, %v4236
        %v4241 = vrsqrt.pop %v4189
        %v4242 = vmul.f32 %v4241, %v4189
        %v4243 = vmul.f32 %v4242, %v4241
        %v4244 = vmul.f32 0.5, %v4243
        %v4245 = vsub.f32 1.5, %v4244
        %v4246 = vmul.f32 %v4241, %v4245
        %vm4247 = vweird.f32 %v4189
        %vm4248 = vweird.f32 %v4241
        %vm4249 = vmor %vm4247, %vm4248
        %v4250 = vsel %vm4249, %v4241, %v4246
        %v4251 = vrsqrt.pop %v4190
        %v4252 = vmul.f32 %v4251, %v4190
        %v4253 = vmul.f32 %v4252, %v4251
        %v4254 = vmul.f32 0.5, %v4253
        %v4255 = vsub.f32 1.5, %v4254
        %v4256 = vmul.f32 %v4251, %v4255
        %vm4257 = vweird.f32 %v4190
        %vm4258 = vweird.f32 %v4251
        %vm4259 = vmor %vm4257, %vm4258
        %v4260 = vsel %vm4259, %v4251, %v4256
        %v4261 = vrsqrt.pop %v4191
        %v4262 = vmul.f32 %v4261, %v4191
        %v4263 = vmul.f32 %v4262, %v4261
        %v4264 = vmul.f32 0.5, %v4263
        %v4265 = vsub.f32 1.5, %v4264
        %v4266 = vmul.f32 %v4261, %v4265
        %vm4267 = vweird.f32 %v4191
        %vm4268 = vweird.f32 %v4261
        %vm4269 = vmor %vm4267, %vm4268
        %v4270 = vsel %vm4269, %v4261, %v4266
        %v4271 = vrsqrt.pop %v4192
        %v4272 = vmul.f32 %v4271, %v4192
        %v4273 = vmul.f32 %v4272, %v4271
        %v4274 = vmul.f32 0.5, %v4273
        %v4275 = vsub.f32 1.5, %v4274
        %v4276 = vmul.f32 %v4271, %v4275
        %vm4277 = vweird.f32 %v4192
        %vm4278 = vweird.f32 %v4271
        %vm4279 = vmor %vm4277, %vm4278
        %v4280 = vsel %vm4279, %v4271, %v4276
        %v4281 = vrsqrt.pop %v4193
        %v4282 = vmul.f32 %v4281, %v4193
        %v4283 = vmul.f32 %v4282, %v4281
        %v4284 = vmul.f32 0.5, %v4283
        %v4285 = vsub.f32 1.5, %v4284
        %v4286 = vmul.f32 %v4281, %v4285
        %vm4287 = vweird.f32 %v4193
        %vm4288 = vweird.f32 %v4281
        %vm4289 = vmor %vm4287, %vm4288
        %v4290 = vsel %vm4289, %v4281, %v4286
        %v4291 = vrsqrt.pop %v4194
        %v4292 = vmul.f32 %v4291, %v4194
        %v4293 = vmul.f32 %v4292, %v4291
        %v4294 = vmul.f32 0.5, %v4293
        %v4295 = vsub.f32 1.5, %v4294
        %v4296 = vmul.f32 %v4291, %v4295
        %vm4297 = vweird.f32 %v4194
        %vm4298 = vweird.f32 %v4291
        %vm4299 = vmor %vm4297, %vm4298
        %v4300 = vsel %vm4299, %v4291, %v4296
        %v4301 = vrsqrt.pop %v4195
        %v4302 = vmul.f32 %v4301, %v4195
        %v4303 = vmul.f32 %v4302, %v4301
        %v4304 = vmul.f32 0.5, %v4303
        %v4305 = vsub.f32 1.5, %v4304
        %v4306 = vmul.f32 %v4301, %v4305
        %vm4307 = vweird.f32 %v4195
        %vm4308 = vweird.f32 %v4301
        %vm4309 = vmor %vm4307, %vm4308
        %v4310 = vsel %vm4309, %v4301, %v4306
        %v4311 = vrsqrt.pop %v4196
        %v4312 = vmul.f32 %v4311, %v4196
        %v4313 = vmul.f32 %v4312, %v4311
        %v4314 = vmul.f32 0.5, %v4313
        %v4315 = vsub.f32 1.5, %v4314
        %v4316 = vmul.f32 %v4311, %v4315
        %vm4317 = vweird.f32 %v4196
        %vm4318 = vweird.f32 %v4311
        %vm4319 = vmor %vm4317, %vm4318
        %v4320 = vsel %vm4319, %v4311, %v4316
        %v4321 = vrsqrt.pop %v4197
        %v4322 = vmul.f32 %v4321, %v4197
        %v4323 = vmul.f32 %v4322, %v4321
        %v4324 = vmul.f32 0.5, %v4323
        %v4325 = vsub.f32 1.5, %v4324
        %v4326 = vmul.f32 %v4321, %v4325
        %vm4327 = vweird.f32 %v4197
        %vm4328 = vweird.f32 %v4321
        %vm4329 = vmor %vm4327, %vm4328
        %v4330 = vsel %vm4329, %v4321, %v4326
        %v4331 = vrsqrt.pop %v4198
        %v4332 = vmul.f32 %v4331, %v4198
        %v4333 = vmul.f32 %v4332, %v4331
        %v4334 = vmul.f32 0.5, %v4333
        %v4335 = vsub.f32 1.5, %v4334
        %v4336 = vmul.f32 %v4331, %v4335
        %vm4337 = vweird.f32 %v4198
        %vm4338 = vweird.f32 %v4331
        %vm4339 = vmor %vm4337, %vm4338
        %v4340 = vsel %vm4339, %v4331, %v4336
        %v4341 = vrsqrt.pop %v4199
        %v4342 = vmul.f32 %v4341, %v4199
        %v4343 = vmul.f32 %v4342, %v4341
        %v4344 = vmul.f32 0.5, %v4343
        %v4345 = vsub.f32 1.5, %v4344
        %v4346 = vmul.f32 %v4341, %v4345
        %vm4347 = vweird.f32 %v4199
        %vm4348 = vweird.f32 %v4341
        %vm4349 = vmor %vm4347, %vm4348
        %v4350 = vsel %vm4349, %v4341, %v4346
        %v4351 = vrsqrt.pop %v4200
        %v4352 = vmul.f32 %v4351, %v4200
        %v4353 = vmul.f32 %v4352, %v4351
        %v4354 = vmul.f32 0.5, %v4353
        %v4355 = vsub.f32 1.5, %v4354
        %v4356 = vmul.f32 %v4351, %v4355
        %vm4357 = vweird.f32 %v4200
        %vm4358 = vweird.f32 %v4351
        %vm4359 = vmor %vm4357, %vm4358
        %v4360 = vsel %vm4359, %v4351, %v4356
        %v4361 = vmul.f32 %v4104, %v4210
        %v4362 = vmul.f32 %v4105, %v4220
        %v4363 = vmul.f32 %v4106, %v4230
        %v4364 = vmul.f32 %v4107, %v4240
        %v4365 = vmul.f32 %v4108, %v4250
        %v4366 = vmul.f32 %v4109, %v4260
        %v4367 = vmul.f32 %v4110, %v4270
        %v4368 = vmul.f32 %v4111, %v4280
        %v4369 = vmul.f32 %v4112, %v4290
        %v4370 = vmul.f32 %v4113, %v4300
        %v4371 = vmul.f32 %v4114, %v4310
        %v4372 = vmul.f32 %v4115, %v4320
        %v4373 = vmul.f32 %v4116, %v4330
        %v4374 = vmul.f32 %v4117, %v4340
        %v4375 = vmul.f32 %v4118, %v4350
        %v4376 = vmul.f32 %v4119, %v4360
        %v4378 = vperm.slane %v4120, 0
        %v4380 = vmul.f32 %v4361, %v4378
        %v4381 = vmul.f32 %v4362, %v4378
        %v4382 = vmul.f32 %v4363, %v4378
        %v4383 = vmul.f32 %v4364, %v4378
        %v4384 = vmul.f32 %v4365, %v4378
        %v4385 = vmul.f32 %v4366, %v4378
        %v4386 = vmul.f32 %v4367, %v4378
        %v4387 = vmul.f32 %v4368, %v4378
        %v4388 = vmul.f32 %v4369, %v4378
        %v4389 = vmul.f32 %v4370, %v4378
        %v4390 = vmul.f32 %v4371, %v4378
        %v4391 = vmul.f32 %v4372, %v4378
        %v4392 = vmul.f32 %v4373, %v4378
        %v4393 = vmul.f32 %v4374, %v4378
        %v4394 = vmul.f32 %v4375, %v4378
        %v4395 = vmul.f32 %v4376, %v4378
        %v4396 = vpack.c.bf16 %v4380, %v4380
        %v4397 = vpack.c.bf16 %v4381, %v4381
        %v4398 = vpack.c.bf16 %v4382, %v4382
        %v4399 = vpack.c.bf16 %v4383, %v4383
        %v4400 = vpack.c.bf16 %v4384, %v4384
        %v4401 = vpack.c.bf16 %v4385, %v4385
        %v4402 = vpack.c.bf16 %v4386, %v4386
        %v4403 = vpack.c.bf16 %v4387, %v4387
        %v4404 = vpack.c.bf16 %v4388, %v4388
        %v4405 = vpack.c.bf16 %v4389, %v4389
        %v4406 = vpack.c.bf16 %v4390, %v4390
        %v4407 = vpack.c.bf16 %v4391, %v4391
        %v4408 = vpack.c.bf16 %v4392, %v4392
        %v4409 = vpack.c.bf16 %v4393, %v4393
        %v4410 = vpack.c.bf16 %v4394, %v4394
        %v4411 = vpack.c.bf16 %v4395, %v4395
        %v4412 = vld [vmem:[%s565] sm:$0xff]
        %v4413 = vld [vmem:[%s565 + $0x8] sm:$0xff]
        %v4414 = vld [vmem:[%s565 + $0x10] sm:$0xff]
        %v4415 = vld [vmem:[%s565 + $0x18] sm:$0xff]
        %v4416 = vld [vmem:[%s565 + $0x20] sm:$0xff]
        %v4417 = vld [vmem:[%s565 + $0x28] sm:$0xff]
        %v4418 = vld [vmem:[%s565 + $0x30] sm:$0xff]
        %v4419 = vld [vmem:[%s565 + $0x38] sm:$0xff]
        %v4420 = vld [vmem:[%s565 + $0x40] sm:$0xff]
        %v4421 = vld [vmem:[%s565 + $0x48] sm:$0xff]
        %v4422 = vld [vmem:[%s565 + $0x50] sm:$0xff]
        %v4423 = vld [vmem:[%s565 + $0x58] sm:$0xff]
        %v4424 = vld [vmem:[%s565 + $0x60] sm:$0xff]
        %v4425 = vld [vmem:[%s565 + $0x68] sm:$0xff]
        %v4426 = vld [vmem:[%s565 + $0x70] sm:$0xff]
        %v4427 = vld [vmem:[%s565 + $0x78] sm:$0xff]
        %v4428 = vld [vmem:[%s565 + $0x80] sm:$0xff]
        %v4429 = vld [vmem:[%s565 + $0x88] sm:$0xff]
        %v4430 = vld [vmem:[%s565 + $0x90] sm:$0xff]
        %v4431 = vld [vmem:[%s565 + $0x98] sm:$0xff]
        %v4432 = vld [vmem:[%s565 + $0xa0] sm:$0xff]
        %v4433 = vld [vmem:[%s565 + $0xa8] sm:$0xff]
        %v4434 = vld [vmem:[%s565 + $0xb0] sm:$0xff]
        %v4435 = vld [vmem:[%s565 + $0xb8] sm:$0xff]
        %v4436 = vld [vmem:[%s565 + $0xc0] sm:$0xff]
        %v4437 = vld [vmem:[%s565 + $0xc8] sm:$0xff]
        %v4438 = vld [vmem:[%s565 + $0xd0] sm:$0xff]
        %v4439 = vld [vmem:[%s565 + $0xd8] sm:$0xff]
        %v4440 = vld [vmem:[%s565 + $0xe0] sm:$0xff]
        %v4441 = vld [vmem:[%s565 + $0xe8] sm:$0xff]
        %v4442 = vld [vmem:[%s565 + $0xf0] sm:$0xff]
        %v4443 = vld [vmem:[%s565 + $0xf8] sm:$0xff]
        %v4460 = vunpack.c.l.b16 %v4396
        %v4461 = vunpack.c.l.b16 %v4397
        %v4462 = vunpack.c.l.b16 %v4398
        %v4463 = vunpack.c.l.b16 %v4399
        %v4464 = vunpack.c.l.b16 %v4400
        %v4465 = vunpack.c.l.b16 %v4401
        %v4466 = vunpack.c.l.b16 %v4402
        %v4467 = vunpack.c.l.b16 %v4403
        %v4468 = vunpack.c.l.b16 %v4404
        %v4469 = vunpack.c.l.b16 %v4405
        %v4470 = vunpack.c.l.b16 %v4406
        %v4471 = vunpack.c.l.b16 %v4407
        %v4472 = vunpack.c.l.b16 %v4408
        %v4473 = vunpack.c.l.b16 %v4409
        %v4474 = vunpack.c.l.b16 %v4410
        %v4475 = vunpack.c.l.b16 %v4411
        %v4476 = vpack.c.b16 %v4461, %v4460
        %v4477 = vpack.c.b16 %v4463, %v4462
        %v4478 = vpack.c.b16 %v4465, %v4464
        %v4479 = vpack.c.b16 %v4467, %v4466
        %v4480 = vpack.c.b16 %v4469, %v4468
        %v4481 = vpack.c.b16 %v4471, %v4470
        %v4482 = vpack.c.b16 %v4473, %v4472
        %v4483 = vpack.c.b16 %v4475, %v4474
        %v4524 = vunpack.c.l.b16 %v4412
        %v4525 = vunpack.c.h.b16 %v4412
        %v4526 = vunpack.c.l.b16 %v4413
        %v4527 = vunpack.c.h.b16 %v4413
        %v4528 = vunpack.c.l.b16 %v4414
        %v4529 = vunpack.c.h.b16 %v4414
        %v4530 = vunpack.c.l.b16 %v4415
        %v4531 = vunpack.c.h.b16 %v4415
        %v4532 = vunpack.c.l.b16 %v4416
        %v4533 = vunpack.c.h.b16 %v4416
        %v4534 = vunpack.c.l.b16 %v4417
        %v4535 = vunpack.c.h.b16 %v4417
        %v4536 = vunpack.c.l.b16 %v4418
        %v4537 = vunpack.c.h.b16 %v4418
        %v4538 = vunpack.c.l.b16 %v4419
        %v4539 = vunpack.c.h.b16 %v4419
        %v4540 = vunpack.c.l.b16 %v4420
        %v4541 = vunpack.c.h.b16 %v4420
        %v4542 = vunpack.c.l.b16 %v4421
        %v4543 = vunpack.c.h.b16 %v4421
        %v4544 = vunpack.c.l.b16 %v4422
        %v4545 = vunpack.c.h.b16 %v4422
        %v4546 = vunpack.c.l.b16 %v4423
        %v4547 = vunpack.c.h.b16 %v4423
        %v4548 = vunpack.c.l.b16 %v4424
        %v4549 = vunpack.c.h.b16 %v4424
        %v4550 = vunpack.c.l.b16 %v4425
        %v4551 = vunpack.c.h.b16 %v4425
        %v4552 = vunpack.c.l.b16 %v4426
        %v4553 = vunpack.c.h.b16 %v4426
        %v4554 = vunpack.c.l.b16 %v4427
        %v4555 = vunpack.c.h.b16 %v4427
        %v4556 = vunpack.c.l.b16 %v4428
        %v4557 = vunpack.c.h.b16 %v4428
        %v4558 = vunpack.c.l.b16 %v4429
        %v4559 = vunpack.c.h.b16 %v4429
        %v4560 = vunpack.c.l.b16 %v4430
        %v4561 = vunpack.c.h.b16 %v4430
        %v4562 = vunpack.c.l.b16 %v4431
        %v4563 = vunpack.c.h.b16 %v4431
        %v4564 = vunpack.c.l.b16 %v4432
        %v4565 = vunpack.c.h.b16 %v4432
        %v4566 = vunpack.c.l.b16 %v4433
        %v4567 = vunpack.c.h.b16 %v4433
        %v4568 = vunpack.c.l.b16 %v4434
        %v4569 = vunpack.c.h.b16 %v4434
        %v4570 = vunpack.c.l.b16 %v4435
        %v4571 = vunpack.c.h.b16 %v4435
        %v4572 = vunpack.c.l.b16 %v4436
        %v4573 = vunpack.c.h.b16 %v4436
        %v4574 = vunpack.c.l.b16 %v4437
        %v4575 = vunpack.c.h.b16 %v4437
        %v4576 = vunpack.c.l.b16 %v4438
        %v4577 = vunpack.c.h.b16 %v4438
        %v4578 = vunpack.c.l.b16 %v4439
        %v4579 = vunpack.c.h.b16 %v4439
        %v4580 = vunpack.c.l.b16 %v4440
        %v4581 = vunpack.c.h.b16 %v4440
        %v4582 = vunpack.c.l.b16 %v4441
        %v4583 = vunpack.c.h.b16 %v4441
        %v4584 = vunpack.c.l.b16 %v4442
        %v4585 = vunpack.c.h.b16 %v4442
        %v4586 = vunpack.c.l.b16 %v4443
        %v4587 = vunpack.c.h.b16 %v4443
        %v4588 = vpack.c.b16 %v4528, %v4524
        %v4589 = vpack.c.b16 %v4529, %v4525
        %v4590 = vpack.c.b16 %v4530, %v4526
        %v4591 = vpack.c.b16 %v4531, %v4527
        %v4592 = vpack.c.b16 %v4536, %v4532
        %v4593 = vpack.c.b16 %v4537, %v4533
        %v4594 = vpack.c.b16 %v4538, %v4534
        %v4595 = vpack.c.b16 %v4539, %v4535
        %v4596 = vpack.c.b16 %v4544, %v4540
        %v4597 = vpack.c.b16 %v4545, %v4541
        %v4598 = vpack.c.b16 %v4546, %v4542
        %v4599 = vpack.c.b16 %v4547, %v4543
        %v4600 = vpack.c.b16 %v4552, %v4548
        %v4601 = vpack.c.b16 %v4553, %v4549
        %v4602 = vpack.c.b16 %v4554, %v4550
        %v4603 = vpack.c.b16 %v4555, %v4551
        %v4604 = vpack.c.b16 %v4560, %v4556
        %v4605 = vpack.c.b16 %v4561, %v4557
        %v4606 = vpack.c.b16 %v4562, %v4558
        %v4607 = vpack.c.b16 %v4563, %v4559
        %v4608 = vpack.c.b16 %v4568, %v4564
        %v4609 = vpack.c.b16 %v4569, %v4565
        %v4610 = vpack.c.b16 %v4570, %v4566
        %v4611 = vpack.c.b16 %v4571, %v4567
        %v4612 = vpack.c.b16 %v4576, %v4572
        %v4613 = vpack.c.b16 %v4577, %v4573
        %v4614 = vpack.c.b16 %v4578, %v4574
        %v4615 = vpack.c.b16 %v4579, %v4575
        %v4616 = vpack.c.b16 %v4584, %v4580
        %v4617 = vpack.c.b16 %v4585, %v4581
        %v4618 = vpack.c.b16 %v4586, %v4582
        %v4619 = vpack.c.b16 %v4587, %v4583
        %4652 = vmatpush.bf16.msra.mxu0 %v4616
        %4653 = vmatpush.bf16.msra.mxu0 %v4612
        %4654 = vmatpush.bf16.msra.mxu0 %v4608
        %4655 = vmatpush.bf16.msra.mxu0 %v4604
        %4656 = vmatpush.bf16.msra.mxu0 %v4600
        %4657 = vmatpush.bf16.msra.mxu0 %v4596
        %4658 = vmatpush.bf16.msra.mxu0 %v4592
        %4659 = vmatpush.bf16.msra.mxu0 %v4588
        %4660 = vmatmul.bf16.gmra.mxu0 %v4476
        %v4661 = vpop.f32.mrf.mxu0
        %v4662 = vadd.f32 0.0, %v4661
        %v4663 = vpop.f32.mrf.mxu0
        %v4664 = vadd.f32 0.0, %v4663
        %4665 = vmatmul.bf16.gmra.mxu0 %v4477
        %v4666 = vpop.f32.mrf.mxu0
        %v4667 = vadd.f32 0.0, %v4666
        %v4668 = vpop.f32.mrf.mxu0
        %v4669 = vadd.f32 0.0, %v4668
        %4670 = vmatmul.bf16.gmra.mxu0 %v4478
        %v4671 = vpop.f32.mrf.mxu0
        %v4672 = vadd.f32 0.0, %v4671
        %v4673 = vpop.f32.mrf.mxu0
        %v4674 = vadd.f32 0.0, %v4673
        %4675 = vmatmul.bf16.gmra.mxu0 %v4479
        %v4676 = vpop.f32.mrf.mxu0
        %v4677 = vadd.f32 0.0, %v4676
        %v4678 = vpop.f32.mrf.mxu0
        %v4679 = vadd.f32 0.0, %v4678
        %4680 = vmatmul.bf16.gmra.mxu0 %v4480
        %v4681 = vpop.f32.mrf.mxu0
        %v4682 = vadd.f32 0.0, %v4681
        %v4683 = vpop.f32.mrf.mxu0
        %v4684 = vadd.f32 0.0, %v4683
        %4685 = vmatmul.bf16.gmra.mxu0 %v4481
        %v4686 = vpop.f32.mrf.mxu0
        %v4687 = vadd.f32 0.0, %v4686
        %v4688 = vpop.f32.mrf.mxu0
        %v4689 = vadd.f32 0.0, %v4688
        %4690 = vmatmul.bf16.gmra.mxu0 %v4482
        %v4691 = vpop.f32.mrf.mxu0
        %v4692 = vadd.f32 0.0, %v4691
        %v4693 = vpop.f32.mrf.mxu0
        %v4694 = vadd.f32 0.0, %v4693
        %4695 = vmatmul.bf16.gmra.mxu0 %v4483
        %v4696 = vpop.f32.mrf.mxu0
        %v4697 = vadd.f32 0.0, %v4696
        %v4698 = vpop.f32.mrf.mxu0
        %v4699 = vadd.f32 0.0, %v4698
        %4700 = vdwg.mxu0
        %4701 = vmatpush.bf16.msra.mxu0 %v4617
        %4702 = vmatpush.bf16.msra.mxu0 %v4613
        %4703 = vmatpush.bf16.msra.mxu0 %v4609
        %4704 = vmatpush.bf16.msra.mxu0 %v4605
        %4705 = vmatpush.bf16.msra.mxu0 %v4601
        %4706 = vmatpush.bf16.msra.mxu0 %v4597
        %4707 = vmatpush.bf16.msra.mxu0 %v4593
        %4708 = vmatpush.bf16.msra.mxu0 %v4589
        %4709 = vmatmul.bf16.gmra.mxu0 %v4476
        %v4710 = vpop.f32.mrf.mxu0
        %v4711 = vadd.f32 0.0, %v4710
        %v4712 = vpop.f32.mrf.mxu0
        %v4713 = vadd.f32 0.0, %v4712
        %4714 = vmatmul.bf16.gmra.mxu0 %v4477
        %v4715 = vpop.f32.mrf.mxu0
        %v4716 = vadd.f32 0.0, %v4715
        %v4717 = vpop.f32.mrf.mxu0
        %v4718 = vadd.f32 0.0, %v4717
        %4719 = vmatmul.bf16.gmra.mxu0 %v4478
        %v4720 = vpop.f32.mrf.mxu0
        %v4721 = vadd.f32 0.0, %v4720
        %v4722 = vpop.f32.mrf.mxu0
        %v4723 = vadd.f32 0.0, %v4722
        %4724 = vmatmul.bf16.gmra.mxu0 %v4479
        %v4725 = vpop.f32.mrf.mxu0
        %v4726 = vadd.f32 0.0, %v4725
        %v4727 = vpop.f32.mrf.mxu0
        %v4728 = vadd.f32 0.0, %v4727
        %4729 = vmatmul.bf16.gmra.mxu0 %v4480
        %v4730 = vpop.f32.mrf.mxu0
        %v4731 = vadd.f32 0.0, %v4730
        %v4732 = vpop.f32.mrf.mxu0
        %v4733 = vadd.f32 0.0, %v4732
        %4734 = vmatmul.bf16.gmra.mxu0 %v4481
        %v4735 = vpop.f32.mrf.mxu0
        %v4736 = vadd.f32 0.0, %v4735
        %v4737 = vpop.f32.mrf.mxu0
        %v4738 = vadd.f32 0.0, %v4737
        %4739 = vmatmul.bf16.gmra.mxu0 %v4482
        %v4740 = vpop.f32.mrf.mxu0
        %v4741 = vadd.f32 0.0, %v4740
        %v4742 = vpop.f32.mrf.mxu0
        %v4743 = vadd.f32 0.0, %v4742
        %4744 = vmatmul.bf16.gmra.mxu0 %v4483
        %v4745 = vpop.f32.mrf.mxu0
        %v4746 = vadd.f32 0.0, %v4745
        %v4747 = vpop.f32.mrf.mxu0
        %v4748 = vadd.f32 0.0, %v4747
        %4749 = vdwg.mxu0
        %4750 = vmatpush.bf16.msra.mxu0 %v4618
        %4751 = vmatpush.bf16.msra.mxu0 %v4614
        %4752 = vmatpush.bf16.msra.mxu0 %v4610
        %4753 = vmatpush.bf16.msra.mxu0 %v4606
        %4754 = vmatpush.bf16.msra.mxu0 %v4602
        %4755 = vmatpush.bf16.msra.mxu0 %v4598
        %4756 = vmatpush.bf16.msra.mxu0 %v4594
        %4757 = vmatpush.bf16.msra.mxu0 %v4590
        %4758 = vmatmul.bf16.gmra.mxu0 %v4476
        %v4759 = vpop.f32.mrf.mxu0
        %v4760 = vadd.f32 0.0, %v4759
        %v4761 = vpop.f32.mrf.mxu0
        %v4762 = vadd.f32 0.0, %v4761
        %4763 = vmatmul.bf16.gmra.mxu0 %v4477
        %v4764 = vpop.f32.mrf.mxu0
        %v4765 = vadd.f32 0.0, %v4764
        %v4766 = vpop.f32.mrf.mxu0
        %v4767 = vadd.f32 0.0, %v4766
        %4768 = vmatmul.bf16.gmra.mxu0 %v4478
        %v4769 = vpop.f32.mrf.mxu0
        %v4770 = vadd.f32 0.0, %v4769
        %v4771 = vpop.f32.mrf.mxu0
        %v4772 = vadd.f32 0.0, %v4771
        %4773 = vmatmul.bf16.gmra.mxu0 %v4479
        %v4774 = vpop.f32.mrf.mxu0
        %v4775 = vadd.f32 0.0, %v4774
        %v4776 = vpop.f32.mrf.mxu0
        %v4777 = vadd.f32 0.0, %v4776
        %4778 = vmatmul.bf16.gmra.mxu0 %v4480
        %v4779 = vpop.f32.mrf.mxu0
        %v4780 = vadd.f32 0.0, %v4779
        %v4781 = vpop.f32.mrf.mxu0
        %v4782 = vadd.f32 0.0, %v4781
        %4783 = vmatmul.bf16.gmra.mxu0 %v4481
        %v4784 = vpop.f32.mrf.mxu0
        %v4785 = vadd.f32 0.0, %v4784
        %v4786 = vpop.f32.mrf.mxu0
        %v4787 = vadd.f32 0.0, %v4786
        %4788 = vmatmul.bf16.gmra.mxu0 %v4482
        %v4789 = vpop.f32.mrf.mxu0
        %v4790 = vadd.f32 0.0, %v4789
        %v4791 = vpop.f32.mrf.mxu0
        %v4792 = vadd.f32 0.0, %v4791
        %4793 = vmatmul.bf16.gmra.mxu0 %v4483
        %v4794 = vpop.f32.mrf.mxu0
        %v4795 = vadd.f32 0.0, %v4794
        %v4796 = vpop.f32.mrf.mxu0
        %v4797 = vadd.f32 0.0, %v4796
        %4798 = vdwg.mxu0
        %4799 = vmatpush.bf16.msra.mxu0 %v4619
        %4800 = vmatpush.bf16.msra.mxu0 %v4615
        %4801 = vmatpush.bf16.msra.mxu0 %v4611
        %4802 = vmatpush.bf16.msra.mxu0 %v4607
        %4803 = vmatpush.bf16.msra.mxu0 %v4603
        %4804 = vmatpush.bf16.msra.mxu0 %v4599
        %4805 = vmatpush.bf16.msra.mxu0 %v4595
        %4806 = vmatpush.bf16.msra.mxu0 %v4591
        %4807 = vmatmul.bf16.gmra.mxu0 %v4476
        %v4808 = vpop.f32.mrf.mxu0
        %v4809 = vadd.f32 0.0, %v4808
        %v4810 = vpop.f32.mrf.mxu0
        %v4811 = vadd.f32 0.0, %v4810
        %4812 = vmatmul.bf16.gmra.mxu0 %v4477
        %v4813 = vpop.f32.mrf.mxu0
        %v4814 = vadd.f32 0.0, %v4813
        %v4815 = vpop.f32.mrf.mxu0
        %v4816 = vadd.f32 0.0, %v4815
        %4817 = vmatmul.bf16.gmra.mxu0 %v4478
        %v4818 = vpop.f32.mrf.mxu0
        %v4819 = vadd.f32 0.0, %v4818
        %v4820 = vpop.f32.mrf.mxu0
        %v4821 = vadd.f32 0.0, %v4820
        %4822 = vmatmul.bf16.gmra.mxu0 %v4479
        %v4823 = vpop.f32.mrf.mxu0
        %v4824 = vadd.f32 0.0, %v4823
        %v4825 = vpop.f32.mrf.mxu0
        %v4826 = vadd.f32 0.0, %v4825
        %4827 = vmatmul.bf16.gmra.mxu0 %v4480
        %v4828 = vpop.f32.mrf.mxu0
        %v4829 = vadd.f32 0.0, %v4828
        %v4830 = vpop.f32.mrf.mxu0
        %v4831 = vadd.f32 0.0, %v4830
        %4832 = vmatmul.bf16.gmra.mxu0 %v4481
        %v4833 = vpop.f32.mrf.mxu0
        %v4834 = vadd.f32 0.0, %v4833
        %v4835 = vpop.f32.mrf.mxu0
        %v4836 = vadd.f32 0.0, %v4835
        %4837 = vmatmul.bf16.gmra.mxu0 %v4482
        %v4838 = vpop.f32.mrf.mxu0
        %v4839 = vadd.f32 0.0, %v4838
        %v4840 = vpop.f32.mrf.mxu0
        %v4841 = vadd.f32 0.0, %v4840
        %4842 = vmatmul.bf16.gmra.mxu0 %v4483
        %v4843 = vpop.f32.mrf.mxu0
        %v4844 = vadd.f32 0.0, %v4843
        %v4845 = vpop.f32.mrf.mxu0
        %v4846 = vadd.f32 0.0, %v4845
        %4847 = vdwg.mxu0
        %v4848 = vxor.u32 %v4662, 2147483648
        %v4849 = vxor.u32 %v4711, 2147483648
        %v4850 = vxor.u32 %v4664, 2147483648
        %v4851 = vxor.u32 %v4713, 2147483648
        %v4852 = vxor.u32 %v4667, 2147483648
        %v4853 = vxor.u32 %v4716, 2147483648
        %v4854 = vxor.u32 %v4669, 2147483648
        %v4855 = vxor.u32 %v4718, 2147483648
        %v4856 = vxor.u32 %v4672, 2147483648
        %v4857 = vxor.u32 %v4721, 2147483648
        %v4858 = vxor.u32 %v4674, 2147483648
        %v4859 = vxor.u32 %v4723, 2147483648
        %v4860 = vxor.u32 %v4677, 2147483648
        %v4861 = vxor.u32 %v4726, 2147483648
        %v4862 = vxor.u32 %v4679, 2147483648
        %v4863 = vxor.u32 %v4728, 2147483648
        %v4864 = vxor.u32 %v4682, 2147483648
        %v4865 = vxor.u32 %v4731, 2147483648
        %v4866 = vxor.u32 %v4684, 2147483648
        %v4867 = vxor.u32 %v4733, 2147483648
        %v4868 = vxor.u32 %v4687, 2147483648
        %v4869 = vxor.u32 %v4736, 2147483648
        %v4870 = vxor.u32 %v4689, 2147483648
        %v4871 = vxor.u32 %v4738, 2147483648
        %v4872 = vxor.u32 %v4692, 2147483648
        %v4873 = vxor.u32 %v4741, 2147483648
        %v4874 = vxor.u32 %v4694, 2147483648
        %v4875 = vxor.u32 %v4743, 2147483648
        %v4876 = vxor.u32 %v4697, 2147483648
        %v4877 = vxor.u32 %v4746, 2147483648
        %v4878 = vxor.u32 %v4699, 2147483648
        %v4879 = vxor.u32 %v4748, 2147483648
        %v4880 = vmul.f32 %v4848, 1.442695
        %v4881 = vpow.pop %v4880
        %v4882 = vmul.f32 %v4849, 1.442695
        %v4883 = vpow.pop %v4882
        %v4884 = vmul.f32 %v4850, 1.442695
        %v4885 = vpow.pop %v4884
        %v4886 = vmul.f32 %v4851, 1.442695
        %v4887 = vpow.pop %v4886
        %v4888 = vmul.f32 %v4852, 1.442695
        %v4889 = vpow.pop %v4888
        %v4890 = vmul.f32 %v4853, 1.442695
        %v4891 = vpow.pop %v4890
        %v4892 = vmul.f32 %v4854, 1.442695
        %v4893 = vpow.pop %v4892
        %v4894 = vmul.f32 %v4855, 1.442695
        %v4895 = vpow.pop %v4894
        %v4896 = vmul.f32 %v4856, 1.442695
        %v4897 = vpow.pop %v4896
        %v4898 = vmul.f32 %v4857, 1.442695
        %v4899 = vpow.pop %v4898
        %v4900 = vmul.f32 %v4858, 1.442695
        %v4901 = vpow.pop %v4900
        %v4902 = vmul.f32 %v4859, 1.442695
        %v4903 = vpow.pop %v4902
        %v4904 = vmul.f32 %v4860, 1.442695
        %v4905 = vpow.pop %v4904
        %v4906 = vmul.f32 %v4861, 1.442695
        %v4907 = vpow.pop %v4906
        %v4908 = vmul.f32 %v4862, 1.442695
        %v4909 = vpow.pop %v4908
        %v4910 = vmul.f32 %v4863, 1.442695
        %v4911 = vpow.pop %v4910
        %v4912 = vmul.f32 %v4864, 1.442695
        %v4913 = vpow.pop %v4912
        %v4914 = vmul.f32 %v4865, 1.442695
        %v4915 = vpow.pop %v4914
        %v4916 = vmul.f32 %v4866, 1.442695
        %v4917 = vpow.pop %v4916
        %v4918 = vmul.f32 %v4867, 1.442695
        %v4919 = vpow.pop %v4918
        %v4920 = vmul.f32 %v4868, 1.442695
        %v4921 = vpow.pop %v4920
        %v4922 = vmul.f32 %v4869, 1.442695
        %v4923 = vpow.pop %v4922
        %v4924 = vmul.f32 %v4870, 1.442695
        %v4925 = vpow.pop %v4924
        %v4926 = vmul.f32 %v4871, 1.442695
        %v4927 = vpow.pop %v4926
        %v4928 = vmul.f32 %v4872, 1.442695
        %v4929 = vpow.pop %v4928
        %v4930 = vmul.f32 %v4873, 1.442695
        %v4931 = vpow.pop %v4930
        %v4932 = vmul.f32 %v4874, 1.442695
        %v4933 = vpow.pop %v4932
        %v4934 = vmul.f32 %v4875, 1.442695
        %v4935 = vpow.pop %v4934
        %v4936 = vmul.f32 %v4876, 1.442695
        %v4937 = vpow.pop %v4936
        %v4938 = vmul.f32 %v4877, 1.442695
        %v4939 = vpow.pop %v4938
        %v4940 = vmul.f32 %v4878, 1.442695
        %v4941 = vpow.pop %v4940
        %v4942 = vmul.f32 %v4879, 1.442695
        %v4943 = vpow.pop %v4942
        %v4944 = vadd.f32 %v4881, 1.0
        %v4945 = vadd.f32 %v4883, 1.0
        %v4946 = vadd.f32 %v4885, 1.0
        %v4947 = vadd.f32 %v4887, 1.0
        %v4948 = vadd.f32 %v4889, 1.0
        %v4949 = vadd.f32 %v4891, 1.0
        %v4950 = vadd.f32 %v4893, 1.0
        %v4951 = vadd.f32 %v4895, 1.0
        %v4952 = vadd.f32 %v4897, 1.0
        %v4953 = vadd.f32 %v4899, 1.0
        %v4954 = vadd.f32 %v4901, 1.0
        %v4955 = vadd.f32 %v4903, 1.0
        %v4956 = vadd.f32 %v4905, 1.0
        %v4957 = vadd.f32 %v4907, 1.0
        %v4958 = vadd.f32 %v4909, 1.0
        %v4959 = vadd.f32 %v4911, 1.0
        %v4960 = vadd.f32 %v4913, 1.0
        %v4961 = vadd.f32 %v4915, 1.0
        %v4962 = vadd.f32 %v4917, 1.0
        %v4963 = vadd.f32 %v4919, 1.0
        %v4964 = vadd.f32 %v4921, 1.0
        %v4965 = vadd.f32 %v4923, 1.0
        %v4966 = vadd.f32 %v4925, 1.0
        %v4967 = vadd.f32 %v4927, 1.0
        %v4968 = vadd.f32 %v4929, 1.0
        %v4969 = vadd.f32 %v4931, 1.0
        %v4970 = vadd.f32 %v4933, 1.0
        %v4971 = vadd.f32 %v4935, 1.0
        %v4972 = vadd.f32 %v4937, 1.0
        %v4973 = vadd.f32 %v4939, 1.0
        %v4974 = vadd.f32 %v4941, 1.0
        %v4975 = vadd.f32 %v4943, 1.0
        %v4976 = vrcp.pop %v4944
        %v4977 = vmul.f32 %v4944, %v4976
        %v4978 = vsub.f32 1.0, %v4977
        %v4979 = vmul.f32 %v4976, %v4978
        %v4980 = vadd.f32 %v4976, %v4979
        %vm4981 = vweird.f32 %v4944
        %vm4982 = vweird.f32 %v4976
        %vm4983 = vmor %vm4981, %vm4982
        %v4984 = vsel %vm4983, %v4976, %v4980
        %v4985 = vand.u32 2147483647, %v4944
        %vm4986 = vcmp.eq.f32.partialorder %v4985, 8.507059e+37
        %v4987 = vand.u32 %v4944, 2147483648
        %v4988 = vor.u32 1.1754944e-38, %v4987
        %v4989 = vsel %vm4986, %v4988, %v4984
        %v4990 = vmul.f32 1.0, %v4989
        %v4991 = vrcp.pop %v4945
        %v4992 = vmul.f32 %v4945, %v4991
        %v4993 = vsub.f32 1.0, %v4992
        %v4994 = vmul.f32 %v4991, %v4993
        %v4995 = vadd.f32 %v4991, %v4994
        %vm4996 = vweird.f32 %v4945
        %vm4997 = vweird.f32 %v4991
        %vm4998 = vmor %vm4996, %vm4997
        %v4999 = vsel %vm4998, %v4991, %v4995
        %v5000 = vand.u32 2147483647, %v4945
        %vm5001 = vcmp.eq.f32.partialorder %v5000, 8.507059e+37
        %v5002 = vand.u32 %v4945, 2147483648
        %v5003 = vor.u32 1.1754944e-38, %v5002
        %v5004 = vsel %vm5001, %v5003, %v4999
        %v5005 = vmul.f32 1.0, %v5004
        %v5006 = vrcp.pop %v4946
        %v5007 = vmul.f32 %v4946, %v5006
        %v5008 = vsub.f32 1.0, %v5007
        %v5009 = vmul.f32 %v5006, %v5008
        %v5010 = vadd.f32 %v5006, %v5009
        %vm5011 = vweird.f32 %v4946
        %vm5012 = vweird.f32 %v5006
        %vm5013 = vmor %vm5011, %vm5012
        %v5014 = vsel %vm5013, %v5006, %v5010
        %v5015 = vand.u32 2147483647, %v4946
        %vm5016 = vcmp.eq.f32.partialorder %v5015, 8.507059e+37
        %v5017 = vand.u32 %v4946, 2147483648
        %v5018 = vor.u32 1.1754944e-38, %v5017
        %v5019 = vsel %vm5016, %v5018, %v5014
        %v5020 = vmul.f32 1.0, %v5019
        %v5021 = vrcp.pop %v4947
        %v5022 = vmul.f32 %v4947, %v5021
        %v5023 = vsub.f32 1.0, %v5022
        %v5024 = vmul.f32 %v5021, %v5023
        %v5025 = vadd.f32 %v5021, %v5024
        %vm5026 = vweird.f32 %v4947
        %vm5027 = vweird.f32 %v5021
        %vm5028 = vmor %vm5026, %vm5027
        %v5029 = vsel %vm5028, %v5021, %v5025
        %v5030 = vand.u32 2147483647, %v4947
        %vm5031 = vcmp.eq.f32.partialorder %v5030, 8.507059e+37
        %v5032 = vand.u32 %v4947, 2147483648
        %v5033 = vor.u32 1.1754944e-38, %v5032
        %v5034 = vsel %vm5031, %v5033, %v5029
        %v5035 = vmul.f32 1.0, %v5034
        %v5036 = vrcp.pop %v4948
        %v5037 = vmul.f32 %v4948, %v5036
        %v5038 = vsub.f32 1.0, %v5037
        %v5039 = vmul.f32 %v5036, %v5038
        %v5040 = vadd.f32 %v5036, %v5039
        %vm5041 = vweird.f32 %v4948
        %vm5042 = vweird.f32 %v5036
        %vm5043 = vmor %vm5041, %vm5042
        %v5044 = vsel %vm5043, %v5036, %v5040
        %v5045 = vand.u32 2147483647, %v4948
        %vm5046 = vcmp.eq.f32.partialorder %v5045, 8.507059e+37
        %v5047 = vand.u32 %v4948, 2147483648
        %v5048 = vor.u32 1.1754944e-38, %v5047
        %v5049 = vsel %vm5046, %v5048, %v5044
        %v5050 = vmul.f32 1.0, %v5049
        %v5051 = vrcp.pop %v4949
        %v5052 = vmul.f32 %v4949, %v5051
        %v5053 = vsub.f32 1.0, %v5052
        %v5054 = vmul.f32 %v5051, %v5053
        %v5055 = vadd.f32 %v5051, %v5054
        %vm5056 = vweird.f32 %v4949
        %vm5057 = vweird.f32 %v5051
        %vm5058 = vmor %vm5056, %vm5057
        %v5059 = vsel %vm5058, %v5051, %v5055
        %v5060 = vand.u32 2147483647, %v4949
        %vm5061 = vcmp.eq.f32.partialorder %v5060, 8.507059e+37
        %v5062 = vand.u32 %v4949, 2147483648
        %v5063 = vor.u32 1.1754944e-38, %v5062
        %v5064 = vsel %vm5061, %v5063, %v5059
        %v5065 = vmul.f32 1.0, %v5064
        %v5066 = vrcp.pop %v4950
        %v5067 = vmul.f32 %v4950, %v5066
        %v5068 = vsub.f32 1.0, %v5067
        %v5069 = vmul.f32 %v5066, %v5068
        %v5070 = vadd.f32 %v5066, %v5069
        %vm5071 = vweird.f32 %v4950
        %vm5072 = vweird.f32 %v5066
        %vm5073 = vmor %vm5071, %vm5072
        %v5074 = vsel %vm5073, %v5066, %v5070
        %v5075 = vand.u32 2147483647, %v4950
        %vm5076 = vcmp.eq.f32.partialorder %v5075, 8.507059e+37
        %v5077 = vand.u32 %v4950, 2147483648
        %v5078 = vor.u32 1.1754944e-38, %v5077
        %v5079 = vsel %vm5076, %v5078, %v5074
        %v5080 = vmul.f32 1.0, %v5079
        %v5081 = vrcp.pop %v4951
        %v5082 = vmul.f32 %v4951, %v5081
        %v5083 = vsub.f32 1.0, %v5082
        %v5084 = vmul.f32 %v5081, %v5083
        %v5085 = vadd.f32 %v5081, %v5084
        %vm5086 = vweird.f32 %v4951
        %vm5087 = vweird.f32 %v5081
        %vm5088 = vmor %vm5086, %vm5087
        %v5089 = vsel %vm5088, %v5081, %v5085
        %v5090 = vand.u32 2147483647, %v4951
        %vm5091 = vcmp.eq.f32.partialorder %v5090, 8.507059e+37
        %v5092 = vand.u32 %v4951, 2147483648
        %v5093 = vor.u32 1.1754944e-38, %v5092
        %v5094 = vsel %vm5091, %v5093, %v5089
        %v5095 = vmul.f32 1.0, %v5094
        %v5096 = vrcp.pop %v4952
        %v5097 = vmul.f32 %v4952, %v5096
        %v5098 = vsub.f32 1.0, %v5097
        %v5099 = vmul.f32 %v5096, %v5098
        %v5100 = vadd.f32 %v5096, %v5099
        %vm5101 = vweird.f32 %v4952
        %vm5102 = vweird.f32 %v5096
        %vm5103 = vmor %vm5101, %vm5102
        %v5104 = vsel %vm5103, %v5096, %v5100
        %v5105 = vand.u32 2147483647, %v4952
        %vm5106 = vcmp.eq.f32.partialorder %v5105, 8.507059e+37
        %v5107 = vand.u32 %v4952, 2147483648
        %v5108 = vor.u32 1.1754944e-38, %v5107
        %v5109 = vsel %vm5106, %v5108, %v5104
        %v5110 = vmul.f32 1.0, %v5109
        %v5111 = vrcp.pop %v4953
        %v5112 = vmul.f32 %v4953, %v5111
        %v5113 = vsub.f32 1.0, %v5112
        %v5114 = vmul.f32 %v5111, %v5113
        %v5115 = vadd.f32 %v5111, %v5114
        %vm5116 = vweird.f32 %v4953
        %vm5117 = vweird.f32 %v5111
        %vm5118 = vmor %vm5116, %vm5117
        %v5119 = vsel %vm5118, %v5111, %v5115
        %v5120 = vand.u32 2147483647, %v4953
        %vm5121 = vcmp.eq.f32.partialorder %v5120, 8.507059e+37
        %v5122 = vand.u32 %v4953, 2147483648
        %v5123 = vor.u32 1.1754944e-38, %v5122
        %v5124 = vsel %vm5121, %v5123, %v5119
        %v5125 = vmul.f32 1.0, %v5124
        %v5126 = vrcp.pop %v4954
        %v5127 = vmul.f32 %v4954, %v5126
        %v5128 = vsub.f32 1.0, %v5127
        %v5129 = vmul.f32 %v5126, %v5128
        %v5130 = vadd.f32 %v5126, %v5129
        %vm5131 = vweird.f32 %v4954
        %vm5132 = vweird.f32 %v5126
        %vm5133 = vmor %vm5131, %vm5132
        %v5134 = vsel %vm5133, %v5126, %v5130
        %v5135 = vand.u32 2147483647, %v4954
        %vm5136 = vcmp.eq.f32.partialorder %v5135, 8.507059e+37
        %v5137 = vand.u32 %v4954, 2147483648
        %v5138 = vor.u32 1.1754944e-38, %v5137
        %v5139 = vsel %vm5136, %v5138, %v5134
        %v5140 = vmul.f32 1.0, %v5139
        %v5141 = vrcp.pop %v4955
        %v5142 = vmul.f32 %v4955, %v5141
        %v5143 = vsub.f32 1.0, %v5142
        %v5144 = vmul.f32 %v5141, %v5143
        %v5145 = vadd.f32 %v5141, %v5144
        %vm5146 = vweird.f32 %v4955
        %vm5147 = vweird.f32 %v5141
        %vm5148 = vmor %vm5146, %vm5147
        %v5149 = vsel %vm5148, %v5141, %v5145
        %v5150 = vand.u32 2147483647, %v4955
        %vm5151 = vcmp.eq.f32.partialorder %v5150, 8.507059e+37
        %v5152 = vand.u32 %v4955, 2147483648
        %v5153 = vor.u32 1.1754944e-38, %v5152
        %v5154 = vsel %vm5151, %v5153, %v5149
        %v5155 = vmul.f32 1.0, %v5154
        %v5156 = vrcp.pop %v4956
        %v5157 = vmul.f32 %v4956, %v5156
        %v5158 = vsub.f32 1.0, %v5157
        %v5159 = vmul.f32 %v5156, %v5158
        %v5160 = vadd.f32 %v5156, %v5159
        %vm5161 = vweird.f32 %v4956
        %vm5162 = vweird.f32 %v5156
        %vm5163 = vmor %vm5161, %vm5162
        %v5164 = vsel %vm5163, %v5156, %v5160
        %v5165 = vand.u32 2147483647, %v4956
        %vm5166 = vcmp.eq.f32.partialorder %v5165, 8.507059e+37
        %v5167 = vand.u32 %v4956, 2147483648
        %v5168 = vor.u32 1.1754944e-38, %v5167
        %v5169 = vsel %vm5166, %v5168, %v5164
        %v5170 = vmul.f32 1.0, %v5169
        %v5171 = vrcp.pop %v4957
        %v5172 = vmul.f32 %v4957, %v5171
        %v5173 = vsub.f32 1.0, %v5172
        %v5174 = vmul.f32 %v5171, %v5173
        %v5175 = vadd.f32 %v5171, %v5174
        %vm5176 = vweird.f32 %v4957
        %vm5177 = vweird.f32 %v5171
        %vm5178 = vmor %vm5176, %vm5177
        %v5179 = vsel %vm5178, %v5171, %v5175
        %v5180 = vand.u32 2147483647, %v4957
        %vm5181 = vcmp.eq.f32.partialorder %v5180, 8.507059e+37
        %v5182 = vand.u32 %v4957, 2147483648
        %v5183 = vor.u32 1.1754944e-38, %v5182
        %v5184 = vsel %vm5181, %v5183, %v5179
        %v5185 = vmul.f32 1.0, %v5184
        %v5186 = vrcp.pop %v4958
        %v5187 = vmul.f32 %v4958, %v5186
        %v5188 = vsub.f32 1.0, %v5187
        %v5189 = vmul.f32 %v5186, %v5188
        %v5190 = vadd.f32 %v5186, %v5189
        %vm5191 = vweird.f32 %v4958
        %vm5192 = vweird.f32 %v5186
        %vm5193 = vmor %vm5191, %vm5192
        %v5194 = vsel %vm5193, %v5186, %v5190
        %v5195 = vand.u32 2147483647, %v4958
        %vm5196 = vcmp.eq.f32.partialorder %v5195, 8.507059e+37
        %v5197 = vand.u32 %v4958, 2147483648
        %v5198 = vor.u32 1.1754944e-38, %v5197
        %v5199 = vsel %vm5196, %v5198, %v5194
        %v5200 = vmul.f32 1.0, %v5199
        %v5201 = vrcp.pop %v4959
        %v5202 = vmul.f32 %v4959, %v5201
        %v5203 = vsub.f32 1.0, %v5202
        %v5204 = vmul.f32 %v5201, %v5203
        %v5205 = vadd.f32 %v5201, %v5204
        %vm5206 = vweird.f32 %v4959
        %vm5207 = vweird.f32 %v5201
        %vm5208 = vmor %vm5206, %vm5207
        %v5209 = vsel %vm5208, %v5201, %v5205
        %v5210 = vand.u32 2147483647, %v4959
        %vm5211 = vcmp.eq.f32.partialorder %v5210, 8.507059e+37
        %v5212 = vand.u32 %v4959, 2147483648
        %v5213 = vor.u32 1.1754944e-38, %v5212
        %v5214 = vsel %vm5211, %v5213, %v5209
        %v5215 = vmul.f32 1.0, %v5214
        %v5216 = vrcp.pop %v4960
        %v5217 = vmul.f32 %v4960, %v5216
        %v5218 = vsub.f32 1.0, %v5217
        %v5219 = vmul.f32 %v5216, %v5218
        %v5220 = vadd.f32 %v5216, %v5219
        %vm5221 = vweird.f32 %v4960
        %vm5222 = vweird.f32 %v5216
        %vm5223 = vmor %vm5221, %vm5222
        %v5224 = vsel %vm5223, %v5216, %v5220
        %v5225 = vand.u32 2147483647, %v4960
        %vm5226 = vcmp.eq.f32.partialorder %v5225, 8.507059e+37
        %v5227 = vand.u32 %v4960, 2147483648
        %v5228 = vor.u32 1.1754944e-38, %v5227
        %v5229 = vsel %vm5226, %v5228, %v5224
        %v5230 = vmul.f32 1.0, %v5229
        %v5231 = vrcp.pop %v4961
        %v5232 = vmul.f32 %v4961, %v5231
        %v5233 = vsub.f32 1.0, %v5232
        %v5234 = vmul.f32 %v5231, %v5233
        %v5235 = vadd.f32 %v5231, %v5234
        %vm5236 = vweird.f32 %v4961
        %vm5237 = vweird.f32 %v5231
        %vm5238 = vmor %vm5236, %vm5237
        %v5239 = vsel %vm5238, %v5231, %v5235
        %v5240 = vand.u32 2147483647, %v4961
        %vm5241 = vcmp.eq.f32.partialorder %v5240, 8.507059e+37
        %v5242 = vand.u32 %v4961, 2147483648
        %v5243 = vor.u32 1.1754944e-38, %v5242
        %v5244 = vsel %vm5241, %v5243, %v5239
        %v5245 = vmul.f32 1.0, %v5244
        %v5246 = vrcp.pop %v4962
        %v5247 = vmul.f32 %v4962, %v5246
        %v5248 = vsub.f32 1.0, %v5247
        %v5249 = vmul.f32 %v5246, %v5248
        %v5250 = vadd.f32 %v5246, %v5249
        %vm5251 = vweird.f32 %v4962
        %vm5252 = vweird.f32 %v5246
        %vm5253 = vmor %vm5251, %vm5252
        %v5254 = vsel %vm5253, %v5246, %v5250
        %v5255 = vand.u32 2147483647, %v4962
        %vm5256 = vcmp.eq.f32.partialorder %v5255, 8.507059e+37
        %v5257 = vand.u32 %v4962, 2147483648
        %v5258 = vor.u32 1.1754944e-38, %v5257
        %v5259 = vsel %vm5256, %v5258, %v5254
        %v5260 = vmul.f32 1.0, %v5259
        %v5261 = vrcp.pop %v4963
        %v5262 = vmul.f32 %v4963, %v5261
        %v5263 = vsub.f32 1.0, %v5262
        %v5264 = vmul.f32 %v5261, %v5263
        %v5265 = vadd.f32 %v5261, %v5264
        %vm5266 = vweird.f32 %v4963
        %vm5267 = vweird.f32 %v5261
        %vm5268 = vmor %vm5266, %vm5267
        %v5269 = vsel %vm5268, %v5261, %v5265
        %v5270 = vand.u32 2147483647, %v4963
        %vm5271 = vcmp.eq.f32.partialorder %v5270, 8.507059e+37
        %v5272 = vand.u32 %v4963, 2147483648
        %v5273 = vor.u32 1.1754944e-38, %v5272
        %v5274 = vsel %vm5271, %v5273, %v5269
        %v5275 = vmul.f32 1.0, %v5274
        %v5276 = vrcp.pop %v4964
        %v5277 = vmul.f32 %v4964, %v5276
        %v5278 = vsub.f32 1.0, %v5277
        %v5279 = vmul.f32 %v5276, %v5278
        %v5280 = vadd.f32 %v5276, %v5279
        %vm5281 = vweird.f32 %v4964
        %vm5282 = vweird.f32 %v5276
        %vm5283 = vmor %vm5281, %vm5282
        %v5284 = vsel %vm5283, %v5276, %v5280
        %v5285 = vand.u32 2147483647, %v4964
        %vm5286 = vcmp.eq.f32.partialorder %v5285, 8.507059e+37
        %v5287 = vand.u32 %v4964, 2147483648
        %v5288 = vor.u32 1.1754944e-38, %v5287
        %v5289 = vsel %vm5286, %v5288, %v5284
        %v5290 = vmul.f32 1.0, %v5289
        %v5291 = vrcp.pop %v4965
        %v5292 = vmul.f32 %v4965, %v5291
        %v5293 = vsub.f32 1.0, %v5292
        %v5294 = vmul.f32 %v5291, %v5293
        %v5295 = vadd.f32 %v5291, %v5294
        %vm5296 = vweird.f32 %v4965
        %vm5297 = vweird.f32 %v5291
        %vm5298 = vmor %vm5296, %vm5297
        %v5299 = vsel %vm5298, %v5291, %v5295
        %v5300 = vand.u32 2147483647, %v4965
        %vm5301 = vcmp.eq.f32.partialorder %v5300, 8.507059e+37
        %v5302 = vand.u32 %v4965, 2147483648
        %v5303 = vor.u32 1.1754944e-38, %v5302
        %v5304 = vsel %vm5301, %v5303, %v5299
        %v5305 = vmul.f32 1.0, %v5304
        %v5306 = vrcp.pop %v4966
        %v5307 = vmul.f32 %v4966, %v5306
        %v5308 = vsub.f32 1.0, %v5307
        %v5309 = vmul.f32 %v5306, %v5308
        %v5310 = vadd.f32 %v5306, %v5309
        %vm5311 = vweird.f32 %v4966
        %vm5312 = vweird.f32 %v5306
        %vm5313 = vmor %vm5311, %vm5312
        %v5314 = vsel %vm5313, %v5306, %v5310
        %v5315 = vand.u32 2147483647, %v4966
        %vm5316 = vcmp.eq.f32.partialorder %v5315, 8.507059e+37
        %v5317 = vand.u32 %v4966, 2147483648
        %v5318 = vor.u32 1.1754944e-38, %v5317
        %v5319 = vsel %vm5316, %v5318, %v5314
        %v5320 = vmul.f32 1.0, %v5319
        %v5321 = vrcp.pop %v4967
        %v5322 = vmul.f32 %v4967, %v5321
        %v5323 = vsub.f32 1.0, %v5322
        %v5324 = vmul.f32 %v5321, %v5323
        %v5325 = vadd.f32 %v5321, %v5324
        %vm5326 = vweird.f32 %v4967
        %vm5327 = vweird.f32 %v5321
        %vm5328 = vmor %vm5326, %vm5327
        %v5329 = vsel %vm5328, %v5321, %v5325
        %v5330 = vand.u32 2147483647, %v4967
        %vm5331 = vcmp.eq.f32.partialorder %v5330, 8.507059e+37
        %v5332 = vand.u32 %v4967, 2147483648
        %v5333 = vor.u32 1.1754944e-38, %v5332
        %v5334 = vsel %vm5331, %v5333, %v5329
        %v5335 = vmul.f32 1.0, %v5334
        %v5336 = vrcp.pop %v4968
        %v5337 = vmul.f32 %v4968, %v5336
        %v5338 = vsub.f32 1.0, %v5337
        %v5339 = vmul.f32 %v5336, %v5338
        %v5340 = vadd.f32 %v5336, %v5339
        %vm5341 = vweird.f32 %v4968
        %vm5342 = vweird.f32 %v5336
        %vm5343 = vmor %vm5341, %vm5342
        %v5344 = vsel %vm5343, %v5336, %v5340
        %v5345 = vand.u32 2147483647, %v4968
        %vm5346 = vcmp.eq.f32.partialorder %v5345, 8.507059e+37
        %v5347 = vand.u32 %v4968, 2147483648
        %v5348 = vor.u32 1.1754944e-38, %v5347
        %v5349 = vsel %vm5346, %v5348, %v5344
        %v5350 = vmul.f32 1.0, %v5349
        %v5351 = vrcp.pop %v4969
        %v5352 = vmul.f32 %v4969, %v5351
        %v5353 = vsub.f32 1.0, %v5352
        %v5354 = vmul.f32 %v5351, %v5353
        %v5355 = vadd.f32 %v5351, %v5354
        %vm5356 = vweird.f32 %v4969
        %vm5357 = vweird.f32 %v5351
        %vm5358 = vmor %vm5356, %vm5357
        %v5359 = vsel %vm5358, %v5351, %v5355
        %v5360 = vand.u32 2147483647, %v4969
        %vm5361 = vcmp.eq.f32.partialorder %v5360, 8.507059e+37
        %v5362 = vand.u32 %v4969, 2147483648
        %v5363 = vor.u32 1.1754944e-38, %v5362
        %v5364 = vsel %vm5361, %v5363, %v5359
        %v5365 = vmul.f32 1.0, %v5364
        %v5366 = vrcp.pop %v4970
        %v5367 = vmul.f32 %v4970, %v5366
        %v5368 = vsub.f32 1.0, %v5367
        %v5369 = vmul.f32 %v5366, %v5368
        %v5370 = vadd.f32 %v5366, %v5369
        %vm5371 = vweird.f32 %v4970
        %vm5372 = vweird.f32 %v5366
        %vm5373 = vmor %vm5371, %vm5372
        %v5374 = vsel %vm5373, %v5366, %v5370
        %v5375 = vand.u32 2147483647, %v4970
        %vm5376 = vcmp.eq.f32.partialorder %v5375, 8.507059e+37
        %v5377 = vand.u32 %v4970, 2147483648
        %v5378 = vor.u32 1.1754944e-38, %v5377
        %v5379 = vsel %vm5376, %v5378, %v5374
        %v5380 = vmul.f32 1.0, %v5379
        %v5381 = vrcp.pop %v4971
        %v5382 = vmul.f32 %v4971, %v5381
        %v5383 = vsub.f32 1.0, %v5382
        %v5384 = vmul.f32 %v5381, %v5383
        %v5385 = vadd.f32 %v5381, %v5384
        %vm5386 = vweird.f32 %v4971
        %vm5387 = vweird.f32 %v5381
        %vm5388 = vmor %vm5386, %vm5387
        %v5389 = vsel %vm5388, %v5381, %v5385
        %v5390 = vand.u32 2147483647, %v4971
        %vm5391 = vcmp.eq.f32.partialorder %v5390, 8.507059e+37
        %v5392 = vand.u32 %v4971, 2147483648
        %v5393 = vor.u32 1.1754944e-38, %v5392
        %v5394 = vsel %vm5391, %v5393, %v5389
        %v5395 = vmul.f32 1.0, %v5394
        %v5396 = vrcp.pop %v4972
        %v5397 = vmul.f32 %v4972, %v5396
        %v5398 = vsub.f32 1.0, %v5397
        %v5399 = vmul.f32 %v5396, %v5398
        %v5400 = vadd.f32 %v5396, %v5399
        %vm5401 = vweird.f32 %v4972
        %vm5402 = vweird.f32 %v5396
        %vm5403 = vmor %vm5401, %vm5402
        %v5404 = vsel %vm5403, %v5396, %v5400
        %v5405 = vand.u32 2147483647, %v4972
        %vm5406 = vcmp.eq.f32.partialorder %v5405, 8.507059e+37
        %v5407 = vand.u32 %v4972, 2147483648
        %v5408 = vor.u32 1.1754944e-38, %v5407
        %v5409 = vsel %vm5406, %v5408, %v5404
        %v5410 = vmul.f32 1.0, %v5409
        %v5411 = vrcp.pop %v4973
        %v5412 = vmul.f32 %v4973, %v5411
        %v5413 = vsub.f32 1.0, %v5412
        %v5414 = vmul.f32 %v5411, %v5413
        %v5415 = vadd.f32 %v5411, %v5414
        %vm5416 = vweird.f32 %v4973
        %vm5417 = vweird.f32 %v5411
        %vm5418 = vmor %vm5416, %vm5417
        %v5419 = vsel %vm5418, %v5411, %v5415
        %v5420 = vand.u32 2147483647, %v4973
        %vm5421 = vcmp.eq.f32.partialorder %v5420, 8.507059e+37
        %v5422 = vand.u32 %v4973, 2147483648
        %v5423 = vor.u32 1.1754944e-38, %v5422
        %v5424 = vsel %vm5421, %v5423, %v5419
        %v5425 = vmul.f32 1.0, %v5424
        %v5426 = vrcp.pop %v4974
        %v5427 = vmul.f32 %v4974, %v5426
        %v5428 = vsub.f32 1.0, %v5427
        %v5429 = vmul.f32 %v5426, %v5428
        %v5430 = vadd.f32 %v5426, %v5429
        %vm5431 = vweird.f32 %v4974
        %vm5432 = vweird.f32 %v5426
        %vm5433 = vmor %vm5431, %vm5432
        %v5434 = vsel %vm5433, %v5426, %v5430
        %v5435 = vand.u32 2147483647, %v4974
        %vm5436 = vcmp.eq.f32.partialorder %v5435, 8.507059e+37
        %v5437 = vand.u32 %v4974, 2147483648
        %v5438 = vor.u32 1.1754944e-38, %v5437
        %v5439 = vsel %vm5436, %v5438, %v5434
        %v5440 = vmul.f32 1.0, %v5439
        %v5441 = vrcp.pop %v4975
        %v5442 = vmul.f32 %v4975, %v5441
        %v5443 = vsub.f32 1.0, %v5442
        %v5444 = vmul.f32 %v5441, %v5443
        %v5445 = vadd.f32 %v5441, %v5444
        %vm5446 = vweird.f32 %v4975
        %vm5447 = vweird.f32 %v5441
        %vm5448 = vmor %vm5446, %vm5447
        %v5449 = vsel %vm5448, %v5441, %v5445
        %v5450 = vand.u32 2147483647, %v4975
        %vm5451 = vcmp.eq.f32.partialorder %v5450, 8.507059e+37
        %v5452 = vand.u32 %v4975, 2147483648
        %v5453 = vor.u32 1.1754944e-38, %v5452
        %v5454 = vsel %vm5451, %v5453, %v5449
        %v5455 = vmul.f32 1.0, %v5454
        %v5456 = vmul.f32 %v4662, %v4990
        %v5457 = vmul.f32 %v4711, %v5005
        %v5458 = vmul.f32 %v4664, %v5020
        %v5459 = vmul.f32 %v4713, %v5035
        %v5460 = vmul.f32 %v4667, %v5050
        %v5461 = vmul.f32 %v4716, %v5065
        %v5462 = vmul.f32 %v4669, %v5080
        %v5463 = vmul.f32 %v4718, %v5095
        %v5464 = vmul.f32 %v4672, %v5110
        %v5465 = vmul.f32 %v4721, %v5125
        %v5466 = vmul.f32 %v4674, %v5140
        %v5467 = vmul.f32 %v4723, %v5155
        %v5468 = vmul.f32 %v4677, %v5170
        %v5469 = vmul.f32 %v4726, %v5185
        %v5470 = vmul.f32 %v4679, %v5200
        %v5471 = vmul.f32 %v4728, %v5215
        %v5472 = vmul.f32 %v4682, %v5230
        %v5473 = vmul.f32 %v4731, %v5245
        %v5474 = vmul.f32 %v4684, %v5260
        %v5475 = vmul.f32 %v4733, %v5275
        %v5476 = vmul.f32 %v4687, %v5290
        %v5477 = vmul.f32 %v4736, %v5305
        %v5478 = vmul.f32 %v4689, %v5320
        %v5479 = vmul.f32 %v4738, %v5335
        %v5480 = vmul.f32 %v4692, %v5350
        %v5481 = vmul.f32 %v4741, %v5365
        %v5482 = vmul.f32 %v4694, %v5380
        %v5483 = vmul.f32 %v4743, %v5395
        %v5484 = vmul.f32 %v4697, %v5410
        %v5485 = vmul.f32 %v4746, %v5425
        %v5486 = vmul.f32 %v4699, %v5440
        %v5487 = vmul.f32 %v4748, %v5455
        %v5488 = vmul.f32 %v4760, %v5456
        %v5489 = vmul.f32 %v4809, %v5457
        %v5490 = vmul.f32 %v4762, %v5458
        %v5491 = vmul.f32 %v4811, %v5459
        %v5492 = vmul.f32 %v4765, %v5460
        %v5493 = vmul.f32 %v4814, %v5461
        %v5494 = vmul.f32 %v4767, %v5462
        %v5495 = vmul.f32 %v4816, %v5463
        %v5496 = vmul.f32 %v4770, %v5464
        %v5497 = vmul.f32 %v4819, %v5465
        %v5498 = vmul.f32 %v4772, %v5466
        %v5499 = vmul.f32 %v4821, %v5467
        %v5500 = vmul.f32 %v4775, %v5468
        %v5501 = vmul.f32 %v4824, %v5469
        %v5502 = vmul.f32 %v4777, %v5470
        %v5503 = vmul.f32 %v4826, %v5471
        %v5504 = vmul.f32 %v4780, %v5472
        %v5505 = vmul.f32 %v4829, %v5473
        %v5506 = vmul.f32 %v4782, %v5474
        %v5507 = vmul.f32 %v4831, %v5475
        %v5508 = vmul.f32 %v4785, %v5476
        %v5509 = vmul.f32 %v4834, %v5477
        %v5510 = vmul.f32 %v4787, %v5478
        %v5511 = vmul.f32 %v4836, %v5479
        %v5512 = vmul.f32 %v4790, %v5480
        %v5513 = vmul.f32 %v4839, %v5481
        %v5514 = vmul.f32 %v4792, %v5482
        %v5515 = vmul.f32 %v4841, %v5483
        %v5516 = vmul.f32 %v4795, %v5484
        %v5517 = vmul.f32 %v4844, %v5485
        %v5518 = vmul.f32 %v4797, %v5486
        %v5519 = vmul.f32 %v4846, %v5487
        %v5520 = vpack.c.bf16 %v5489, %v5488
        %v5521 = vpack.c.bf16 %v5491, %v5490
        %v5522 = vpack.c.bf16 %v5493, %v5492
        %v5523 = vpack.c.bf16 %v5495, %v5494
        %v5524 = vpack.c.bf16 %v5497, %v5496
        %v5525 = vpack.c.bf16 %v5499, %v5498
        %v5526 = vpack.c.bf16 %v5501, %v5500
        %v5527 = vpack.c.bf16 %v5503, %v5502
        %v5528 = vpack.c.bf16 %v5505, %v5504
        %v5529 = vpack.c.bf16 %v5507, %v5506
        %v5530 = vpack.c.bf16 %v5509, %v5508
        %v5531 = vpack.c.bf16 %v5511, %v5510
        %v5532 = vpack.c.bf16 %v5513, %v5512
        %v5533 = vpack.c.bf16 %v5515, %v5514
        %v5534 = vpack.c.bf16 %v5517, %v5516
        %v5535 = vpack.c.bf16 %v5519, %v5518
        %v5536 = vld [vmem:[%s575] sm:$0xf]
        %v5537 = vld [vmem:[%s575 + $0x4] sm:$0xf]
        %v5538 = vld [vmem:[%s575 + $0x8] sm:$0xf]
        %v5539 = vld [vmem:[%s575 + $0xc] sm:$0xf]
        %v5540 = vld [vmem:[%s575 + $0x10] sm:$0xf]
        %v5541 = vld [vmem:[%s575 + $0x14] sm:$0xf]
        %v5542 = vld [vmem:[%s575 + $0x18] sm:$0xf]
        %v5543 = vld [vmem:[%s575 + $0x1c] sm:$0xf]
        %v5544 = vld [vmem:[%s575 + $0x20] sm:$0xf]
        %v5545 = vld [vmem:[%s575 + $0x24] sm:$0xf]
        %v5546 = vld [vmem:[%s575 + $0x28] sm:$0xf]
        %v5547 = vld [vmem:[%s575 + $0x2c] sm:$0xf]
        %v5548 = vld [vmem:[%s575 + $0x30] sm:$0xf]
        %v5549 = vld [vmem:[%s575 + $0x34] sm:$0xf]
        %v5550 = vld [vmem:[%s575 + $0x38] sm:$0xf]
        %v5551 = vld [vmem:[%s575 + $0x3c] sm:$0xf]
        %v5552 = vld [vmem:[%s575 + $0x40] sm:$0xf]
        %v5553 = vld [vmem:[%s575 + $0x44] sm:$0xf]
        %v5554 = vld [vmem:[%s575 + $0x48] sm:$0xf]
        %v5555 = vld [vmem:[%s575 + $0x4c] sm:$0xf]
        %v5556 = vld [vmem:[%s575 + $0x50] sm:$0xf]
        %v5557 = vld [vmem:[%s575 + $0x54] sm:$0xf]
        %v5558 = vld [vmem:[%s575 + $0x58] sm:$0xf]
        %v5559 = vld [vmem:[%s575 + $0x5c] sm:$0xf]
        %v5560 = vld [vmem:[%s575 + $0x60] sm:$0xf]
        %v5561 = vld [vmem:[%s575 + $0x64] sm:$0xf]
        %v5562 = vld [vmem:[%s575 + $0x68] sm:$0xf]
        %v5563 = vld [vmem:[%s575 + $0x6c] sm:$0xf]
        %v5564 = vld [vmem:[%s575 + $0x70] sm:$0xf]
        %v5565 = vld [vmem:[%s575 + $0x74] sm:$0xf]
        %v5566 = vld [vmem:[%s575 + $0x78] sm:$0xf]
        %v5567 = vld [vmem:[%s575 + $0x7c] sm:$0xf]
        %v5584 = vunpack.c.l.b16 %v5520
        %v5585 = vunpack.c.h.b16 %v5520
        %v5586 = vunpack.c.l.b16 %v5521
        %v5587 = vunpack.c.h.b16 %v5521
        %v5588 = vunpack.c.l.b16 %v5522
        %v5589 = vunpack.c.h.b16 %v5522
        %v5590 = vunpack.c.l.b16 %v5523
        %v5591 = vunpack.c.h.b16 %v5523
        %v5592 = vunpack.c.l.b16 %v5524
        %v5593 = vunpack.c.h.b16 %v5524
        %v5594 = vunpack.c.l.b16 %v5525
        %v5595 = vunpack.c.h.b16 %v5525
        %v5596 = vunpack.c.l.b16 %v5526
        %v5597 = vunpack.c.h.b16 %v5526
        %v5598 = vunpack.c.l.b16 %v5527
        %v5599 = vunpack.c.h.b16 %v5527
        %v5600 = vunpack.c.l.b16 %v5528
        %v5601 = vunpack.c.h.b16 %v5528
        %v5602 = vunpack.c.l.b16 %v5529
        %v5603 = vunpack.c.h.b16 %v5529
        %v5604 = vunpack.c.l.b16 %v5530
        %v5605 = vunpack.c.h.b16 %v5530
        %v5606 = vunpack.c.l.b16 %v5531
        %v5607 = vunpack.c.h.b16 %v5531
        %v5608 = vunpack.c.l.b16 %v5532
        %v5609 = vunpack.c.h.b16 %v5532
        %v5610 = vunpack.c.l.b16 %v5533
        %v5611 = vunpack.c.h.b16 %v5533
        %v5612 = vunpack.c.l.b16 %v5534
        %v5613 = vunpack.c.h.b16 %v5534
        %v5614 = vunpack.c.l.b16 %v5535
        %v5615 = vunpack.c.h.b16 %v5535
        %v5616 = vpack.c.b16 %v5586, %v5584
        %v5617 = vpack.c.b16 %v5587, %v5585
        %v5618 = vpack.c.b16 %v5590, %v5588
        %v5619 = vpack.c.b16 %v5591, %v5589
        %v5620 = vpack.c.b16 %v5594, %v5592
        %v5621 = vpack.c.b16 %v5595, %v5593
        %v5622 = vpack.c.b16 %v5598, %v5596
        %v5623 = vpack.c.b16 %v5599, %v5597
        %v5624 = vpack.c.b16 %v5602, %v5600
        %v5625 = vpack.c.b16 %v5603, %v5601
        %v5626 = vpack.c.b16 %v5606, %v5604
        %v5627 = vpack.c.b16 %v5607, %v5605
        %v5628 = vpack.c.b16 %v5610, %v5608
        %v5629 = vpack.c.b16 %v5611, %v5609
        %v5630 = vpack.c.b16 %v5614, %v5612
        %v5631 = vpack.c.b16 %v5615, %v5613
        %v5680 = vunpack.c.l.b16 %v5536
        %v5681 = vunpack.c.l.b16 %v5537
        %v5682 = vunpack.c.l.b16 %v5538
        %v5683 = vunpack.c.l.b16 %v5539
        %v5684 = vunpack.c.l.b16 %v5540
        %v5685 = vunpack.c.l.b16 %v5541
        %v5686 = vunpack.c.l.b16 %v5542
        %v5687 = vunpack.c.l.b16 %v5543
        %v5688 = vunpack.c.l.b16 %v5544
        %v5689 = vunpack.c.l.b16 %v5545
        %v5690 = vunpack.c.l.b16 %v5546
        %v5691 = vunpack.c.l.b16 %v5547
        %v5692 = vunpack.c.l.b16 %v5548
        %v5693 = vunpack.c.l.b16 %v5549
        %v5694 = vunpack.c.l.b16 %v5550
        %v5695 = vunpack.c.l.b16 %v5551
        %v5696 = vunpack.c.l.b16 %v5552
        %v5697 = vunpack.c.l.b16 %v5553
        %v5698 = vunpack.c.l.b16 %v5554
        %v5699 = vunpack.c.l.b16 %v5555
        %v5700 = vunpack.c.l.b16 %v5556
        %v5701 = vunpack.c.l.b16 %v5557
        %v5702 = vunpack.c.l.b16 %v5558
        %v5703 = vunpack.c.l.b16 %v5559
        %v5704 = vunpack.c.l.b16 %v5560
        %v5705 = vunpack.c.l.b16 %v5561
        %v5706 = vunpack.c.l.b16 %v5562
        %v5707 = vunpack.c.l.b16 %v5563
        %v5708 = vunpack.c.l.b16 %v5564
        %v5709 = vunpack.c.l.b16 %v5565
        %v5710 = vunpack.c.l.b16 %v5566
        %v5711 = vunpack.c.l.b16 %v5567
        %v5712 = vpack.c.b16 %v5681, %v5680
        %v5713 = vpack.c.b16 %v5683, %v5682
        %v5714 = vpack.c.b16 %v5685, %v5684
        %v5715 = vpack.c.b16 %v5687, %v5686
        %v5716 = vpack.c.b16 %v5689, %v5688
        %v5717 = vpack.c.b16 %v5691, %v5690
        %v5718 = vpack.c.b16 %v5693, %v5692
        %v5719 = vpack.c.b16 %v5695, %v5694
        %v5720 = vpack.c.b16 %v5697, %v5696
        %v5721 = vpack.c.b16 %v5699, %v5698
        %v5722 = vpack.c.b16 %v5701, %v5700
        %v5723 = vpack.c.b16 %v5703, %v5702
        %v5724 = vpack.c.b16 %v5705, %v5704
        %v5725 = vpack.c.b16 %v5707, %v5706
        %v5726 = vpack.c.b16 %v5709, %v5708
        %v5727 = vpack.c.b16 %v5711, %v5710
        %5744 = vmatpush.bf16.msra.mxu0 %v5719
        %5745 = vmatpush.bf16.msra.mxu0 %v5718
        %5746 = vmatpush.bf16.msra.mxu0 %v5717
        %5747 = vmatpush.bf16.msra.mxu0 %v5716
        %5748 = vmatpush.bf16.msra.mxu0 %v5715
        %5749 = vmatpush.bf16.msra.mxu0 %v5714
        %5750 = vmatpush.bf16.msra.mxu0 %v5713
        %5751 = vmatpush.bf16.msra.mxu0 %v5712
        %5752 = vmatmul.bf16.gmra.mxu0 %v5616
        %v5753 = vpop.f32.mrf.mxu0
        %v5754 = vadd.f32 0.0, %v5753
        %v5755 = vpop.f32.mrf.mxu0
        %v5756 = vadd.f32 0.0, %v5755
        %5757 = vmatmul.bf16.gmra.mxu0 %v5618
        %v5758 = vpop.f32.mrf.mxu0
        %v5759 = vadd.f32 0.0, %v5758
        %v5760 = vpop.f32.mrf.mxu0
        %v5761 = vadd.f32 0.0, %v5760
        %5762 = vmatmul.bf16.gmra.mxu0 %v5620
        %v5763 = vpop.f32.mrf.mxu0
        %v5764 = vadd.f32 0.0, %v5763
        %v5765 = vpop.f32.mrf.mxu0
        %v5766 = vadd.f32 0.0, %v5765
        %5767 = vmatmul.bf16.gmra.mxu0 %v5622
        %v5768 = vpop.f32.mrf.mxu0
        %v5769 = vadd.f32 0.0, %v5768
        %v5770 = vpop.f32.mrf.mxu0
        %v5771 = vadd.f32 0.0, %v5770
        %5772 = vmatmul.bf16.gmra.mxu0 %v5624
        %v5773 = vpop.f32.mrf.mxu0
        %v5774 = vadd.f32 0.0, %v5773
        %v5775 = vpop.f32.mrf.mxu0
        %v5776 = vadd.f32 0.0, %v5775
        %5777 = vmatmul.bf16.gmra.mxu0 %v5626
        %v5778 = vpop.f32.mrf.mxu0
        %v5779 = vadd.f32 0.0, %v5778
        %v5780 = vpop.f32.mrf.mxu0
        %v5781 = vadd.f32 0.0, %v5780
        %5782 = vmatmul.bf16.gmra.mxu0 %v5628
        %v5783 = vpop.f32.mrf.mxu0
        %v5784 = vadd.f32 0.0, %v5783
        %v5785 = vpop.f32.mrf.mxu0
        %v5786 = vadd.f32 0.0, %v5785
        %5787 = vmatmul.bf16.gmra.mxu0 %v5630
        %v5788 = vpop.f32.mrf.mxu0
        %v5789 = vadd.f32 0.0, %v5788
        %v5790 = vpop.f32.mrf.mxu0
        %v5791 = vadd.f32 0.0, %v5790
        %5792 = vdwg.mxu0
        %5793 = vmatpush.bf16.msra.mxu0 %v5727
        %5794 = vmatpush.bf16.msra.mxu0 %v5726
        %5795 = vmatpush.bf16.msra.mxu0 %v5725
        %5796 = vmatpush.bf16.msra.mxu0 %v5724
        %5797 = vmatpush.bf16.msra.mxu0 %v5723
        %5798 = vmatpush.bf16.msra.mxu0 %v5722
        %5799 = vmatpush.bf16.msra.mxu0 %v5721
        %5800 = vmatpush.bf16.msra.mxu0 %v5720
        %5801 = vmatmul.bf16.gmra.mxu0 %v5617
        %v5802 = vpop.f32.mrf.mxu0
        %v5803 = vadd.f32 %v5754, %v5802
        %v5804 = vpop.f32.mrf.mxu0
        %v5805 = vadd.f32 %v5756, %v5804
        %5806 = vmatmul.bf16.gmra.mxu0 %v5619
        %v5807 = vpop.f32.mrf.mxu0
        %v5808 = vadd.f32 %v5759, %v5807
        %v5809 = vpop.f32.mrf.mxu0
        %v5810 = vadd.f32 %v5761, %v5809
        %5811 = vmatmul.bf16.gmra.mxu0 %v5621
        %v5812 = vpop.f32.mrf.mxu0
        %v5813 = vadd.f32 %v5764, %v5812
        %v5814 = vpop.f32.mrf.mxu0
        %v5815 = vadd.f32 %v5766, %v5814
        %5816 = vmatmul.bf16.gmra.mxu0 %v5623
        %v5817 = vpop.f32.mrf.mxu0
        %v5818 = vadd.f32 %v5769, %v5817
        %v5819 = vpop.f32.mrf.mxu0
        %v5820 = vadd.f32 %v5771, %v5819
        %5821 = vmatmul.bf16.gmra.mxu0 %v5625
        %v5822 = vpop.f32.mrf.mxu0
        %v5823 = vadd.f32 %v5774, %v5822
        %v5824 = vpop.f32.mrf.mxu0
        %v5825 = vadd.f32 %v5776, %v5824
        %5826 = vmatmul.bf16.gmra.mxu0 %v5627
        %v5827 = vpop.f32.mrf.mxu0
        %v5828 = vadd.f32 %v5779, %v5827
        %v5829 = vpop.f32.mrf.mxu0
        %v5830 = vadd.f32 %v5781, %v5829
        %5831 = vmatmul.bf16.gmra.mxu0 %v5629
        %v5832 = vpop.f32.mrf.mxu0
        %v5833 = vadd.f32 %v5784, %v5832
        %v5834 = vpop.f32.mrf.mxu0
        %v5835 = vadd.f32 %v5786, %v5834
        %5836 = vmatmul.bf16.gmra.mxu0 %v5631
        %v5837 = vpop.f32.mrf.mxu0
        %v5838 = vadd.f32 %v5789, %v5837
        %v5839 = vpop.f32.mrf.mxu0
        %v5840 = vadd.f32 %v5791, %v5839
        %5841 = vdwg.mxu0
        %v5842 = vadd.f32 %v4104, %v5803
        %v5843 = vadd.f32 %v4105, %v5805
        %v5844 = vadd.f32 %v4106, %v5808
        %v5845 = vadd.f32 %v4107, %v5810
        %v5846 = vadd.f32 %v4108, %v5813
        %v5847 = vadd.f32 %v4109, %v5815
        %v5848 = vadd.f32 %v4110, %v5818
        %v5849 = vadd.f32 %v4111, %v5820
        %v5850 = vadd.f32 %v4112, %v5823
        %v5851 = vadd.f32 %v4113, %v5825
        %v5852 = vadd.f32 %v4114, %v5828
        %v5853 = vadd.f32 %v4115, %v5830
        %v5854 = vadd.f32 %v4116, %v5833
        %v5855 = vadd.f32 %v4117, %v5835
        %v5856 = vadd.f32 %v4118, %v5838
        %v5857 = vadd.f32 %v4119, %v5840
        %5858 = vst [vmem:[#allocation2] sm:$0xff] %v5842
        %5859 = vst [vmem:[#allocation2 + $0x8] sm:$0xff] %v5843
        %5860 = vst [vmem:[#allocation2 + $0x10] sm:$0xff] %v5844
        %5861 = vst [vmem:[#allocation2 + $0x18] sm:$0xff] %v5845
        %5862 = vst [vmem:[#allocation2 + $0x20] sm:$0xff] %v5846
        %5863 = vst [vmem:[#allocation2 + $0x28] sm:$0xff] %v5847
        %5864 = vst [vmem:[#allocation2 + $0x30] sm:$0xff] %v5848
        %5865 = vst [vmem:[#allocation2 + $0x38] sm:$0xff] %v5849
        %5866 = vst [vmem:[#allocation2 + $0x40] sm:$0xff] %v5850
        %5867 = vst [vmem:[#allocation2 + $0x48] sm:$0xff] %v5851
        %5868 = vst [vmem:[#allocation2 + $0x50] sm:$0xff] %v5852
        %5869 = vst [vmem:[#allocation2 + $0x58] sm:$0xff] %v5853
        %5870 = vst [vmem:[#allocation2 + $0x60] sm:$0xff] %v5854
        %5871 = vst [vmem:[#allocation2 + $0x68] sm:$0xff] %v5855
        %5872 = vst [vmem:[#allocation2 + $0x70] sm:$0xff] %v5856
        %5873 = vst [vmem:[#allocation2 + $0x78] sm:$0xff] %v5857
        %p5874 = scmp.eq.s32.totalorder %s37, 39
        // Predicated region
        $region101: #{phi3_blockwise_forward.2} parent=59 // pred_check
          %p5875 = pneg %p5874
        $region102: #{phi3_blockwise_forward.2} parent=59 // pred_check_branch
          %5877 = sbr.rel (%p5875) target = $region104
        $region103: #{phi3_blockwise_forward.2} parent=59 // pred_region
          %5878 = vst [vmem:[%s650] sm:$0xff] %v5842
          %5879 = vst [vmem:[%s650 + $0x8] sm:$0xff] %v5843
          %5880 = vst [vmem:[%s650 + $0x10] sm:$0xff] %v5844
          %5881 = vst [vmem:[%s650 + $0x18] sm:$0xff] %v5845
          %5882 = vst [vmem:[%s650 + $0x20] sm:$0xff] %v5846
          %5883 = vst [vmem:[%s650 + $0x28] sm:$0xff] %v5847
          %5884 = vst [vmem:[%s650 + $0x30] sm:$0xff] %v5848
          %5885 = vst [vmem:[%s650 + $0x38] sm:$0xff] %v5849
          %5886 = vst [vmem:[%s650 + $0x40] sm:$0xff] %v5850
          %5887 = vst [vmem:[%s650 + $0x48] sm:$0xff] %v5851
          %5888 = vst [vmem:[%s650 + $0x50] sm:$0xff] %v5852
          %5889 = vst [vmem:[%s650 + $0x58] sm:$0xff] %v5853
          %5890 = vst [vmem:[%s650 + $0x60] sm:$0xff] %v5854
          %5891 = vst [vmem:[%s650 + $0x68] sm:$0xff] %v5855
          %5892 = vst [vmem:[%s650 + $0x70] sm:$0xff] %v5856
          %5893 = vst [vmem:[%s650 + $0x78] sm:$0xff] %v5857
        $region104: #{phi3_blockwise_forward.2} parent=59 // pred_fallthru
          _
        %p5894 = scmp.lt.s32.totalorder %s36, 1
        %s5895 = scalar_select %p5894, %s36, 1
        %s5896 = smul.addr %s5895, 16
        %s5897 = smul.addr %s5896, 8
        %s5898 = scalar_lea.vmem %s10, %s5897
        // Predicated region
        $region105: #{phi3_blockwise_forward.2} parent=59 // pred_check
          %p5899 = pneg %p307
        $region106: #{phi3_blockwise_forward.2} parent=59 // pred_check_branch
          %5901 = sbr.rel (%p5899) target = $region108
        $region107: #{phi3_blockwise_forward.2} parent=59 // pred_region
          _
        $region108: #{phi3_blockwise_forward.2} parent=59 // pred_fallthru
          _
      $region60: #{phi3_blockwise_forward.2} parent=5 // pred_fallthru
        _
      %p5902 = scmp.le.s32.totalorder 2, %s27
      // Predicated region
      $region109: #{phi3_blockwise_forward.2} parent=5 // pred_check
        %p5903 = pneg %p5902
      $region110: #{phi3_blockwise_forward.2} parent=5 // pred_check_branch
        %5905 = sbr.rel (%p5903) target = $region112
      $region111: #{phi3_blockwise_forward.2} parent=5 // pred_region
        %s5906 = ssub.s32 %s27, 2
        // Predicated region
        $region113: #{phi3_blockwise_forward.2} parent=111 // pred_check
          %p5907 = pneg %p313
        $region114: #{phi3_blockwise_forward.2} parent=111 // pred_check_branch
          %5909 = sbr.rel (%p5907) target = $region116
        $region115: #{phi3_blockwise_forward.2} parent=111 // pred_region
          %p5910 = scmp.lt.s32.totalorder %s38, 1
          %s5911 = scalar_select %p5910, %s38, 1
          %s5912 = smul.addr %s5911, 16
          %s5913 = smul.addr %s5912, 8
          %s5914 = scalar_lea.vmem %s10, %s5913
        $region116: #{phi3_blockwise_forward.2} parent=111 // pred_fallthru
          _
      $region112: #{phi3_blockwise_forward.2} parent=5 // pred_fallthru
        _
    $region6: #{phi3_blockwise_forward.2} parent=1 // loop_footer
      %s31 = sadd.s32 1, %s27
    $region7: #{phi3_blockwise_forward.2} parent=1 // loop_footer_branch
      %26 = sbr.rel target = $region3
    $region8: #{phi3_blockwise_forward.2} parent=1 // loop_exit
      _
    %5915 = vsyncpa [#allocation4], 1
    %s5916 = scalar_lea.sflag [#allocation4], 1
    %5917 = vsyncpa %s5916, 1
    %5918 = vsyncpa [#allocation6], 1
    %5919 = vsyncpa [#allocation9], 1
    %s5920 = scalar_lea.sflag [#allocation9], 1
    %5921 = vsyncpa %s5920, 1
    %5922 = vsyncpa [#allocation12], 1
    %s5923 = scalar_lea.sflag [#allocation12], 1
    %5924 = vsyncpa %s5923, 1
    %5925 = vsyncpa [#allocation15], 1
    %s5926 = scalar_lea.sflag [#allocation15], 1
    %5927 = vsyncpa %s5926, 1

</llo_original>
